<compile_context>
chip_gen: v7x
topology: tpu7x:2x2x1
jax: 0.10.0
libtpu: 0.0.40
codegen_flags: <defaults>
</compile_context>

<pallas_src>
import jax
import jax.numpy as jnp
from jax.experimental import pallas as pl
from jax.experimental.pallas import tpu as pltpu


N_FC1_SPLIT = 2  # fc1 output halves -> leading "parallel" grid axis (v7x: 2 TCs)


# ------------------------------------------------------------------ kernels --

def _conv_pool_kernel(x_ref, w00_ref, w01_ref, w10_ref, w11_ref, b_ref, o_ref):
    """Fused 3x3 conv + bias + ReLU + 2x2/2 max-pool for one tile of pooled pixels.

    x_ref rows are 4x4xCin superpatches (one per pooled output pixel); each
    w*_ref embeds the 3x3 kernel for one pool-window position inside the 4x4
    receptive field (rows outside the window are zero), so the 2x2 pool is just
    an elementwise max of the four GEMM results."""
    x = x_ref[...]
    y00 = jnp.dot(x, w00_ref[...], preferred_element_type=jnp.float32)
    y01 = jnp.dot(x, w01_ref[...], preferred_element_type=jnp.float32)
    y10 = jnp.dot(x, w10_ref[...], preferred_element_type=jnp.float32)
    y11 = jnp.dot(x, w11_ref[...], preferred_element_type=jnp.float32)
    m = jnp.maximum(jnp.maximum(y00, y01), jnp.maximum(y10, y11))
    o_ref[...] = jnp.maximum(m + b_ref[...], 0.0)


def _conv_relu_kernel(x_ref, w_ref, b_ref, o_ref):
    """o = relu(x @ w + b): conv3 (no pool) as an im2col GEMM tile."""
    o_ref[...] = jnp.maximum(
        jnp.dot(x_ref[...], w_ref[...], preferred_element_type=jnp.float32)
        + b_ref[...], 0.0)


def _fc1_kernel(x_ref, w_ref, b_ref, o_ref, acc_ref):
    """One half of fc1 (+bias+ReLU).  Grid = (half j: parallel, K-tile k:
    arbitrary); the bf16 weight half is streamed and accumulated in f32 VMEM."""
    k = pl.program_id(1)

    @pl.when(k == 0)
    def _init():
        acc_ref[...] = jnp.zeros_like(acc_ref)

    acc_ref[...] += jnp.dot(x_ref[...].astype(jnp.bfloat16), w_ref[...],
                            preferred_element_type=jnp.float32)

    @pl.when(k == pl.num_programs(1) - 1)
    def _finalize():
        # TODO(synk): nn.Dropout(0.25) after fc1 is identity at inference;
        # training-mode random masking is not implemented here.
        o_ref[...] = jnp.maximum(acc_ref[...] + b_ref[...], 0.0)


def _fc_tail_kernel(h1_ref, w2_ref, b2_ref, w3_ref, b3_ref, o_ref):
    """fc2 + ReLU + fc3.  h1 / w2 arrive pre-split into the fc1 halves."""
    n_split = h1_ref.shape[0]
    z = b2_ref[...]
    for j in range(n_split):
        z = z + jnp.dot(h1_ref[j], w2_ref[j], preferred_element_type=jnp.float32)
    h2 = jnp.maximum(z, 0.0)
    o_ref[...] = (jnp.dot(h2, w3_ref[...], preferred_element_type=jnp.float32)
                  + b3_ref[...])


# ----------------------------------------------------------------- wrappers --

def _choose_row_tile(n_rows, *, min_steps=8, max_tile=1024):
    """(tile_m, n_steps): tile is a multiple of 8, >=min_steps grid steps (>=2
    TensorCores on v7x + pipelining), minimal row padding."""
    steps = max(min_steps, (n_rows + max_tile - 1) // max_tile)
    tile = (((n_rows + steps - 1) // steps) + 7) // 8 * 8
    return tile, steps


def _pad_rows(x, m_pad):
    n = x.shape[0]
    return x if n == m_pad else jnp.pad(x, ((0, m_pad - n), (0, 0)))


def conv_pool_relu(x_nhwc, w_mats, bias):
    """maxpool2x2(relu(conv3x3_valid(x))) fused in one Pallas kernel."""
    B, H, W, _ = x_nhwc.shape
    Cout = bias.shape[-1]
    Hp, Wp = (H - 2) // 2, (W - 2) // 2
    K = w_mats[0].shape[0]                              # 16 * Cin
    # 4x4xCin superpatch per pooled pixel: pure strided-slice data movement
    # (XLA fuses the 16 slices + concat); every MAC runs on the MXU below.
    cols = [x_nhwc[:, ry:ry + 2 * Hp:2, rx:rx + 2 * Wp:2, :]
            for ry in range(4) for rx in range(4)]
    sp = jnp.concatenate(cols, axis=-1).reshape(B * Hp * Wp, K)
    n_rows = sp.shape[0]
    tile_m, n_steps = _choose_row_tile(n_rows)
    m_pad = tile_m * n_steps
    sp = _pad_rows(sp, m_pad)

    w_spec = pl.BlockSpec((K, Cout), lambda i: (0, 0))
    out = pl.pallas_call(
        _conv_pool_kernel,
        out_shape=jax.ShapeDtypeStruct((m_pad, Cout), jnp.float32),
        grid_spec=pltpu.PrefetchScalarGridSpec(
            num_scalar_prefetch=0,
            grid=(n_steps,),
            in_specs=[pl.BlockSpec((tile_m, K), lambda i: (i, 0)),
                      w_spec, w_spec, w_spec, w_spec,
                      pl.BlockSpec((1, Cout), lambda i: (0, 0))],
            out_specs=pl.BlockSpec((tile_m, Cout), lambda i: (i, 0))),
        compiler_params=pltpu.CompilerParams(
            dimension_semantics=("parallel",)),
    )(sp, *w_mats, bias)
    # Padded rows hold relu(bias); they are dropped here and never reused.
    return out[:n_rows].reshape(B, Hp, Wp, Cout)


def conv_relu(x_nhwc, w2d, bias):
    """relu(conv3x3_valid(x)) (no pool) as an im2col GEMM Pallas kernel."""
    B, H, W, Cin = x_nhwc.shape
    Cout = bias.shape[-1]
    Ho, Wo = H - 2, W - 2
    cols = [x_nhwc[:, dy:dy + Ho, dx:dx + Wo, :]
            for dy in range(3) for dx in range(3)]
    patches = jnp.concatenate(cols, axis=-1).reshape(B * Ho * Wo, 9 * Cin)
    n_rows = patches.shape[0]
    tile_m, n_steps = _choose_row_tile(n_rows)
    m_pad = tile_m * n_steps
    patches = _pad_rows(patches, m_pad)
    K = patches.shape[1]

    out = pl.pallas_call(
        _conv_relu_kernel,
        out_shape=jax.ShapeDtypeStruct((m_pad, Cout), jnp.float32),
        grid_spec=pltpu.PrefetchScalarGridSpec(
            num_scalar_prefetch=0,
            grid=(n_steps,),
            in_specs=[pl.BlockSpec((tile_m, K), lambda i: (i, 0)),
                      pl.BlockSpec((K, Cout), lambda i: (0, 0)),
                      pl.BlockSpec((1, Cout), lambda i: (0, 0))],
            out_specs=pl.BlockSpec((tile_m, Cout), lambda i: (i, 0))),
        compiler_params=pltpu.CompilerParams(
            dimension_semantics=("parallel",)),
    )(patches, w2d, bias)
    return out[:n_rows].reshape(B, Ho, Wo, Cout)


def _choose_k_tile(k_dim, *, cap=6144):
    """Largest multiple-of-128 divisor of k_dim that is <= cap.  The cap keeps
    the double-buffered bf16 w1 block ~3 MB: safe under v5e's 16 MiB default
    scoped VMEM (do not raise it without also raising vmem_limit_bytes)."""
    best = 128
    for t in range(128, cap + 1, 128):
        if k_dim % t == 0:
            best = t
    return best


def fc_head(x_flat, w1s, b1s, w2s, b2, w3, b3):
    """fc1 (bf16 weight stream, output halves on a parallel grid axis) -> ReLU
    -> fc2 -> ReLU -> fc3."""
    B = x_flat.shape[0]
    n_split, k_dim, h1h = w1s.shape
    if x_flat.shape[1] != k_dim:                        # ragged K: pad activations
        x_flat = jnp.pad(x_flat, ((0, 0), (0, k_dim - x_flat.shape[1])))
    tile_k = _choose_k_tile(k_dim)
    h2_dim, n_out = w2s.shape[2], w3.shape[1]

    h1s = pl.pallas_call(
        _fc1_kernel,
        out_shape=jax.ShapeDtypeStruct((n_split, B, h1h), jnp.float32),
        grid_spec=pltpu.PrefetchScalarGridSpec(
            num_scalar_prefetch=0,
            grid=(n_split, k_dim // tile_k),
            in_specs=[pl.BlockSpec((B, tile_k), lambda j, k: (0, k)),
                      pl.BlockSpec((None, tile_k, h1h), lambda j, k: (j, k, 0)),
                      pl.BlockSpec((None, 1, h1h), lambda j, k: (j, 0, 0))],
            out_specs=pl.BlockSpec((None, B, h1h), lambda j, k: (j, 0, 0)),
            scratch_shapes=[pltpu.VMEM((B, h1h), jnp.float32)]),
        compiler_params=pltpu.CompilerParams(
            dimension_semantics=("parallel", "arbitrary")),
    )(x_flat, w1s, b1s)

    return pl.pallas_call(
        _fc_tail_kernel,
        out_shape=jax.ShapeDtypeStruct((B, n_out), jnp.float32),
        grid_spec=pltpu.PrefetchScalarGridSpec(
            num_scalar_prefetch=0,
            grid=(1,),
            in_specs=[pl.BlockSpec((n_split, B, h1h), lambda i: (0, 0, 0)),
                      pl.BlockSpec((n_split, h1h, h2_dim), lambda i: (0, 0, 0)),
                      pl.BlockSpec((1, h2_dim), lambda i: (0, 0)),
                      pl.BlockSpec((h2_dim, n_out), lambda i: (0, 0)),
                      pl.BlockSpec((1, n_out), lambda i: (0, 0))],
            out_specs=pl.BlockSpec((B, n_out), lambda i: (0, 0))),
    )(h1s, w2s, b2, w3, b3)


def convnet_forward(x_nchw, kparams):
    (c1_mats, c1_b), (c2_mats, c2_b), (c3_w, c3_b), \
        (w1s, b1s), (w2s, b2), (w3, b3) = kparams
    h = jnp.transpose(x_nchw, (0, 2, 3, 1))             # NCHW -> NHWC once
    h = conv_pool_relu(h, c1_mats, c1_b)
    h = conv_pool_relu(h, c2_mats, c2_b)
    h = conv_relu(h, c3_w, c3_b)
    # NHWC flatten; fc1's weight rows were permuted at prep time to match, so
    # no per-forward transpose of the activation is needed.
    h = h.reshape(h.shape[0], -1)
    return fc_head(h, w1s, b1s, w2s, b2, w3, b3)


# ----------------------------------------------------- one-time weight prep --

def _pool_conv_weights(w_oihw):
    """4 GEMM matrices (16*Cin, Cout), one per 2x2 pool-window position, with
    the 3x3 kernel embedded at its offset inside the shared 4x4 receptive
    field (other rows zero)."""
    w_hwio = jnp.transpose(w_oihw, (2, 3, 1, 0))         # (3,3,Cin,Cout)
    cin, cout = w_hwio.shape[2], w_hwio.shape[3]
    mats = []
    for py in range(2):
        for px in range(2):
            wp = jnp.pad(w_hwio, ((py, 1 - py), (px, 1 - px), (0, 0), (0, 0)))
            mats.append(wp.reshape(16 * cin, cout))
    return tuple(mats)


def prepare_params(params, conv3_hw=(28, 28)):
    """One-time, forward-independent weight massaging (free per forward)."""
    (cw1, cb1), (cw2, cb2), (cw3, cb3), \
        (fw1, fb1), (fw2, fb2), (fw3, fb3) = params

    c1 = (_pool_conv_weights(cw1), cb1.reshape(1, -1))
    c2 = (_pool_conv_weights(cw2), cb2.reshape(1, -1))
    c3_w = jnp.transpose(cw3, (2, 3, 1, 0)).reshape(9 * cw3.shape[1],
                                                    cw3.shape[0])
    c3 = (c3_w, cb3.reshape(1, -1))

    # fc1: permute rows from PyTorch's NCHW flatten (c,h,w) order to NHWC
    # (h,w,c) order, split the output dim in halves, cast to bf16 for streaming.
    hh, ww = conv3_hw
    cout3, k_dim, h1 = cw3.shape[0], fw1.shape[0], fw1.shape[1]
    w1 = fw1.reshape(cout3, hh, ww, h1).transpose(1, 2, 0, 3).reshape(k_dim, h1)
    if k_dim % 128:                                      # ragged K: zero-row pad
        w1 = jnp.pad(w1, ((0, 128 - k_dim % 128), (0, 0)))
    assert h1 % N_FC1_SPLIT == 0, h1
    h1h = h1 // N_FC1_SPLIT
    w1s = jnp.stack([w1[:, j * h1h:(j + 1) * h1h]
                     for j in range(N_FC1_SPLIT)]).astype(jnp.bfloat16)
    b1s = jnp.stack([fb1[j * h1h:(j + 1) * h1h].reshape(1, h1h)
                     for j in range(N_FC1_SPLIT)])
    w2s = jnp.stack([fw2[j * h1h:(j + 1) * h1h] for j in range(N_FC1_SPLIT)])
    return [c1, c2, c3, (w1s, b1s), (w2s, fb2.reshape(1, -1)),
            (fw3, fb3.reshape(1, -1))]


# ------------------------------------------------------- init + reference ----

def init_params(key):
    """Mimics nn.Conv2d / nn.Linear default init (uniform +-1/sqrt(fan_in)).
    Conv weights are OIHW (PyTorch layout); Linear weights are (in, out)."""
    def conv_init(k, cout, cin, ksz):
        kw_, kb_ = jax.random.split(k)
        bound = 1.0 / float(cin * ksz * ksz) ** 0.5
        w = jax.random.uniform(kw_, (cout, cin, ksz, ksz), jnp.float32,
                               -bound, bound)
        b = jax.random.uniform(kb_, (cout,), jnp.float32, -bound, bound)
        return w, b

    def fc_init(k, fin, fout):
        kw_, kb_ = jax.random.split(k)
        bound = 1.0 / float(fin) ** 0.5
        w = jax.random.uniform(kw_, (fin, fout), jnp.float32, -bound, bound)
        b = jax.random.uniform(kb_, (fout,), jnp.float32, -bound, bound)
        return w, b

    keys = jax.random.split(key, 6)
    return [conv_init(keys[0], 12, 3, 3),
            conv_init(keys[1], 24, 12, 3),
            conv_init(keys[2], 48, 24, 3),
            fc_init(keys[3], 48 * 28 * 28, 200),
            fc_init(keys[4], 200, 100),
            fc_init(keys[5], 100, 1)]


def reference_forward(x_nchw, params):
    (cw1, cb1), (cw2, cb2), (cw3, cb3), \
        (fw1, fb1), (fw2, fb2), (fw3, fb3) = params
    hi = jax.lax.Precision.HIGHEST

    def conv(x, w, b):
        y = jax.lax.conv_general_dilated(
            x, w, window_strides=(1, 1), padding="VALID",
            dimension_numbers=("NCHW", "OIHW", "NCHW"), precision=hi)
        return jnp.maximum(y + b[None, :, None, None], 0.0)

    def pool(x):
        return jax.lax.reduce_window(x, -jnp.inf, jax.lax.max,
                                     (1, 1, 2, 2), (1, 1, 2, 2), "VALID")

    h = pool(conv(x_nchw, cw1, cb1))
    h = pool(conv(h, cw2, cb2))
    h = conv(h, cw3, cb3)
    h = h.reshape(h.shape[0], -1)
    h = jnp.maximum(jnp.dot(h, fw1, precision=hi) + fb1, 0.0)
    h = jnp.maximum(jnp.dot(h, fw2, precision=hi) + fb2, 0.0)
    return jnp.dot(h, fw3, precision=hi) + fb3


if __name__ == "__main__":
    key = jax.random.PRNGKey(0)
    kx, kp = jax.random.split(key)

    # Smallest input consistent with the module: fc1 expects 48*28*28 features,
    # which forces a 126x126 spatial input through the conv/pool stack.
    B = 2
    x = jax.random.normal(kx, (B, 3, 126, 126), jnp.float32)
    params = init_params(kp)
    kparams = prepare_params(params)

    out = jax.jit(convnet_forward)(x, kparams)
    out = jax.block_until_ready(out)
    assert out.shape == (B, 1), out.shape

    # Primary check (tight): kernels vs a reference using the same
    # bf16-quantized fc1 weight -> validates the Pallas implementation.
    fw1, fb1 = params[3]
    params_q = list(params)
    params_q[3] = (fw1.astype(jnp.bfloat16).astype(jnp.float32), fb1)
    ref_q = reference_forward(x, params_q)
    assert jnp.allclose(out, ref_q, atol=2e-3, rtol=2e-3), \
        "mismatch vs bf16-w1 reference"

    # Secondary check: still close to the full-f32 module despite streaming
    # fc1's weight in bf16.
    ref = reference_forward(x, params)
    assert jnp.allclose(out, ref, atol=1e-2, rtol=1e-2), \
        "mismatch vs f32 reference"

    print("KERNEL_OK")
</pallas_src>

<mosaic_0001>
module attributes {stable_mosaic.version = 11 : i64} {
  func.func @_conv_pool_kernel(%arg0: i32, %arg1: memref<968x48xf32, #tpu.memory_space<vmem>>, %arg2: memref<48x12xf32, #tpu.memory_space<vmem>>, %arg3: memref<48x12xf32, #tpu.memory_space<vmem>>, %arg4: memref<48x12xf32, #tpu.memory_space<vmem>>, %arg5: memref<48x12xf32, #tpu.memory_space<vmem>>, %arg6: memref<1x12xf32, #tpu.memory_space<vmem>>, %arg7: memref<968x12xf32, #tpu.memory_space<vmem>>) attributes {dimension_semantics = [#tpu.dimension_semantics<parallel>], iteration_bounds = array<i64: 8>, scalar_prefetch = 0 : i64, scratch_operands = 0 : i64, tpu.core_type = #tpu.core_type<tc>, window_params = [{transform_indices = @transform_0, window_bounds = array<i64: 968, 48>}, {pipeline_mode = #tpu.pipeline_mode<synchronous>, transform_indices = @transform_1, window_bounds = array<i64: 48, 12>}, {pipeline_mode = #tpu.pipeline_mode<synchronous>, transform_indices = @transform_2, window_bounds = array<i64: 48, 12>}, {pipeline_mode = #tpu.pipeline_mode<synchronous>, transform_indices = @transform_3, window_bounds = array<i64: 48, 12>}, {pipeline_mode = #tpu.pipeline_mode<synchronous>, transform_indices = @transform_4, window_bounds = array<i64: 48, 12>}, {pipeline_mode = #tpu.pipeline_mode<synchronous>, transform_indices = @transform_5, window_bounds = array<i64: 1, 12>}, {transform_indices = @transform_6, window_bounds = array<i64: 968, 12>}]} {
    %c0 = arith.constant 0 : index
    %c0_0 = arith.constant 0 : index
    %0 = vector.load %arg1[%c0, %c0_0] : memref<968x48xf32, #tpu.memory_space<vmem>>, vector<968x48xf32>
    %c0_1 = arith.constant 0 : index
    %c0_2 = arith.constant 0 : index
    %1 = vector.load %arg2[%c0_1, %c0_2] : memref<48x12xf32, #tpu.memory_space<vmem>>, vector<48x12xf32>
    %cst = arith.constant dense<0.000000e+00> : vector<968x12xf32>
    %2 = tpu.matmul %0, %1, %cst {dimension_numbers = #tpu.dot_dimension_numbers<[1], [0], [0], [1], [0, 0, 1, 1], [], []>} : vector<968x48xf32>, vector<48x12xf32>, vector<968x12xf32> -> vector<968x12xf32>
    %c0_3 = arith.constant 0 : index
    %c0_4 = arith.constant 0 : index
    %3 = vector.load %arg3[%c0_3, %c0_4] : memref<48x12xf32, #tpu.memory_space<vmem>>, vector<48x12xf32>
    %cst_5 = arith.constant dense<0.000000e+00> : vector<968x12xf32>
    %4 = tpu.matmul %0, %3, %cst_5 {dimension_numbers = #tpu.dot_dimension_numbers<[1], [0], [0], [1], [0, 0, 1, 1], [], []>} : vector<968x48xf32>, vector<48x12xf32>, vector<968x12xf32> -> vector<968x12xf32>
    %c0_6 = arith.constant 0 : index
    %c0_7 = arith.constant 0 : index
    %5 = vector.load %arg4[%c0_6, %c0_7] : memref<48x12xf32, #tpu.memory_space<vmem>>, vector<48x12xf32>
    %cst_8 = arith.constant dense<0.000000e+00> : vector<968x12xf32>
    %6 = tpu.matmul %0, %5, %cst_8 {dimension_numbers = #tpu.dot_dimension_numbers<[1], [0], [0], [1], [0, 0, 1, 1], [], []>} : vector<968x48xf32>, vector<48x12xf32>, vector<968x12xf32> -> vector<968x12xf32>
    %c0_9 = arith.constant 0 : index
    %c0_10 = arith.constant 0 : index
    %7 = vector.load %arg5[%c0_9, %c0_10] : memref<48x12xf32, #tpu.memory_space<vmem>>, vector<48x12xf32>
    %cst_11 = arith.constant dense<0.000000e+00> : vector<968x12xf32>
    %8 = tpu.matmul %0, %7, %cst_11 {dimension_numbers = #tpu.dot_dimension_numbers<[1], [0], [0], [1], [0, 0, 1, 1], [], []>} : vector<968x48xf32>, vector<48x12xf32>, vector<968x12xf32> -> vector<968x12xf32>
    %9 = arith.maximumf %2, %4 : vector<968x12xf32>
    %10 = arith.maximumf %6, %8 : vector<968x12xf32>
    %11 = arith.maximumf %9, %10 : vector<968x12xf32>
    %c0_12 = arith.constant 0 : index
    %c0_13 = arith.constant 0 : index
    %12 = vector.load %arg6[%c0_12, %c0_13] : memref<1x12xf32, #tpu.memory_space<vmem>>, vector<1x12xf32>
    %13 = vector.broadcast %12 : vector<1x12xf32> to vector<968x12xf32>
    %14 = arith.addf %11, %13 : vector<968x12xf32>
    %cst_14 = arith.constant 0.000000e+00 : f32
    %15 = vector.broadcast %cst_14 : f32 to vector<968x12xf32>
    %16 = arith.maximumf %14, %15 : vector<968x12xf32>
    %c0_15 = arith.constant 0 : index
    %c0_16 = arith.constant 0 : index
    %17 = vector.load %arg7[%c0_15, %c0_16] : memref<968x12xf32, #tpu.memory_space<vmem>>, vector<968x12xf32>
    tpu.vector_store %arg7[%c0_15, %c0_16], %16 {strides = array<i32>} : memref<968x12xf32, #tpu.memory_space<vmem>>, vector<968x12xf32>,
    return
  }
  func.func @transform_0(%arg0: i32) -> (i32, i32) {
    %c0_i32 = arith.constant 0 : i32
    %c0_i32_0 = arith.constant 0 : i32
    return %arg0, %c0_i32 : i32, i32
  }
  func.func @transform_1(%arg0: i32) -> (i32, i32) {
    %c0_i32 = arith.constant 0 : i32
    %c0_i32_0 = arith.constant 0 : i32
    %c0_i32_1 = arith.constant 0 : i32
    return %c0_i32, %c0_i32_0 : i32, i32
  }
  func.func @transform_2(%arg0: i32) -> (i32, i32) {
    %c0_i32 = arith.constant 0 : i32
    %c0_i32_0 = arith.constant 0 : i32
    %c0_i32_1 = arith.constant 0 : i32
    return %c0_i32, %c0_i32_0 : i32, i32
  }
  func.func @transform_3(%arg0: i32) -> (i32, i32) {
    %c0_i32 = arith.constant 0 : i32
    %c0_i32_0 = arith.constant 0 : i32
    %c0_i32_1 = arith.constant 0 : i32
    return %c0_i32, %c0_i32_0 : i32, i32
  }
  func.func @transform_4(%arg0: i32) -> (i32, i32) {
    %c0_i32 = arith.constant 0 : i32
    %c0_i32_0 = arith.constant 0 : i32
    %c0_i32_1 = arith.constant 0 : i32
    return %c0_i32, %c0_i32_0 : i32, i32
  }
  func.func @transform_5(%arg0: i32) -> (i32, i32) {
    %c0_i32 = arith.constant 0 : i32
    %c0_i32_0 = arith.constant 0 : i32
    %c0_i32_1 = arith.constant 0 : i32
    return %c0_i32, %c0_i32_0 : i32, i32
  }
  func.func @transform_6(%arg0: i32) -> (i32, i32) {
    %c0_i32 = arith.constant 0 : i32
    %c0_i32_0 = arith.constant 0 : i32
    return %arg0, %c0_i32 : i32, i32
  }
}

module attributes {stable_mosaic.version = 11 : i64} {
  func.func @_conv_pool_kernel(%arg0: i32, %arg1: memref<232x192xf32, #tpu.memory_space<vmem>>, %arg2: memref<192x24xf32, #tpu.memory_space<vmem>>, %arg3: memref<192x24xf32, #tpu.memory_space<vmem>>, %arg4: memref<192x24xf32, #tpu.memory_space<vmem>>, %arg5: memref<192x24xf32, #tpu.memory_space<vmem>>, %arg6: memref<1x24xf32, #tpu.memory_space<vmem>>, %arg7: memref<232x24xf32, #tpu.memory_space<vmem>>) attributes {dimension_semantics = [#tpu.dimension_semantics<parallel>], iteration_bounds = array<i64: 8>, scalar_prefetch = 0 : i64, scratch_operands = 0 : i64, tpu.core_type = #tpu.core_type<tc>, window_params = [{transform_indices = @transform_0, window_bounds = array<i64: 232, 192>}, {pipeline_mode = #tpu.pipeline_mode<synchronous>, transform_indices = @transform_1, window_bounds = array<i64: 192, 24>}, {pipeline_mode = #tpu.pipeline_mode<synchronous>, transform_indices = @transform_2, window_bounds = array<i64: 192, 24>}, {pipeline_mode = #tpu.pipeline_mode<synchronous>, transform_indices = @transform_3, window_bounds = array<i64: 192, 24>}, {pipeline_mode = #tpu.pipeline_mode<synchronous>, transform_indices = @transform_4, window_bounds = array<i64: 192, 24>}, {pipeline_mode = #tpu.pipeline_mode<synchronous>, transform_indices = @transform_5, window_bounds = array<i64: 1, 24>}, {transform_indices = @transform_6, window_bounds = array<i64: 232, 24>}]} {
    %c0 = arith.constant 0 : index
    %c0_0 = arith.constant 0 : index
    %0 = vector.load %arg1[%c0, %c0_0] : memref<232x192xf32, #tpu.memory_space<vmem>>, vector<232x192xf32>
    %c0_1 = arith.constant 0 : index
    %c0_2 = arith.constant 0 : index
    %1 = vector.load %arg2[%c0_1, %c0_2] : memref<192x24xf32, #tpu.memory_space<vmem>>, vector<192x24xf32>
    %cst = arith.constant dense<0.000000e+00> : vector<232x24xf32>
    %2 = tpu.matmul %0, %1, %cst {dimension_numbers = #tpu.dot_dimension_numbers<[1], [0], [0], [1], [0, 0, 1, 1], [], []>} : vector<232x192xf32>, vector<192x24xf32>, vector<232x24xf32> -> vector<232x24xf32>
    %c0_3 = arith.constant 0 : index
    %c0_4 = arith.constant 0 : index
    %3 = vector.load %arg3[%c0_3, %c0_4] : memref<192x24xf32, #tpu.memory_space<vmem>>, vector<192x24xf32>
    %cst_5 = arith.constant dense<0.000000e+00> : vector<232x24xf32>
    %4 = tpu.matmul %0, %3, %cst_5 {dimension_numbers = #tpu.dot_dimension_numbers<[1], [0], [0], [1], [0, 0, 1, 1], [], []>} : vector<232x192xf32>, vector<192x24xf32>, vector<232x24xf32> -> vector<232x24xf32>
    %c0_6 = arith.constant 0 : index
    %c0_7 = arith.constant 0 : index
    %5 = vector.load %arg4[%c0_6, %c0_7] : memref<192x24xf32, #tpu.memory_space<vmem>>, vector<192x24xf32>
    %cst_8 = arith.constant dense<0.000000e+00> : vector<232x24xf32>
    %6 = tpu.matmul %0, %5, %cst_8 {dimension_numbers = #tpu.dot_dimension_numbers<[1], [0], [0], [1], [0, 0, 1, 1], [], []>} : vector<232x192xf32>, vector<192x24xf32>, vector<232x24xf32> -> vector<232x24xf32>
    %c0_9 = arith.constant 0 : index
    %c0_10 = arith.constant 0 : index
    %7 = vector.load %arg5[%c0_9, %c0_10] : memref<192x24xf32, #tpu.memory_space<vmem>>, vector<192x24xf32>
    %cst_11 = arith.constant dense<0.000000e+00> : vector<232x24xf32>
    %8 = tpu.matmul %0, %7, %cst_11 {dimension_numbers = #tpu.dot_dimension_numbers<[1], [0], [0], [1], [0, 0, 1, 1], [], []>} : vector<232x192xf32>, vector<192x24xf32>, vector<232x24xf32> -> vector<232x24xf32>
    %9 = arith.maximumf %2, %4 : vector<232x24xf32>
    %10 = arith.maximumf %6, %8 : vector<232x24xf32>
    %11 = arith.maximumf %9, %10 : vector<232x24xf32>
    %c0_12 = arith.constant 0 : index
    %c0_13 = arith.constant 0 : index
    %12 = vector.load %arg6[%c0_12, %c0_13] : memref<1x24xf32, #tpu.memory_space<vmem>>, vector<1x24xf32>
    %13 = vector.broadcast %12 : vector<1x24xf32> to vector<232x24xf32>
    %14 = arith.addf %11, %13 : vector<232x24xf32>
    %cst_14 = arith.constant 0.000000e+00 : f32
    %15 = vector.broadcast %cst_14 : f32 to vector<232x24xf32>
    %16 = arith.maximumf %14, %15 : vector<232x24xf32>
    %c0_15 = arith.constant 0 : index
    %c0_16 = arith.constant 0 : index
    %17 = vector.load %arg7[%c0_15, %c0_16] : memref<232x24xf32, #tpu.memory_space<vmem>>, vector<232x24xf32>
    tpu.vector_store %arg7[%c0_15, %c0_16], %16 {strides = array<i32>} : memref<232x24xf32, #tpu.memory_space<vmem>>, vector<232x24xf32>,
    return
  }
  func.func @transform_0(%arg0: i32) -> (i32, i32) {
    %c0_i32 = arith.constant 0 : i32
    %c0_i32_0 = arith.constant 0 : i32
    return %arg0, %c0_i32 : i32, i32
  }
  func.func @transform_1(%arg0: i32) -> (i32, i32) {
    %c0_i32 = arith.constant 0 : i32
    %c0_i32_0 = arith.constant 0 : i32
    %c0_i32_1 = arith.constant 0 : i32
    return %c0_i32, %c0_i32_0 : i32, i32
  }
  func.func @transform_2(%arg0: i32) -> (i32, i32) {
    %c0_i32 = arith.constant 0 : i32
    %c0_i32_0 = arith.constant 0 : i32
    %c0_i32_1 = arith.constant 0 : i32
    return %c0_i32, %c0_i32_0 : i32, i32
  }
  func.func @transform_3(%arg0: i32) -> (i32, i32) {
    %c0_i32 = arith.constant 0 : i32
    %c0_i32_0 = arith.constant 0 : i32
    %c0_i32_1 = arith.constant 0 : i32
    return %c0_i32, %c0_i32_0 : i32, i32
  }
  func.func @transform_4(%arg0: i32) -> (i32, i32) {
    %c0_i32 = arith.constant 0 : i32
    %c0_i32_0 = arith.constant 0 : i32
    %c0_i32_1 = arith.constant 0 : i32
    return %c0_i32, %c0_i32_0 : i32, i32
  }
  func.func @transform_5(%arg0: i32) -> (i32, i32) {
    %c0_i32 = arith.constant 0 : i32
    %c0_i32_0 = arith.constant 0 : i32
    %c0_i32_1 = arith.constant 0 : i32
    return %c0_i32, %c0_i32_0 : i32, i32
  }
  func.func @transform_6(%arg0: i32) -> (i32, i32) {
    %c0_i32 = arith.constant 0 : i32
    %c0_i32_0 = arith.constant 0 : i32
    return %arg0, %c0_i32 : i32, i32
  }
}

module attributes {stable_mosaic.version = 11 : i64} {
  func.func @_conv_relu_kernel(%arg0: i32, %arg1: memref<200x216xf32, #tpu.memory_space<vmem>>, %arg2: memref<216x48xf32, #tpu.memory_space<vmem>>, %arg3: memref<1x48xf32, #tpu.memory_space<vmem>>, %arg4: memref<200x48xf32, #tpu.memory_space<vmem>>) attributes {dimension_semantics = [#tpu.dimension_semantics<parallel>], iteration_bounds = array<i64: 8>, scalar_prefetch = 0 : i64, scratch_operands = 0 : i64, tpu.core_type = #tpu.core_type<tc>, window_params = [{transform_indices = @transform_0, window_bounds = array<i64: 200, 216>}, {pipeline_mode = #tpu.pipeline_mode<synchronous>, transform_indices = @transform_1, window_bounds = array<i64: 216, 48>}, {pipeline_mode = #tpu.pipeline_mode<synchronous>, transform_indices = @transform_2, window_bounds = array<i64: 1, 48>}, {transform_indices = @transform_3, window_bounds = array<i64: 200, 48>}]} {
    %c0 = arith.constant 0 : index
    %c0_0 = arith.constant 0 : index
    %0 = vector.load %arg1[%c0, %c0_0] : memref<200x216xf32, #tpu.memory_space<vmem>>, vector<200x216xf32>
    %c0_1 = arith.constant 0 : index
    %c0_2 = arith.constant 0 : index
    %1 = vector.load %arg2[%c0_1, %c0_2] : memref<216x48xf32, #tpu.memory_space<vmem>>, vector<216x48xf32>
    %cst = arith.constant dense<0.000000e+00> : vector<200x48xf32>
    %2 = tpu.matmul %0, %1, %cst {dimension_numbers = #tpu.dot_dimension_numbers<[1], [0], [0], [1], [0, 0, 1, 1], [], []>} : vector<200x216xf32>, vector<216x48xf32>, vector<200x48xf32> -> vector<200x48xf32>
    %c0_3 = arith.constant 0 : index
    %c0_4 = arith.constant 0 : index
    %3 = vector.load %arg3[%c0_3, %c0_4] : memref<1x48xf32, #tpu.memory_space<vmem>>, vector<1x48xf32>
    %4 = vector.broadcast %3 : vector<1x48xf32> to vector<200x48xf32>
    %5 = arith.addf %2, %4 : vector<200x48xf32>
    %cst_5 = arith.constant 0.000000e+00 : f32
    %6 = vector.broadcast %cst_5 : f32 to vector<200x48xf32>
    %7 = arith.maximumf %5, %6 : vector<200x48xf32>
    %c0_6 = arith.constant 0 : index
    %c0_7 = arith.constant 0 : index
    %8 = vector.load %arg4[%c0_6, %c0_7] : memref<200x48xf32, #tpu.memory_space<vmem>>, vector<200x48xf32>
    tpu.vector_store %arg4[%c0_6, %c0_7], %7 {strides = array<i32>} : memref<200x48xf32, #tpu.memory_space<vmem>>, vector<200x48xf32>,
    return
  }
  func.func @transform_0(%arg0: i32) -> (i32, i32) {
    %c0_i32 = arith.constant 0 : i32
    %c0_i32_0 = arith.constant 0 : i32
    return %arg0, %c0_i32 : i32, i32
  }
  func.func @transform_1(%arg0: i32) -> (i32, i32) {
    %c0_i32 = arith.constant 0 : i32
    %c0_i32_0 = arith.constant 0 : i32
    %c0_i32_1 = arith.constant 0 : i32
    return %c0_i32, %c0_i32_0 : i32, i32
  }
  func.func @transform_2(%arg0: i32) -> (i32, i32) {
    %c0_i32 = arith.constant 0 : i32
    %c0_i32_0 = arith.constant 0 : i32
    %c0_i32_1 = arith.constant 0 : i32
    return %c0_i32, %c0_i32_0 : i32, i32
  }
  func.func @transform_3(%arg0: i32) -> (i32, i32) {
    %c0_i32 = arith.constant 0 : i32
    %c0_i32_0 = arith.constant 0 : i32
    return %arg0, %c0_i32 : i32, i32
  }
}

module attributes {stable_mosaic.version = 11 : i64} {
  func.func @_fc1_kernel(%arg0: i32, %arg1: i32, %arg2: memref<2x5376xf32, #tpu.memory_space<vmem>>, %arg3: memref<1x5376x100xbf16, #tpu.memory_space<vmem>>, %arg4: memref<1x1x100xf32, #tpu.memory_space<vmem>>, %arg5: memref<1x2x100xf32, #tpu.memory_space<vmem>>, %arg6: memref<2x100xf32, #tpu.memory_space<vmem>>) attributes {dimension_semantics = [#tpu.dimension_semantics<parallel>, #tpu.dimension_semantics<arbitrary>], iteration_bounds = array<i64: 2, 7>, scalar_prefetch = 0 : i64, scratch_operands = 1 : i64, tpu.core_type = #tpu.core_type<tc>, window_params = [{transform_indices = @transform_0, window_bounds = array<i64: 2, 5376>}, {transform_indices = @transform_1, window_bounds = array<i64: 1, 5376, 100>}, {transform_indices = @transform_2, window_bounds = array<i64: 1, 1, 100>}, {transform_indices = @transform_3, window_bounds = array<i64: 1, 2, 100>}]} {
    %c0_i32 = arith.constant 0 : i32
    %0 = arith.cmpi eq, %arg1, %c0_i32 : i32
    %1 = arith.extui %0 : i1 to i32
    %c0_i32_0 = arith.constant 0 : i32
    %2 = arith.cmpi ne, %1, %c0_i32_0 : i32
    scf.if %2 {
      %cst_10 = arith.constant 0.000000e+00 : f32
      %14 = vector.broadcast %cst_10 : f32 to vector<2x100xf32>
      %c0_11 = arith.constant 0 : index
      %c0_12 = arith.constant 0 : index
      %15 = vector.load %arg6[%c0_11, %c0_12] : memref<2x100xf32, #tpu.memory_space<vmem>>, vector<2x100xf32>
      tpu.vector_store %arg6[%c0_11, %c0_12], %14 {strides = array<i32>} : memref<2x100xf32, #tpu.memory_space<vmem>>, vector<2x100xf32>,
    } else {
    }
    %c0 = arith.constant 0 : index
    %c0_1 = arith.constant 0 : index
    %3 = vector.load %arg6[%c0, %c0_1] : memref<2x100xf32, #tpu.memory_space<vmem>>, vector<2x100xf32>
    %c0_2 = arith.constant 0 : index
    %c0_3 = arith.constant 0 : index
    %4 = vector.load %arg2[%c0_2, %c0_3] : memref<2x5376xf32, #tpu.memory_space<vmem>>, vector<2x5376xf32>
    %5 = arith.truncf %4 : vector<2x5376xf32> to vector<2x5376xbf16>
    %c0_4 = arith.constant 0 : index
    %c0_5 = arith.constant 0 : index
    %c0_6 = arith.constant 0 : index
    %6 = vector.load %arg3[%c0_4, %c0_5, %c0_6] : memref<1x5376x100xbf16, #tpu.memory_space<vmem>>, vector<1x5376x100xbf16>
    %7 = vector.shape_cast %6 : vector<1x5376x100xbf16> to vector<5376x100xbf16>
    %cst = arith.constant dense<0.000000e+00> : vector<2x100xf32>
    %8 = tpu.matmul %5, %7, %cst {dimension_numbers = #tpu.dot_dimension_numbers<[1], [0], [0], [1], [0, 0, 1, 1], [], []>} : vector<2x5376xbf16>, vector<5376x100xbf16>, vector<2x100xf32> -> vector<2x100xf32>
    %9 = arith.addf %3, %8 : vector<2x100xf32>
    %c0_7 = arith.constant 0 : index
    %c0_8 = arith.constant 0 : index
    %10 = vector.load %arg6[%c0_7, %c0_8] : memref<2x100xf32, #tpu.memory_space<vmem>>, vector<2x100xf32>
    tpu.vector_store %arg6[%c0_7, %c0_8], %9 {strides = array<i32>} : memref<2x100xf32, #tpu.memory_space<vmem>>, vector<2x100xf32>,
    %c6_i32 = arith.constant 6 : i32
    %11 = arith.cmpi eq, %arg1, %c6_i32 : i32
    %12 = arith.extui %11 : i1 to i32
    %c0_i32_9 = arith.constant 0 : i32
    %13 = arith.cmpi ne, %12, %c0_i32_9 : i32
    scf.if %13 {
      %c0_10 = arith.constant 0 : index
      %c0_11 = arith.constant 0 : index
      %14 = vector.load %arg6[%c0_10, %c0_11] : memref<2x100xf32, #tpu.memory_space<vmem>>, vector<2x100xf32>
      %c0_12 = arith.constant 0 : index
      %c0_13 = arith.constant 0 : index
      %c0_14 = arith.constant 0 : index
      %15 = vector.load %arg4[%c0_12, %c0_13, %c0_14] : memref<1x1x100xf32, #tpu.memory_space<vmem>>, vector<1x1x100xf32>
      %16 = vector.shape_cast %15 : vector<1x1x100xf32> to vector<1x100xf32>
      %17 = vector.broadcast %16 : vector<1x100xf32> to vector<2x100xf32>
      %18 = arith.addf %14, %17 : vector<2x100xf32>
      %cst_15 = arith.constant 0.000000e+00 : f32
      %19 = vector.broadcast %cst_15 : f32 to vector<2x100xf32>
      %20 = arith.maximumf %18, %19 : vector<2x100xf32>
      %c0_16 = arith.constant 0 : index
      %c0_17 = arith.constant 0 : index
      %c0_18 = arith.constant 0 : index
      %21 = vector.load %arg5[%c0_16, %c0_17, %c0_18] : memref<1x2x100xf32, #tpu.memory_space<vmem>>, vector<1x2x100xf32>
      %22 = vector.shape_cast %21 : vector<1x2x100xf32> to vector<2x100xf32>
      %23 = vector.shape_cast %20 : vector<2x100xf32> to vector<1x2x100xf32>
      tpu.vector_store %arg5[%c0_16, %c0_17, %c0_18], %23 {strides = array<i32>} : memref<1x2x100xf32, #tpu.memory_space<vmem>>, vector<1x2x100xf32>,
    } else {
    }
    return
  }
  func.func @transform_0(%arg0: i32, %arg1: i32) -> (i32, i32) {
    %c0_i32 = arith.constant 0 : i32
    %c0_i32_0 = arith.constant 0 : i32
    return %c0_i32, %arg1 : i32, i32
  }
  func.func @transform_1(%arg0: i32, %arg1: i32) -> (i32, i32, i32) {
    %c0_i32 = arith.constant 0 : i32
    %c0_i32_0 = arith.constant 0 : i32
    return %arg0, %arg1, %c0_i32 : i32, i32, i32
  }
  func.func @transform_2(%arg0: i32, %arg1: i32) -> (i32, i32, i32) {
    %c0_i32 = arith.constant 0 : i32
    %c0_i32_0 = arith.constant 0 : i32
    %c0_i32_1 = arith.constant 0 : i32
    return %arg0, %c0_i32, %c0_i32_0 : i32, i32, i32
  }
  func.func @transform_3(%arg0: i32, %arg1: i32) -> (i32, i32, i32) {
    %c0_i32 = arith.constant 0 : i32
    %c0_i32_0 = arith.constant 0 : i32
    %c0_i32_1 = arith.constant 0 : i32
    return %arg0, %c0_i32, %c0_i32_0 : i32, i32, i32
  }
}

module attributes {stable_mosaic.version = 11 : i64} {
  func.func @_fc_tail_kernel(%arg0: i32, %arg1: memref<2x2x100xf32, #tpu.memory_space<vmem>>, %arg2: memref<2x100x100xf32, #tpu.memory_space<vmem>>, %arg3: memref<1x100xf32, #tpu.memory_space<vmem>>, %arg4: memref<100x1xf32, #tpu.memory_space<vmem>>, %arg5: memref<1x1xf32, #tpu.memory_space<vmem>>, %arg6: memref<2x1xf32, #tpu.memory_space<vmem>>) attributes {dimension_semantics = [#tpu.dimension_semantics<arbitrary>], iteration_bounds = array<i64: 1>, scalar_prefetch = 0 : i64, scratch_operands = 0 : i64, tpu.core_type = #tpu.core_type<tc>, window_params = [{pipeline_mode = #tpu.pipeline_mode<synchronous>, transform_indices = @transform_0, window_bounds = array<i64: 2, 2, 100>}, {pipeline_mode = #tpu.pipeline_mode<synchronous>, transform_indices = @transform_1, window_bounds = array<i64: 2, 100, 100>}, {pipeline_mode = #tpu.pipeline_mode<synchronous>, transform_indices = @transform_2, window_bounds = array<i64: 1, 100>}, {pipeline_mode = #tpu.pipeline_mode<synchronous>, transform_indices = @transform_3, window_bounds = array<i64: 100, 1>}, {pipeline_mode = #tpu.pipeline_mode<synchronous>, transform_indices = @transform_4, window_bounds = array<i64: 1, 1>}, {pipeline_mode = #tpu.pipeline_mode<synchronous>, transform_indices = @transform_5, window_bounds = array<i64: 2, 1>}]} {
    %c0 = arith.constant 0 : index
    %c0_0 = arith.constant 0 : index
    %0 = vector.load %arg3[%c0, %c0_0] : memref<1x100xf32, #tpu.memory_space<vmem>>, vector<1x100xf32>
    %c0_1 = arith.constant 0 : index
    %c0_2 = arith.constant 0 : index
    %c0_3 = arith.constant 0 : index
    %1 = vector.load %arg1[%c0_1, %c0_2, %c0_3] : memref<2x2x100xf32, #tpu.memory_space<vmem>>, vector<1x2x100xf32>
    %2 = vector.shape_cast %1 : vector<1x2x100xf32> to vector<2x100xf32>
    %c0_4 = arith.constant 0 : index
    %c0_5 = arith.constant 0 : index
    %c0_6 = arith.constant 0 : index
    %3 = vector.load %arg2[%c0_4, %c0_5, %c0_6] : memref<2x100x100xf32, #tpu.memory_space<vmem>>, vector<1x100x100xf32>
    %4 = vector.shape_cast %3 : vector<1x100x100xf32> to vector<100x100xf32>
    %cst = arith.constant dense<0.000000e+00> : vector<2x100xf32>
    %5 = tpu.matmul %2, %4, %cst {dimension_numbers = #tpu.dot_dimension_numbers<[1], [0], [0], [1], [0, 0, 1, 1], [], []>} : vector<2x100xf32>, vector<100x100xf32>, vector<2x100xf32> -> vector<2x100xf32>
    %6 = vector.broadcast %0 : vector<1x100xf32> to vector<2x100xf32>
    %7 = arith.addf %6, %5 : vector<2x100xf32>
    %c1 = arith.constant 1 : index
    %c0_7 = arith.constant 0 : index
    %c0_8 = arith.constant 0 : index
    %8 = vector.load %arg1[%c1, %c0_7, %c0_8] : memref<2x2x100xf32, #tpu.memory_space<vmem>>, vector<1x2x100xf32>
    %9 = vector.shape_cast %8 : vector<1x2x100xf32> to vector<2x100xf32>
    %c1_9 = arith.constant 1 : index
    %c0_10 = arith.constant 0 : index
    %c0_11 = arith.constant 0 : index
    %10 = vector.load %arg2[%c1_9, %c0_10, %c0_11] : memref<2x100x100xf32, #tpu.memory_space<vmem>>, vector<1x100x100xf32>
    %11 = vector.shape_cast %10 : vector<1x100x100xf32> to vector<100x100xf32>
    %cst_12 = arith.constant dense<0.000000e+00> : vector<2x100xf32>
    %12 = tpu.matmul %9, %11, %cst_12 {dimension_numbers = #tpu.dot_dimension_numbers<[1], [0], [0], [1], [0, 0, 1, 1], [], []>} : vector<2x100xf32>, vector<100x100xf32>, vector<2x100xf32> -> vector<2x100xf32>
    %13 = arith.addf %7, %12 : vector<2x100xf32>
    %cst_13 = arith.constant 0.000000e+00 : f32
    %14 = vector.broadcast %cst_13 : f32 to vector<2x100xf32>
    %15 = arith.maximumf %13, %14 : vector<2x100xf32>
    %c0_14 = arith.constant 0 : index
    %c0_15 = arith.constant 0 : index
    %16 = vector.load %arg4[%c0_14, %c0_15] : memref<100x1xf32, #tpu.memory_space<vmem>>, vector<100x1xf32>
    %cst_16 = arith.constant dense<0.000000e+00> : vector<2x1xf32>
    %17 = tpu.matmul %15, %16, %cst_16 {dimension_numbers = #tpu.dot_dimension_numbers<[1], [0], [0], [1], [0, 0, 1, 1], [], []>} : vector<2x100xf32>, vector<100x1xf32>, vector<2x1xf32> -> vector<2x1xf32>
    %c0_17 = arith.constant 0 : index
    %c0_18 = arith.constant 0 : index
    %18 = vector.load %arg5[%c0_17, %c0_18] : memref<1x1xf32, #tpu.memory_space<vmem>>, vector<1x1xf32>
    %19 = vector.broadcast %18 : vector<1x1xf32> to vector<2x1xf32>
    %20 = arith.addf %17, %19 : vector<2x1xf32>
    %c0_19 = arith.constant 0 : index
    %c0_20 = arith.constant 0 : index
    %21 = vector.load %arg6[%c0_19, %c0_20] : memref<2x1xf32, #tpu.memory_space<vmem>>, vector<2x1xf32>
    tpu.vector_store %arg6[%c0_19, %c0_20], %20 {strides = array<i32>} : memref<2x1xf32, #tpu.memory_space<vmem>>, vector<2x1xf32>,
    return
  }
  func.func @transform_0(%arg0: i32) -> (i32, i32, i32) {
    %c0_i32 = arith.constant 0 : i32
    %c0_i32_0 = arith.constant 0 : i32
    %c0_i32_1 = arith.constant 0 : i32
    %c0_i32_2 = arith.constant 0 : i32
    return %c0_i32, %c0_i32_0, %c0_i32_1 : i32, i32, i32
  }
  func.func @transform_1(%arg0: i32) -> (i32, i32, i32) {
    %c0_i32 = arith.constant 0 : i32
    %c0_i32_0 = arith.constant 0 : i32
    %c0_i32_1 = arith.constant 0 : i32
    %c0_i32_2 = arith.constant 0 : i32
    return %c0_i32, %c0_i32_0, %c0_i32_1 : i32, i32, i32
  }
  func.func @transform_2(%arg0: i32) -> (i32, i32) {
    %c0_i32 = arith.constant 0 : i32
    %c0_i32_0 = arith.constant 0 : i32
    %c0_i32_1 = arith.constant 0 : i32
    return %c0_i32, %c0_i32_0 : i32, i32
  }
  func.func @transform_3(%arg0: i32) -> (i32, i32) {
    %c0_i32 = arith.constant 0 : i32
    %c0_i32_0 = arith.constant 0 : i32
    %c0_i32_1 = arith.constant 0 : i32
    return %c0_i32, %c0_i32_0 : i32, i32
  }
  func.func @transform_4(%arg0: i32) -> (i32, i32) {
    %c0_i32 = arith.constant 0 : i32
    %c0_i32_0 = arith.constant 0 : i32
    %c0_i32_1 = arith.constant 0 : i32
    return %c0_i32, %c0_i32_0 : i32, i32
  }
  func.func @transform_5(%arg0: i32) -> (i32, i32) {
    %c0_i32 = arith.constant 0 : i32
    %c0_i32_0 = arith.constant 0 : i32
    %c0_i32_1 = arith.constant 0 : i32
    return %c0_i32, %c0_i32_0 : i32, i32
  }
}

</mosaic_0001>

<llo_original>
// kernel: convnet_forward.5
$region0: #{convnet_forward.5}
  #allocation0 [shape = 'u32[]', space=smem, size = 0x4, offset = 0x4, fixed_abs, tag = 'smem constant byte address 0x4 - core index']
  #allocation1 [shape = 'u32[144,128]{1,0:T(1,128)}', space=vmem, size = 0x12000, scoped, tag = 'internal scratch']
  %s0 = inlined_call_operand.vmem [shape: f32[7744,48], index: 0, kind: input, shape index: {}]
  %s1 = inlined_call_operand.vmem [shape: f32[48,12], index: 1, kind: input, shape index: {}]
  %s2 = inlined_call_operand.vmem [shape: f32[48,12], index: 2, kind: input, shape index: {}]
  %s3 = inlined_call_operand.vmem [shape: f32[48,12], index: 3, kind: input, shape index: {}]
  %s4 = inlined_call_operand.vmem [shape: f32[48,12], index: 4, kind: input, shape index: {}]
  %s5 = inlined_call_operand.vmem [shape: f32[1,12], index: 5, kind: input, shape index: {}]
  %s6 = inlined_call_operand.vmem [shape: f32[7744,12], index: 6, kind: output, shape index: {}]
  %s7 = sld [smem:[#allocation0]]
  $region57: #{convnet_forward.5} parent=0
    _
  %s9 = ssub.s32 1, %s7
  %s10 = scalar_select 0, %s9, %s7
  loop: start=0, step=1, limit=10
  $region2: #{convnet_forward.5} parent=0 // loop_pre_header
    _
  $region3: #{convnet_forward.5} parent=0 // loop_header
    %s12 = sphi 0, %s16
    %p13 = scmp.ge.s32.totalorder %s12, 10
    %s22 = sphi 0, %s24
    %s25 = sphi 0, %s22
    %s26 = sphi 0, %s25
    %s42 = sphi 0, %s26
    %s46 = sphi 0, %s46
    %s48 = sphi 0, %s46
    %s49 = sphi 0, %s48
    %s63 = sphi 0, %s49
    %s67 = sphi 0, %s67
    %s69 = sphi 0, %s67
    %s70 = sphi 0, %s69
    %s84 = sphi 0, %s70
    %s88 = sphi 0, %s88
    %s90 = sphi 0, %s88
    %s91 = sphi 0, %s90
    %s105 = sphi 0, %s91
    %s109 = sphi 0, %s109
    %s111 = sphi 0, %s109
    %s112 = sphi 0, %s111
    %s126 = sphi 0, %s112
    %s130 = sphi 0, %s130
    %s132 = sphi 0, %s130
    %s133 = sphi 0, %s132
    %s147 = sphi 0, %s133
    %s153 = sphi 0, %s155
    %s156 = sphi 0, %s153
    %s157 = sphi 0, %s156
    %s173 = sphi 0, %s157
  $region4: #{convnet_forward.5} parent=0 // loop_header_branch
    %15 = sbr.rel (%p13) target = $region8
  $region5: #{convnet_forward.5} parent=0 // loop_body
    %s17 = ssub.s32 %s12, 1
    %s18 = ssub.s32 %s12, 2
    %s19 = sadd.s32 %s12, 1
    %s20 = ssub.s32 %s12, %s19
    %p21 = scmp.eq.s32.totalorder %s20, 0
    %s23 = sadd.s32 %s22, 1
    %s24 = scalar_select %p21, %s22, %s23
    %p27 = pneg %p21
    %p28 = scmp.eq.s32.totalorder %s12, 7
    %p29 = por %p27, %p28
    %p30 = scmp.ne.s32.totalorder %s22, %s25
    %p31 = scmp.eq.s32.totalorder %s12, 0
    %p32 = por %p30, %p31
    %p33 = scmp.ne.s32.totalorder %s22, %s25
    %p34 = scmp.eq.s32.totalorder %s17, 7
    %p35 = por %p33, %p34
    %p36 = scmp.ne.s32.totalorder %s25, %s26
    %p37 = scmp.eq.s32.totalorder %s17, 0
    %p38 = por %p36, %p37
    %p39 = scmp.ne.s32.totalorder %s25, %s26
    %p40 = scmp.eq.s32.totalorder %s18, 7
    %p41 = por %p39, %p40
    %p43 = scmp.ne.s32.totalorder %s26, %s42
    %p44 = scmp.eq.s32.totalorder %s18, 0
    %p45 = por %p43, %p44
    %s47 = sadd.s32 %s46, 1
    %p50 = scmp.eq.s32.totalorder %s12, 7
    %p51 = scmp.ne.s32.totalorder %s46, %s48
    %p52 = scmp.eq.s32.totalorder %s12, 0
    %p53 = por %p51, %p52
    %p54 = scmp.ne.s32.totalorder %s46, %s48
    %p55 = scmp.eq.s32.totalorder %s17, 7
    %p56 = por %p54, %p55
    %p57 = scmp.ne.s32.totalorder %s48, %s49
    %p58 = scmp.eq.s32.totalorder %s17, 0
    %p59 = por %p57, %p58
    %p60 = scmp.ne.s32.totalorder %s48, %s49
    %p61 = scmp.eq.s32.totalorder %s18, 7
    %p62 = por %p60, %p61
    %p64 = scmp.ne.s32.totalorder %s49, %s63
    %p65 = scmp.eq.s32.totalorder %s18, 0
    %p66 = por %p64, %p65
    %s68 = sadd.s32 %s67, 1
    %p71 = scmp.eq.s32.totalorder %s12, 7
    %p72 = scmp.ne.s32.totalorder %s67, %s69
    %p73 = scmp.eq.s32.totalorder %s12, 0
    %p74 = por %p72, %p73
    %p75 = scmp.ne.s32.totalorder %s67, %s69
    %p76 = scmp.eq.s32.totalorder %s17, 7
    %p77 = por %p75, %p76
    %p78 = scmp.ne.s32.totalorder %s69, %s70
    %p79 = scmp.eq.s32.totalorder %s17, 0
    %p80 = por %p78, %p79
    %p81 = scmp.ne.s32.totalorder %s69, %s70
    %p82 = scmp.eq.s32.totalorder %s18, 7
    %p83 = por %p81, %p82
    %p85 = scmp.ne.s32.totalorder %s70, %s84
    %p86 = scmp.eq.s32.totalorder %s18, 0
    %p87 = por %p85, %p86
    %s89 = sadd.s32 %s88, 1
    %p92 = scmp.eq.s32.totalorder %s12, 7
    %p93 = scmp.ne.s32.totalorder %s88, %s90
    %p94 = scmp.eq.s32.totalorder %s12, 0
    %p95 = por %p93, %p94
    %p96 = scmp.ne.s32.totalorder %s88, %s90
    %p97 = scmp.eq.s32.totalorder %s17, 7
    %p98 = por %p96, %p97
    %p99 = scmp.ne.s32.totalorder %s90, %s91
    %p100 = scmp.eq.s32.totalorder %s17, 0
    %p101 = por %p99, %p100
    %p102 = scmp.ne.s32.totalorder %s90, %s91
    %p103 = scmp.eq.s32.totalorder %s18, 7
    %p104 = por %p102, %p103
    %p106 = scmp.ne.s32.totalorder %s91, %s105
    %p107 = scmp.eq.s32.totalorder %s18, 0
    %p108 = por %p106, %p107
    %s110 = sadd.s32 %s109, 1
    %p113 = scmp.eq.s32.totalorder %s12, 7
    %p114 = scmp.ne.s32.totalorder %s109, %s111
    %p115 = scmp.eq.s32.totalorder %s12, 0
    %p116 = por %p114, %p115
    %p117 = scmp.ne.s32.totalorder %s109, %s111
    %p118 = scmp.eq.s32.totalorder %s17, 7
    %p119 = por %p117, %p118
    %p120 = scmp.ne.s32.totalorder %s111, %s112
    %p121 = scmp.eq.s32.totalorder %s17, 0
    %p122 = por %p120, %p121
    %p123 = scmp.ne.s32.totalorder %s111, %s112
    %p124 = scmp.eq.s32.totalorder %s18, 7
    %p125 = por %p123, %p124
    %p127 = scmp.ne.s32.totalorder %s112, %s126
    %p128 = scmp.eq.s32.totalorder %s18, 0
    %p129 = por %p127, %p128
    %s131 = sadd.s32 %s130, 1
    %p134 = scmp.eq.s32.totalorder %s12, 7
    %p135 = scmp.ne.s32.totalorder %s130, %s132
    %p136 = scmp.eq.s32.totalorder %s12, 0
    %p137 = por %p135, %p136
    %p138 = scmp.ne.s32.totalorder %s130, %s132
    %p139 = scmp.eq.s32.totalorder %s17, 7
    %p140 = por %p138, %p139
    %p141 = scmp.ne.s32.totalorder %s132, %s133
    %p142 = scmp.eq.s32.totalorder %s17, 0
    %p143 = por %p141, %p142
    %p144 = scmp.ne.s32.totalorder %s132, %s133
    %p145 = scmp.eq.s32.totalorder %s18, 7
    %p146 = por %p144, %p145
    %p148 = scmp.ne.s32.totalorder %s133, %s147
    %p149 = scmp.eq.s32.totalorder %s18, 0
    %p150 = por %p148, %p149
    %s151 = ssub.s32 %s12, %s19
    %p152 = scmp.eq.s32.totalorder %s151, 0
    %s154 = sadd.s32 %s153, 1
    %s155 = scalar_select %p152, %s153, %s154
    %p158 = pneg %p152
    %p159 = scmp.eq.s32.totalorder %s12, 7
    %p160 = por %p158, %p159
    %p161 = scmp.ne.s32.totalorder %s153, %s156
    %p162 = scmp.eq.s32.totalorder %s12, 0
    %p163 = por %p161, %p162
    %p164 = scmp.ne.s32.totalorder %s153, %s156
    %p165 = scmp.eq.s32.totalorder %s17, 7
    %p166 = por %p164, %p165
    %p167 = scmp.ne.s32.totalorder %s156, %s157
    %p168 = scmp.eq.s32.totalorder %s17, 0
    %p169 = por %p167, %p168
    %p170 = scmp.ne.s32.totalorder %s156, %s157
    %p171 = scmp.eq.s32.totalorder %s18, 7
    %p172 = por %p170, %p171
    %p174 = scmp.ne.s32.totalorder %s157, %s173
    %p175 = scmp.eq.s32.totalorder %s18, 0
    %p176 = por %p174, %p175
    %p177 = scmp.le.s32.totalorder 1, %s12
    %p178 = scmp.lt.s32.totalorder %s12, 9
    %p179 = pnand %p177, %p178
    %p180 = pneg %p179
    // Predicated region
    $region9: #{convnet_forward.5} parent=5 // pred_check
      _
    $region10: #{convnet_forward.5} parent=5 // pred_check_branch
      %182 = sbr.rel (%p179) target = $region12
    $region11: #{convnet_forward.5} parent=5 // pred_region
      %s183 = ssub.s32 %s12, 1
      // Predicated region
      $region13: #{convnet_forward.5} parent=11 // pred_check
        %p184 = pneg %p59
      $region14: #{convnet_forward.5} parent=11 // pred_check_branch
        %186 = sbr.rel (%p184) target = $region16
      $region15: #{convnet_forward.5} parent=11 // pred_region
        _
      $region16: #{convnet_forward.5} parent=11 // pred_fallthru
        _
      // Predicated region
      $region17: #{convnet_forward.5} parent=11 // pred_check
        %p187 = pneg %p80
      $region18: #{convnet_forward.5} parent=11 // pred_check_branch
        %189 = sbr.rel (%p187) target = $region20
      $region19: #{convnet_forward.5} parent=11 // pred_region
        _
      $region20: #{convnet_forward.5} parent=11 // pred_fallthru
        _
      // Predicated region
      $region21: #{convnet_forward.5} parent=11 // pred_check
        %p190 = pneg %p101
      $region22: #{convnet_forward.5} parent=11 // pred_check_branch
        %192 = sbr.rel (%p190) target = $region24
      $region23: #{convnet_forward.5} parent=11 // pred_region
        _
      $region24: #{convnet_forward.5} parent=11 // pred_fallthru
        _
      // Predicated region
      $region25: #{convnet_forward.5} parent=11 // pred_check
        %p193 = pneg %p122
      $region26: #{convnet_forward.5} parent=11 // pred_check_branch
        %195 = sbr.rel (%p193) target = $region28
      $region27: #{convnet_forward.5} parent=11 // pred_region
        _
      $region28: #{convnet_forward.5} parent=11 // pred_fallthru
        _
      // Predicated region
      $region29: #{convnet_forward.5} parent=11 // pred_check
        %p196 = pneg %p143
      $region30: #{convnet_forward.5} parent=11 // pred_check_branch
        %198 = sbr.rel (%p196) target = $region32
      $region31: #{convnet_forward.5} parent=11 // pred_region
        _
      $region32: #{convnet_forward.5} parent=11 // pred_fallthru
        _
    $region12: #{convnet_forward.5} parent=5 // pred_fallthru
      _
    %p199 = scmp.lt.s32.totalorder %s12, 8
    // Predicated region
    $region33: #{convnet_forward.5} parent=5 // pred_check
      %p200 = pneg %p199
    $region34: #{convnet_forward.5} parent=5 // pred_check_branch
      %202 = sbr.rel (%p200) target = $region36
    $region35: #{convnet_forward.5} parent=5 // pred_region
      // Predicated region
      $region37: #{convnet_forward.5} parent=35 // pred_check
        %p203 = pneg %p32
      $region38: #{convnet_forward.5} parent=35 // pred_check_branch
        %205 = sbr.rel (%p203) target = $region40
      $region39: #{convnet_forward.5} parent=35 // pred_region
        %s206 = smul.u32 121, %s12
        %p207 = scmp.lt.s32.totalorder %s206, 967
        %s208 = scalar_select %p207, %s206, 967
        %s209 = smul.addr %s208, 8
        %s210 = scalar_lea.vmem %s0, %s209
        %s211 = smul.u32 121, %s12
      $region40: #{convnet_forward.5} parent=35 // pred_fallthru
        _
    $region36: #{convnet_forward.5} parent=5 // pred_fallthru
      _
    %p212 = scmp.le.s32.totalorder 1, %s12
    %p213 = scmp.lt.s32.totalorder %s12, 9
    %p214 = pnand %p212, %p213
    %p215 = pneg %p214
    // Predicated region
    $region41: #{convnet_forward.5} parent=5 // pred_check
      _
    $region42: #{convnet_forward.5} parent=5 // pred_check_branch
      %217 = sbr.rel (%p214) target = $region44
    $region43: #{convnet_forward.5} parent=5 // pred_region
      %s218 = ssub.s32 %s12, 1
      %s219 = smul.u32 121, %s17
      %p220 = scmp.lt.s32.totalorder %s219, 967
      %s221 = scalar_select %p220, %s219, 967
      %s222 = smul.addr %s221, 8
      %s223 = scalar_lea.vmem %s0, %s222
      %p224 = pneg %p38
      %p225 = pneg %p35
      %p226 = pneg %p59
      %p227 = pneg %p56
      %p228 = pneg %p80
      %p229 = pneg %p77
      %p230 = pneg %p101
      %p231 = pneg %p98
      %p232 = pneg %p122
      %p233 = pneg %p119
      %p234 = pneg %p143
      %p235 = pneg %p140
      %p236 = pneg %p169
      %p237 = pneg %p166
      %s238 = smul.u32 121, %s17
      %p239 = scmp.lt.s32.totalorder %s238, 967
      %s240 = scalar_select %p239, %s238, 967
      %s241 = smul.addr %s240, 8
      %s242 = scalar_lea.vmem %s6, %s241
      %s243 = smul.u32 121, %s17
      %p244 = scmp.lt.s32.totalorder %s243, 967
      %s245 = scalar_select %p244, %s243, 967
      %s246 = smul.addr %s245, 8
      %s247 = scalar_lea.vmem %s0, %s246
      %s248 = smul.u32 121, %s17
      %s249 = smul.u32 121, %s17
      %p250 = scmp.lt.s32.totalorder %s249, 967
      %s251 = scalar_select %p250, %s249, 967
      %s252 = smul.addr %s251, 8
      %s253 = scalar_lea.vmem %s6, %s252
      %s254 = smul.u32 121, %s17
      %v255 = vld [vmem:[%s247] sm:$0xff]
      %v256 = vld [vmem:[%s247 + $0x8] sm:$0xff]
      %v257 = vld [vmem:[%s247 + $0x10] sm:$0xff]
      %v258 = vld [vmem:[%s247 + $0x18] sm:$0xff]
      %v259 = vld [vmem:[%s247 + $0x20] sm:$0xff]
      %v260 = vld [vmem:[%s247 + $0x28] sm:$0xff]
      %v261 = vld [vmem:[%s247 + $0x30] sm:$0xff]
      %v262 = vld [vmem:[%s247 + $0x38] sm:$0xff]
      %v263 = vld [vmem:[%s247 + $0x40] sm:$0xff]
      %v264 = vld [vmem:[%s247 + $0x48] sm:$0xff]
      %v265 = vld [vmem:[%s247 + $0x50] sm:$0xff]
      %v266 = vld [vmem:[%s247 + $0x58] sm:$0xff]
      %v267 = vld [vmem:[%s247 + $0x60] sm:$0xff]
      %v268 = vld [vmem:[%s247 + $0x68] sm:$0xff]
      %v269 = vld [vmem:[%s247 + $0x70] sm:$0xff]
      %v270 = vld [vmem:[%s247 + $0x78] sm:$0xff]
      %v271 = vld [vmem:[%s247 + $0x80] sm:$0xff]
      %v272 = vld [vmem:[%s247 + $0x88] sm:$0xff]
      %v273 = vld [vmem:[%s247 + $0x90] sm:$0xff]
      %v274 = vld [vmem:[%s247 + $0x98] sm:$0xff]
      %v275 = vld [vmem:[%s247 + $0xa0] sm:$0xff]
      %v276 = vld [vmem:[%s247 + $0xa8] sm:$0xff]
      %v277 = vld [vmem:[%s247 + $0xb0] sm:$0xff]
      %v278 = vld [vmem:[%s247 + $0xb8] sm:$0xff]
      %v279 = vld [vmem:[%s247 + $0xc0] sm:$0xff]
      %v280 = vld [vmem:[%s247 + $0xc8] sm:$0xff]
      %v281 = vld [vmem:[%s247 + $0xd0] sm:$0xff]
      %v282 = vld [vmem:[%s247 + $0xd8] sm:$0xff]
      %v283 = vld [vmem:[%s247 + $0xe0] sm:$0xff]
      %v284 = vld [vmem:[%s247 + $0xe8] sm:$0xff]
      %v285 = vld [vmem:[%s247 + $0xf0] sm:$0xff]
      %v286 = vld [vmem:[%s247 + $0xf8] sm:$0xff]
      %v287 = vld [vmem:[%s247 + $0x100] sm:$0xff]
      %v288 = vld [vmem:[%s247 + $0x108] sm:$0xff]
      %v289 = vld [vmem:[%s247 + $0x110] sm:$0xff]
      %v290 = vld [vmem:[%s247 + $0x118] sm:$0xff]
      %v291 = vld [vmem:[%s247 + $0x120] sm:$0xff]
      %v292 = vld [vmem:[%s247 + $0x128] sm:$0xff]
      %v293 = vld [vmem:[%s247 + $0x130] sm:$0xff]
      %v294 = vld [vmem:[%s247 + $0x138] sm:$0xff]
      %v295 = vld [vmem:[%s247 + $0x140] sm:$0xff]
      %v296 = vld [vmem:[%s247 + $0x148] sm:$0xff]
      %v297 = vld [vmem:[%s247 + $0x150] sm:$0xff]
      %v298 = vld [vmem:[%s247 + $0x158] sm:$0xff]
      %v299 = vld [vmem:[%s247 + $0x160] sm:$0xff]
      %v300 = vld [vmem:[%s247 + $0x168] sm:$0xff]
      %v301 = vld [vmem:[%s247 + $0x170] sm:$0xff]
      %v302 = vld [vmem:[%s247 + $0x178] sm:$0xff]
      %v303 = vld [vmem:[%s247 + $0x180] sm:$0xff]
      %v304 = vld [vmem:[%s247 + $0x188] sm:$0xff]
      %v305 = vld [vmem:[%s247 + $0x190] sm:$0xff]
      %v306 = vld [vmem:[%s247 + $0x198] sm:$0xff]
      %v307 = vld [vmem:[%s247 + $0x1a0] sm:$0xff]
      %v308 = vld [vmem:[%s247 + $0x1a8] sm:$0xff]
      %v309 = vld [vmem:[%s247 + $0x1b0] sm:$0xff]
      %v310 = vld [vmem:[%s247 + $0x1b8] sm:$0xff]
      %v311 = vld [vmem:[%s247 + $0x1c0] sm:$0xff]
      %v312 = vld [vmem:[%s247 + $0x1c8] sm:$0xff]
      %v313 = vld [vmem:[%s247 + $0x1d0] sm:$0xff]
      %v314 = vld [vmem:[%s247 + $0x1d8] sm:$0xff]
      %v315 = vld [vmem:[%s247 + $0x1e0] sm:$0xff]
      %v316 = vld [vmem:[%s247 + $0x1e8] sm:$0xff]
      %v317 = vld [vmem:[%s247 + $0x1f0] sm:$0xff]
      %v318 = vld [vmem:[%s247 + $0x1f8] sm:$0xff]
      %v319 = vld [vmem:[%s247 + $0x200] sm:$0xff]
      %v320 = vld [vmem:[%s247 + $0x208] sm:$0xff]
      %v321 = vld [vmem:[%s247 + $0x210] sm:$0xff]
      %v322 = vld [vmem:[%s247 + $0x218] sm:$0xff]
      %v323 = vld [vmem:[%s247 + $0x220] sm:$0xff]
      %v324 = vld [vmem:[%s247 + $0x228] sm:$0xff]
      %v325 = vld [vmem:[%s247 + $0x230] sm:$0xff]
      %v326 = vld [vmem:[%s247 + $0x238] sm:$0xff]
      %v327 = vld [vmem:[%s247 + $0x240] sm:$0xff]
      %v328 = vld [vmem:[%s247 + $0x248] sm:$0xff]
      %v329 = vld [vmem:[%s247 + $0x250] sm:$0xff]
      %v330 = vld [vmem:[%s247 + $0x258] sm:$0xff]
      %v331 = vld [vmem:[%s247 + $0x260] sm:$0xff]
      %v332 = vld [vmem:[%s247 + $0x268] sm:$0xff]
      %v333 = vld [vmem:[%s247 + $0x270] sm:$0xff]
      %v334 = vld [vmem:[%s247 + $0x278] sm:$0xff]
      %v335 = vld [vmem:[%s247 + $0x280] sm:$0xff]
      %v336 = vld [vmem:[%s247 + $0x288] sm:$0xff]
      %v337 = vld [vmem:[%s247 + $0x290] sm:$0xff]
      %v338 = vld [vmem:[%s247 + $0x298] sm:$0xff]
      %v339 = vld [vmem:[%s247 + $0x2a0] sm:$0xff]
      %v340 = vld [vmem:[%s247 + $0x2a8] sm:$0xff]
      %v341 = vld [vmem:[%s247 + $0x2b0] sm:$0xff]
      %v342 = vld [vmem:[%s247 + $0x2b8] sm:$0xff]
      %v343 = vld [vmem:[%s247 + $0x2c0] sm:$0xff]
      %v344 = vld [vmem:[%s247 + $0x2c8] sm:$0xff]
      %v345 = vld [vmem:[%s247 + $0x2d0] sm:$0xff]
      %v346 = vld [vmem:[%s247 + $0x2d8] sm:$0xff]
      %v347 = vld [vmem:[%s247 + $0x2e0] sm:$0xff]
      %v348 = vld [vmem:[%s247 + $0x2e8] sm:$0xff]
      %v349 = vld [vmem:[%s247 + $0x2f0] sm:$0xff]
      %v350 = vld [vmem:[%s247 + $0x2f8] sm:$0xff]
      %v351 = vld [vmem:[%s247 + $0x300] sm:$0xff]
      %v352 = vld [vmem:[%s247 + $0x308] sm:$0xff]
      %v353 = vld [vmem:[%s247 + $0x310] sm:$0xff]
      %v354 = vld [vmem:[%s247 + $0x318] sm:$0xff]
      %v355 = vld [vmem:[%s247 + $0x320] sm:$0xff]
      %v356 = vld [vmem:[%s247 + $0x328] sm:$0xff]
      %v357 = vld [vmem:[%s247 + $0x330] sm:$0xff]
      %v358 = vld [vmem:[%s247 + $0x338] sm:$0xff]
      %v359 = vld [vmem:[%s247 + $0x340] sm:$0xff]
      %v360 = vld [vmem:[%s247 + $0x348] sm:$0xff]
      %v361 = vld [vmem:[%s247 + $0x350] sm:$0xff]
      %v362 = vld [vmem:[%s247 + $0x358] sm:$0xff]
      %v363 = vld [vmem:[%s247 + $0x360] sm:$0xff]
      %v364 = vld [vmem:[%s247 + $0x368] sm:$0xff]
      %v365 = vld [vmem:[%s247 + $0x370] sm:$0xff]
      %v366 = vld [vmem:[%s247 + $0x378] sm:$0xff]
      %v367 = vld [vmem:[%s247 + $0x380] sm:$0xff]
      %v368 = vld [vmem:[%s247 + $0x388] sm:$0xff]
      %v369 = vld [vmem:[%s247 + $0x390] sm:$0xff]
      %v370 = vld [vmem:[%s247 + $0x398] sm:$0xff]
      %v371 = vld [vmem:[%s247 + $0x3a0] sm:$0xff]
      %v372 = vld [vmem:[%s247 + $0x3a8] sm:$0xff]
      %v373 = vld [vmem:[%s247 + $0x3b0] sm:$0xff]
      %v374 = vld [vmem:[%s247 + $0x3b8] sm:$0xff]
      %v375 = vld [vmem:[%s247 + $0x3c0] sm:$0xff]
      %v376 = vld [vmem:[%s1] sm:$0xff]
      %v377 = vld [vmem:[%s1 + $0x8] sm:$0xff]
      %v378 = vld [vmem:[%s1 + $0x10] sm:$0xff]
      %v379 = vld [vmem:[%s1 + $0x18] sm:$0xff]
      %v380 = vld [vmem:[%s1 + $0x20] sm:$0xff]
      %v381 = vld [vmem:[%s1 + $0x28] sm:$0xff]
      %vm382 = vcmask 392192
      %v384 = vsel %vm382, %v255, 0
      %v387 = vsel %vm382, %v256, 0
      %v390 = vsel %vm382, %v257, 0
      %v393 = vsel %vm382, %v258, 0
      %v396 = vsel %vm382, %v259, 0
      %v399 = vsel %vm382, %v260, 0
      %v402 = vsel %vm382, %v261, 0
      %v405 = vsel %vm382, %v262, 0
      %v408 = vsel %vm382, %v263, 0
      %v411 = vsel %vm382, %v264, 0
      %v414 = vsel %vm382, %v265, 0
      %v417 = vsel %vm382, %v266, 0
      %v420 = vsel %vm382, %v267, 0
      %v423 = vsel %vm382, %v268, 0
      %v426 = vsel %vm382, %v269, 0
      %v429 = vsel %vm382, %v270, 0
      %v432 = vsel %vm382, %v271, 0
      %v435 = vsel %vm382, %v272, 0
      %v438 = vsel %vm382, %v273, 0
      %v441 = vsel %vm382, %v274, 0
      %v444 = vsel %vm382, %v275, 0
      %v447 = vsel %vm382, %v276, 0
      %v450 = vsel %vm382, %v277, 0
      %v453 = vsel %vm382, %v278, 0
      %v456 = vsel %vm382, %v279, 0
      %v459 = vsel %vm382, %v280, 0
      %v462 = vsel %vm382, %v281, 0
      %v465 = vsel %vm382, %v282, 0
      %v468 = vsel %vm382, %v283, 0
      %v471 = vsel %vm382, %v284, 0
      %v474 = vsel %vm382, %v285, 0
      %v477 = vsel %vm382, %v286, 0
      %v480 = vsel %vm382, %v287, 0
      %v483 = vsel %vm382, %v288, 0
      %v486 = vsel %vm382, %v289, 0
      %v489 = vsel %vm382, %v290, 0
      %v492 = vsel %vm382, %v291, 0
      %v495 = vsel %vm382, %v292, 0
      %v498 = vsel %vm382, %v293, 0
      %v501 = vsel %vm382, %v294, 0
      %v504 = vsel %vm382, %v295, 0
      %v507 = vsel %vm382, %v296, 0
      %v510 = vsel %vm382, %v297, 0
      %v513 = vsel %vm382, %v298, 0
      %v516 = vsel %vm382, %v299, 0
      %v519 = vsel %vm382, %v300, 0
      %v522 = vsel %vm382, %v301, 0
      %v525 = vsel %vm382, %v302, 0
      %v528 = vsel %vm382, %v303, 0
      %v531 = vsel %vm382, %v304, 0
      %v534 = vsel %vm382, %v305, 0
      %v537 = vsel %vm382, %v306, 0
      %v540 = vsel %vm382, %v307, 0
      %v543 = vsel %vm382, %v308, 0
      %v546 = vsel %vm382, %v309, 0
      %v549 = vsel %vm382, %v310, 0
      %v552 = vsel %vm382, %v311, 0
      %v555 = vsel %vm382, %v312, 0
      %v558 = vsel %vm382, %v313, 0
      %v561 = vsel %vm382, %v314, 0
      %v564 = vsel %vm382, %v315, 0
      %v567 = vsel %vm382, %v316, 0
      %v570 = vsel %vm382, %v317, 0
      %v573 = vsel %vm382, %v318, 0
      %v576 = vsel %vm382, %v319, 0
      %v579 = vsel %vm382, %v320, 0
      %v582 = vsel %vm382, %v321, 0
      %v585 = vsel %vm382, %v322, 0
      %v588 = vsel %vm382, %v323, 0
      %v591 = vsel %vm382, %v324, 0
      %v594 = vsel %vm382, %v325, 0
      %v597 = vsel %vm382, %v326, 0
      %v600 = vsel %vm382, %v327, 0
      %v603 = vsel %vm382, %v328, 0
      %v606 = vsel %vm382, %v329, 0
      %v609 = vsel %vm382, %v330, 0
      %v612 = vsel %vm382, %v331, 0
      %v615 = vsel %vm382, %v332, 0
      %v618 = vsel %vm382, %v333, 0
      %v621 = vsel %vm382, %v334, 0
      %v624 = vsel %vm382, %v335, 0
      %v627 = vsel %vm382, %v336, 0
      %v630 = vsel %vm382, %v337, 0
      %v633 = vsel %vm382, %v338, 0
      %v636 = vsel %vm382, %v339, 0
      %v639 = vsel %vm382, %v340, 0
      %v642 = vsel %vm382, %v341, 0
      %v645 = vsel %vm382, %v342, 0
      %v648 = vsel %vm382, %v343, 0
      %v651 = vsel %vm382, %v344, 0
      %v654 = vsel %vm382, %v345, 0
      %v657 = vsel %vm382, %v346, 0
      %v660 = vsel %vm382, %v347, 0
      %v663 = vsel %vm382, %v348, 0
      %v666 = vsel %vm382, %v349, 0
      %v669 = vsel %vm382, %v350, 0
      %v672 = vsel %vm382, %v351, 0
      %v675 = vsel %vm382, %v352, 0
      %v678 = vsel %vm382, %v353, 0
      %v681 = vsel %vm382, %v354, 0
      %v684 = vsel %vm382, %v355, 0
      %v687 = vsel %vm382, %v356, 0
      %v690 = vsel %vm382, %v357, 0
      %v693 = vsel %vm382, %v358, 0
      %v696 = vsel %vm382, %v359, 0
      %v699 = vsel %vm382, %v360, 0
      %v702 = vsel %vm382, %v361, 0
      %v705 = vsel %vm382, %v362, 0
      %v708 = vsel %vm382, %v363, 0
      %v711 = vsel %vm382, %v364, 0
      %v714 = vsel %vm382, %v365, 0
      %v717 = vsel %vm382, %v366, 0
      %v720 = vsel %vm382, %v367, 0
      %v723 = vsel %vm382, %v368, 0
      %v726 = vsel %vm382, %v369, 0
      %v729 = vsel %vm382, %v370, 0
      %v732 = vsel %vm382, %v371, 0
      %v735 = vsel %vm382, %v372, 0
      %v738 = vsel %vm382, %v373, 0
      %v741 = vsel %vm382, %v374, 0
      %v744 = vsel %vm382, %v375, 0
      %746 = vmatprep.subr.mxu0 0.0
      %747 = vmatpush1.msra.mxu0 %v376
      %748 = vmatprep.subr.mxu0 0.0
      %749 = vmatpush1.msra.mxu0 %v377
      %750 = vmatprep.subr.mxu0 0.0
      %751 = vmatpush1.msra.mxu0 %v378
      %752 = vmatprep.subr.mxu0 0.0
      %753 = vmatpush1.msra.mxu0 %v379
      %754 = vmatprep.subr.mxu0 0.0
      %755 = vmatpush1.msra.mxu0 %v380
      %756 = vmatprep.subr.mxu0 0.0
      %757 = vmatpush1.msra.mxu0 %v381
      %758 = vmatprep.subr.mxu0 0.0
      %759 = vmatpush1.msra.mxu0 0.0
      %760 = vmatprep.subr.mxu0 0.0
      %761 = vmatpush1.msra.mxu0 0.0
      %762 = vmatprep.subr.mxu0 0.0
      %763 = vmatpush1.msra.mxu0 0.0
      %764 = vmatprep.subr.mxu0 0.0
      %765 = vmatpush1.msra.mxu0 0.0
      %766 = vmatprep.subr.mxu0 0.0
      %767 = vmatpush1.msra.mxu0 0.0
      %768 = vmatprep.subr.mxu0 0.0
      %769 = vmatpush1.msra.mxu0 0.0
      %770 = vmatprep.subr.mxu0 0.0
      %771 = vmatpush1.msra.mxu0 0.0
      %772 = vmatprep.subr.mxu0 0.0
      %773 = vmatpush1.msra.mxu0 0.0
      %774 = vmatprep.subr.mxu0 0.0
      %775 = vmatpush1.msra.mxu0 0.0
      %776 = vmatprep.subr.mxu0 0.0
      %777 = vmatpush1.msra.mxu0 0.0
      %778 = vmatprep.subr.mxu0 0.0
      %779 = vmatpush1.msra.mxu0 0.0
      %780 = vmatprep.subr.mxu0 0.0
      %781 = vmatpush1.msra.mxu0 0.0
      %782 = vmatprep.subr.mxu0 0.0
      %783 = vmatpush1.msra.mxu0 0.0
      %784 = vmatprep.subr.mxu0 0.0
      %785 = vmatpush1.msra.mxu0 0.0
      %786 = vmatprep.subr.mxu0 0.0
      %787 = vmatpush1.msra.mxu0 0.0
      %788 = vmatprep.subr.mxu0 0.0
      %789 = vmatpush1.msra.mxu0 0.0
      %790 = vmatprep.subr.mxu0 0.0
      %791 = vmatpush1.msra.mxu0 0.0
      %792 = vmatprep.subr.mxu0 0.0
      %793 = vmatpush1.msra.mxu0 0.0
      %794 = vmatprep.subr.mxu0 0.0
      %795 = vmatpush1.msra.mxu0 0.0
      %796 = vmatprep.subr.mxu0 0.0
      %797 = vmatpush1.msra.mxu0 0.0
      %798 = vmatprep.subr.mxu0 0.0
      %799 = vmatpush1.msra.mxu0 0.0
      %800 = vmatprep.subr.mxu0 0.0
      %801 = vmatpush1.msra.mxu0 0.0
      %802 = vmatprep.subr.mxu0 0.0
      %803 = vmatpush1.msra.mxu0 0.0
      %804 = vmatprep.subr.mxu0 0.0
      %805 = vmatpush1.msra.mxu0 0.0
      %806 = vmatprep.subr.mxu0 0.0
      %807 = vmatpush1.msra.mxu0 0.0
      %808 = vmatprep.subr.mxu0 0.0
      %809 = vmatpush1.msra.mxu0 0.0
      %810 = vmatprep.mubr.f32.mxu0 0.0
      %811 = vmatmul.mubr.f32.gmra.mrb[0].mxu0 %v384
      %v812 = vpop.f32.mrb[0].mxu0
      %v813 = vadd.f32 0.0, %v812
      %v814 = vpop.f32.mrb[0].mxu0
      %815 = vmatprep.mubr.f32.mxu0 0.0
      %816 = vmatmul.mubr.f32.gmra.mrb[0].mxu0 %v387
      %v817 = vpop.f32.mrb[0].mxu0
      %v818 = vadd.f32 0.0, %v817
      %v819 = vpop.f32.mrb[0].mxu0
      %820 = vmatprep.mubr.f32.mxu0 0.0
      %821 = vmatmul.mubr.f32.gmra.mrb[0].mxu0 %v390
      %v822 = vpop.f32.mrb[0].mxu0
      %v823 = vadd.f32 0.0, %v822
      %v824 = vpop.f32.mrb[0].mxu0
      %825 = vmatprep.mubr.f32.mxu0 0.0
      %826 = vmatmul.mubr.f32.gmra.mrb[0].mxu0 %v393
      %v827 = vpop.f32.mrb[0].mxu0
      %v828 = vadd.f32 0.0, %v827
      %v829 = vpop.f32.mrb[0].mxu0
      %830 = vmatprep.mubr.f32.mxu0 0.0
      %831 = vmatmul.mubr.f32.gmra.mrb[0].mxu0 %v396
      %v832 = vpop.f32.mrb[0].mxu0
      %v833 = vadd.f32 0.0, %v832
      %v834 = vpop.f32.mrb[0].mxu0
      %835 = vmatprep.mubr.f32.mxu0 0.0
      %836 = vmatmul.mubr.f32.gmra.mrb[0].mxu0 %v399
      %v837 = vpop.f32.mrb[0].mxu0
      %v838 = vadd.f32 0.0, %v837
      %v839 = vpop.f32.mrb[0].mxu0
      %840 = vmatprep.mubr.f32.mxu0 0.0
      %841 = vmatmul.mubr.f32.gmra.mrb[0].mxu0 %v402
      %v842 = vpop.f32.mrb[0].mxu0
      %v843 = vadd.f32 0.0, %v842
      %v844 = vpop.f32.mrb[0].mxu0
      %845 = vmatprep.mubr.f32.mxu0 0.0
      %846 = vmatmul.mubr.f32.gmra.mrb[0].mxu0 %v405
      %v847 = vpop.f32.mrb[0].mxu0
      %v848 = vadd.f32 0.0, %v847
      %v849 = vpop.f32.mrb[0].mxu0
      %850 = vmatprep.mubr.f32.mxu0 0.0
      %851 = vmatmul.mubr.f32.gmra.mrb[0].mxu0 %v408
      %v852 = vpop.f32.mrb[0].mxu0
      %v853 = vadd.f32 0.0, %v852
      %v854 = vpop.f32.mrb[0].mxu0
      %855 = vmatprep.mubr.f32.mxu0 0.0
      %856 = vmatmul.mubr.f32.gmra.mrb[0].mxu0 %v411
      %v857 = vpop.f32.mrb[0].mxu0
      %v858 = vadd.f32 0.0, %v857
      %v859 = vpop.f32.mrb[0].mxu0
      %860 = vmatprep.mubr.f32.mxu0 0.0
      %861 = vmatmul.mubr.f32.gmra.mrb[0].mxu0 %v414
      %v862 = vpop.f32.mrb[0].mxu0
      %v863 = vadd.f32 0.0, %v862
      %v864 = vpop.f32.mrb[0].mxu0
      %865 = vmatprep.mubr.f32.mxu0 0.0
      %866 = vmatmul.mubr.f32.gmra.mrb[0].mxu0 %v417
      %v867 = vpop.f32.mrb[0].mxu0
      %v868 = vadd.f32 0.0, %v867
      %v869 = vpop.f32.mrb[0].mxu0
      %870 = vmatprep.mubr.f32.mxu0 0.0
      %871 = vmatmul.mubr.f32.gmra.mrb[0].mxu0 %v420
      %v872 = vpop.f32.mrb[0].mxu0
      %v873 = vadd.f32 0.0, %v872
      %v874 = vpop.f32.mrb[0].mxu0
      %875 = vmatprep.mubr.f32.mxu0 0.0
      %876 = vmatmul.mubr.f32.gmra.mrb[0].mxu0 %v423
      %v877 = vpop.f32.mrb[0].mxu0
      %v878 = vadd.f32 0.0, %v877
      %v879 = vpop.f32.mrb[0].mxu0
      %880 = vmatprep.mubr.f32.mxu0 0.0
      %881 = vmatmul.mubr.f32.gmra.mrb[0].mxu0 %v426
      %v882 = vpop.f32.mrb[0].mxu0
      %v883 = vadd.f32 0.0, %v882
      %v884 = vpop.f32.mrb[0].mxu0
      %885 = vmatprep.mubr.f32.mxu0 0.0
      %886 = vmatmul.mubr.f32.gmra.mrb[0].mxu0 %v429
      %v887 = vpop.f32.mrb[0].mxu0
      %v888 = vadd.f32 0.0, %v887
      %v889 = vpop.f32.mrb[0].mxu0
      %890 = vmatprep.mubr.f32.mxu0 0.0
      %891 = vmatmul.mubr.f32.gmra.mrb[0].mxu0 %v432
      %v892 = vpop.f32.mrb[0].mxu0
      %v893 = vadd.f32 0.0, %v892
      %v894 = vpop.f32.mrb[0].mxu0
      %895 = vmatprep.mubr.f32.mxu0 0.0
      %896 = vmatmul.mubr.f32.gmra.mrb[0].mxu0 %v435
      %v897 = vpop.f32.mrb[0].mxu0
      %v898 = vadd.f32 0.0, %v897
      %v899 = vpop.f32.mrb[0].mxu0
      %900 = vmatprep.mubr.f32.mxu0 0.0
      %901 = vmatmul.mubr.f32.gmra.mrb[0].mxu0 %v438
      %v902 = vpop.f32.mrb[0].mxu0
      %v903 = vadd.f32 0.0, %v902
      %v904 = vpop.f32.mrb[0].mxu0
      %905 = vmatprep.mubr.f32.mxu0 0.0
      %906 = vmatmul.mubr.f32.gmra.mrb[0].mxu0 %v441
      %v907 = vpop.f32.mrb[0].mxu0
      %v908 = vadd.f32 0.0, %v907
      %v909 = vpop.f32.mrb[0].mxu0
      %910 = vmatprep.mubr.f32.mxu0 0.0
      %911 = vmatmul.mubr.f32.gmra.mrb[0].mxu0 %v444
      %v912 = vpop.f32.mrb[0].mxu0
      %v913 = vadd.f32 0.0, %v912
      %v914 = vpop.f32.mrb[0].mxu0
      %915 = vmatprep.mubr.f32.mxu0 0.0
      %916 = vmatmul.mubr.f32.gmra.mrb[0].mxu0 %v447
      %v917 = vpop.f32.mrb[0].mxu0
      %v918 = vadd.f32 0.0, %v917
      %v919 = vpop.f32.mrb[0].mxu0
      %920 = vmatprep.mubr.f32.mxu0 0.0
      %921 = vmatmul.mubr.f32.gmra.mrb[0].mxu0 %v450
      %v922 = vpop.f32.mrb[0].mxu0
      %v923 = vadd.f32 0.0, %v922
      %v924 = vpop.f32.mrb[0].mxu0
      %925 = vmatprep.mubr.f32.mxu0 0.0
      %926 = vmatmul.mubr.f32.gmra.mrb[0].mxu0 %v453
      %v927 = vpop.f32.mrb[0].mxu0
      %v928 = vadd.f32 0.0, %v927
      %v929 = vpop.f32.mrb[0].mxu0
      %930 = vmatprep.mubr.f32.mxu0 0.0
      %931 = vmatmul.mubr.f32.gmra.mrb[0].mxu0 %v456
      %v932 = vpop.f32.mrb[0].mxu0
      %v933 = vadd.f32 0.0, %v932
      %v934 = vpop.f32.mrb[0].mxu0
      %935 = vmatprep.mubr.f32.mxu0 0.0
      %936 = vmatmul.mubr.f32.gmra.mrb[0].mxu0 %v459
      %v937 = vpop.f32.mrb[0].mxu0
      %v938 = vadd.f32 0.0, %v937
      %v939 = vpop.f32.mrb[0].mxu0
      %940 = vmatprep.mubr.f32.mxu0 0.0
      %941 = vmatmul.mubr.f32.gmra.mrb[0].mxu0 %v462
      %v942 = vpop.f32.mrb[0].mxu0
      %v943 = vadd.f32 0.0, %v942
      %v944 = vpop.f32.mrb[0].mxu0
      %945 = vmatprep.mubr.f32.mxu0 0.0
      %946 = vmatmul.mubr.f32.gmra.mrb[0].mxu0 %v465
      %v947 = vpop.f32.mrb[0].mxu0
      %v948 = vadd.f32 0.0, %v947
      %v949 = vpop.f32.mrb[0].mxu0
      %950 = vmatprep.mubr.f32.mxu0 0.0
      %951 = vmatmul.mubr.f32.gmra.mrb[0].mxu0 %v468
      %v952 = vpop.f32.mrb[0].mxu0
      %v953 = vadd.f32 0.0, %v952
      %v954 = vpop.f32.mrb[0].mxu0
      %955 = vmatprep.mubr.f32.mxu0 0.0
      %956 = vmatmul.mubr.f32.gmra.mrb[0].mxu0 %v471
      %v957 = vpop.f32.mrb[0].mxu0
      %v958 = vadd.f32 0.0, %v957
      %v959 = vpop.f32.mrb[0].mxu0
      %960 = vmatprep.mubr.f32.mxu0 0.0
      %961 = vmatmul.mubr.f32.gmra.mrb[0].mxu0 %v474
      %v962 = vpop.f32.mrb[0].mxu0
      %v963 = vadd.f32 0.0, %v962
      %v964 = vpop.f32.mrb[0].mxu0
      %965 = vmatprep.mubr.f32.mxu0 0.0
      %966 = vmatmul.mubr.f32.gmra.mrb[0].mxu0 %v477
      %v967 = vpop.f32.mrb[0].mxu0
      %v968 = vadd.f32 0.0, %v967
      %v969 = vpop.f32.mrb[0].mxu0
      %970 = vmatprep.mubr.f32.mxu0 0.0
      %971 = vmatmul.mubr.f32.gmra.mrb[0].mxu0 %v480
      %v972 = vpop.f32.mrb[0].mxu0
      %v973 = vadd.f32 0.0, %v972
      %v974 = vpop.f32.mrb[0].mxu0
      %975 = vmatprep.mubr.f32.mxu0 0.0
      %976 = vmatmul.mubr.f32.gmra.mrb[0].mxu0 %v483
      %v977 = vpop.f32.mrb[0].mxu0
      %v978 = vadd.f32 0.0, %v977
      %v979 = vpop.f32.mrb[0].mxu0
      %980 = vmatprep.mubr.f32.mxu0 0.0
      %981 = vmatmul.mubr.f32.gmra.mrb[0].mxu0 %v486
      %v982 = vpop.f32.mrb[0].mxu0
      %v983 = vadd.f32 0.0, %v982
      %v984 = vpop.f32.mrb[0].mxu0
      %985 = vmatprep.mubr.f32.mxu0 0.0
      %986 = vmatmul.mubr.f32.gmra.mrb[0].mxu0 %v489
      %v987 = vpop.f32.mrb[0].mxu0
      %v988 = vadd.f32 0.0, %v987
      %v989 = vpop.f32.mrb[0].mxu0
      %990 = vmatprep.mubr.f32.mxu0 0.0
      %991 = vmatmul.mubr.f32.gmra.mrb[0].mxu0 %v492
      %v992 = vpop.f32.mrb[0].mxu0
      %v993 = vadd.f32 0.0, %v992
      %v994 = vpop.f32.mrb[0].mxu0
      %995 = vmatprep.mubr.f32.mxu0 0.0
      %996 = vmatmul.mubr.f32.gmra.mrb[0].mxu0 %v495
      %v997 = vpop.f32.mrb[0].mxu0
      %v998 = vadd.f32 0.0, %v997
      %v999 = vpop.f32.mrb[0].mxu0
      %1000 = vmatprep.mubr.f32.mxu0 0.0
      %1001 = vmatmul.mubr.f32.gmra.mrb[0].mxu0 %v498
      %v1002 = vpop.f32.mrb[0].mxu0
      %v1003 = vadd.f32 0.0, %v1002
      %v1004 = vpop.f32.mrb[0].mxu0
      %1005 = vmatprep.mubr.f32.mxu0 0.0
      %1006 = vmatmul.mubr.f32.gmra.mrb[0].mxu0 %v501
      %v1007 = vpop.f32.mrb[0].mxu0
      %v1008 = vadd.f32 0.0, %v1007
      %v1009 = vpop.f32.mrb[0].mxu0
      %1010 = vmatprep.mubr.f32.mxu0 0.0
      %1011 = vmatmul.mubr.f32.gmra.mrb[0].mxu0 %v504
      %v1012 = vpop.f32.mrb[0].mxu0
      %v1013 = vadd.f32 0.0, %v1012
      %v1014 = vpop.f32.mrb[0].mxu0
      %1015 = vmatprep.mubr.f32.mxu0 0.0
      %1016 = vmatmul.mubr.f32.gmra.mrb[0].mxu0 %v507
      %v1017 = vpop.f32.mrb[0].mxu0
      %v1018 = vadd.f32 0.0, %v1017
      %v1019 = vpop.f32.mrb[0].mxu0
      %1020 = vmatprep.mubr.f32.mxu0 0.0
      %1021 = vmatmul.mubr.f32.gmra.mrb[0].mxu0 %v510
      %v1022 = vpop.f32.mrb[0].mxu0
      %v1023 = vadd.f32 0.0, %v1022
      %v1024 = vpop.f32.mrb[0].mxu0
      %1025 = vmatprep.mubr.f32.mxu0 0.0
      %1026 = vmatmul.mubr.f32.gmra.mrb[0].mxu0 %v513
      %v1027 = vpop.f32.mrb[0].mxu0
      %v1028 = vadd.f32 0.0, %v1027
      %v1029 = vpop.f32.mrb[0].mxu0
      %1030 = vmatprep.mubr.f32.mxu0 0.0
      %1031 = vmatmul.mubr.f32.gmra.mrb[0].mxu0 %v516
      %v1032 = vpop.f32.mrb[0].mxu0
      %v1033 = vadd.f32 0.0, %v1032
      %v1034 = vpop.f32.mrb[0].mxu0
      %1035 = vmatprep.mubr.f32.mxu0 0.0
      %1036 = vmatmul.mubr.f32.gmra.mrb[0].mxu0 %v519
      %v1037 = vpop.f32.mrb[0].mxu0
      %v1038 = vadd.f32 0.0, %v1037
      %v1039 = vpop.f32.mrb[0].mxu0
      %1040 = vmatprep.mubr.f32.mxu0 0.0
      %1041 = vmatmul.mubr.f32.gmra.mrb[0].mxu0 %v522
      %v1042 = vpop.f32.mrb[0].mxu0
      %v1043 = vadd.f32 0.0, %v1042
      %v1044 = vpop.f32.mrb[0].mxu0
      %1045 = vmatprep.mubr.f32.mxu0 0.0
      %1046 = vmatmul.mubr.f32.gmra.mrb[0].mxu0 %v525
      %v1047 = vpop.f32.mrb[0].mxu0
      %v1048 = vadd.f32 0.0, %v1047
      %v1049 = vpop.f32.mrb[0].mxu0
      %1050 = vmatprep.mubr.f32.mxu0 0.0
      %1051 = vmatmul.mubr.f32.gmra.mrb[0].mxu0 %v528
      %v1052 = vpop.f32.mrb[0].mxu0
      %v1053 = vadd.f32 0.0, %v1052
      %v1054 = vpop.f32.mrb[0].mxu0
      %1055 = vmatprep.mubr.f32.mxu0 0.0
      %1056 = vmatmul.mubr.f32.gmra.mrb[0].mxu0 %v531
      %v1057 = vpop.f32.mrb[0].mxu0
      %v1058 = vadd.f32 0.0, %v1057
      %v1059 = vpop.f32.mrb[0].mxu0
      %1060 = vmatprep.mubr.f32.mxu0 0.0
      %1061 = vmatmul.mubr.f32.gmra.mrb[0].mxu0 %v534
      %v1062 = vpop.f32.mrb[0].mxu0
      %v1063 = vadd.f32 0.0, %v1062
      %v1064 = vpop.f32.mrb[0].mxu0
      %1065 = vmatprep.mubr.f32.mxu0 0.0
      %1066 = vmatmul.mubr.f32.gmra.mrb[0].mxu0 %v537
      %v1067 = vpop.f32.mrb[0].mxu0
      %v1068 = vadd.f32 0.0, %v1067
      %v1069 = vpop.f32.mrb[0].mxu0
      %1070 = vmatprep.mubr.f32.mxu0 0.0
      %1071 = vmatmul.mubr.f32.gmra.mrb[0].mxu0 %v540
      %v1072 = vpop.f32.mrb[0].mxu0
      %v1073 = vadd.f32 0.0, %v1072
      %v1074 = vpop.f32.mrb[0].mxu0
      %1075 = vmatprep.mubr.f32.mxu0 0.0
      %1076 = vmatmul.mubr.f32.gmra.mrb[0].mxu0 %v543
      %v1077 = vpop.f32.mrb[0].mxu0
      %v1078 = vadd.f32 0.0, %v1077
      %v1079 = vpop.f32.mrb[0].mxu0
      %1080 = vmatprep.mubr.f32.mxu0 0.0
      %1081 = vmatmul.mubr.f32.gmra.mrb[0].mxu0 %v546
      %v1082 = vpop.f32.mrb[0].mxu0
      %v1083 = vadd.f32 0.0, %v1082
      %v1084 = vpop.f32.mrb[0].mxu0
      %1085 = vmatprep.mubr.f32.mxu0 0.0
      %1086 = vmatmul.mubr.f32.gmra.mrb[0].mxu0 %v549
      %v1087 = vpop.f32.mrb[0].mxu0
      %v1088 = vadd.f32 0.0, %v1087
      %v1089 = vpop.f32.mrb[0].mxu0
      %1090 = vmatprep.mubr.f32.mxu0 0.0
      %1091 = vmatmul.mubr.f32.gmra.mrb[0].mxu0 %v552
      %v1092 = vpop.f32.mrb[0].mxu0
      %v1093 = vadd.f32 0.0, %v1092
      %v1094 = vpop.f32.mrb[0].mxu0
      %1095 = vmatprep.mubr.f32.mxu0 0.0
      %1096 = vmatmul.mubr.f32.gmra.mrb[0].mxu0 %v555
      %v1097 = vpop.f32.mrb[0].mxu0
      %v1098 = vadd.f32 0.0, %v1097
      %v1099 = vpop.f32.mrb[0].mxu0
      %1100 = vmatprep.mubr.f32.mxu0 0.0
      %1101 = vmatmul.mubr.f32.gmra.mrb[0].mxu0 %v558
      %v1102 = vpop.f32.mrb[0].mxu0
      %v1103 = vadd.f32 0.0, %v1102
      %v1104 = vpop.f32.mrb[0].mxu0
      %1105 = vmatprep.mubr.f32.mxu0 0.0
      %1106 = vmatmul.mubr.f32.gmra.mrb[0].mxu0 %v561
      %v1107 = vpop.f32.mrb[0].mxu0
      %v1108 = vadd.f32 0.0, %v1107
      %v1109 = vpop.f32.mrb[0].mxu0
      %1110 = vmatprep.mubr.f32.mxu0 0.0
      %1111 = vmatmul.mubr.f32.gmra.mrb[0].mxu0 %v564
      %v1112 = vpop.f32.mrb[0].mxu0
      %v1113 = vadd.f32 0.0, %v1112
      %v1114 = vpop.f32.mrb[0].mxu0
      %1115 = vmatprep.mubr.f32.mxu0 0.0
      %1116 = vmatmul.mubr.f32.gmra.mrb[0].mxu0 %v567
      %v1117 = vpop.f32.mrb[0].mxu0
      %v1118 = vadd.f32 0.0, %v1117
      %v1119 = vpop.f32.mrb[0].mxu0
      %1120 = vmatprep.mubr.f32.mxu0 0.0
      %1121 = vmatmul.mubr.f32.gmra.mrb[0].mxu0 %v570
      %v1122 = vpop.f32.mrb[0].mxu0
      %v1123 = vadd.f32 0.0, %v1122
      %v1124 = vpop.f32.mrb[0].mxu0
      %1125 = vmatprep.mubr.f32.mxu0 0.0
      %1126 = vmatmul.mubr.f32.gmra.mrb[0].mxu0 %v573
      %v1127 = vpop.f32.mrb[0].mxu0
      %v1128 = vadd.f32 0.0, %v1127
      %v1129 = vpop.f32.mrb[0].mxu0
      %1130 = vmatprep.mubr.f32.mxu0 0.0
      %1131 = vmatmul.mubr.f32.gmra.mrb[0].mxu0 %v576
      %v1132 = vpop.f32.mrb[0].mxu0
      %v1133 = vadd.f32 0.0, %v1132
      %v1134 = vpop.f32.mrb[0].mxu0
      %1135 = vmatprep.mubr.f32.mxu0 0.0
      %1136 = vmatmul.mubr.f32.gmra.mrb[0].mxu0 %v579
      %v1137 = vpop.f32.mrb[0].mxu0
      %v1138 = vadd.f32 0.0, %v1137
      %v1139 = vpop.f32.mrb[0].mxu0
      %1140 = vmatprep.mubr.f32.mxu0 0.0
      %1141 = vmatmul.mubr.f32.gmra.mrb[0].mxu0 %v582
      %v1142 = vpop.f32.mrb[0].mxu0
      %v1143 = vadd.f32 0.0, %v1142
      %v1144 = vpop.f32.mrb[0].mxu0
      %1145 = vmatprep.mubr.f32.mxu0 0.0
      %1146 = vmatmul.mubr.f32.gmra.mrb[0].mxu0 %v585
      %v1147 = vpop.f32.mrb[0].mxu0
      %v1148 = vadd.f32 0.0, %v1147
      %v1149 = vpop.f32.mrb[0].mxu0
      %1150 = vmatprep.mubr.f32.mxu0 0.0
      %1151 = vmatmul.mubr.f32.gmra.mrb[0].mxu0 %v588
      %v1152 = vpop.f32.mrb[0].mxu0
      %v1153 = vadd.f32 0.0, %v1152
      %v1154 = vpop.f32.mrb[0].mxu0
      %1155 = vmatprep.mubr.f32.mxu0 0.0
      %1156 = vmatmul.mubr.f32.gmra.mrb[0].mxu0 %v591
      %v1157 = vpop.f32.mrb[0].mxu0
      %v1158 = vadd.f32 0.0, %v1157
      %v1159 = vpop.f32.mrb[0].mxu0
      %1160 = vmatprep.mubr.f32.mxu0 0.0
      %1161 = vmatmul.mubr.f32.gmra.mrb[0].mxu0 %v594
      %v1162 = vpop.f32.mrb[0].mxu0
      %v1163 = vadd.f32 0.0, %v1162
      %v1164 = vpop.f32.mrb[0].mxu0
      %1165 = vmatprep.mubr.f32.mxu0 0.0
      %1166 = vmatmul.mubr.f32.gmra.mrb[0].mxu0 %v597
      %v1167 = vpop.f32.mrb[0].mxu0
      %v1168 = vadd.f32 0.0, %v1167
      %v1169 = vpop.f32.mrb[0].mxu0
      %1170 = vmatprep.mubr.f32.mxu0 0.0
      %1171 = vmatmul.mubr.f32.gmra.mrb[0].mxu0 %v600
      %v1172 = vpop.f32.mrb[0].mxu0
      %v1173 = vadd.f32 0.0, %v1172
      %v1174 = vpop.f32.mrb[0].mxu0
      %1175 = vmatprep.mubr.f32.mxu0 0.0
      %1176 = vmatmul.mubr.f32.gmra.mrb[0].mxu0 %v603
      %v1177 = vpop.f32.mrb[0].mxu0
      %v1178 = vadd.f32 0.0, %v1177
      %v1179 = vpop.f32.mrb[0].mxu0
      %1180 = vmatprep.mubr.f32.mxu0 0.0
      %1181 = vmatmul.mubr.f32.gmra.mrb[0].mxu0 %v606
      %v1182 = vpop.f32.mrb[0].mxu0
      %v1183 = vadd.f32 0.0, %v1182
      %v1184 = vpop.f32.mrb[0].mxu0
      %1185 = vmatprep.mubr.f32.mxu0 0.0
      %1186 = vmatmul.mubr.f32.gmra.mrb[0].mxu0 %v609
      %v1187 = vpop.f32.mrb[0].mxu0
      %v1188 = vadd.f32 0.0, %v1187
      %v1189 = vpop.f32.mrb[0].mxu0
      %1190 = vmatprep.mubr.f32.mxu0 0.0
      %1191 = vmatmul.mubr.f32.gmra.mrb[0].mxu0 %v612
      %v1192 = vpop.f32.mrb[0].mxu0
      %v1193 = vadd.f32 0.0, %v1192
      %v1194 = vpop.f32.mrb[0].mxu0
      %1195 = vmatprep.mubr.f32.mxu0 0.0
      %1196 = vmatmul.mubr.f32.gmra.mrb[0].mxu0 %v615
      %v1197 = vpop.f32.mrb[0].mxu0
      %v1198 = vadd.f32 0.0, %v1197
      %v1199 = vpop.f32.mrb[0].mxu0
      %1200 = vmatprep.mubr.f32.mxu0 0.0
      %1201 = vmatmul.mubr.f32.gmra.mrb[0].mxu0 %v618
      %v1202 = vpop.f32.mrb[0].mxu0
      %v1203 = vadd.f32 0.0, %v1202
      %v1204 = vpop.f32.mrb[0].mxu0
      %1205 = vmatprep.mubr.f32.mxu0 0.0
      %1206 = vmatmul.mubr.f32.gmra.mrb[0].mxu0 %v621
      %v1207 = vpop.f32.mrb[0].mxu0
      %v1208 = vadd.f32 0.0, %v1207
      %v1209 = vpop.f32.mrb[0].mxu0
      %1210 = vmatprep.mubr.f32.mxu0 0.0
      %1211 = vmatmul.mubr.f32.gmra.mrb[0].mxu0 %v624
      %v1212 = vpop.f32.mrb[0].mxu0
      %v1213 = vadd.f32 0.0, %v1212
      %v1214 = vpop.f32.mrb[0].mxu0
      %1215 = vmatprep.mubr.f32.mxu0 0.0
      %1216 = vmatmul.mubr.f32.gmra.mrb[0].mxu0 %v627
      %v1217 = vpop.f32.mrb[0].mxu0
      %v1218 = vadd.f32 0.0, %v1217
      %v1219 = vpop.f32.mrb[0].mxu0
      %1220 = vmatprep.mubr.f32.mxu0 0.0
      %1221 = vmatmul.mubr.f32.gmra.mrb[0].mxu0 %v630
      %v1222 = vpop.f32.mrb[0].mxu0
      %v1223 = vadd.f32 0.0, %v1222
      %v1224 = vpop.f32.mrb[0].mxu0
      %1225 = vmatprep.mubr.f32.mxu0 0.0
      %1226 = vmatmul.mubr.f32.gmra.mrb[0].mxu0 %v633
      %v1227 = vpop.f32.mrb[0].mxu0
      %v1228 = vadd.f32 0.0, %v1227
      %v1229 = vpop.f32.mrb[0].mxu0
      %1230 = vmatprep.mubr.f32.mxu0 0.0
      %1231 = vmatmul.mubr.f32.gmra.mrb[0].mxu0 %v636
      %v1232 = vpop.f32.mrb[0].mxu0
      %v1233 = vadd.f32 0.0, %v1232
      %v1234 = vpop.f32.mrb[0].mxu0
      %1235 = vmatprep.mubr.f32.mxu0 0.0
      %1236 = vmatmul.mubr.f32.gmra.mrb[0].mxu0 %v639
      %v1237 = vpop.f32.mrb[0].mxu0
      %v1238 = vadd.f32 0.0, %v1237
      %v1239 = vpop.f32.mrb[0].mxu0
      %1240 = vmatprep.mubr.f32.mxu0 0.0
      %1241 = vmatmul.mubr.f32.gmra.mrb[0].mxu0 %v642
      %v1242 = vpop.f32.mrb[0].mxu0
      %v1243 = vadd.f32 0.0, %v1242
      %v1244 = vpop.f32.mrb[0].mxu0
      %1245 = vmatprep.mubr.f32.mxu0 0.0
      %1246 = vmatmul.mubr.f32.gmra.mrb[0].mxu0 %v645
      %v1247 = vpop.f32.mrb[0].mxu0
      %v1248 = vadd.f32 0.0, %v1247
      %v1249 = vpop.f32.mrb[0].mxu0
      %1250 = vmatprep.mubr.f32.mxu0 0.0
      %1251 = vmatmul.mubr.f32.gmra.mrb[0].mxu0 %v648
      %v1252 = vpop.f32.mrb[0].mxu0
      %v1253 = vadd.f32 0.0, %v1252
      %v1254 = vpop.f32.mrb[0].mxu0
      %1255 = vmatprep.mubr.f32.mxu0 0.0
      %1256 = vmatmul.mubr.f32.gmra.mrb[0].mxu0 %v651
      %v1257 = vpop.f32.mrb[0].mxu0
      %v1258 = vadd.f32 0.0, %v1257
      %v1259 = vpop.f32.mrb[0].mxu0
      %1260 = vmatprep.mubr.f32.mxu0 0.0
      %1261 = vmatmul.mubr.f32.gmra.mrb[0].mxu0 %v654
      %v1262 = vpop.f32.mrb[0].mxu0
      %v1263 = vadd.f32 0.0, %v1262
      %v1264 = vpop.f32.mrb[0].mxu0
      %1265 = vmatprep.mubr.f32.mxu0 0.0
      %1266 = vmatmul.mubr.f32.gmra.mrb[0].mxu0 %v657
      %v1267 = vpop.f32.mrb[0].mxu0
      %v1268 = vadd.f32 0.0, %v1267
      %v1269 = vpop.f32.mrb[0].mxu0
      %1270 = vmatprep.mubr.f32.mxu0 0.0
      %1271 = vmatmul.mubr.f32.gmra.mrb[0].mxu0 %v660
      %v1272 = vpop.f32.mrb[0].mxu0
      %v1273 = vadd.f32 0.0, %v1272
      %v1274 = vpop.f32.mrb[0].mxu0
      %1275 = vmatprep.mubr.f32.mxu0 0.0
      %1276 = vmatmul.mubr.f32.gmra.mrb[0].mxu0 %v663
      %v1277 = vpop.f32.mrb[0].mxu0
      %v1278 = vadd.f32 0.0, %v1277
      %v1279 = vpop.f32.mrb[0].mxu0
      %1280 = vmatprep.mubr.f32.mxu0 0.0
      %1281 = vmatmul.mubr.f32.gmra.mrb[0].mxu0 %v666
      %v1282 = vpop.f32.mrb[0].mxu0
      %v1283 = vadd.f32 0.0, %v1282
      %v1284 = vpop.f32.mrb[0].mxu0
      %1285 = vmatprep.mubr.f32.mxu0 0.0
      %1286 = vmatmul.mubr.f32.gmra.mrb[0].mxu0 %v669
      %v1287 = vpop.f32.mrb[0].mxu0
      %v1288 = vadd.f32 0.0, %v1287
      %v1289 = vpop.f32.mrb[0].mxu0
      %1290 = vmatprep.mubr.f32.mxu0 0.0
      %1291 = vmatmul.mubr.f32.gmra.mrb[0].mxu0 %v672
      %v1292 = vpop.f32.mrb[0].mxu0
      %v1293 = vadd.f32 0.0, %v1292
      %v1294 = vpop.f32.mrb[0].mxu0
      %1295 = vmatprep.mubr.f32.mxu0 0.0
      %1296 = vmatmul.mubr.f32.gmra.mrb[0].mxu0 %v675
      %v1297 = vpop.f32.mrb[0].mxu0
      %v1298 = vadd.f32 0.0, %v1297
      %v1299 = vpop.f32.mrb[0].mxu0
      %1300 = vmatprep.mubr.f32.mxu0 0.0
      %1301 = vmatmul.mubr.f32.gmra.mrb[0].mxu0 %v678
      %v1302 = vpop.f32.mrb[0].mxu0
      %v1303 = vadd.f32 0.0, %v1302
      %v1304 = vpop.f32.mrb[0].mxu0
      %1305 = vmatprep.mubr.f32.mxu0 0.0
      %1306 = vmatmul.mubr.f32.gmra.mrb[0].mxu0 %v681
      %v1307 = vpop.f32.mrb[0].mxu0
      %v1308 = vadd.f32 0.0, %v1307
      %v1309 = vpop.f32.mrb[0].mxu0
      %1310 = vmatprep.mubr.f32.mxu0 0.0
      %1311 = vmatmul.mubr.f32.gmra.mrb[0].mxu0 %v684
      %v1312 = vpop.f32.mrb[0].mxu0
      %v1313 = vadd.f32 0.0, %v1312
      %v1314 = vpop.f32.mrb[0].mxu0
      %1315 = vmatprep.mubr.f32.mxu0 0.0
      %1316 = vmatmul.mubr.f32.gmra.mrb[0].mxu0 %v687
      %v1317 = vpop.f32.mrb[0].mxu0
      %v1318 = vadd.f32 0.0, %v1317
      %v1319 = vpop.f32.mrb[0].mxu0
      %1320 = vmatprep.mubr.f32.mxu0 0.0
      %1321 = vmatmul.mubr.f32.gmra.mrb[0].mxu0 %v690
      %v1322 = vpop.f32.mrb[0].mxu0
      %v1323 = vadd.f32 0.0, %v1322
      %v1324 = vpop.f32.mrb[0].mxu0
      %1325 = vmatprep.mubr.f32.mxu0 0.0
      %1326 = vmatmul.mubr.f32.gmra.mrb[0].mxu0 %v693
      %v1327 = vpop.f32.mrb[0].mxu0
      %v1328 = vadd.f32 0.0, %v1327
      %v1329 = vpop.f32.mrb[0].mxu0
      %1330 = vmatprep.mubr.f32.mxu0 0.0
      %1331 = vmatmul.mubr.f32.gmra.mrb[0].mxu0 %v696
      %v1332 = vpop.f32.mrb[0].mxu0
      %v1333 = vadd.f32 0.0, %v1332
      %v1334 = vpop.f32.mrb[0].mxu0
      %1335 = vmatprep.mubr.f32.mxu0 0.0
      %1336 = vmatmul.mubr.f32.gmra.mrb[0].mxu0 %v699
      %v1337 = vpop.f32.mrb[0].mxu0
      %v1338 = vadd.f32 0.0, %v1337
      %v1339 = vpop.f32.mrb[0].mxu0
      %1340 = vmatprep.mubr.f32.mxu0 0.0
      %1341 = vmatmul.mubr.f32.gmra.mrb[0].mxu0 %v702
      %v1342 = vpop.f32.mrb[0].mxu0
      %v1343 = vadd.f32 0.0, %v1342
      %v1344 = vpop.f32.mrb[0].mxu0
      %1345 = vmatprep.mubr.f32.mxu0 0.0
      %1346 = vmatmul.mubr.f32.gmra.mrb[0].mxu0 %v705
      %v1347 = vpop.f32.mrb[0].mxu0
      %v1348 = vadd.f32 0.0, %v1347
      %v1349 = vpop.f32.mrb[0].mxu0
      %1350 = vmatprep.mubr.f32.mxu0 0.0
      %1351 = vmatmul.mubr.f32.gmra.mrb[0].mxu0 %v708
      %v1352 = vpop.f32.mrb[0].mxu0
      %v1353 = vadd.f32 0.0, %v1352
      %v1354 = vpop.f32.mrb[0].mxu0
      %1355 = vmatprep.mubr.f32.mxu0 0.0
      %1356 = vmatmul.mubr.f32.gmra.mrb[0].mxu0 %v711
      %v1357 = vpop.f32.mrb[0].mxu0
      %v1358 = vadd.f32 0.0, %v1357
      %v1359 = vpop.f32.mrb[0].mxu0
      %1360 = vmatprep.mubr.f32.mxu0 0.0
      %1361 = vmatmul.mubr.f32.gmra.mrb[0].mxu0 %v714
      %v1362 = vpop.f32.mrb[0].mxu0
      %v1363 = vadd.f32 0.0, %v1362
      %v1364 = vpop.f32.mrb[0].mxu0
      %1365 = vmatprep.mubr.f32.mxu0 0.0
      %1366 = vmatmul.mubr.f32.gmra.mrb[0].mxu0 %v717
      %v1367 = vpop.f32.mrb[0].mxu0
      %v1368 = vadd.f32 0.0, %v1367
      %v1369 = vpop.f32.mrb[0].mxu0
      %1370 = vmatprep.mubr.f32.mxu0 0.0
      %1371 = vmatmul.mubr.f32.gmra.mrb[0].mxu0 %v720
      %v1372 = vpop.f32.mrb[0].mxu0
      %v1373 = vadd.f32 0.0, %v1372
      %v1374 = vpop.f32.mrb[0].mxu0
      %1375 = vmatprep.mubr.f32.mxu0 0.0
      %1376 = vmatmul.mubr.f32.gmra.mrb[0].mxu0 %v723
      %v1377 = vpop.f32.mrb[0].mxu0
      %v1378 = vadd.f32 0.0, %v1377
      %v1379 = vpop.f32.mrb[0].mxu0
      %1380 = vmatprep.mubr.f32.mxu0 0.0
      %1381 = vmatmul.mubr.f32.gmra.mrb[0].mxu0 %v726
      %v1382 = vpop.f32.mrb[0].mxu0
      %v1383 = vadd.f32 0.0, %v1382
      %v1384 = vpop.f32.mrb[0].mxu0
      %1385 = vmatprep.mubr.f32.mxu0 0.0
      %1386 = vmatmul.mubr.f32.gmra.mrb[0].mxu0 %v729
      %v1387 = vpop.f32.mrb[0].mxu0
      %v1388 = vadd.f32 0.0, %v1387
      %v1389 = vpop.f32.mrb[0].mxu0
      %1390 = vmatprep.mubr.f32.mxu0 0.0
      %1391 = vmatmul.mubr.f32.gmra.mrb[0].mxu0 %v732
      %v1392 = vpop.f32.mrb[0].mxu0
      %v1393 = vadd.f32 0.0, %v1392
      %v1394 = vpop.f32.mrb[0].mxu0
      %1395 = vmatprep.mubr.f32.mxu0 0.0
      %1396 = vmatmul.mubr.f32.gmra.mrb[0].mxu0 %v735
      %v1397 = vpop.f32.mrb[0].mxu0
      %v1398 = vadd.f32 0.0, %v1397
      %v1399 = vpop.f32.mrb[0].mxu0
      %1400 = vmatprep.mubr.f32.mxu0 0.0
      %1401 = vmatmul.mubr.f32.gmra.mrb[0].mxu0 %v738
      %v1402 = vpop.f32.mrb[0].mxu0
      %v1403 = vadd.f32 0.0, %v1402
      %v1404 = vpop.f32.mrb[0].mxu0
      %1405 = vmatprep.mubr.f32.mxu0 0.0
      %1406 = vmatmul.mubr.f32.gmra.mrb[0].mxu0 %v741
      %v1407 = vpop.f32.mrb[0].mxu0
      %v1408 = vadd.f32 0.0, %v1407
      %v1409 = vpop.f32.mrb[0].mxu0
      %1410 = vmatprep.mubr.f32.mxu0 0.0
      %1411 = vmatmul.mubr.f32.gmra.mrb[0].mxu0 %v744
      %v1412 = vpop.f32.mrb[0].mxu0
      %v1413 = vadd.f32 0.0, %v1412
      %v1414 = vpop.f32.mrb[0].mxu0
      %1415 = vdwg.mxu0
      %v1416 = vld [vmem:[%s2] sm:$0xff]
      %v1417 = vld [vmem:[%s2 + $0x8] sm:$0xff]
      %v1418 = vld [vmem:[%s2 + $0x10] sm:$0xff]
      %v1419 = vld [vmem:[%s2 + $0x18] sm:$0xff]
      %v1420 = vld [vmem:[%s2 + $0x20] sm:$0xff]
      %v1421 = vld [vmem:[%s2 + $0x28] sm:$0xff]
      %1422 = vmatprep.subr.mxu0 0.0
      %1423 = vmatpush1.msra.mxu0 %v1416
      %1424 = vmatprep.subr.mxu0 0.0
      %1425 = vmatpush1.msra.mxu0 %v1417
      %1426 = vmatprep.subr.mxu0 0.0
      %1427 = vmatpush1.msra.mxu0 %v1418
      %1428 = vmatprep.subr.mxu0 0.0
      %1429 = vmatpush1.msra.mxu0 %v1419
      %1430 = vmatprep.subr.mxu0 0.0
      %1431 = vmatpush1.msra.mxu0 %v1420
      %1432 = vmatprep.subr.mxu0 0.0
      %1433 = vmatpush1.msra.mxu0 %v1421
      %1434 = vmatprep.subr.mxu0 0.0
      %1435 = vmatpush1.msra.mxu0 0.0
      %1436 = vmatprep.subr.mxu0 0.0
      %1437 = vmatpush1.msra.mxu0 0.0
      %1438 = vmatprep.subr.mxu0 0.0
      %1439 = vmatpush1.msra.mxu0 0.0
      %1440 = vmatprep.subr.mxu0 0.0
      %1441 = vmatpush1.msra.mxu0 0.0
      %1442 = vmatprep.subr.mxu0 0.0
      %1443 = vmatpush1.msra.mxu0 0.0
      %1444 = vmatprep.subr.mxu0 0.0
      %1445 = vmatpush1.msra.mxu0 0.0
      %1446 = vmatprep.subr.mxu0 0.0
      %1447 = vmatpush1.msra.mxu0 0.0
      %1448 = vmatprep.subr.mxu0 0.0
      %1449 = vmatpush1.msra.mxu0 0.0
      %1450 = vmatprep.subr.mxu0 0.0
      %1451 = vmatpush1.msra.mxu0 0.0
      %1452 = vmatprep.subr.mxu0 0.0
      %1453 = vmatpush1.msra.mxu0 0.0
      %1454 = vmatprep.subr.mxu0 0.0
      %1455 = vmatpush1.msra.mxu0 0.0
      %1456 = vmatprep.subr.mxu0 0.0
      %1457 = vmatpush1.msra.mxu0 0.0
      %1458 = vmatprep.subr.mxu0 0.0
      %1459 = vmatpush1.msra.mxu0 0.0
      %1460 = vmatprep.subr.mxu0 0.0
      %1461 = vmatpush1.msra.mxu0 0.0
      %1462 = vmatprep.subr.mxu0 0.0
      %1463 = vmatpush1.msra.mxu0 0.0
      %1464 = vmatprep.subr.mxu0 0.0
      %1465 = vmatpush1.msra.mxu0 0.0
      %1466 = vmatprep.subr.mxu0 0.0
      %1467 = vmatpush1.msra.mxu0 0.0
      %1468 = vmatprep.subr.mxu0 0.0
      %1469 = vmatpush1.msra.mxu0 0.0
      %1470 = vmatprep.subr.mxu0 0.0
      %1471 = vmatpush1.msra.mxu0 0.0
      %1472 = vmatprep.subr.mxu0 0.0
      %1473 = vmatpush1.msra.mxu0 0.0
      %1474 = vmatprep.subr.mxu0 0.0
      %1475 = vmatpush1.msra.mxu0 0.0
      %1476 = vmatprep.subr.mxu0 0.0
      %1477 = vmatpush1.msra.mxu0 0.0
      %1478 = vmatprep.subr.mxu0 0.0
      %1479 = vmatpush1.msra.mxu0 0.0
      %1480 = vmatprep.subr.mxu0 0.0
      %1481 = vmatpush1.msra.mxu0 0.0
      %1482 = vmatprep.subr.mxu0 0.0
      %1483 = vmatpush1.msra.mxu0 0.0
      %1484 = vmatprep.subr.mxu0 0.0
      %1485 = vmatpush1.msra.mxu0 0.0
      %1486 = vmatprep.mubr.f32.mxu0 0.0
      %1487 = vmatmul.mubr.f32.gmra.mrb[0].mxu0 %v384
      %v1488 = vpop.f32.mrb[0].mxu0
      %v1489 = vadd.f32 0.0, %v1488
      %v1490 = vpop.f32.mrb[0].mxu0
      %1491 = vmatprep.mubr.f32.mxu0 0.0
      %1492 = vmatmul.mubr.f32.gmra.mrb[0].mxu0 %v387
      %v1493 = vpop.f32.mrb[0].mxu0
      %v1494 = vadd.f32 0.0, %v1493
      %v1495 = vpop.f32.mrb[0].mxu0
      %1496 = vmatprep.mubr.f32.mxu0 0.0
      %1497 = vmatmul.mubr.f32.gmra.mrb[0].mxu0 %v390
      %v1498 = vpop.f32.mrb[0].mxu0
      %v1499 = vadd.f32 0.0, %v1498
      %v1500 = vpop.f32.mrb[0].mxu0
      %1501 = vmatprep.mubr.f32.mxu0 0.0
      %1502 = vmatmul.mubr.f32.gmra.mrb[0].mxu0 %v393
      %v1503 = vpop.f32.mrb[0].mxu0
      %v1504 = vadd.f32 0.0, %v1503
      %v1505 = vpop.f32.mrb[0].mxu0
      %1506 = vmatprep.mubr.f32.mxu0 0.0
      %1507 = vmatmul.mubr.f32.gmra.mrb[0].mxu0 %v396
      %v1508 = vpop.f32.mrb[0].mxu0
      %v1509 = vadd.f32 0.0, %v1508
      %v1510 = vpop.f32.mrb[0].mxu0
      %1511 = vmatprep.mubr.f32.mxu0 0.0
      %1512 = vmatmul.mubr.f32.gmra.mrb[0].mxu0 %v399
      %v1513 = vpop.f32.mrb[0].mxu0
      %v1514 = vadd.f32 0.0, %v1513
      %v1515 = vpop.f32.mrb[0].mxu0
      %1516 = vmatprep.mubr.f32.mxu0 0.0
      %1517 = vmatmul.mubr.f32.gmra.mrb[0].mxu0 %v402
      %v1518 = vpop.f32.mrb[0].mxu0
      %v1519 = vadd.f32 0.0, %v1518
      %v1520 = vpop.f32.mrb[0].mxu0
      %1521 = vmatprep.mubr.f32.mxu0 0.0
      %1522 = vmatmul.mubr.f32.gmra.mrb[0].mxu0 %v405
      %v1523 = vpop.f32.mrb[0].mxu0
      %v1524 = vadd.f32 0.0, %v1523
      %v1525 = vpop.f32.mrb[0].mxu0
      %1526 = vmatprep.mubr.f32.mxu0 0.0
      %1527 = vmatmul.mubr.f32.gmra.mrb[0].mxu0 %v408
      %v1528 = vpop.f32.mrb[0].mxu0
      %v1529 = vadd.f32 0.0, %v1528
      %v1530 = vpop.f32.mrb[0].mxu0
      %1531 = vmatprep.mubr.f32.mxu0 0.0
      %1532 = vmatmul.mubr.f32.gmra.mrb[0].mxu0 %v411
      %v1533 = vpop.f32.mrb[0].mxu0
      %v1534 = vadd.f32 0.0, %v1533
      %v1535 = vpop.f32.mrb[0].mxu0
      %1536 = vmatprep.mubr.f32.mxu0 0.0
      %1537 = vmatmul.mubr.f32.gmra.mrb[0].mxu0 %v414
      %v1538 = vpop.f32.mrb[0].mxu0
      %v1539 = vadd.f32 0.0, %v1538
      %v1540 = vpop.f32.mrb[0].mxu0
      %1541 = vmatprep.mubr.f32.mxu0 0.0
      %1542 = vmatmul.mubr.f32.gmra.mrb[0].mxu0 %v417
      %v1543 = vpop.f32.mrb[0].mxu0
      %v1544 = vadd.f32 0.0, %v1543
      %v1545 = vpop.f32.mrb[0].mxu0
      %1546 = vmatprep.mubr.f32.mxu0 0.0
      %1547 = vmatmul.mubr.f32.gmra.mrb[0].mxu0 %v420
      %v1548 = vpop.f32.mrb[0].mxu0
      %v1549 = vadd.f32 0.0, %v1548
      %v1550 = vpop.f32.mrb[0].mxu0
      %1551 = vmatprep.mubr.f32.mxu0 0.0
      %1552 = vmatmul.mubr.f32.gmra.mrb[0].mxu0 %v423
      %v1553 = vpop.f32.mrb[0].mxu0
      %v1554 = vadd.f32 0.0, %v1553
      %v1555 = vpop.f32.mrb[0].mxu0
      %1556 = vmatprep.mubr.f32.mxu0 0.0
      %1557 = vmatmul.mubr.f32.gmra.mrb[0].mxu0 %v426
      %v1558 = vpop.f32.mrb[0].mxu0
      %v1559 = vadd.f32 0.0, %v1558
      %v1560 = vpop.f32.mrb[0].mxu0
      %1561 = vmatprep.mubr.f32.mxu0 0.0
      %1562 = vmatmul.mubr.f32.gmra.mrb[0].mxu0 %v429
      %v1563 = vpop.f32.mrb[0].mxu0
      %v1564 = vadd.f32 0.0, %v1563
      %v1565 = vpop.f32.mrb[0].mxu0
      %1566 = vmatprep.mubr.f32.mxu0 0.0
      %1567 = vmatmul.mubr.f32.gmra.mrb[0].mxu0 %v432
      %v1568 = vpop.f32.mrb[0].mxu0
      %v1569 = vadd.f32 0.0, %v1568
      %v1570 = vpop.f32.mrb[0].mxu0
      %1571 = vmatprep.mubr.f32.mxu0 0.0
      %1572 = vmatmul.mubr.f32.gmra.mrb[0].mxu0 %v435
      %v1573 = vpop.f32.mrb[0].mxu0
      %v1574 = vadd.f32 0.0, %v1573
      %v1575 = vpop.f32.mrb[0].mxu0
      %1576 = vmatprep.mubr.f32.mxu0 0.0
      %1577 = vmatmul.mubr.f32.gmra.mrb[0].mxu0 %v438
      %v1578 = vpop.f32.mrb[0].mxu0
      %v1579 = vadd.f32 0.0, %v1578
      %v1580 = vpop.f32.mrb[0].mxu0
      %1581 = vmatprep.mubr.f32.mxu0 0.0
      %1582 = vmatmul.mubr.f32.gmra.mrb[0].mxu0 %v441
      %v1583 = vpop.f32.mrb[0].mxu0
      %v1584 = vadd.f32 0.0, %v1583
      %v1585 = vpop.f32.mrb[0].mxu0
      %1586 = vmatprep.mubr.f32.mxu0 0.0
      %1587 = vmatmul.mubr.f32.gmra.mrb[0].mxu0 %v444
      %v1588 = vpop.f32.mrb[0].mxu0
      %v1589 = vadd.f32 0.0, %v1588
      %v1590 = vpop.f32.mrb[0].mxu0
      %1591 = vmatprep.mubr.f32.mxu0 0.0
      %1592 = vmatmul.mubr.f32.gmra.mrb[0].mxu0 %v447
      %v1593 = vpop.f32.mrb[0].mxu0
      %v1594 = vadd.f32 0.0, %v1593
      %v1595 = vpop.f32.mrb[0].mxu0
      %1596 = vmatprep.mubr.f32.mxu0 0.0
      %1597 = vmatmul.mubr.f32.gmra.mrb[0].mxu0 %v450
      %v1598 = vpop.f32.mrb[0].mxu0
      %v1599 = vadd.f32 0.0, %v1598
      %v1600 = vpop.f32.mrb[0].mxu0
      %1601 = vmatprep.mubr.f32.mxu0 0.0
      %1602 = vmatmul.mubr.f32.gmra.mrb[0].mxu0 %v453
      %v1603 = vpop.f32.mrb[0].mxu0
      %v1604 = vadd.f32 0.0, %v1603
      %v1605 = vpop.f32.mrb[0].mxu0
      %1606 = vmatprep.mubr.f32.mxu0 0.0
      %1607 = vmatmul.mubr.f32.gmra.mrb[0].mxu0 %v456
      %v1608 = vpop.f32.mrb[0].mxu0
      %v1609 = vadd.f32 0.0, %v1608
      %v1610 = vpop.f32.mrb[0].mxu0
      %1611 = vmatprep.mubr.f32.mxu0 0.0
      %1612 = vmatmul.mubr.f32.gmra.mrb[0].mxu0 %v459
      %v1613 = vpop.f32.mrb[0].mxu0
      %v1614 = vadd.f32 0.0, %v1613
      %v1615 = vpop.f32.mrb[0].mxu0
      %1616 = vmatprep.mubr.f32.mxu0 0.0
      %1617 = vmatmul.mubr.f32.gmra.mrb[0].mxu0 %v462
      %v1618 = vpop.f32.mrb[0].mxu0
      %v1619 = vadd.f32 0.0, %v1618
      %v1620 = vpop.f32.mrb[0].mxu0
      %1621 = vmatprep.mubr.f32.mxu0 0.0
      %1622 = vmatmul.mubr.f32.gmra.mrb[0].mxu0 %v465
      %v1623 = vpop.f32.mrb[0].mxu0
      %v1624 = vadd.f32 0.0, %v1623
      %v1625 = vpop.f32.mrb[0].mxu0
      %1626 = vmatprep.mubr.f32.mxu0 0.0
      %1627 = vmatmul.mubr.f32.gmra.mrb[0].mxu0 %v468
      %v1628 = vpop.f32.mrb[0].mxu0
      %v1629 = vadd.f32 0.0, %v1628
      %v1630 = vpop.f32.mrb[0].mxu0
      %1631 = vmatprep.mubr.f32.mxu0 0.0
      %1632 = vmatmul.mubr.f32.gmra.mrb[0].mxu0 %v471
      %v1633 = vpop.f32.mrb[0].mxu0
      %v1634 = vadd.f32 0.0, %v1633
      %v1635 = vpop.f32.mrb[0].mxu0
      %1636 = vmatprep.mubr.f32.mxu0 0.0
      %1637 = vmatmul.mubr.f32.gmra.mrb[0].mxu0 %v474
      %v1638 = vpop.f32.mrb[0].mxu0
      %v1639 = vadd.f32 0.0, %v1638
      %v1640 = vpop.f32.mrb[0].mxu0
      %1641 = vmatprep.mubr.f32.mxu0 0.0
      %1642 = vmatmul.mubr.f32.gmra.mrb[0].mxu0 %v477
      %v1643 = vpop.f32.mrb[0].mxu0
      %v1644 = vadd.f32 0.0, %v1643
      %v1645 = vpop.f32.mrb[0].mxu0
      %1646 = vmatprep.mubr.f32.mxu0 0.0
      %1647 = vmatmul.mubr.f32.gmra.mrb[0].mxu0 %v480
      %v1648 = vpop.f32.mrb[0].mxu0
      %v1649 = vadd.f32 0.0, %v1648
      %v1650 = vpop.f32.mrb[0].mxu0
      %1651 = vmatprep.mubr.f32.mxu0 0.0
      %1652 = vmatmul.mubr.f32.gmra.mrb[0].mxu0 %v483
      %v1653 = vpop.f32.mrb[0].mxu0
      %v1654 = vadd.f32 0.0, %v1653
      %v1655 = vpop.f32.mrb[0].mxu0
      %1656 = vmatprep.mubr.f32.mxu0 0.0
      %1657 = vmatmul.mubr.f32.gmra.mrb[0].mxu0 %v486
      %v1658 = vpop.f32.mrb[0].mxu0
      %v1659 = vadd.f32 0.0, %v1658
      %v1660 = vpop.f32.mrb[0].mxu0
      %1661 = vmatprep.mubr.f32.mxu0 0.0
      %1662 = vmatmul.mubr.f32.gmra.mrb[0].mxu0 %v489
      %v1663 = vpop.f32.mrb[0].mxu0
      %v1664 = vadd.f32 0.0, %v1663
      %v1665 = vpop.f32.mrb[0].mxu0
      %1666 = vmatprep.mubr.f32.mxu0 0.0
      %1667 = vmatmul.mubr.f32.gmra.mrb[0].mxu0 %v492
      %v1668 = vpop.f32.mrb[0].mxu0
      %v1669 = vadd.f32 0.0, %v1668
      %v1670 = vpop.f32.mrb[0].mxu0
      %1671 = vmatprep.mubr.f32.mxu0 0.0
      %1672 = vmatmul.mubr.f32.gmra.mrb[0].mxu0 %v495
      %v1673 = vpop.f32.mrb[0].mxu0
      %v1674 = vadd.f32 0.0, %v1673
      %v1675 = vpop.f32.mrb[0].mxu0
      %1676 = vmatprep.mubr.f32.mxu0 0.0
      %1677 = vmatmul.mubr.f32.gmra.mrb[0].mxu0 %v498
      %v1678 = vpop.f32.mrb[0].mxu0
      %v1679 = vadd.f32 0.0, %v1678
      %v1680 = vpop.f32.mrb[0].mxu0
      %1681 = vmatprep.mubr.f32.mxu0 0.0
      %1682 = vmatmul.mubr.f32.gmra.mrb[0].mxu0 %v501
      %v1683 = vpop.f32.mrb[0].mxu0
      %v1684 = vadd.f32 0.0, %v1683
      %v1685 = vpop.f32.mrb[0].mxu0
      %1686 = vmatprep.mubr.f32.mxu0 0.0
      %1687 = vmatmul.mubr.f32.gmra.mrb[0].mxu0 %v504
      %v1688 = vpop.f32.mrb[0].mxu0
      %v1689 = vadd.f32 0.0, %v1688
      %v1690 = vpop.f32.mrb[0].mxu0
      %1691 = vmatprep.mubr.f32.mxu0 0.0
      %1692 = vmatmul.mubr.f32.gmra.mrb[0].mxu0 %v507
      %v1693 = vpop.f32.mrb[0].mxu0
      %v1694 = vadd.f32 0.0, %v1693
      %v1695 = vpop.f32.mrb[0].mxu0
      %1696 = vmatprep.mubr.f32.mxu0 0.0
      %1697 = vmatmul.mubr.f32.gmra.mrb[0].mxu0 %v510
      %v1698 = vpop.f32.mrb[0].mxu0
      %v1699 = vadd.f32 0.0, %v1698
      %v1700 = vpop.f32.mrb[0].mxu0
      %1701 = vmatprep.mubr.f32.mxu0 0.0
      %1702 = vmatmul.mubr.f32.gmra.mrb[0].mxu0 %v513
      %v1703 = vpop.f32.mrb[0].mxu0
      %v1704 = vadd.f32 0.0, %v1703
      %v1705 = vpop.f32.mrb[0].mxu0
      %1706 = vmatprep.mubr.f32.mxu0 0.0
      %1707 = vmatmul.mubr.f32.gmra.mrb[0].mxu0 %v516
      %v1708 = vpop.f32.mrb[0].mxu0
      %v1709 = vadd.f32 0.0, %v1708
      %v1710 = vpop.f32.mrb[0].mxu0
      %1711 = vmatprep.mubr.f32.mxu0 0.0
      %1712 = vmatmul.mubr.f32.gmra.mrb[0].mxu0 %v519
      %v1713 = vpop.f32.mrb[0].mxu0
      %v1714 = vadd.f32 0.0, %v1713
      %v1715 = vpop.f32.mrb[0].mxu0
      %1716 = vmatprep.mubr.f32.mxu0 0.0
      %1717 = vmatmul.mubr.f32.gmra.mrb[0].mxu0 %v522
      %v1718 = vpop.f32.mrb[0].mxu0
      %v1719 = vadd.f32 0.0, %v1718
      %v1720 = vpop.f32.mrb[0].mxu0
      %1721 = vmatprep.mubr.f32.mxu0 0.0
      %1722 = vmatmul.mubr.f32.gmra.mrb[0].mxu0 %v525
      %v1723 = vpop.f32.mrb[0].mxu0
      %v1724 = vadd.f32 0.0, %v1723
      %v1725 = vpop.f32.mrb[0].mxu0
      %1726 = vmatprep.mubr.f32.mxu0 0.0
      %1727 = vmatmul.mubr.f32.gmra.mrb[0].mxu0 %v528
      %v1728 = vpop.f32.mrb[0].mxu0
      %v1729 = vadd.f32 0.0, %v1728
      %v1730 = vpop.f32.mrb[0].mxu0
      %1731 = vmatprep.mubr.f32.mxu0 0.0
      %1732 = vmatmul.mubr.f32.gmra.mrb[0].mxu0 %v531
      %v1733 = vpop.f32.mrb[0].mxu0
      %v1734 = vadd.f32 0.0, %v1733
      %v1735 = vpop.f32.mrb[0].mxu0
      %1736 = vmatprep.mubr.f32.mxu0 0.0
      %1737 = vmatmul.mubr.f32.gmra.mrb[0].mxu0 %v534
      %v1738 = vpop.f32.mrb[0].mxu0
      %v1739 = vadd.f32 0.0, %v1738
      %v1740 = vpop.f32.mrb[0].mxu0
      %1741 = vmatprep.mubr.f32.mxu0 0.0
      %1742 = vmatmul.mubr.f32.gmra.mrb[0].mxu0 %v537
      %v1743 = vpop.f32.mrb[0].mxu0
      %v1744 = vadd.f32 0.0, %v1743
      %v1745 = vpop.f32.mrb[0].mxu0
      %1746 = vmatprep.mubr.f32.mxu0 0.0
      %1747 = vmatmul.mubr.f32.gmra.mrb[0].mxu0 %v540
      %v1748 = vpop.f32.mrb[0].mxu0
      %v1749 = vadd.f32 0.0, %v1748
      %v1750 = vpop.f32.mrb[0].mxu0
      %1751 = vmatprep.mubr.f32.mxu0 0.0
      %1752 = vmatmul.mubr.f32.gmra.mrb[0].mxu0 %v543
      %v1753 = vpop.f32.mrb[0].mxu0
      %v1754 = vadd.f32 0.0, %v1753
      %v1755 = vpop.f32.mrb[0].mxu0
      %1756 = vmatprep.mubr.f32.mxu0 0.0
      %1757 = vmatmul.mubr.f32.gmra.mrb[0].mxu0 %v546
      %v1758 = vpop.f32.mrb[0].mxu0
      %v1759 = vadd.f32 0.0, %v1758
      %v1760 = vpop.f32.mrb[0].mxu0
      %1761 = vmatprep.mubr.f32.mxu0 0.0
      %1762 = vmatmul.mubr.f32.gmra.mrb[0].mxu0 %v549
      %v1763 = vpop.f32.mrb[0].mxu0
      %v1764 = vadd.f32 0.0, %v1763
      %v1765 = vpop.f32.mrb[0].mxu0
      %1766 = vmatprep.mubr.f32.mxu0 0.0
      %1767 = vmatmul.mubr.f32.gmra.mrb[0].mxu0 %v552
      %v1768 = vpop.f32.mrb[0].mxu0
      %v1769 = vadd.f32 0.0, %v1768
      %v1770 = vpop.f32.mrb[0].mxu0
      %1771 = vmatprep.mubr.f32.mxu0 0.0
      %1772 = vmatmul.mubr.f32.gmra.mrb[0].mxu0 %v555
      %v1773 = vpop.f32.mrb[0].mxu0
      %v1774 = vadd.f32 0.0, %v1773
      %v1775 = vpop.f32.mrb[0].mxu0
      %1776 = vmatprep.mubr.f32.mxu0 0.0
      %1777 = vmatmul.mubr.f32.gmra.mrb[0].mxu0 %v558
      %v1778 = vpop.f32.mrb[0].mxu0
      %v1779 = vadd.f32 0.0, %v1778
      %v1780 = vpop.f32.mrb[0].mxu0
      %1781 = vmatprep.mubr.f32.mxu0 0.0
      %1782 = vmatmul.mubr.f32.gmra.mrb[0].mxu0 %v561
      %v1783 = vpop.f32.mrb[0].mxu0
      %v1784 = vadd.f32 0.0, %v1783
      %v1785 = vpop.f32.mrb[0].mxu0
      %1786 = vmatprep.mubr.f32.mxu0 0.0
      %1787 = vmatmul.mubr.f32.gmra.mrb[0].mxu0 %v564
      %v1788 = vpop.f32.mrb[0].mxu0
      %v1789 = vadd.f32 0.0, %v1788
      %v1790 = vpop.f32.mrb[0].mxu0
      %1791 = vmatprep.mubr.f32.mxu0 0.0
      %1792 = vmatmul.mubr.f32.gmra.mrb[0].mxu0 %v567
      %v1793 = vpop.f32.mrb[0].mxu0
      %v1794 = vadd.f32 0.0, %v1793
      %v1795 = vpop.f32.mrb[0].mxu0
      %1796 = vmatprep.mubr.f32.mxu0 0.0
      %1797 = vmatmul.mubr.f32.gmra.mrb[0].mxu0 %v570
      %v1798 = vpop.f32.mrb[0].mxu0
      %v1799 = vadd.f32 0.0, %v1798
      %v1800 = vpop.f32.mrb[0].mxu0
      %1801 = vmatprep.mubr.f32.mxu0 0.0
      %1802 = vmatmul.mubr.f32.gmra.mrb[0].mxu0 %v573
      %v1803 = vpop.f32.mrb[0].mxu0
      %v1804 = vadd.f32 0.0, %v1803
      %v1805 = vpop.f32.mrb[0].mxu0
      %1806 = vmatprep.mubr.f32.mxu0 0.0
      %1807 = vmatmul.mubr.f32.gmra.mrb[0].mxu0 %v576
      %v1808 = vpop.f32.mrb[0].mxu0
      %v1809 = vadd.f32 0.0, %v1808
      %v1810 = vpop.f32.mrb[0].mxu0
      %1811 = vmatprep.mubr.f32.mxu0 0.0
      %1812 = vmatmul.mubr.f32.gmra.mrb[0].mxu0 %v579
      %v1813 = vpop.f32.mrb[0].mxu0
      %v1814 = vadd.f32 0.0, %v1813
      %v1815 = vpop.f32.mrb[0].mxu0
      %1816 = vmatprep.mubr.f32.mxu0 0.0
      %1817 = vmatmul.mubr.f32.gmra.mrb[0].mxu0 %v582
      %v1818 = vpop.f32.mrb[0].mxu0
      %v1819 = vadd.f32 0.0, %v1818
      %v1820 = vpop.f32.mrb[0].mxu0
      %1821 = vmatprep.mubr.f32.mxu0 0.0
      %1822 = vmatmul.mubr.f32.gmra.mrb[0].mxu0 %v585
      %v1823 = vpop.f32.mrb[0].mxu0
      %v1824 = vadd.f32 0.0, %v1823
      %v1825 = vpop.f32.mrb[0].mxu0
      %1826 = vmatprep.mubr.f32.mxu0 0.0
      %1827 = vmatmul.mubr.f32.gmra.mrb[0].mxu0 %v588
      %v1828 = vpop.f32.mrb[0].mxu0
      %v1829 = vadd.f32 0.0, %v1828
      %v1830 = vpop.f32.mrb[0].mxu0
      %1831 = vmatprep.mubr.f32.mxu0 0.0
      %1832 = vmatmul.mubr.f32.gmra.mrb[0].mxu0 %v591
      %v1833 = vpop.f32.mrb[0].mxu0
      %v1834 = vadd.f32 0.0, %v1833
      %v1835 = vpop.f32.mrb[0].mxu0
      %1836 = vmatprep.mubr.f32.mxu0 0.0
      %1837 = vmatmul.mubr.f32.gmra.mrb[0].mxu0 %v594
      %v1838 = vpop.f32.mrb[0].mxu0
      %v1839 = vadd.f32 0.0, %v1838
      %v1840 = vpop.f32.mrb[0].mxu0
      %1841 = vmatprep.mubr.f32.mxu0 0.0
      %1842 = vmatmul.mubr.f32.gmra.mrb[0].mxu0 %v597
      %v1843 = vpop.f32.mrb[0].mxu0
      %v1844 = vadd.f32 0.0, %v1843
      %v1845 = vpop.f32.mrb[0].mxu0
      %1846 = vmatprep.mubr.f32.mxu0 0.0
      %1847 = vmatmul.mubr.f32.gmra.mrb[0].mxu0 %v600
      %v1848 = vpop.f32.mrb[0].mxu0
      %v1849 = vadd.f32 0.0, %v1848
      %v1850 = vpop.f32.mrb[0].mxu0
      %1851 = vmatprep.mubr.f32.mxu0 0.0
      %1852 = vmatmul.mubr.f32.gmra.mrb[0].mxu0 %v603
      %v1853 = vpop.f32.mrb[0].mxu0
      %v1854 = vadd.f32 0.0, %v1853
      %v1855 = vpop.f32.mrb[0].mxu0
      %1856 = vmatprep.mubr.f32.mxu0 0.0
      %1857 = vmatmul.mubr.f32.gmra.mrb[0].mxu0 %v606
      %v1858 = vpop.f32.mrb[0].mxu0
      %v1859 = vadd.f32 0.0, %v1858
      %v1860 = vpop.f32.mrb[0].mxu0
      %1861 = vmatprep.mubr.f32.mxu0 0.0
      %1862 = vmatmul.mubr.f32.gmra.mrb[0].mxu0 %v609
      %v1863 = vpop.f32.mrb[0].mxu0
      %v1864 = vadd.f32 0.0, %v1863
      %v1865 = vpop.f32.mrb[0].mxu0
      %1866 = vmatprep.mubr.f32.mxu0 0.0
      %1867 = vmatmul.mubr.f32.gmra.mrb[0].mxu0 %v612
      %v1868 = vpop.f32.mrb[0].mxu0
      %v1869 = vadd.f32 0.0, %v1868
      %v1870 = vpop.f32.mrb[0].mxu0
      %1871 = vmatprep.mubr.f32.mxu0 0.0
      %1872 = vmatmul.mubr.f32.gmra.mrb[0].mxu0 %v615
      %v1873 = vpop.f32.mrb[0].mxu0
      %v1874 = vadd.f32 0.0, %v1873
      %v1875 = vpop.f32.mrb[0].mxu0
      %1876 = vmatprep.mubr.f32.mxu0 0.0
      %1877 = vmatmul.mubr.f32.gmra.mrb[0].mxu0 %v618
      %v1878 = vpop.f32.mrb[0].mxu0
      %v1879 = vadd.f32 0.0, %v1878
      %v1880 = vpop.f32.mrb[0].mxu0
      %1881 = vmatprep.mubr.f32.mxu0 0.0
      %1882 = vmatmul.mubr.f32.gmra.mrb[0].mxu0 %v621
      %v1883 = vpop.f32.mrb[0].mxu0
      %v1884 = vadd.f32 0.0, %v1883
      %v1885 = vpop.f32.mrb[0].mxu0
      %1886 = vmatprep.mubr.f32.mxu0 0.0
      %1887 = vmatmul.mubr.f32.gmra.mrb[0].mxu0 %v624
      %v1888 = vpop.f32.mrb[0].mxu0
      %v1889 = vadd.f32 0.0, %v1888
      %v1890 = vpop.f32.mrb[0].mxu0
      %1891 = vmatprep.mubr.f32.mxu0 0.0
      %1892 = vmatmul.mubr.f32.gmra.mrb[0].mxu0 %v627
      %v1893 = vpop.f32.mrb[0].mxu0
      %v1894 = vadd.f32 0.0, %v1893
      %v1895 = vpop.f32.mrb[0].mxu0
      %1896 = vmatprep.mubr.f32.mxu0 0.0
      %1897 = vmatmul.mubr.f32.gmra.mrb[0].mxu0 %v630
      %v1898 = vpop.f32.mrb[0].mxu0
      %v1899 = vadd.f32 0.0, %v1898
      %v1900 = vpop.f32.mrb[0].mxu0
      %1901 = vmatprep.mubr.f32.mxu0 0.0
      %1902 = vmatmul.mubr.f32.gmra.mrb[0].mxu0 %v633
      %v1903 = vpop.f32.mrb[0].mxu0
      %v1904 = vadd.f32 0.0, %v1903
      %v1905 = vpop.f32.mrb[0].mxu0
      %1906 = vmatprep.mubr.f32.mxu0 0.0
      %1907 = vmatmul.mubr.f32.gmra.mrb[0].mxu0 %v636
      %v1908 = vpop.f32.mrb[0].mxu0
      %v1909 = vadd.f32 0.0, %v1908
      %v1910 = vpop.f32.mrb[0].mxu0
      %1911 = vmatprep.mubr.f32.mxu0 0.0
      %1912 = vmatmul.mubr.f32.gmra.mrb[0].mxu0 %v639
      %v1913 = vpop.f32.mrb[0].mxu0
      %v1914 = vadd.f32 0.0, %v1913
      %v1915 = vpop.f32.mrb[0].mxu0
      %1916 = vmatprep.mubr.f32.mxu0 0.0
      %1917 = vmatmul.mubr.f32.gmra.mrb[0].mxu0 %v642
      %v1918 = vpop.f32.mrb[0].mxu0
      %v1919 = vadd.f32 0.0, %v1918
      %v1920 = vpop.f32.mrb[0].mxu0
      %1921 = vmatprep.mubr.f32.mxu0 0.0
      %1922 = vmatmul.mubr.f32.gmra.mrb[0].mxu0 %v645
      %v1923 = vpop.f32.mrb[0].mxu0
      %v1924 = vadd.f32 0.0, %v1923
      %v1925 = vpop.f32.mrb[0].mxu0
      %1926 = vmatprep.mubr.f32.mxu0 0.0
      %1927 = vmatmul.mubr.f32.gmra.mrb[0].mxu0 %v648
      %v1928 = vpop.f32.mrb[0].mxu0
      %v1929 = vadd.f32 0.0, %v1928
      %v1930 = vpop.f32.mrb[0].mxu0
      %1931 = vmatprep.mubr.f32.mxu0 0.0
      %1932 = vmatmul.mubr.f32.gmra.mrb[0].mxu0 %v651
      %v1933 = vpop.f32.mrb[0].mxu0
      %v1934 = vadd.f32 0.0, %v1933
      %v1935 = vpop.f32.mrb[0].mxu0
      %1936 = vmatprep.mubr.f32.mxu0 0.0
      %1937 = vmatmul.mubr.f32.gmra.mrb[0].mxu0 %v654
      %v1938 = vpop.f32.mrb[0].mxu0
      %v1939 = vadd.f32 0.0, %v1938
      %v1940 = vpop.f32.mrb[0].mxu0
      %1941 = vmatprep.mubr.f32.mxu0 0.0
      %1942 = vmatmul.mubr.f32.gmra.mrb[0].mxu0 %v657
      %v1943 = vpop.f32.mrb[0].mxu0
      %v1944 = vadd.f32 0.0, %v1943
      %v1945 = vpop.f32.mrb[0].mxu0
      %1946 = vmatprep.mubr.f32.mxu0 0.0
      %1947 = vmatmul.mubr.f32.gmra.mrb[0].mxu0 %v660
      %v1948 = vpop.f32.mrb[0].mxu0
      %v1949 = vadd.f32 0.0, %v1948
      %v1950 = vpop.f32.mrb[0].mxu0
      %1951 = vmatprep.mubr.f32.mxu0 0.0
      %1952 = vmatmul.mubr.f32.gmra.mrb[0].mxu0 %v663
      %v1953 = vpop.f32.mrb[0].mxu0
      %v1954 = vadd.f32 0.0, %v1953
      %v1955 = vpop.f32.mrb[0].mxu0
      %1956 = vmatprep.mubr.f32.mxu0 0.0
      %1957 = vmatmul.mubr.f32.gmra.mrb[0].mxu0 %v666
      %v1958 = vpop.f32.mrb[0].mxu0
      %v1959 = vadd.f32 0.0, %v1958
      %v1960 = vpop.f32.mrb[0].mxu0
      %1961 = vmatprep.mubr.f32.mxu0 0.0
      %1962 = vmatmul.mubr.f32.gmra.mrb[0].mxu0 %v669
      %v1963 = vpop.f32.mrb[0].mxu0
      %v1964 = vadd.f32 0.0, %v1963
      %v1965 = vpop.f32.mrb[0].mxu0
      %1966 = vmatprep.mubr.f32.mxu0 0.0
      %1967 = vmatmul.mubr.f32.gmra.mrb[0].mxu0 %v672
      %v1968 = vpop.f32.mrb[0].mxu0
      %v1969 = vadd.f32 0.0, %v1968
      %v1970 = vpop.f32.mrb[0].mxu0
      %1971 = vmatprep.mubr.f32.mxu0 0.0
      %1972 = vmatmul.mubr.f32.gmra.mrb[0].mxu0 %v675
      %v1973 = vpop.f32.mrb[0].mxu0
      %v1974 = vadd.f32 0.0, %v1973
      %v1975 = vpop.f32.mrb[0].mxu0
      %1976 = vmatprep.mubr.f32.mxu0 0.0
      %1977 = vmatmul.mubr.f32.gmra.mrb[0].mxu0 %v678
      %v1978 = vpop.f32.mrb[0].mxu0
      %v1979 = vadd.f32 0.0, %v1978
      %v1980 = vpop.f32.mrb[0].mxu0
      %1981 = vmatprep.mubr.f32.mxu0 0.0
      %1982 = vmatmul.mubr.f32.gmra.mrb[0].mxu0 %v681
      %v1983 = vpop.f32.mrb[0].mxu0
      %v1984 = vadd.f32 0.0, %v1983
      %v1985 = vpop.f32.mrb[0].mxu0
      %1986 = vmatprep.mubr.f32.mxu0 0.0
      %1987 = vmatmul.mubr.f32.gmra.mrb[0].mxu0 %v684
      %v1988 = vpop.f32.mrb[0].mxu0
      %v1989 = vadd.f32 0.0, %v1988
      %v1990 = vpop.f32.mrb[0].mxu0
      %1991 = vmatprep.mubr.f32.mxu0 0.0
      %1992 = vmatmul.mubr.f32.gmra.mrb[0].mxu0 %v687
      %v1993 = vpop.f32.mrb[0].mxu0
      %v1994 = vadd.f32 0.0, %v1993
      %v1995 = vpop.f32.mrb[0].mxu0
      %1996 = vmatprep.mubr.f32.mxu0 0.0
      %1997 = vmatmul.mubr.f32.gmra.mrb[0].mxu0 %v690
      %v1998 = vpop.f32.mrb[0].mxu0
      %v1999 = vadd.f32 0.0, %v1998
      %v2000 = vpop.f32.mrb[0].mxu0
      %2001 = vmatprep.mubr.f32.mxu0 0.0
      %2002 = vmatmul.mubr.f32.gmra.mrb[0].mxu0 %v693
      %v2003 = vpop.f32.mrb[0].mxu0
      %v2004 = vadd.f32 0.0, %v2003
      %v2005 = vpop.f32.mrb[0].mxu0
      %2006 = vmatprep.mubr.f32.mxu0 0.0
      %2007 = vmatmul.mubr.f32.gmra.mrb[0].mxu0 %v696
      %v2008 = vpop.f32.mrb[0].mxu0
      %v2009 = vadd.f32 0.0, %v2008
      %v2010 = vpop.f32.mrb[0].mxu0
      %2011 = vmatprep.mubr.f32.mxu0 0.0
      %2012 = vmatmul.mubr.f32.gmra.mrb[0].mxu0 %v699
      %v2013 = vpop.f32.mrb[0].mxu0
      %v2014 = vadd.f32 0.0, %v2013
      %v2015 = vpop.f32.mrb[0].mxu0
      %2016 = vmatprep.mubr.f32.mxu0 0.0
      %2017 = vmatmul.mubr.f32.gmra.mrb[0].mxu0 %v702
      %v2018 = vpop.f32.mrb[0].mxu0
      %v2019 = vadd.f32 0.0, %v2018
      %v2020 = vpop.f32.mrb[0].mxu0
      %2021 = vmatprep.mubr.f32.mxu0 0.0
      %2022 = vmatmul.mubr.f32.gmra.mrb[0].mxu0 %v705
      %v2023 = vpop.f32.mrb[0].mxu0
      %v2024 = vadd.f32 0.0, %v2023
      %v2025 = vpop.f32.mrb[0].mxu0
      %2026 = vmatprep.mubr.f32.mxu0 0.0
      %2027 = vmatmul.mubr.f32.gmra.mrb[0].mxu0 %v708
      %v2028 = vpop.f32.mrb[0].mxu0
      %v2029 = vadd.f32 0.0, %v2028
      %v2030 = vpop.f32.mrb[0].mxu0
      %2031 = vmatprep.mubr.f32.mxu0 0.0
      %2032 = vmatmul.mubr.f32.gmra.mrb[0].mxu0 %v711
      %v2033 = vpop.f32.mrb[0].mxu0
      %v2034 = vadd.f32 0.0, %v2033
      %v2035 = vpop.f32.mrb[0].mxu0
      %2036 = vmatprep.mubr.f32.mxu0 0.0
      %2037 = vmatmul.mubr.f32.gmra.mrb[0].mxu0 %v714
      %v2038 = vpop.f32.mrb[0].mxu0
      %v2039 = vadd.f32 0.0, %v2038
      %v2040 = vpop.f32.mrb[0].mxu0
      %2041 = vmatprep.mubr.f32.mxu0 0.0
      %2042 = vmatmul.mubr.f32.gmra.mrb[0].mxu0 %v717
      %v2043 = vpop.f32.mrb[0].mxu0
      %v2044 = vadd.f32 0.0, %v2043
      %v2045 = vpop.f32.mrb[0].mxu0
      %2046 = vmatprep.mubr.f32.mxu0 0.0
      %2047 = vmatmul.mubr.f32.gmra.mrb[0].mxu0 %v720
      %v2048 = vpop.f32.mrb[0].mxu0
      %v2049 = vadd.f32 0.0, %v2048
      %v2050 = vpop.f32.mrb[0].mxu0
      %2051 = vmatprep.mubr.f32.mxu0 0.0
      %2052 = vmatmul.mubr.f32.gmra.mrb[0].mxu0 %v723
      %v2053 = vpop.f32.mrb[0].mxu0
      %v2054 = vadd.f32 0.0, %v2053
      %v2055 = vpop.f32.mrb[0].mxu0
      %2056 = vmatprep.mubr.f32.mxu0 0.0
      %2057 = vmatmul.mubr.f32.gmra.mrb[0].mxu0 %v726
      %v2058 = vpop.f32.mrb[0].mxu0
      %v2059 = vadd.f32 0.0, %v2058
      %v2060 = vpop.f32.mrb[0].mxu0
      %2061 = vmatprep.mubr.f32.mxu0 0.0
      %2062 = vmatmul.mubr.f32.gmra.mrb[0].mxu0 %v729
      %v2063 = vpop.f32.mrb[0].mxu0
      %v2064 = vadd.f32 0.0, %v2063
      %v2065 = vpop.f32.mrb[0].mxu0
      %2066 = vmatprep.mubr.f32.mxu0 0.0
      %2067 = vmatmul.mubr.f32.gmra.mrb[0].mxu0 %v732
      %v2068 = vpop.f32.mrb[0].mxu0
      %v2069 = vadd.f32 0.0, %v2068
      %v2070 = vpop.f32.mrb[0].mxu0
      %2071 = vmatprep.mubr.f32.mxu0 0.0
      %2072 = vmatmul.mubr.f32.gmra.mrb[0].mxu0 %v735
      %v2073 = vpop.f32.mrb[0].mxu0
      %v2074 = vadd.f32 0.0, %v2073
      %v2075 = vpop.f32.mrb[0].mxu0
      %2076 = vmatprep.mubr.f32.mxu0 0.0
      %2077 = vmatmul.mubr.f32.gmra.mrb[0].mxu0 %v738
      %v2078 = vpop.f32.mrb[0].mxu0
      %v2079 = vadd.f32 0.0, %v2078
      %v2080 = vpop.f32.mrb[0].mxu0
      %2081 = vmatprep.mubr.f32.mxu0 0.0
      %2082 = vmatmul.mubr.f32.gmra.mrb[0].mxu0 %v741
      %v2083 = vpop.f32.mrb[0].mxu0
      %v2084 = vadd.f32 0.0, %v2083
      %v2085 = vpop.f32.mrb[0].mxu0
      %2086 = vmatprep.mubr.f32.mxu0 0.0
      %2087 = vmatmul.mubr.f32.gmra.mrb[0].mxu0 %v744
      %v2088 = vpop.f32.mrb[0].mxu0
      %v2089 = vadd.f32 0.0, %v2088
      %v2090 = vpop.f32.mrb[0].mxu0
      %2091 = vdwg.mxu0
      %v2092 = vld [vmem:[%s3] sm:$0xff]
      %v2093 = vld [vmem:[%s3 + $0x8] sm:$0xff]
      %v2094 = vld [vmem:[%s3 + $0x10] sm:$0xff]
      %v2095 = vld [vmem:[%s3 + $0x18] sm:$0xff]
      %v2096 = vld [vmem:[%s3 + $0x20] sm:$0xff]
      %v2097 = vld [vmem:[%s3 + $0x28] sm:$0xff]
      %2098 = vmatprep.subr.mxu0 0.0
      %2099 = vmatpush1.msra.mxu0 %v2092
      %2100 = vmatprep.subr.mxu0 0.0
      %2101 = vmatpush1.msra.mxu0 %v2093
      %2102 = vmatprep.subr.mxu0 0.0
      %2103 = vmatpush1.msra.mxu0 %v2094
      %2104 = vmatprep.subr.mxu0 0.0
      %2105 = vmatpush1.msra.mxu0 %v2095
      %2106 = vmatprep.subr.mxu0 0.0
      %2107 = vmatpush1.msra.mxu0 %v2096
      %2108 = vmatprep.subr.mxu0 0.0
      %2109 = vmatpush1.msra.mxu0 %v2097
      %2110 = vmatprep.subr.mxu0 0.0
      %2111 = vmatpush1.msra.mxu0 0.0
      %2112 = vmatprep.subr.mxu0 0.0
      %2113 = vmatpush1.msra.mxu0 0.0
      %2114 = vmatprep.subr.mxu0 0.0
      %2115 = vmatpush1.msra.mxu0 0.0
      %2116 = vmatprep.subr.mxu0 0.0
      %2117 = vmatpush1.msra.mxu0 0.0
      %2118 = vmatprep.subr.mxu0 0.0
      %2119 = vmatpush1.msra.mxu0 0.0
      %2120 = vmatprep.subr.mxu0 0.0
      %2121 = vmatpush1.msra.mxu0 0.0
      %2122 = vmatprep.subr.mxu0 0.0
      %2123 = vmatpush1.msra.mxu0 0.0
      %2124 = vmatprep.subr.mxu0 0.0
      %2125 = vmatpush1.msra.mxu0 0.0
      %2126 = vmatprep.subr.mxu0 0.0
      %2127 = vmatpush1.msra.mxu0 0.0
      %2128 = vmatprep.subr.mxu0 0.0
      %2129 = vmatpush1.msra.mxu0 0.0
      %2130 = vmatprep.subr.mxu0 0.0
      %2131 = vmatpush1.msra.mxu0 0.0
      %2132 = vmatprep.subr.mxu0 0.0
      %2133 = vmatpush1.msra.mxu0 0.0
      %2134 = vmatprep.subr.mxu0 0.0
      %2135 = vmatpush1.msra.mxu0 0.0
      %2136 = vmatprep.subr.mxu0 0.0
      %2137 = vmatpush1.msra.mxu0 0.0
      %2138 = vmatprep.subr.mxu0 0.0
      %2139 = vmatpush1.msra.mxu0 0.0
      %2140 = vmatprep.subr.mxu0 0.0
      %2141 = vmatpush1.msra.mxu0 0.0
      %2142 = vmatprep.subr.mxu0 0.0
      %2143 = vmatpush1.msra.mxu0 0.0
      %2144 = vmatprep.subr.mxu0 0.0
      %2145 = vmatpush1.msra.mxu0 0.0
      %2146 = vmatprep.subr.mxu0 0.0
      %2147 = vmatpush1.msra.mxu0 0.0
      %2148 = vmatprep.subr.mxu0 0.0
      %2149 = vmatpush1.msra.mxu0 0.0
      %2150 = vmatprep.subr.mxu0 0.0
      %2151 = vmatpush1.msra.mxu0 0.0
      %2152 = vmatprep.subr.mxu0 0.0
      %2153 = vmatpush1.msra.mxu0 0.0
      %2154 = vmatprep.subr.mxu0 0.0
      %2155 = vmatpush1.msra.mxu0 0.0
      %2156 = vmatprep.subr.mxu0 0.0
      %2157 = vmatpush1.msra.mxu0 0.0
      %2158 = vmatprep.subr.mxu0 0.0
      %2159 = vmatpush1.msra.mxu0 0.0
      %2160 = vmatprep.subr.mxu0 0.0
      %2161 = vmatpush1.msra.mxu0 0.0
      %2162 = vmatprep.mubr.f32.mxu0 0.0
      %2163 = vmatmul.mubr.f32.gmra.mrb[0].mxu0 %v384
      %v2164 = vpop.f32.mrb[0].mxu0
      %v2165 = vadd.f32 0.0, %v2164
      %v2166 = vpop.f32.mrb[0].mxu0
      %2167 = vmatprep.mubr.f32.mxu0 0.0
      %2168 = vmatmul.mubr.f32.gmra.mrb[0].mxu0 %v387
      %v2169 = vpop.f32.mrb[0].mxu0
      %v2170 = vadd.f32 0.0, %v2169
      %v2171 = vpop.f32.mrb[0].mxu0
      %2172 = vmatprep.mubr.f32.mxu0 0.0
      %2173 = vmatmul.mubr.f32.gmra.mrb[0].mxu0 %v390
      %v2174 = vpop.f32.mrb[0].mxu0
      %v2175 = vadd.f32 0.0, %v2174
      %v2176 = vpop.f32.mrb[0].mxu0
      %2177 = vmatprep.mubr.f32.mxu0 0.0
      %2178 = vmatmul.mubr.f32.gmra.mrb[0].mxu0 %v393
      %v2179 = vpop.f32.mrb[0].mxu0
      %v2180 = vadd.f32 0.0, %v2179
      %v2181 = vpop.f32.mrb[0].mxu0
      %2182 = vmatprep.mubr.f32.mxu0 0.0
      %2183 = vmatmul.mubr.f32.gmra.mrb[0].mxu0 %v396
      %v2184 = vpop.f32.mrb[0].mxu0
      %v2185 = vadd.f32 0.0, %v2184
      %v2186 = vpop.f32.mrb[0].mxu0
      %2187 = vmatprep.mubr.f32.mxu0 0.0
      %2188 = vmatmul.mubr.f32.gmra.mrb[0].mxu0 %v399
      %v2189 = vpop.f32.mrb[0].mxu0
      %v2190 = vadd.f32 0.0, %v2189
      %v2191 = vpop.f32.mrb[0].mxu0
      %2192 = vmatprep.mubr.f32.mxu0 0.0
      %2193 = vmatmul.mubr.f32.gmra.mrb[0].mxu0 %v402
      %v2194 = vpop.f32.mrb[0].mxu0
      %v2195 = vadd.f32 0.0, %v2194
      %v2196 = vpop.f32.mrb[0].mxu0
      %2197 = vmatprep.mubr.f32.mxu0 0.0
      %2198 = vmatmul.mubr.f32.gmra.mrb[0].mxu0 %v405
      %v2199 = vpop.f32.mrb[0].mxu0
      %v2200 = vadd.f32 0.0, %v2199
      %v2201 = vpop.f32.mrb[0].mxu0
      %2202 = vmatprep.mubr.f32.mxu0 0.0
      %2203 = vmatmul.mubr.f32.gmra.mrb[0].mxu0 %v408
      %v2204 = vpop.f32.mrb[0].mxu0
      %v2205 = vadd.f32 0.0, %v2204
      %v2206 = vpop.f32.mrb[0].mxu0
      %2207 = vmatprep.mubr.f32.mxu0 0.0
      %2208 = vmatmul.mubr.f32.gmra.mrb[0].mxu0 %v411
      %v2209 = vpop.f32.mrb[0].mxu0
      %v2210 = vadd.f32 0.0, %v2209
      %v2211 = vpop.f32.mrb[0].mxu0
      %2212 = vmatprep.mubr.f32.mxu0 0.0
      %2213 = vmatmul.mubr.f32.gmra.mrb[0].mxu0 %v414
      %v2214 = vpop.f32.mrb[0].mxu0
      %v2215 = vadd.f32 0.0, %v2214
      %v2216 = vpop.f32.mrb[0].mxu0
      %2217 = vmatprep.mubr.f32.mxu0 0.0
      %2218 = vmatmul.mubr.f32.gmra.mrb[0].mxu0 %v417
      %v2219 = vpop.f32.mrb[0].mxu0
      %v2220 = vadd.f32 0.0, %v2219
      %v2221 = vpop.f32.mrb[0].mxu0
      %2222 = vmatprep.mubr.f32.mxu0 0.0
      %2223 = vmatmul.mubr.f32.gmra.mrb[0].mxu0 %v420
      %v2224 = vpop.f32.mrb[0].mxu0
      %v2225 = vadd.f32 0.0, %v2224
      %v2226 = vpop.f32.mrb[0].mxu0
      %2227 = vmatprep.mubr.f32.mxu0 0.0
      %2228 = vmatmul.mubr.f32.gmra.mrb[0].mxu0 %v423
      %v2229 = vpop.f32.mrb[0].mxu0
      %v2230 = vadd.f32 0.0, %v2229
      %v2231 = vpop.f32.mrb[0].mxu0
      %2232 = vmatprep.mubr.f32.mxu0 0.0
      %2233 = vmatmul.mubr.f32.gmra.mrb[0].mxu0 %v426
      %v2234 = vpop.f32.mrb[0].mxu0
      %v2235 = vadd.f32 0.0, %v2234
      %v2236 = vpop.f32.mrb[0].mxu0
      %2237 = vmatprep.mubr.f32.mxu0 0.0
      %2238 = vmatmul.mubr.f32.gmra.mrb[0].mxu0 %v429
      %v2239 = vpop.f32.mrb[0].mxu0
      %v2240 = vadd.f32 0.0, %v2239
      %v2241 = vpop.f32.mrb[0].mxu0
      %2242 = vmatprep.mubr.f32.mxu0 0.0
      %2243 = vmatmul.mubr.f32.gmra.mrb[0].mxu0 %v432
      %v2244 = vpop.f32.mrb[0].mxu0
      %v2245 = vadd.f32 0.0, %v2244
      %v2246 = vpop.f32.mrb[0].mxu0
      %2247 = vmatprep.mubr.f32.mxu0 0.0
      %2248 = vmatmul.mubr.f32.gmra.mrb[0].mxu0 %v435
      %v2249 = vpop.f32.mrb[0].mxu0
      %v2250 = vadd.f32 0.0, %v2249
      %v2251 = vpop.f32.mrb[0].mxu0
      %2252 = vmatprep.mubr.f32.mxu0 0.0
      %2253 = vmatmul.mubr.f32.gmra.mrb[0].mxu0 %v438
      %v2254 = vpop.f32.mrb[0].mxu0
      %v2255 = vadd.f32 0.0, %v2254
      %v2256 = vpop.f32.mrb[0].mxu0
      %2257 = vmatprep.mubr.f32.mxu0 0.0
      %2258 = vmatmul.mubr.f32.gmra.mrb[0].mxu0 %v441
      %v2259 = vpop.f32.mrb[0].mxu0
      %v2260 = vadd.f32 0.0, %v2259
      %v2261 = vpop.f32.mrb[0].mxu0
      %2262 = vmatprep.mubr.f32.mxu0 0.0
      %2263 = vmatmul.mubr.f32.gmra.mrb[0].mxu0 %v444
      %v2264 = vpop.f32.mrb[0].mxu0
      %v2265 = vadd.f32 0.0, %v2264
      %v2266 = vpop.f32.mrb[0].mxu0
      %2267 = vmatprep.mubr.f32.mxu0 0.0
      %2268 = vmatmul.mubr.f32.gmra.mrb[0].mxu0 %v447
      %v2269 = vpop.f32.mrb[0].mxu0
      %v2270 = vadd.f32 0.0, %v2269
      %v2271 = vpop.f32.mrb[0].mxu0
      %2272 = vmatprep.mubr.f32.mxu0 0.0
      %2273 = vmatmul.mubr.f32.gmra.mrb[0].mxu0 %v450
      %v2274 = vpop.f32.mrb[0].mxu0
      %v2275 = vadd.f32 0.0, %v2274
      %v2276 = vpop.f32.mrb[0].mxu0
      %2277 = vmatprep.mubr.f32.mxu0 0.0
      %2278 = vmatmul.mubr.f32.gmra.mrb[0].mxu0 %v453
      %v2279 = vpop.f32.mrb[0].mxu0
      %v2280 = vadd.f32 0.0, %v2279
      %v2281 = vpop.f32.mrb[0].mxu0
      %2282 = vmatprep.mubr.f32.mxu0 0.0
      %2283 = vmatmul.mubr.f32.gmra.mrb[0].mxu0 %v456
      %v2284 = vpop.f32.mrb[0].mxu0
      %v2285 = vadd.f32 0.0, %v2284
      %v2286 = vpop.f32.mrb[0].mxu0
      %2287 = vmatprep.mubr.f32.mxu0 0.0
      %2288 = vmatmul.mubr.f32.gmra.mrb[0].mxu0 %v459
      %v2289 = vpop.f32.mrb[0].mxu0
      %v2290 = vadd.f32 0.0, %v2289
      %v2291 = vpop.f32.mrb[0].mxu0
      %2292 = vmatprep.mubr.f32.mxu0 0.0
      %2293 = vmatmul.mubr.f32.gmra.mrb[0].mxu0 %v462
      %v2294 = vpop.f32.mrb[0].mxu0
      %v2295 = vadd.f32 0.0, %v2294
      %v2296 = vpop.f32.mrb[0].mxu0
      %2297 = vmatprep.mubr.f32.mxu0 0.0
      %2298 = vmatmul.mubr.f32.gmra.mrb[0].mxu0 %v465
      %v2299 = vpop.f32.mrb[0].mxu0
      %v2300 = vadd.f32 0.0, %v2299
      %v2301 = vpop.f32.mrb[0].mxu0
      %2302 = vmatprep.mubr.f32.mxu0 0.0
      %2303 = vmatmul.mubr.f32.gmra.mrb[0].mxu0 %v468
      %v2304 = vpop.f32.mrb[0].mxu0
      %v2305 = vadd.f32 0.0, %v2304
      %v2306 = vpop.f32.mrb[0].mxu0
      %2307 = vmatprep.mubr.f32.mxu0 0.0
      %2308 = vmatmul.mubr.f32.gmra.mrb[0].mxu0 %v471
      %v2309 = vpop.f32.mrb[0].mxu0
      %v2310 = vadd.f32 0.0, %v2309
      %v2311 = vpop.f32.mrb[0].mxu0
      %2312 = vmatprep.mubr.f32.mxu0 0.0
      %2313 = vmatmul.mubr.f32.gmra.mrb[0].mxu0 %v474
      %v2314 = vpop.f32.mrb[0].mxu0
      %v2315 = vadd.f32 0.0, %v2314
      %v2316 = vpop.f32.mrb[0].mxu0
      %2317 = vmatprep.mubr.f32.mxu0 0.0
      %2318 = vmatmul.mubr.f32.gmra.mrb[0].mxu0 %v477
      %v2319 = vpop.f32.mrb[0].mxu0
      %v2320 = vadd.f32 0.0, %v2319
      %v2321 = vpop.f32.mrb[0].mxu0
      %2322 = vmatprep.mubr.f32.mxu0 0.0
      %2323 = vmatmul.mubr.f32.gmra.mrb[0].mxu0 %v480
      %v2324 = vpop.f32.mrb[0].mxu0
      %v2325 = vadd.f32 0.0, %v2324
      %v2326 = vpop.f32.mrb[0].mxu0
      %2327 = vmatprep.mubr.f32.mxu0 0.0
      %2328 = vmatmul.mubr.f32.gmra.mrb[0].mxu0 %v483
      %v2329 = vpop.f32.mrb[0].mxu0
      %v2330 = vadd.f32 0.0, %v2329
      %v2331 = vpop.f32.mrb[0].mxu0
      %2332 = vmatprep.mubr.f32.mxu0 0.0
      %2333 = vmatmul.mubr.f32.gmra.mrb[0].mxu0 %v486
      %v2334 = vpop.f32.mrb[0].mxu0
      %v2335 = vadd.f32 0.0, %v2334
      %v2336 = vpop.f32.mrb[0].mxu0
      %2337 = vmatprep.mubr.f32.mxu0 0.0
      %2338 = vmatmul.mubr.f32.gmra.mrb[0].mxu0 %v489
      %v2339 = vpop.f32.mrb[0].mxu0
      %v2340 = vadd.f32 0.0, %v2339
      %v2341 = vpop.f32.mrb[0].mxu0
      %2342 = vmatprep.mubr.f32.mxu0 0.0
      %2343 = vmatmul.mubr.f32.gmra.mrb[0].mxu0 %v492
      %v2344 = vpop.f32.mrb[0].mxu0
      %v2345 = vadd.f32 0.0, %v2344
      %v2346 = vpop.f32.mrb[0].mxu0
      %2347 = vmatprep.mubr.f32.mxu0 0.0
      %2348 = vmatmul.mubr.f32.gmra.mrb[0].mxu0 %v495
      %v2349 = vpop.f32.mrb[0].mxu0
      %v2350 = vadd.f32 0.0, %v2349
      %v2351 = vpop.f32.mrb[0].mxu0
      %2352 = vmatprep.mubr.f32.mxu0 0.0
      %2353 = vmatmul.mubr.f32.gmra.mrb[0].mxu0 %v498
      %v2354 = vpop.f32.mrb[0].mxu0
      %v2355 = vadd.f32 0.0, %v2354
      %v2356 = vpop.f32.mrb[0].mxu0
      %2357 = vmatprep.mubr.f32.mxu0 0.0
      %2358 = vmatmul.mubr.f32.gmra.mrb[0].mxu0 %v501
      %v2359 = vpop.f32.mrb[0].mxu0
      %v2360 = vadd.f32 0.0, %v2359
      %v2361 = vpop.f32.mrb[0].mxu0
      %2362 = vmatprep.mubr.f32.mxu0 0.0
      %2363 = vmatmul.mubr.f32.gmra.mrb[0].mxu0 %v504
      %v2364 = vpop.f32.mrb[0].mxu0
      %v2365 = vadd.f32 0.0, %v2364
      %v2366 = vpop.f32.mrb[0].mxu0
      %2367 = vmatprep.mubr.f32.mxu0 0.0
      %2368 = vmatmul.mubr.f32.gmra.mrb[0].mxu0 %v507
      %v2369 = vpop.f32.mrb[0].mxu0
      %v2370 = vadd.f32 0.0, %v2369
      %v2371 = vpop.f32.mrb[0].mxu0
      %2372 = vmatprep.mubr.f32.mxu0 0.0
      %2373 = vmatmul.mubr.f32.gmra.mrb[0].mxu0 %v510
      %v2374 = vpop.f32.mrb[0].mxu0
      %v2375 = vadd.f32 0.0, %v2374
      %v2376 = vpop.f32.mrb[0].mxu0
      %2377 = vmatprep.mubr.f32.mxu0 0.0
      %2378 = vmatmul.mubr.f32.gmra.mrb[0].mxu0 %v513
      %v2379 = vpop.f32.mrb[0].mxu0
      %v2380 = vadd.f32 0.0, %v2379
      %v2381 = vpop.f32.mrb[0].mxu0
      %2382 = vmatprep.mubr.f32.mxu0 0.0
      %2383 = vmatmul.mubr.f32.gmra.mrb[0].mxu0 %v516
      %v2384 = vpop.f32.mrb[0].mxu0
      %v2385 = vadd.f32 0.0, %v2384
      %v2386 = vpop.f32.mrb[0].mxu0
      %2387 = vmatprep.mubr.f32.mxu0 0.0
      %2388 = vmatmul.mubr.f32.gmra.mrb[0].mxu0 %v519
      %v2389 = vpop.f32.mrb[0].mxu0
      %v2390 = vadd.f32 0.0, %v2389
      %v2391 = vpop.f32.mrb[0].mxu0
      %2392 = vmatprep.mubr.f32.mxu0 0.0
      %2393 = vmatmul.mubr.f32.gmra.mrb[0].mxu0 %v522
      %v2394 = vpop.f32.mrb[0].mxu0
      %v2395 = vadd.f32 0.0, %v2394
      %v2396 = vpop.f32.mrb[0].mxu0
      %2397 = vmatprep.mubr.f32.mxu0 0.0
      %2398 = vmatmul.mubr.f32.gmra.mrb[0].mxu0 %v525
      %v2399 = vpop.f32.mrb[0].mxu0
      %v2400 = vadd.f32 0.0, %v2399
      %v2401 = vpop.f32.mrb[0].mxu0
      %2402 = vmatprep.mubr.f32.mxu0 0.0
      %2403 = vmatmul.mubr.f32.gmra.mrb[0].mxu0 %v528
      %v2404 = vpop.f32.mrb[0].mxu0
      %v2405 = vadd.f32 0.0, %v2404
      %v2406 = vpop.f32.mrb[0].mxu0
      %2407 = vmatprep.mubr.f32.mxu0 0.0
      %2408 = vmatmul.mubr.f32.gmra.mrb[0].mxu0 %v531
      %v2409 = vpop.f32.mrb[0].mxu0
      %v2410 = vadd.f32 0.0, %v2409
      %v2411 = vpop.f32.mrb[0].mxu0
      %2412 = vmatprep.mubr.f32.mxu0 0.0
      %2413 = vmatmul.mubr.f32.gmra.mrb[0].mxu0 %v534
      %v2414 = vpop.f32.mrb[0].mxu0
      %v2415 = vadd.f32 0.0, %v2414
      %v2416 = vpop.f32.mrb[0].mxu0
      %2417 = vmatprep.mubr.f32.mxu0 0.0
      %2418 = vmatmul.mubr.f32.gmra.mrb[0].mxu0 %v537
      %v2419 = vpop.f32.mrb[0].mxu0
      %v2420 = vadd.f32 0.0, %v2419
      %v2421 = vpop.f32.mrb[0].mxu0
      %2422 = vmatprep.mubr.f32.mxu0 0.0
      %2423 = vmatmul.mubr.f32.gmra.mrb[0].mxu0 %v540
      %v2424 = vpop.f32.mrb[0].mxu0
      %v2425 = vadd.f32 0.0, %v2424
      %v2426 = vpop.f32.mrb[0].mxu0
      %2427 = vmatprep.mubr.f32.mxu0 0.0
      %2428 = vmatmul.mubr.f32.gmra.mrb[0].mxu0 %v543
      %v2429 = vpop.f32.mrb[0].mxu0
      %v2430 = vadd.f32 0.0, %v2429
      %v2431 = vpop.f32.mrb[0].mxu0
      %2432 = vmatprep.mubr.f32.mxu0 0.0
      %2433 = vmatmul.mubr.f32.gmra.mrb[0].mxu0 %v546
      %v2434 = vpop.f32.mrb[0].mxu0
      %v2435 = vadd.f32 0.0, %v2434
      %v2436 = vpop.f32.mrb[0].mxu0
      %2437 = vmatprep.mubr.f32.mxu0 0.0
      %2438 = vmatmul.mubr.f32.gmra.mrb[0].mxu0 %v549
      %v2439 = vpop.f32.mrb[0].mxu0
      %v2440 = vadd.f32 0.0, %v2439
      %v2441 = vpop.f32.mrb[0].mxu0
      %2442 = vmatprep.mubr.f32.mxu0 0.0
      %2443 = vmatmul.mubr.f32.gmra.mrb[0].mxu0 %v552
      %v2444 = vpop.f32.mrb[0].mxu0
      %v2445 = vadd.f32 0.0, %v2444
      %v2446 = vpop.f32.mrb[0].mxu0
      %2447 = vmatprep.mubr.f32.mxu0 0.0
      %2448 = vmatmul.mubr.f32.gmra.mrb[0].mxu0 %v555
      %v2449 = vpop.f32.mrb[0].mxu0
      %v2450 = vadd.f32 0.0, %v2449
      %v2451 = vpop.f32.mrb[0].mxu0
      %2452 = vmatprep.mubr.f32.mxu0 0.0
      %2453 = vmatmul.mubr.f32.gmra.mrb[0].mxu0 %v558
      %v2454 = vpop.f32.mrb[0].mxu0
      %v2455 = vadd.f32 0.0, %v2454
      %v2456 = vpop.f32.mrb[0].mxu0
      %2457 = vmatprep.mubr.f32.mxu0 0.0
      %2458 = vmatmul.mubr.f32.gmra.mrb[0].mxu0 %v561
      %v2459 = vpop.f32.mrb[0].mxu0
      %v2460 = vadd.f32 0.0, %v2459
      %v2461 = vpop.f32.mrb[0].mxu0
      %2462 = vmatprep.mubr.f32.mxu0 0.0
      %2463 = vmatmul.mubr.f32.gmra.mrb[0].mxu0 %v564
      %v2464 = vpop.f32.mrb[0].mxu0
      %v2465 = vadd.f32 0.0, %v2464
      %v2466 = vpop.f32.mrb[0].mxu0
      %2467 = vmatprep.mubr.f32.mxu0 0.0
      %2468 = vmatmul.mubr.f32.gmra.mrb[0].mxu0 %v567
      %v2469 = vpop.f32.mrb[0].mxu0
      %v2470 = vadd.f32 0.0, %v2469
      %v2471 = vpop.f32.mrb[0].mxu0
      %2472 = vmatprep.mubr.f32.mxu0 0.0
      %2473 = vmatmul.mubr.f32.gmra.mrb[0].mxu0 %v570
      %v2474 = vpop.f32.mrb[0].mxu0
      %v2475 = vadd.f32 0.0, %v2474
      %v2476 = vpop.f32.mrb[0].mxu0
      %2477 = vmatprep.mubr.f32.mxu0 0.0
      %2478 = vmatmul.mubr.f32.gmra.mrb[0].mxu0 %v573
      %v2479 = vpop.f32.mrb[0].mxu0
      %v2480 = vadd.f32 0.0, %v2479
      %v2481 = vpop.f32.mrb[0].mxu0
      %2482 = vmatprep.mubr.f32.mxu0 0.0
      %2483 = vmatmul.mubr.f32.gmra.mrb[0].mxu0 %v576
      %v2484 = vpop.f32.mrb[0].mxu0
      %v2485 = vadd.f32 0.0, %v2484
      %v2486 = vpop.f32.mrb[0].mxu0
      %2487 = vmatprep.mubr.f32.mxu0 0.0
      %2488 = vmatmul.mubr.f32.gmra.mrb[0].mxu0 %v579
      %v2489 = vpop.f32.mrb[0].mxu0
      %v2490 = vadd.f32 0.0, %v2489
      %v2491 = vpop.f32.mrb[0].mxu0
      %2492 = vmatprep.mubr.f32.mxu0 0.0
      %2493 = vmatmul.mubr.f32.gmra.mrb[0].mxu0 %v582
      %v2494 = vpop.f32.mrb[0].mxu0
      %v2495 = vadd.f32 0.0, %v2494
      %v2496 = vpop.f32.mrb[0].mxu0
      %2497 = vmatprep.mubr.f32.mxu0 0.0
      %2498 = vmatmul.mubr.f32.gmra.mrb[0].mxu0 %v585
      %v2499 = vpop.f32.mrb[0].mxu0
      %v2500 = vadd.f32 0.0, %v2499
      %v2501 = vpop.f32.mrb[0].mxu0
      %2502 = vmatprep.mubr.f32.mxu0 0.0
      %2503 = vmatmul.mubr.f32.gmra.mrb[0].mxu0 %v588
      %v2504 = vpop.f32.mrb[0].mxu0
      %v2505 = vadd.f32 0.0, %v2504
      %v2506 = vpop.f32.mrb[0].mxu0
      %2507 = vmatprep.mubr.f32.mxu0 0.0
      %2508 = vmatmul.mubr.f32.gmra.mrb[0].mxu0 %v591
      %v2509 = vpop.f32.mrb[0].mxu0
      %v2510 = vadd.f32 0.0, %v2509
      %v2511 = vpop.f32.mrb[0].mxu0
      %2512 = vmatprep.mubr.f32.mxu0 0.0
      %2513 = vmatmul.mubr.f32.gmra.mrb[0].mxu0 %v594
      %v2514 = vpop.f32.mrb[0].mxu0
      %v2515 = vadd.f32 0.0, %v2514
      %v2516 = vpop.f32.mrb[0].mxu0
      %2517 = vmatprep.mubr.f32.mxu0 0.0
      %2518 = vmatmul.mubr.f32.gmra.mrb[0].mxu0 %v597
      %v2519 = vpop.f32.mrb[0].mxu0
      %v2520 = vadd.f32 0.0, %v2519
      %v2521 = vpop.f32.mrb[0].mxu0
      %2522 = vmatprep.mubr.f32.mxu0 0.0
      %2523 = vmatmul.mubr.f32.gmra.mrb[0].mxu0 %v600
      %v2524 = vpop.f32.mrb[0].mxu0
      %v2525 = vadd.f32 0.0, %v2524
      %v2526 = vpop.f32.mrb[0].mxu0
      %2527 = vmatprep.mubr.f32.mxu0 0.0
      %2528 = vmatmul.mubr.f32.gmra.mrb[0].mxu0 %v603
      %v2529 = vpop.f32.mrb[0].mxu0
      %v2530 = vadd.f32 0.0, %v2529
      %v2531 = vpop.f32.mrb[0].mxu0
      %2532 = vmatprep.mubr.f32.mxu0 0.0
      %2533 = vmatmul.mubr.f32.gmra.mrb[0].mxu0 %v606
      %v2534 = vpop.f32.mrb[0].mxu0
      %v2535 = vadd.f32 0.0, %v2534
      %v2536 = vpop.f32.mrb[0].mxu0
      %2537 = vmatprep.mubr.f32.mxu0 0.0
      %2538 = vmatmul.mubr.f32.gmra.mrb[0].mxu0 %v609
      %v2539 = vpop.f32.mrb[0].mxu0
      %v2540 = vadd.f32 0.0, %v2539
      %v2541 = vpop.f32.mrb[0].mxu0
      %2542 = vmatprep.mubr.f32.mxu0 0.0
      %2543 = vmatmul.mubr.f32.gmra.mrb[0].mxu0 %v612
      %v2544 = vpop.f32.mrb[0].mxu0
      %v2545 = vadd.f32 0.0, %v2544
      %v2546 = vpop.f32.mrb[0].mxu0
      %2547 = vmatprep.mubr.f32.mxu0 0.0
      %2548 = vmatmul.mubr.f32.gmra.mrb[0].mxu0 %v615
      %v2549 = vpop.f32.mrb[0].mxu0
      %v2550 = vadd.f32 0.0, %v2549
      %v2551 = vpop.f32.mrb[0].mxu0
      %2552 = vmatprep.mubr.f32.mxu0 0.0
      %2553 = vmatmul.mubr.f32.gmra.mrb[0].mxu0 %v618
      %v2554 = vpop.f32.mrb[0].mxu0
      %v2555 = vadd.f32 0.0, %v2554
      %v2556 = vpop.f32.mrb[0].mxu0
      %2557 = vmatprep.mubr.f32.mxu0 0.0
      %2558 = vmatmul.mubr.f32.gmra.mrb[0].mxu0 %v621
      %v2559 = vpop.f32.mrb[0].mxu0
      %v2560 = vadd.f32 0.0, %v2559
      %v2561 = vpop.f32.mrb[0].mxu0
      %2562 = vmatprep.mubr.f32.mxu0 0.0
      %2563 = vmatmul.mubr.f32.gmra.mrb[0].mxu0 %v624
      %v2564 = vpop.f32.mrb[0].mxu0
      %v2565 = vadd.f32 0.0, %v2564
      %v2566 = vpop.f32.mrb[0].mxu0
      %2567 = vmatprep.mubr.f32.mxu0 0.0
      %2568 = vmatmul.mubr.f32.gmra.mrb[0].mxu0 %v627
      %v2569 = vpop.f32.mrb[0].mxu0
      %v2570 = vadd.f32 0.0, %v2569
      %v2571 = vpop.f32.mrb[0].mxu0
      %2572 = vmatprep.mubr.f32.mxu0 0.0
      %2573 = vmatmul.mubr.f32.gmra.mrb[0].mxu0 %v630
      %v2574 = vpop.f32.mrb[0].mxu0
      %v2575 = vadd.f32 0.0, %v2574
      %v2576 = vpop.f32.mrb[0].mxu0
      %2577 = vmatprep.mubr.f32.mxu0 0.0
      %2578 = vmatmul.mubr.f32.gmra.mrb[0].mxu0 %v633
      %v2579 = vpop.f32.mrb[0].mxu0
      %v2580 = vadd.f32 0.0, %v2579
      %v2581 = vpop.f32.mrb[0].mxu0
      %2582 = vmatprep.mubr.f32.mxu0 0.0
      %2583 = vmatmul.mubr.f32.gmra.mrb[0].mxu0 %v636
      %v2584 = vpop.f32.mrb[0].mxu0
      %v2585 = vadd.f32 0.0, %v2584
      %v2586 = vpop.f32.mrb[0].mxu0
      %2587 = vmatprep.mubr.f32.mxu0 0.0
      %2588 = vmatmul.mubr.f32.gmra.mrb[0].mxu0 %v639
      %v2589 = vpop.f32.mrb[0].mxu0
      %v2590 = vadd.f32 0.0, %v2589
      %v2591 = vpop.f32.mrb[0].mxu0
      %2592 = vmatprep.mubr.f32.mxu0 0.0
      %2593 = vmatmul.mubr.f32.gmra.mrb[0].mxu0 %v642
      %v2594 = vpop.f32.mrb[0].mxu0
      %v2595 = vadd.f32 0.0, %v2594
      %v2596 = vpop.f32.mrb[0].mxu0
      %2597 = vmatprep.mubr.f32.mxu0 0.0
      %2598 = vmatmul.mubr.f32.gmra.mrb[0].mxu0 %v645
      %v2599 = vpop.f32.mrb[0].mxu0
      %v2600 = vadd.f32 0.0, %v2599
      %v2601 = vpop.f32.mrb[0].mxu0
      %2602 = vmatprep.mubr.f32.mxu0 0.0
      %2603 = vmatmul.mubr.f32.gmra.mrb[0].mxu0 %v648
      %v2604 = vpop.f32.mrb[0].mxu0
      %v2605 = vadd.f32 0.0, %v2604
      %v2606 = vpop.f32.mrb[0].mxu0
      %2607 = vmatprep.mubr.f32.mxu0 0.0
      %2608 = vmatmul.mubr.f32.gmra.mrb[0].mxu0 %v651
      %v2609 = vpop.f32.mrb[0].mxu0
      %v2610 = vadd.f32 0.0, %v2609
      %v2611 = vpop.f32.mrb[0].mxu0
      %2612 = vmatprep.mubr.f32.mxu0 0.0
      %2613 = vmatmul.mubr.f32.gmra.mrb[0].mxu0 %v654
      %v2614 = vpop.f32.mrb[0].mxu0
      %v2615 = vadd.f32 0.0, %v2614
      %v2616 = vpop.f32.mrb[0].mxu0
      %2617 = vmatprep.mubr.f32.mxu0 0.0
      %2618 = vmatmul.mubr.f32.gmra.mrb[0].mxu0 %v657
      %v2619 = vpop.f32.mrb[0].mxu0
      %v2620 = vadd.f32 0.0, %v2619
      %v2621 = vpop.f32.mrb[0].mxu0
      %2622 = vmatprep.mubr.f32.mxu0 0.0
      %2623 = vmatmul.mubr.f32.gmra.mrb[0].mxu0 %v660
      %v2624 = vpop.f32.mrb[0].mxu0
      %v2625 = vadd.f32 0.0, %v2624
      %v2626 = vpop.f32.mrb[0].mxu0
      %2627 = vmatprep.mubr.f32.mxu0 0.0
      %2628 = vmatmul.mubr.f32.gmra.mrb[0].mxu0 %v663
      %v2629 = vpop.f32.mrb[0].mxu0
      %v2630 = vadd.f32 0.0, %v2629
      %v2631 = vpop.f32.mrb[0].mxu0
      %2632 = vmatprep.mubr.f32.mxu0 0.0
      %2633 = vmatmul.mubr.f32.gmra.mrb[0].mxu0 %v666
      %v2634 = vpop.f32.mrb[0].mxu0
      %v2635 = vadd.f32 0.0, %v2634
      %v2636 = vpop.f32.mrb[0].mxu0
      %2637 = vmatprep.mubr.f32.mxu0 0.0
      %2638 = vmatmul.mubr.f32.gmra.mrb[0].mxu0 %v669
      %v2639 = vpop.f32.mrb[0].mxu0
      %v2640 = vadd.f32 0.0, %v2639
      %v2641 = vpop.f32.mrb[0].mxu0
      %2642 = vmatprep.mubr.f32.mxu0 0.0
      %2643 = vmatmul.mubr.f32.gmra.mrb[0].mxu0 %v672
      %v2644 = vpop.f32.mrb[0].mxu0
      %v2645 = vadd.f32 0.0, %v2644
      %v2646 = vpop.f32.mrb[0].mxu0
      %2647 = vmatprep.mubr.f32.mxu0 0.0
      %2648 = vmatmul.mubr.f32.gmra.mrb[0].mxu0 %v675
      %v2649 = vpop.f32.mrb[0].mxu0
      %v2650 = vadd.f32 0.0, %v2649
      %v2651 = vpop.f32.mrb[0].mxu0
      %2652 = vmatprep.mubr.f32.mxu0 0.0
      %2653 = vmatmul.mubr.f32.gmra.mrb[0].mxu0 %v678
      %v2654 = vpop.f32.mrb[0].mxu0
      %v2655 = vadd.f32 0.0, %v2654
      %v2656 = vpop.f32.mrb[0].mxu0
      %2657 = vmatprep.mubr.f32.mxu0 0.0
      %2658 = vmatmul.mubr.f32.gmra.mrb[0].mxu0 %v681
      %v2659 = vpop.f32.mrb[0].mxu0
      %v2660 = vadd.f32 0.0, %v2659
      %v2661 = vpop.f32.mrb[0].mxu0
      %2662 = vmatprep.mubr.f32.mxu0 0.0
      %2663 = vmatmul.mubr.f32.gmra.mrb[0].mxu0 %v684
      %v2664 = vpop.f32.mrb[0].mxu0
      %v2665 = vadd.f32 0.0, %v2664
      %v2666 = vpop.f32.mrb[0].mxu0
      %2667 = vmatprep.mubr.f32.mxu0 0.0
      %2668 = vmatmul.mubr.f32.gmra.mrb[0].mxu0 %v687
      %v2669 = vpop.f32.mrb[0].mxu0
      %v2670 = vadd.f32 0.0, %v2669
      %v2671 = vpop.f32.mrb[0].mxu0
      %2672 = vmatprep.mubr.f32.mxu0 0.0
      %2673 = vmatmul.mubr.f32.gmra.mrb[0].mxu0 %v690
      %v2674 = vpop.f32.mrb[0].mxu0
      %v2675 = vadd.f32 0.0, %v2674
      %v2676 = vpop.f32.mrb[0].mxu0
      %2677 = vmatprep.mubr.f32.mxu0 0.0
      %2678 = vmatmul.mubr.f32.gmra.mrb[0].mxu0 %v693
      %v2679 = vpop.f32.mrb[0].mxu0
      %v2680 = vadd.f32 0.0, %v2679
      %v2681 = vpop.f32.mrb[0].mxu0
      %2682 = vmatprep.mubr.f32.mxu0 0.0
      %2683 = vmatmul.mubr.f32.gmra.mrb[0].mxu0 %v696
      %v2684 = vpop.f32.mrb[0].mxu0
      %v2685 = vadd.f32 0.0, %v2684
      %v2686 = vpop.f32.mrb[0].mxu0
      %2687 = vmatprep.mubr.f32.mxu0 0.0
      %2688 = vmatmul.mubr.f32.gmra.mrb[0].mxu0 %v699
      %v2689 = vpop.f32.mrb[0].mxu0
      %v2690 = vadd.f32 0.0, %v2689
      %v2691 = vpop.f32.mrb[0].mxu0
      %2692 = vmatprep.mubr.f32.mxu0 0.0
      %2693 = vmatmul.mubr.f32.gmra.mrb[0].mxu0 %v702
      %v2694 = vpop.f32.mrb[0].mxu0
      %v2695 = vadd.f32 0.0, %v2694
      %v2696 = vpop.f32.mrb[0].mxu0
      %2697 = vmatprep.mubr.f32.mxu0 0.0
      %2698 = vmatmul.mubr.f32.gmra.mrb[0].mxu0 %v705
      %v2699 = vpop.f32.mrb[0].mxu0
      %v2700 = vadd.f32 0.0, %v2699
      %v2701 = vpop.f32.mrb[0].mxu0
      %2702 = vmatprep.mubr.f32.mxu0 0.0
      %2703 = vmatmul.mubr.f32.gmra.mrb[0].mxu0 %v708
      %v2704 = vpop.f32.mrb[0].mxu0
      %v2705 = vadd.f32 0.0, %v2704
      %v2706 = vpop.f32.mrb[0].mxu0
      %2707 = vmatprep.mubr.f32.mxu0 0.0
      %2708 = vmatmul.mubr.f32.gmra.mrb[0].mxu0 %v711
      %v2709 = vpop.f32.mrb[0].mxu0
      %v2710 = vadd.f32 0.0, %v2709
      %v2711 = vpop.f32.mrb[0].mxu0
      %2712 = vmatprep.mubr.f32.mxu0 0.0
      %2713 = vmatmul.mubr.f32.gmra.mrb[0].mxu0 %v714
      %v2714 = vpop.f32.mrb[0].mxu0
      %v2715 = vadd.f32 0.0, %v2714
      %v2716 = vpop.f32.mrb[0].mxu0
      %2717 = vmatprep.mubr.f32.mxu0 0.0
      %2718 = vmatmul.mubr.f32.gmra.mrb[0].mxu0 %v717
      %v2719 = vpop.f32.mrb[0].mxu0
      %v2720 = vadd.f32 0.0, %v2719
      %v2721 = vpop.f32.mrb[0].mxu0
      %2722 = vmatprep.mubr.f32.mxu0 0.0
      %2723 = vmatmul.mubr.f32.gmra.mrb[0].mxu0 %v720
      %v2724 = vpop.f32.mrb[0].mxu0
      %v2725 = vadd.f32 0.0, %v2724
      %v2726 = vpop.f32.mrb[0].mxu0
      %2727 = vmatprep.mubr.f32.mxu0 0.0
      %2728 = vmatmul.mubr.f32.gmra.mrb[0].mxu0 %v723
      %v2729 = vpop.f32.mrb[0].mxu0
      %v2730 = vadd.f32 0.0, %v2729
      %v2731 = vpop.f32.mrb[0].mxu0
      %2732 = vmatprep.mubr.f32.mxu0 0.0
      %2733 = vmatmul.mubr.f32.gmra.mrb[0].mxu0 %v726
      %v2734 = vpop.f32.mrb[0].mxu0
      %v2735 = vadd.f32 0.0, %v2734
      %v2736 = vpop.f32.mrb[0].mxu0
      %2737 = vmatprep.mubr.f32.mxu0 0.0
      %2738 = vmatmul.mubr.f32.gmra.mrb[0].mxu0 %v729
      %v2739 = vpop.f32.mrb[0].mxu0
      %v2740 = vadd.f32 0.0, %v2739
      %v2741 = vpop.f32.mrb[0].mxu0
      %2742 = vmatprep.mubr.f32.mxu0 0.0
      %2743 = vmatmul.mubr.f32.gmra.mrb[0].mxu0 %v732
      %v2744 = vpop.f32.mrb[0].mxu0
      %v2745 = vadd.f32 0.0, %v2744
      %v2746 = vpop.f32.mrb[0].mxu0
      %2747 = vmatprep.mubr.f32.mxu0 0.0
      %2748 = vmatmul.mubr.f32.gmra.mrb[0].mxu0 %v735
      %v2749 = vpop.f32.mrb[0].mxu0
      %v2750 = vadd.f32 0.0, %v2749
      %v2751 = vpop.f32.mrb[0].mxu0
      %2752 = vmatprep.mubr.f32.mxu0 0.0
      %2753 = vmatmul.mubr.f32.gmra.mrb[0].mxu0 %v738
      %v2754 = vpop.f32.mrb[0].mxu0
      %v2755 = vadd.f32 0.0, %v2754
      %v2756 = vpop.f32.mrb[0].mxu0
      %2757 = vmatprep.mubr.f32.mxu0 0.0
      %2758 = vmatmul.mubr.f32.gmra.mrb[0].mxu0 %v741
      %v2759 = vpop.f32.mrb[0].mxu0
      %v2760 = vadd.f32 0.0, %v2759
      %v2761 = vpop.f32.mrb[0].mxu0
      %2762 = vmatprep.mubr.f32.mxu0 0.0
      %2763 = vmatmul.mubr.f32.gmra.mrb[0].mxu0 %v744
      %v2764 = vpop.f32.mrb[0].mxu0
      %v2765 = vadd.f32 0.0, %v2764
      %v2766 = vpop.f32.mrb[0].mxu0
      %2767 = vdwg.mxu0
      %v2768 = vld [vmem:[%s4] sm:$0xff]
      %v2769 = vld [vmem:[%s4 + $0x8] sm:$0xff]
      %v2770 = vld [vmem:[%s4 + $0x10] sm:$0xff]
      %v2771 = vld [vmem:[%s4 + $0x18] sm:$0xff]
      %v2772 = vld [vmem:[%s4 + $0x20] sm:$0xff]
      %v2773 = vld [vmem:[%s4 + $0x28] sm:$0xff]
      %2774 = vmatprep.subr.mxu0 0.0
      %2775 = vmatpush1.msra.mxu0 %v2768
      %2776 = vmatprep.subr.mxu0 0.0
      %2777 = vmatpush1.msra.mxu0 %v2769
      %2778 = vmatprep.subr.mxu0 0.0
      %2779 = vmatpush1.msra.mxu0 %v2770
      %2780 = vmatprep.subr.mxu0 0.0
      %2781 = vmatpush1.msra.mxu0 %v2771
      %2782 = vmatprep.subr.mxu0 0.0
      %2783 = vmatpush1.msra.mxu0 %v2772
      %2784 = vmatprep.subr.mxu0 0.0
      %2785 = vmatpush1.msra.mxu0 %v2773
      %2786 = vmatprep.subr.mxu0 0.0
      %2787 = vmatpush1.msra.mxu0 0.0
      %2788 = vmatprep.subr.mxu0 0.0
      %2789 = vmatpush1.msra.mxu0 0.0
      %2790 = vmatprep.subr.mxu0 0.0
      %2791 = vmatpush1.msra.mxu0 0.0
      %2792 = vmatprep.subr.mxu0 0.0
      %2793 = vmatpush1.msra.mxu0 0.0
      %2794 = vmatprep.subr.mxu0 0.0
      %2795 = vmatpush1.msra.mxu0 0.0
      %2796 = vmatprep.subr.mxu0 0.0
      %2797 = vmatpush1.msra.mxu0 0.0
      %2798 = vmatprep.subr.mxu0 0.0
      %2799 = vmatpush1.msra.mxu0 0.0
      %2800 = vmatprep.subr.mxu0 0.0
      %2801 = vmatpush1.msra.mxu0 0.0
      %2802 = vmatprep.subr.mxu0 0.0
      %2803 = vmatpush1.msra.mxu0 0.0
      %2804 = vmatprep.subr.mxu0 0.0
      %2805 = vmatpush1.msra.mxu0 0.0
      %2806 = vmatprep.subr.mxu0 0.0
      %2807 = vmatpush1.msra.mxu0 0.0
      %2808 = vmatprep.subr.mxu0 0.0
      %2809 = vmatpush1.msra.mxu0 0.0
      %2810 = vmatprep.subr.mxu0 0.0
      %2811 = vmatpush1.msra.mxu0 0.0
      %2812 = vmatprep.subr.mxu0 0.0
      %2813 = vmatpush1.msra.mxu0 0.0
      %2814 = vmatprep.subr.mxu0 0.0
      %2815 = vmatpush1.msra.mxu0 0.0
      %2816 = vmatprep.subr.mxu0 0.0
      %2817 = vmatpush1.msra.mxu0 0.0
      %2818 = vmatprep.subr.mxu0 0.0
      %2819 = vmatpush1.msra.mxu0 0.0
      %2820 = vmatprep.subr.mxu0 0.0
      %2821 = vmatpush1.msra.mxu0 0.0
      %2822 = vmatprep.subr.mxu0 0.0
      %2823 = vmatpush1.msra.mxu0 0.0
      %2824 = vmatprep.subr.mxu0 0.0
      %2825 = vmatpush1.msra.mxu0 0.0
      %2826 = vmatprep.subr.mxu0 0.0
      %2827 = vmatpush1.msra.mxu0 0.0
      %2828 = vmatprep.subr.mxu0 0.0
      %2829 = vmatpush1.msra.mxu0 0.0
      %2830 = vmatprep.subr.mxu0 0.0
      %2831 = vmatpush1.msra.mxu0 0.0
      %2832 = vmatprep.subr.mxu0 0.0
      %2833 = vmatpush1.msra.mxu0 0.0
      %2834 = vmatprep.subr.mxu0 0.0
      %2835 = vmatpush1.msra.mxu0 0.0
      %2836 = vmatprep.subr.mxu0 0.0
      %2837 = vmatpush1.msra.mxu0 0.0
      %2838 = vmatprep.mubr.f32.mxu0 0.0
      %2839 = vmatmul.mubr.f32.gmra.mrb[0].mxu0 %v384
      %v2840 = vpop.f32.mrb[0].mxu0
      %v2841 = vadd.f32 0.0, %v2840
      %v2842 = vpop.f32.mrb[0].mxu0
      %2843 = vmatprep.mubr.f32.mxu0 0.0
      %2844 = vmatmul.mubr.f32.gmra.mrb[0].mxu0 %v387
      %v2845 = vpop.f32.mrb[0].mxu0
      %v2846 = vadd.f32 0.0, %v2845
      %v2847 = vpop.f32.mrb[0].mxu0
      %2848 = vmatprep.mubr.f32.mxu0 0.0
      %2849 = vmatmul.mubr.f32.gmra.mrb[0].mxu0 %v390
      %v2850 = vpop.f32.mrb[0].mxu0
      %v2851 = vadd.f32 0.0, %v2850
      %v2852 = vpop.f32.mrb[0].mxu0
      %2853 = vmatprep.mubr.f32.mxu0 0.0
      %2854 = vmatmul.mubr.f32.gmra.mrb[0].mxu0 %v393
      %v2855 = vpop.f32.mrb[0].mxu0
      %v2856 = vadd.f32 0.0, %v2855
      %v2857 = vpop.f32.mrb[0].mxu0
      %2858 = vmatprep.mubr.f32.mxu0 0.0
      %2859 = vmatmul.mubr.f32.gmra.mrb[0].mxu0 %v396
      %v2860 = vpop.f32.mrb[0].mxu0
      %v2861 = vadd.f32 0.0, %v2860
      %v2862 = vpop.f32.mrb[0].mxu0
      %2863 = vmatprep.mubr.f32.mxu0 0.0
      %2864 = vmatmul.mubr.f32.gmra.mrb[0].mxu0 %v399
      %v2865 = vpop.f32.mrb[0].mxu0
      %v2866 = vadd.f32 0.0, %v2865
      %v2867 = vpop.f32.mrb[0].mxu0
      %2868 = vmatprep.mubr.f32.mxu0 0.0
      %2869 = vmatmul.mubr.f32.gmra.mrb[0].mxu0 %v402
      %v2870 = vpop.f32.mrb[0].mxu0
      %v2871 = vadd.f32 0.0, %v2870
      %v2872 = vpop.f32.mrb[0].mxu0
      %2873 = vmatprep.mubr.f32.mxu0 0.0
      %2874 = vmatmul.mubr.f32.gmra.mrb[0].mxu0 %v405
      %v2875 = vpop.f32.mrb[0].mxu0
      %v2876 = vadd.f32 0.0, %v2875
      %v2877 = vpop.f32.mrb[0].mxu0
      %2878 = vmatprep.mubr.f32.mxu0 0.0
      %2879 = vmatmul.mubr.f32.gmra.mrb[0].mxu0 %v408
      %v2880 = vpop.f32.mrb[0].mxu0
      %v2881 = vadd.f32 0.0, %v2880
      %v2882 = vpop.f32.mrb[0].mxu0
      %2883 = vmatprep.mubr.f32.mxu0 0.0
      %2884 = vmatmul.mubr.f32.gmra.mrb[0].mxu0 %v411
      %v2885 = vpop.f32.mrb[0].mxu0
      %v2886 = vadd.f32 0.0, %v2885
      %v2887 = vpop.f32.mrb[0].mxu0
      %2888 = vmatprep.mubr.f32.mxu0 0.0
      %2889 = vmatmul.mubr.f32.gmra.mrb[0].mxu0 %v414
      %v2890 = vpop.f32.mrb[0].mxu0
      %v2891 = vadd.f32 0.0, %v2890
      %v2892 = vpop.f32.mrb[0].mxu0
      %2893 = vmatprep.mubr.f32.mxu0 0.0
      %2894 = vmatmul.mubr.f32.gmra.mrb[0].mxu0 %v417
      %v2895 = vpop.f32.mrb[0].mxu0
      %v2896 = vadd.f32 0.0, %v2895
      %v2897 = vpop.f32.mrb[0].mxu0
      %2898 = vmatprep.mubr.f32.mxu0 0.0
      %2899 = vmatmul.mubr.f32.gmra.mrb[0].mxu0 %v420
      %v2900 = vpop.f32.mrb[0].mxu0
      %v2901 = vadd.f32 0.0, %v2900
      %v2902 = vpop.f32.mrb[0].mxu0
      %2903 = vmatprep.mubr.f32.mxu0 0.0
      %2904 = vmatmul.mubr.f32.gmra.mrb[0].mxu0 %v423
      %v2905 = vpop.f32.mrb[0].mxu0
      %v2906 = vadd.f32 0.0, %v2905
      %v2907 = vpop.f32.mrb[0].mxu0
      %2908 = vmatprep.mubr.f32.mxu0 0.0
      %2909 = vmatmul.mubr.f32.gmra.mrb[0].mxu0 %v426
      %v2910 = vpop.f32.mrb[0].mxu0
      %v2911 = vadd.f32 0.0, %v2910
      %v2912 = vpop.f32.mrb[0].mxu0
      %2913 = vmatprep.mubr.f32.mxu0 0.0
      %2914 = vmatmul.mubr.f32.gmra.mrb[0].mxu0 %v429
      %v2915 = vpop.f32.mrb[0].mxu0
      %v2916 = vadd.f32 0.0, %v2915
      %v2917 = vpop.f32.mrb[0].mxu0
      %2918 = vmatprep.mubr.f32.mxu0 0.0
      %2919 = vmatmul.mubr.f32.gmra.mrb[0].mxu0 %v432
      %v2920 = vpop.f32.mrb[0].mxu0
      %v2921 = vadd.f32 0.0, %v2920
      %v2922 = vpop.f32.mrb[0].mxu0
      %2923 = vmatprep.mubr.f32.mxu0 0.0
      %2924 = vmatmul.mubr.f32.gmra.mrb[0].mxu0 %v435
      %v2925 = vpop.f32.mrb[0].mxu0
      %v2926 = vadd.f32 0.0, %v2925
      %v2927 = vpop.f32.mrb[0].mxu0
      %2928 = vmatprep.mubr.f32.mxu0 0.0
      %2929 = vmatmul.mubr.f32.gmra.mrb[0].mxu0 %v438
      %v2930 = vpop.f32.mrb[0].mxu0
      %v2931 = vadd.f32 0.0, %v2930
      %v2932 = vpop.f32.mrb[0].mxu0
      %2933 = vmatprep.mubr.f32.mxu0 0.0
      %2934 = vmatmul.mubr.f32.gmra.mrb[0].mxu0 %v441
      %v2935 = vpop.f32.mrb[0].mxu0
      %v2936 = vadd.f32 0.0, %v2935
      %v2937 = vpop.f32.mrb[0].mxu0
      %2938 = vmatprep.mubr.f32.mxu0 0.0
      %2939 = vmatmul.mubr.f32.gmra.mrb[0].mxu0 %v444
      %v2940 = vpop.f32.mrb[0].mxu0
      %v2941 = vadd.f32 0.0, %v2940
      %v2942 = vpop.f32.mrb[0].mxu0
      %2943 = vmatprep.mubr.f32.mxu0 0.0
      %2944 = vmatmul.mubr.f32.gmra.mrb[0].mxu0 %v447
      %v2945 = vpop.f32.mrb[0].mxu0
      %v2946 = vadd.f32 0.0, %v2945
      %v2947 = vpop.f32.mrb[0].mxu0
      %2948 = vmatprep.mubr.f32.mxu0 0.0
      %2949 = vmatmul.mubr.f32.gmra.mrb[0].mxu0 %v450
      %v2950 = vpop.f32.mrb[0].mxu0
      %v2951 = vadd.f32 0.0, %v2950
      %v2952 = vpop.f32.mrb[0].mxu0
      %2953 = vmatprep.mubr.f32.mxu0 0.0
      %2954 = vmatmul.mubr.f32.gmra.mrb[0].mxu0 %v453
      %v2955 = vpop.f32.mrb[0].mxu0
      %v2956 = vadd.f32 0.0, %v2955
      %v2957 = vpop.f32.mrb[0].mxu0
      %2958 = vmatprep.mubr.f32.mxu0 0.0
      %2959 = vmatmul.mubr.f32.gmra.mrb[0].mxu0 %v456
      %v2960 = vpop.f32.mrb[0].mxu0
      %v2961 = vadd.f32 0.0, %v2960
      %v2962 = vpop.f32.mrb[0].mxu0
      %2963 = vmatprep.mubr.f32.mxu0 0.0
      %2964 = vmatmul.mubr.f32.gmra.mrb[0].mxu0 %v459
      %v2965 = vpop.f32.mrb[0].mxu0
      %v2966 = vadd.f32 0.0, %v2965
      %v2967 = vpop.f32.mrb[0].mxu0
      %2968 = vmatprep.mubr.f32.mxu0 0.0
      %2969 = vmatmul.mubr.f32.gmra.mrb[0].mxu0 %v462
      %v2970 = vpop.f32.mrb[0].mxu0
      %v2971 = vadd.f32 0.0, %v2970
      %v2972 = vpop.f32.mrb[0].mxu0
      %2973 = vmatprep.mubr.f32.mxu0 0.0
      %2974 = vmatmul.mubr.f32.gmra.mrb[0].mxu0 %v465
      %v2975 = vpop.f32.mrb[0].mxu0
      %v2976 = vadd.f32 0.0, %v2975
      %v2977 = vpop.f32.mrb[0].mxu0
      %2978 = vmatprep.mubr.f32.mxu0 0.0
      %2979 = vmatmul.mubr.f32.gmra.mrb[0].mxu0 %v468
      %v2980 = vpop.f32.mrb[0].mxu0
      %v2981 = vadd.f32 0.0, %v2980
      %v2982 = vpop.f32.mrb[0].mxu0
      %2983 = vmatprep.mubr.f32.mxu0 0.0
      %2984 = vmatmul.mubr.f32.gmra.mrb[0].mxu0 %v471
      %v2985 = vpop.f32.mrb[0].mxu0
      %v2986 = vadd.f32 0.0, %v2985
      %v2987 = vpop.f32.mrb[0].mxu0
      %2988 = vmatprep.mubr.f32.mxu0 0.0
      %2989 = vmatmul.mubr.f32.gmra.mrb[0].mxu0 %v474
      %v2990 = vpop.f32.mrb[0].mxu0
      %v2991 = vadd.f32 0.0, %v2990
      %v2992 = vpop.f32.mrb[0].mxu0
      %2993 = vmatprep.mubr.f32.mxu0 0.0
      %2994 = vmatmul.mubr.f32.gmra.mrb[0].mxu0 %v477
      %v2995 = vpop.f32.mrb[0].mxu0
      %v2996 = vadd.f32 0.0, %v2995
      %v2997 = vpop.f32.mrb[0].mxu0
      %2998 = vmatprep.mubr.f32.mxu0 0.0
      %2999 = vmatmul.mubr.f32.gmra.mrb[0].mxu0 %v480
      %v3000 = vpop.f32.mrb[0].mxu0
      %v3001 = vadd.f32 0.0, %v3000
      %v3002 = vpop.f32.mrb[0].mxu0
      %3003 = vmatprep.mubr.f32.mxu0 0.0
      %3004 = vmatmul.mubr.f32.gmra.mrb[0].mxu0 %v483
      %v3005 = vpop.f32.mrb[0].mxu0
      %v3006 = vadd.f32 0.0, %v3005
      %v3007 = vpop.f32.mrb[0].mxu0
      %3008 = vmatprep.mubr.f32.mxu0 0.0
      %3009 = vmatmul.mubr.f32.gmra.mrb[0].mxu0 %v486
      %v3010 = vpop.f32.mrb[0].mxu0
      %v3011 = vadd.f32 0.0, %v3010
      %v3012 = vpop.f32.mrb[0].mxu0
      %3013 = vmatprep.mubr.f32.mxu0 0.0
      %3014 = vmatmul.mubr.f32.gmra.mrb[0].mxu0 %v489
      %v3015 = vpop.f32.mrb[0].mxu0
      %v3016 = vadd.f32 0.0, %v3015
      %v3017 = vpop.f32.mrb[0].mxu0
      %3018 = vmatprep.mubr.f32.mxu0 0.0
      %3019 = vmatmul.mubr.f32.gmra.mrb[0].mxu0 %v492
      %v3020 = vpop.f32.mrb[0].mxu0
      %v3021 = vadd.f32 0.0, %v3020
      %v3022 = vpop.f32.mrb[0].mxu0
      %3023 = vmatprep.mubr.f32.mxu0 0.0
      %3024 = vmatmul.mubr.f32.gmra.mrb[0].mxu0 %v495
      %v3025 = vpop.f32.mrb[0].mxu0
      %v3026 = vadd.f32 0.0, %v3025
      %v3027 = vpop.f32.mrb[0].mxu0
      %3028 = vmatprep.mubr.f32.mxu0 0.0
      %3029 = vmatmul.mubr.f32.gmra.mrb[0].mxu0 %v498
      %v3030 = vpop.f32.mrb[0].mxu0
      %v3031 = vadd.f32 0.0, %v3030
      %v3032 = vpop.f32.mrb[0].mxu0
      %3033 = vmatprep.mubr.f32.mxu0 0.0
      %3034 = vmatmul.mubr.f32.gmra.mrb[0].mxu0 %v501
      %v3035 = vpop.f32.mrb[0].mxu0
      %v3036 = vadd.f32 0.0, %v3035
      %v3037 = vpop.f32.mrb[0].mxu0
      %3038 = vmatprep.mubr.f32.mxu0 0.0
      %3039 = vmatmul.mubr.f32.gmra.mrb[0].mxu0 %v504
      %v3040 = vpop.f32.mrb[0].mxu0
      %v3041 = vadd.f32 0.0, %v3040
      %v3042 = vpop.f32.mrb[0].mxu0
      %3043 = vmatprep.mubr.f32.mxu0 0.0
      %3044 = vmatmul.mubr.f32.gmra.mrb[0].mxu0 %v507
      %v3045 = vpop.f32.mrb[0].mxu0
      %v3046 = vadd.f32 0.0, %v3045
      %v3047 = vpop.f32.mrb[0].mxu0
      %3048 = vmatprep.mubr.f32.mxu0 0.0
      %3049 = vmatmul.mubr.f32.gmra.mrb[0].mxu0 %v510
      %v3050 = vpop.f32.mrb[0].mxu0
      %v3051 = vadd.f32 0.0, %v3050
      %v3052 = vpop.f32.mrb[0].mxu0
      %3053 = vmatprep.mubr.f32.mxu0 0.0
      %3054 = vmatmul.mubr.f32.gmra.mrb[0].mxu0 %v513
      %v3055 = vpop.f32.mrb[0].mxu0
      %v3056 = vadd.f32 0.0, %v3055
      %v3057 = vpop.f32.mrb[0].mxu0
      %3058 = vmatprep.mubr.f32.mxu0 0.0
      %3059 = vmatmul.mubr.f32.gmra.mrb[0].mxu0 %v516
      %v3060 = vpop.f32.mrb[0].mxu0
      %v3061 = vadd.f32 0.0, %v3060
      %v3062 = vpop.f32.mrb[0].mxu0
      %3063 = vmatprep.mubr.f32.mxu0 0.0
      %3064 = vmatmul.mubr.f32.gmra.mrb[0].mxu0 %v519
      %v3065 = vpop.f32.mrb[0].mxu0
      %v3066 = vadd.f32 0.0, %v3065
      %v3067 = vpop.f32.mrb[0].mxu0
      %3068 = vmatprep.mubr.f32.mxu0 0.0
      %3069 = vmatmul.mubr.f32.gmra.mrb[0].mxu0 %v522
      %v3070 = vpop.f32.mrb[0].mxu0
      %v3071 = vadd.f32 0.0, %v3070
      %v3072 = vpop.f32.mrb[0].mxu0
      %3073 = vmatprep.mubr.f32.mxu0 0.0
      %3074 = vmatmul.mubr.f32.gmra.mrb[0].mxu0 %v525
      %v3075 = vpop.f32.mrb[0].mxu0
      %v3076 = vadd.f32 0.0, %v3075
      %v3077 = vpop.f32.mrb[0].mxu0
      %3078 = vmatprep.mubr.f32.mxu0 0.0
      %3079 = vmatmul.mubr.f32.gmra.mrb[0].mxu0 %v528
      %v3080 = vpop.f32.mrb[0].mxu0
      %v3081 = vadd.f32 0.0, %v3080
      %v3082 = vpop.f32.mrb[0].mxu0
      %3083 = vmatprep.mubr.f32.mxu0 0.0
      %3084 = vmatmul.mubr.f32.gmra.mrb[0].mxu0 %v531
      %v3085 = vpop.f32.mrb[0].mxu0
      %v3086 = vadd.f32 0.0, %v3085
      %v3087 = vpop.f32.mrb[0].mxu0
      %3088 = vmatprep.mubr.f32.mxu0 0.0
      %3089 = vmatmul.mubr.f32.gmra.mrb[0].mxu0 %v534
      %v3090 = vpop.f32.mrb[0].mxu0
      %v3091 = vadd.f32 0.0, %v3090
      %v3092 = vpop.f32.mrb[0].mxu0
      %3093 = vmatprep.mubr.f32.mxu0 0.0
      %3094 = vmatmul.mubr.f32.gmra.mrb[0].mxu0 %v537
      %v3095 = vpop.f32.mrb[0].mxu0
      %v3096 = vadd.f32 0.0, %v3095
      %v3097 = vpop.f32.mrb[0].mxu0
      %3098 = vmatprep.mubr.f32.mxu0 0.0
      %3099 = vmatmul.mubr.f32.gmra.mrb[0].mxu0 %v540
      %v3100 = vpop.f32.mrb[0].mxu0
      %v3101 = vadd.f32 0.0, %v3100
      %v3102 = vpop.f32.mrb[0].mxu0
      %3103 = vmatprep.mubr.f32.mxu0 0.0
      %3104 = vmatmul.mubr.f32.gmra.mrb[0].mxu0 %v543
      %v3105 = vpop.f32.mrb[0].mxu0
      %v3106 = vadd.f32 0.0, %v3105
      %v3107 = vpop.f32.mrb[0].mxu0
      %3108 = vmatprep.mubr.f32.mxu0 0.0
      %3109 = vmatmul.mubr.f32.gmra.mrb[0].mxu0 %v546
      %v3110 = vpop.f32.mrb[0].mxu0
      %v3111 = vadd.f32 0.0, %v3110
      %v3112 = vpop.f32.mrb[0].mxu0
      %3113 = vmatprep.mubr.f32.mxu0 0.0
      %3114 = vmatmul.mubr.f32.gmra.mrb[0].mxu0 %v549
      %v3115 = vpop.f32.mrb[0].mxu0
      %v3116 = vadd.f32 0.0, %v3115
      %v3117 = vpop.f32.mrb[0].mxu0
      %3118 = vmatprep.mubr.f32.mxu0 0.0
      %3119 = vmatmul.mubr.f32.gmra.mrb[0].mxu0 %v552
      %v3120 = vpop.f32.mrb[0].mxu0
      %v3121 = vadd.f32 0.0, %v3120
      %v3122 = vpop.f32.mrb[0].mxu0
      %3123 = vmatprep.mubr.f32.mxu0 0.0
      %3124 = vmatmul.mubr.f32.gmra.mrb[0].mxu0 %v555
      %v3125 = vpop.f32.mrb[0].mxu0
      %v3126 = vadd.f32 0.0, %v3125
      %v3127 = vpop.f32.mrb[0].mxu0
      %3128 = vmatprep.mubr.f32.mxu0 0.0
      %3129 = vmatmul.mubr.f32.gmra.mrb[0].mxu0 %v558
      %v3130 = vpop.f32.mrb[0].mxu0
      %v3131 = vadd.f32 0.0, %v3130
      %v3132 = vpop.f32.mrb[0].mxu0
      %3133 = vmatprep.mubr.f32.mxu0 0.0
      %3134 = vmatmul.mubr.f32.gmra.mrb[0].mxu0 %v561
      %v3135 = vpop.f32.mrb[0].mxu0
      %v3136 = vadd.f32 0.0, %v3135
      %v3137 = vpop.f32.mrb[0].mxu0
      %3138 = vmatprep.mubr.f32.mxu0 0.0
      %3139 = vmatmul.mubr.f32.gmra.mrb[0].mxu0 %v564
      %v3140 = vpop.f32.mrb[0].mxu0
      %v3141 = vadd.f32 0.0, %v3140
      %v3142 = vpop.f32.mrb[0].mxu0
      %3143 = vmatprep.mubr.f32.mxu0 0.0
      %3144 = vmatmul.mubr.f32.gmra.mrb[0].mxu0 %v567
      %v3145 = vpop.f32.mrb[0].mxu0
      %v3146 = vadd.f32 0.0, %v3145
      %v3147 = vpop.f32.mrb[0].mxu0
      %3148 = vmatprep.mubr.f32.mxu0 0.0
      %3149 = vmatmul.mubr.f32.gmra.mrb[0].mxu0 %v570
      %v3150 = vpop.f32.mrb[0].mxu0
      %v3151 = vadd.f32 0.0, %v3150
      %v3152 = vpop.f32.mrb[0].mxu0
      %3153 = vmatprep.mubr.f32.mxu0 0.0
      %3154 = vmatmul.mubr.f32.gmra.mrb[0].mxu0 %v573
      %v3155 = vpop.f32.mrb[0].mxu0
      %v3156 = vadd.f32 0.0, %v3155
      %v3157 = vpop.f32.mrb[0].mxu0
      %3158 = vmatprep.mubr.f32.mxu0 0.0
      %3159 = vmatmul.mubr.f32.gmra.mrb[0].mxu0 %v576
      %v3160 = vpop.f32.mrb[0].mxu0
      %v3161 = vadd.f32 0.0, %v3160
      %v3162 = vpop.f32.mrb[0].mxu0
      %3163 = vmatprep.mubr.f32.mxu0 0.0
      %3164 = vmatmul.mubr.f32.gmra.mrb[0].mxu0 %v579
      %v3165 = vpop.f32.mrb[0].mxu0
      %v3166 = vadd.f32 0.0, %v3165
      %v3167 = vpop.f32.mrb[0].mxu0
      %3168 = vmatprep.mubr.f32.mxu0 0.0
      %3169 = vmatmul.mubr.f32.gmra.mrb[0].mxu0 %v582
      %v3170 = vpop.f32.mrb[0].mxu0
      %v3171 = vadd.f32 0.0, %v3170
      %v3172 = vpop.f32.mrb[0].mxu0
      %3173 = vmatprep.mubr.f32.mxu0 0.0
      %3174 = vmatmul.mubr.f32.gmra.mrb[0].mxu0 %v585
      %v3175 = vpop.f32.mrb[0].mxu0
      %v3176 = vadd.f32 0.0, %v3175
      %v3177 = vpop.f32.mrb[0].mxu0
      %3178 = vmatprep.mubr.f32.mxu0 0.0
      %3179 = vmatmul.mubr.f32.gmra.mrb[0].mxu0 %v588
      %v3180 = vpop.f32.mrb[0].mxu0
      %v3181 = vadd.f32 0.0, %v3180
      %v3182 = vpop.f32.mrb[0].mxu0
      %3183 = vmatprep.mubr.f32.mxu0 0.0
      %3184 = vmatmul.mubr.f32.gmra.mrb[0].mxu0 %v591
      %v3185 = vpop.f32.mrb[0].mxu0
      %v3186 = vadd.f32 0.0, %v3185
      %v3187 = vpop.f32.mrb[0].mxu0
      %3188 = vmatprep.mubr.f32.mxu0 0.0
      %3189 = vmatmul.mubr.f32.gmra.mrb[0].mxu0 %v594
      %v3190 = vpop.f32.mrb[0].mxu0
      %v3191 = vadd.f32 0.0, %v3190
      %v3192 = vpop.f32.mrb[0].mxu0
      %3193 = vmatprep.mubr.f32.mxu0 0.0
      %3194 = vmatmul.mubr.f32.gmra.mrb[0].mxu0 %v597
      %v3195 = vpop.f32.mrb[0].mxu0
      %v3196 = vadd.f32 0.0, %v3195
      %v3197 = vpop.f32.mrb[0].mxu0
      %3198 = vmatprep.mubr.f32.mxu0 0.0
      %3199 = vmatmul.mubr.f32.gmra.mrb[0].mxu0 %v600
      %v3200 = vpop.f32.mrb[0].mxu0
      %v3201 = vadd.f32 0.0, %v3200
      %v3202 = vpop.f32.mrb[0].mxu0
      %3203 = vmatprep.mubr.f32.mxu0 0.0
      %3204 = vmatmul.mubr.f32.gmra.mrb[0].mxu0 %v603
      %v3205 = vpop.f32.mrb[0].mxu0
      %v3206 = vadd.f32 0.0, %v3205
      %v3207 = vpop.f32.mrb[0].mxu0
      %3208 = vmatprep.mubr.f32.mxu0 0.0
      %3209 = vmatmul.mubr.f32.gmra.mrb[0].mxu0 %v606
      %v3210 = vpop.f32.mrb[0].mxu0
      %v3211 = vadd.f32 0.0, %v3210
      %v3212 = vpop.f32.mrb[0].mxu0
      %3213 = vmatprep.mubr.f32.mxu0 0.0
      %3214 = vmatmul.mubr.f32.gmra.mrb[0].mxu0 %v609
      %v3215 = vpop.f32.mrb[0].mxu0
      %v3216 = vadd.f32 0.0, %v3215
      %v3217 = vpop.f32.mrb[0].mxu0
      %3218 = vmatprep.mubr.f32.mxu0 0.0
      %3219 = vmatmul.mubr.f32.gmra.mrb[0].mxu0 %v612
      %v3220 = vpop.f32.mrb[0].mxu0
      %v3221 = vadd.f32 0.0, %v3220
      %v3222 = vpop.f32.mrb[0].mxu0
      %3223 = vmatprep.mubr.f32.mxu0 0.0
      %3224 = vmatmul.mubr.f32.gmra.mrb[0].mxu0 %v615
      %v3225 = vpop.f32.mrb[0].mxu0
      %v3226 = vadd.f32 0.0, %v3225
      %v3227 = vpop.f32.mrb[0].mxu0
      %3228 = vmatprep.mubr.f32.mxu0 0.0
      %3229 = vmatmul.mubr.f32.gmra.mrb[0].mxu0 %v618
      %v3230 = vpop.f32.mrb[0].mxu0
      %v3231 = vadd.f32 0.0, %v3230
      %v3232 = vpop.f32.mrb[0].mxu0
      %3233 = vmatprep.mubr.f32.mxu0 0.0
      %3234 = vmatmul.mubr.f32.gmra.mrb[0].mxu0 %v621
      %v3235 = vpop.f32.mrb[0].mxu0
      %v3236 = vadd.f32 0.0, %v3235
      %v3237 = vpop.f32.mrb[0].mxu0
      %3238 = vmatprep.mubr.f32.mxu0 0.0
      %3239 = vmatmul.mubr.f32.gmra.mrb[0].mxu0 %v624
      %v3240 = vpop.f32.mrb[0].mxu0
      %v3241 = vadd.f32 0.0, %v3240
      %v3242 = vpop.f32.mrb[0].mxu0
      %3243 = vmatprep.mubr.f32.mxu0 0.0
      %3244 = vmatmul.mubr.f32.gmra.mrb[0].mxu0 %v627
      %v3245 = vpop.f32.mrb[0].mxu0
      %v3246 = vadd.f32 0.0, %v3245
      %v3247 = vpop.f32.mrb[0].mxu0
      %3248 = vmatprep.mubr.f32.mxu0 0.0
      %3249 = vmatmul.mubr.f32.gmra.mrb[0].mxu0 %v630
      %v3250 = vpop.f32.mrb[0].mxu0
      %v3251 = vadd.f32 0.0, %v3250
      %v3252 = vpop.f32.mrb[0].mxu0
      %3253 = vmatprep.mubr.f32.mxu0 0.0
      %3254 = vmatmul.mubr.f32.gmra.mrb[0].mxu0 %v633
      %v3255 = vpop.f32.mrb[0].mxu0
      %v3256 = vadd.f32 0.0, %v3255
      %v3257 = vpop.f32.mrb[0].mxu0
      %3258 = vmatprep.mubr.f32.mxu0 0.0
      %3259 = vmatmul.mubr.f32.gmra.mrb[0].mxu0 %v636
      %v3260 = vpop.f32.mrb[0].mxu0
      %v3261 = vadd.f32 0.0, %v3260
      %v3262 = vpop.f32.mrb[0].mxu0
      %3263 = vmatprep.mubr.f32.mxu0 0.0
      %3264 = vmatmul.mubr.f32.gmra.mrb[0].mxu0 %v639
      %v3265 = vpop.f32.mrb[0].mxu0
      %v3266 = vadd.f32 0.0, %v3265
      %v3267 = vpop.f32.mrb[0].mxu0
      %3268 = vmatprep.mubr.f32.mxu0 0.0
      %3269 = vmatmul.mubr.f32.gmra.mrb[0].mxu0 %v642
      %v3270 = vpop.f32.mrb[0].mxu0
      %v3271 = vadd.f32 0.0, %v3270
      %v3272 = vpop.f32.mrb[0].mxu0
      %3273 = vmatprep.mubr.f32.mxu0 0.0
      %3274 = vmatmul.mubr.f32.gmra.mrb[0].mxu0 %v645
      %v3275 = vpop.f32.mrb[0].mxu0
      %v3276 = vadd.f32 0.0, %v3275
      %v3277 = vpop.f32.mrb[0].mxu0
      %3278 = vmatprep.mubr.f32.mxu0 0.0
      %3279 = vmatmul.mubr.f32.gmra.mrb[0].mxu0 %v648
      %v3280 = vpop.f32.mrb[0].mxu0
      %v3281 = vadd.f32 0.0, %v3280
      %v3282 = vpop.f32.mrb[0].mxu0
      %3283 = vmatprep.mubr.f32.mxu0 0.0
      %3284 = vmatmul.mubr.f32.gmra.mrb[0].mxu0 %v651
      %v3285 = vpop.f32.mrb[0].mxu0
      %v3286 = vadd.f32 0.0, %v3285
      %v3287 = vpop.f32.mrb[0].mxu0
      %3288 = vmatprep.mubr.f32.mxu0 0.0
      %3289 = vmatmul.mubr.f32.gmra.mrb[0].mxu0 %v654
      %v3290 = vpop.f32.mrb[0].mxu0
      %v3291 = vadd.f32 0.0, %v3290
      %v3292 = vpop.f32.mrb[0].mxu0
      %3293 = vmatprep.mubr.f32.mxu0 0.0
      %3294 = vmatmul.mubr.f32.gmra.mrb[0].mxu0 %v657
      %v3295 = vpop.f32.mrb[0].mxu0
      %v3296 = vadd.f32 0.0, %v3295
      %v3297 = vpop.f32.mrb[0].mxu0
      %3298 = vmatprep.mubr.f32.mxu0 0.0
      %3299 = vmatmul.mubr.f32.gmra.mrb[0].mxu0 %v660
      %v3300 = vpop.f32.mrb[0].mxu0
      %v3301 = vadd.f32 0.0, %v3300
      %v3302 = vpop.f32.mrb[0].mxu0
      %3303 = vmatprep.mubr.f32.mxu0 0.0
      %3304 = vmatmul.mubr.f32.gmra.mrb[0].mxu0 %v663
      %v3305 = vpop.f32.mrb[0].mxu0
      %v3306 = vadd.f32 0.0, %v3305
      %v3307 = vpop.f32.mrb[0].mxu0
      %3308 = vmatprep.mubr.f32.mxu0 0.0
      %3309 = vmatmul.mubr.f32.gmra.mrb[0].mxu0 %v666
      %v3310 = vpop.f32.mrb[0].mxu0
      %v3311 = vadd.f32 0.0, %v3310
      %v3312 = vpop.f32.mrb[0].mxu0
      %3313 = vmatprep.mubr.f32.mxu0 0.0
      %3314 = vmatmul.mubr.f32.gmra.mrb[0].mxu0 %v669
      %v3315 = vpop.f32.mrb[0].mxu0
      %v3316 = vadd.f32 0.0, %v3315
      %v3317 = vpop.f32.mrb[0].mxu0
      %3318 = vmatprep.mubr.f32.mxu0 0.0
      %3319 = vmatmul.mubr.f32.gmra.mrb[0].mxu0 %v672
      %v3320 = vpop.f32.mrb[0].mxu0
      %v3321 = vadd.f32 0.0, %v3320
      %v3322 = vpop.f32.mrb[0].mxu0
      %3323 = vmatprep.mubr.f32.mxu0 0.0
      %3324 = vmatmul.mubr.f32.gmra.mrb[0].mxu0 %v675
      %v3325 = vpop.f32.mrb[0].mxu0
      %v3326 = vadd.f32 0.0, %v3325
      %v3327 = vpop.f32.mrb[0].mxu0
      %3328 = vmatprep.mubr.f32.mxu0 0.0
      %3329 = vmatmul.mubr.f32.gmra.mrb[0].mxu0 %v678
      %v3330 = vpop.f32.mrb[0].mxu0
      %v3331 = vadd.f32 0.0, %v3330
      %v3332 = vpop.f32.mrb[0].mxu0
      %3333 = vmatprep.mubr.f32.mxu0 0.0
      %3334 = vmatmul.mubr.f32.gmra.mrb[0].mxu0 %v681
      %v3335 = vpop.f32.mrb[0].mxu0
      %v3336 = vadd.f32 0.0, %v3335
      %v3337 = vpop.f32.mrb[0].mxu0
      %3338 = vmatprep.mubr.f32.mxu0 0.0
      %3339 = vmatmul.mubr.f32.gmra.mrb[0].mxu0 %v684
      %v3340 = vpop.f32.mrb[0].mxu0
      %v3341 = vadd.f32 0.0, %v3340
      %v3342 = vpop.f32.mrb[0].mxu0
      %3343 = vmatprep.mubr.f32.mxu0 0.0
      %3344 = vmatmul.mubr.f32.gmra.mrb[0].mxu0 %v687
      %v3345 = vpop.f32.mrb[0].mxu0
      %v3346 = vadd.f32 0.0, %v3345
      %v3347 = vpop.f32.mrb[0].mxu0
      %3348 = vmatprep.mubr.f32.mxu0 0.0
      %3349 = vmatmul.mubr.f32.gmra.mrb[0].mxu0 %v690
      %v3350 = vpop.f32.mrb[0].mxu0
      %v3351 = vadd.f32 0.0, %v3350
      %v3352 = vpop.f32.mrb[0].mxu0
      %3353 = vmatprep.mubr.f32.mxu0 0.0
      %3354 = vmatmul.mubr.f32.gmra.mrb[0].mxu0 %v693
      %v3355 = vpop.f32.mrb[0].mxu0
      %v3356 = vadd.f32 0.0, %v3355
      %v3357 = vpop.f32.mrb[0].mxu0
      %3358 = vmatprep.mubr.f32.mxu0 0.0
      %3359 = vmatmul.mubr.f32.gmra.mrb[0].mxu0 %v696
      %v3360 = vpop.f32.mrb[0].mxu0
      %v3361 = vadd.f32 0.0, %v3360
      %v3362 = vpop.f32.mrb[0].mxu0
      %3363 = vmatprep.mubr.f32.mxu0 0.0
      %3364 = vmatmul.mubr.f32.gmra.mrb[0].mxu0 %v699
      %v3365 = vpop.f32.mrb[0].mxu0
      %v3366 = vadd.f32 0.0, %v3365
      %v3367 = vpop.f32.mrb[0].mxu0
      %3368 = vmatprep.mubr.f32.mxu0 0.0
      %3369 = vmatmul.mubr.f32.gmra.mrb[0].mxu0 %v702
      %v3370 = vpop.f32.mrb[0].mxu0
      %v3371 = vadd.f32 0.0, %v3370
      %v3372 = vpop.f32.mrb[0].mxu0
      %3373 = vmatprep.mubr.f32.mxu0 0.0
      %3374 = vmatmul.mubr.f32.gmra.mrb[0].mxu0 %v705
      %v3375 = vpop.f32.mrb[0].mxu0
      %v3376 = vadd.f32 0.0, %v3375
      %v3377 = vpop.f32.mrb[0].mxu0
      %3378 = vmatprep.mubr.f32.mxu0 0.0
      %3379 = vmatmul.mubr.f32.gmra.mrb[0].mxu0 %v708
      %v3380 = vpop.f32.mrb[0].mxu0
      %v3381 = vadd.f32 0.0, %v3380
      %v3382 = vpop.f32.mrb[0].mxu0
      %3383 = vmatprep.mubr.f32.mxu0 0.0
      %3384 = vmatmul.mubr.f32.gmra.mrb[0].mxu0 %v711
      %v3385 = vpop.f32.mrb[0].mxu0
      %v3386 = vadd.f32 0.0, %v3385
      %v3387 = vpop.f32.mrb[0].mxu0
      %3388 = vmatprep.mubr.f32.mxu0 0.0
      %3389 = vmatmul.mubr.f32.gmra.mrb[0].mxu0 %v714
      %v3390 = vpop.f32.mrb[0].mxu0
      %v3391 = vadd.f32 0.0, %v3390
      %v3392 = vpop.f32.mrb[0].mxu0
      %3393 = vmatprep.mubr.f32.mxu0 0.0
      %3394 = vmatmul.mubr.f32.gmra.mrb[0].mxu0 %v717
      %v3395 = vpop.f32.mrb[0].mxu0
      %v3396 = vadd.f32 0.0, %v3395
      %v3397 = vpop.f32.mrb[0].mxu0
      %3398 = vmatprep.mubr.f32.mxu0 0.0
      %3399 = vmatmul.mubr.f32.gmra.mrb[0].mxu0 %v720
      %v3400 = vpop.f32.mrb[0].mxu0
      %v3401 = vadd.f32 0.0, %v3400
      %v3402 = vpop.f32.mrb[0].mxu0
      %3403 = vmatprep.mubr.f32.mxu0 0.0
      %3404 = vmatmul.mubr.f32.gmra.mrb[0].mxu0 %v723
      %v3405 = vpop.f32.mrb[0].mxu0
      %v3406 = vadd.f32 0.0, %v3405
      %v3407 = vpop.f32.mrb[0].mxu0
      %3408 = vmatprep.mubr.f32.mxu0 0.0
      %3409 = vmatmul.mubr.f32.gmra.mrb[0].mxu0 %v726
      %v3410 = vpop.f32.mrb[0].mxu0
      %v3411 = vadd.f32 0.0, %v3410
      %v3412 = vpop.f32.mrb[0].mxu0
      %3413 = vmatprep.mubr.f32.mxu0 0.0
      %3414 = vmatmul.mubr.f32.gmra.mrb[0].mxu0 %v729
      %v3415 = vpop.f32.mrb[0].mxu0
      %v3416 = vadd.f32 0.0, %v3415
      %v3417 = vpop.f32.mrb[0].mxu0
      %3418 = vmatprep.mubr.f32.mxu0 0.0
      %3419 = vmatmul.mubr.f32.gmra.mrb[0].mxu0 %v732
      %v3420 = vpop.f32.mrb[0].mxu0
      %v3421 = vadd.f32 0.0, %v3420
      %v3422 = vpop.f32.mrb[0].mxu0
      %3423 = vmatprep.mubr.f32.mxu0 0.0
      %3424 = vmatmul.mubr.f32.gmra.mrb[0].mxu0 %v735
      %v3425 = vpop.f32.mrb[0].mxu0
      %v3426 = vadd.f32 0.0, %v3425
      %v3427 = vpop.f32.mrb[0].mxu0
      %3428 = vmatprep.mubr.f32.mxu0 0.0
      %3429 = vmatmul.mubr.f32.gmra.mrb[0].mxu0 %v738
      %v3430 = vpop.f32.mrb[0].mxu0
      %v3431 = vadd.f32 0.0, %v3430
      %v3432 = vpop.f32.mrb[0].mxu0
      %3433 = vmatprep.mubr.f32.mxu0 0.0
      %3434 = vmatmul.mubr.f32.gmra.mrb[0].mxu0 %v741
      %v3435 = vpop.f32.mrb[0].mxu0
      %v3436 = vadd.f32 0.0, %v3435
      %v3437 = vpop.f32.mrb[0].mxu0
      %3438 = vmatprep.mubr.f32.mxu0 0.0
      %3439 = vmatmul.mubr.f32.gmra.mrb[0].mxu0 %v744
      %v3440 = vpop.f32.mrb[0].mxu0
      %v3441 = vadd.f32 0.0, %v3440
      %v3442 = vpop.f32.mrb[0].mxu0
      %3443 = vdwg.mxu0
      %v3444 = vmax.f32 %v813, %v1489
      %v3445 = vmax.f32 %v818, %v1494
      %v3446 = vmax.f32 %v823, %v1499
      %v3447 = vmax.f32 %v828, %v1504
      %v3448 = vmax.f32 %v833, %v1509
      %v3449 = vmax.f32 %v838, %v1514
      %v3450 = vmax.f32 %v843, %v1519
      %v3451 = vmax.f32 %v848, %v1524
      %v3452 = vmax.f32 %v853, %v1529
      %v3453 = vmax.f32 %v858, %v1534
      %v3454 = vmax.f32 %v863, %v1539
      %v3455 = vmax.f32 %v868, %v1544
      %v3456 = vmax.f32 %v873, %v1549
      %v3457 = vmax.f32 %v878, %v1554
      %v3458 = vmax.f32 %v883, %v1559
      %v3459 = vmax.f32 %v888, %v1564
      %v3460 = vmax.f32 %v893, %v1569
      %v3461 = vmax.f32 %v898, %v1574
      %v3462 = vmax.f32 %v903, %v1579
      %v3463 = vmax.f32 %v908, %v1584
      %v3464 = vmax.f32 %v913, %v1589
      %v3465 = vmax.f32 %v918, %v1594
      %v3466 = vmax.f32 %v923, %v1599
      %v3467 = vmax.f32 %v928, %v1604
      %v3468 = vmax.f32 %v933, %v1609
      %v3469 = vmax.f32 %v938, %v1614
      %v3470 = vmax.f32 %v943, %v1619
      %v3471 = vmax.f32 %v948, %v1624
      %v3472 = vmax.f32 %v953, %v1629
      %v3473 = vmax.f32 %v958, %v1634
      %v3474 = vmax.f32 %v963, %v1639
      %v3475 = vmax.f32 %v968, %v1644
      %v3476 = vmax.f32 %v973, %v1649
      %v3477 = vmax.f32 %v978, %v1654
      %v3478 = vmax.f32 %v983, %v1659
      %v3479 = vmax.f32 %v988, %v1664
      %v3480 = vmax.f32 %v993, %v1669
      %v3481 = vmax.f32 %v998, %v1674
      %v3482 = vmax.f32 %v1003, %v1679
      %v3483 = vmax.f32 %v1008, %v1684
      %v3484 = vmax.f32 %v1013, %v1689
      %v3485 = vmax.f32 %v1018, %v1694
      %v3486 = vmax.f32 %v1023, %v1699
      %v3487 = vmax.f32 %v1028, %v1704
      %v3488 = vmax.f32 %v1033, %v1709
      %v3489 = vmax.f32 %v1038, %v1714
      %v3490 = vmax.f32 %v1043, %v1719
      %v3491 = vmax.f32 %v1048, %v1724
      %v3492 = vmax.f32 %v1053, %v1729
      %v3493 = vmax.f32 %v1058, %v1734
      %v3494 = vmax.f32 %v1063, %v1739
      %v3495 = vmax.f32 %v1068, %v1744
      %v3496 = vmax.f32 %v1073, %v1749
      %v3497 = vmax.f32 %v1078, %v1754
      %v3498 = vmax.f32 %v1083, %v1759
      %v3499 = vmax.f32 %v1088, %v1764
      %v3500 = vmax.f32 %v1093, %v1769
      %v3501 = vmax.f32 %v1098, %v1774
      %v3502 = vmax.f32 %v1103, %v1779
      %v3503 = vmax.f32 %v1108, %v1784
      %v3504 = vmax.f32 %v1113, %v1789
      %v3505 = vmax.f32 %v1118, %v1794
      %v3506 = vmax.f32 %v1123, %v1799
      %v3507 = vmax.f32 %v1128, %v1804
      %v3508 = vmax.f32 %v1133, %v1809
      %v3509 = vmax.f32 %v1138, %v1814
      %v3510 = vmax.f32 %v1143, %v1819
      %v3511 = vmax.f32 %v1148, %v1824
      %v3512 = vmax.f32 %v1153, %v1829
      %v3513 = vmax.f32 %v1158, %v1834
      %v3514 = vmax.f32 %v1163, %v1839
      %v3515 = vmax.f32 %v1168, %v1844
      %v3516 = vmax.f32 %v1173, %v1849
      %v3517 = vmax.f32 %v1178, %v1854
      %v3518 = vmax.f32 %v1183, %v1859
      %v3519 = vmax.f32 %v1188, %v1864
      %v3520 = vmax.f32 %v1193, %v1869
      %v3521 = vmax.f32 %v1198, %v1874
      %v3522 = vmax.f32 %v1203, %v1879
      %v3523 = vmax.f32 %v1208, %v1884
      %v3524 = vmax.f32 %v1213, %v1889
      %v3525 = vmax.f32 %v1218, %v1894
      %v3526 = vmax.f32 %v1223, %v1899
      %v3527 = vmax.f32 %v1228, %v1904
      %v3528 = vmax.f32 %v1233, %v1909
      %v3529 = vmax.f32 %v1238, %v1914
      %v3530 = vmax.f32 %v1243, %v1919
      %v3531 = vmax.f32 %v1248, %v1924
      %v3532 = vmax.f32 %v1253, %v1929
      %v3533 = vmax.f32 %v1258, %v1934
      %v3534 = vmax.f32 %v1263, %v1939
      %v3535 = vmax.f32 %v1268, %v1944
      %v3536 = vmax.f32 %v1273, %v1949
      %v3537 = vmax.f32 %v1278, %v1954
      %v3538 = vmax.f32 %v1283, %v1959
      %v3539 = vmax.f32 %v1288, %v1964
      %v3540 = vmax.f32 %v1293, %v1969
      %v3541 = vmax.f32 %v1298, %v1974
      %v3542 = vmax.f32 %v1303, %v1979
      %v3543 = vmax.f32 %v1308, %v1984
      %v3544 = vmax.f32 %v1313, %v1989
      %v3545 = vmax.f32 %v1318, %v1994
      %v3546 = vmax.f32 %v1323, %v1999
      %v3547 = vmax.f32 %v1328, %v2004
      %v3548 = vmax.f32 %v1333, %v2009
      %v3549 = vmax.f32 %v1338, %v2014
      %v3550 = vmax.f32 %v1343, %v2019
      %v3551 = vmax.f32 %v1348, %v2024
      %v3552 = vmax.f32 %v1353, %v2029
      %v3553 = vmax.f32 %v1358, %v2034
      %v3554 = vmax.f32 %v1363, %v2039
      %v3555 = vmax.f32 %v1368, %v2044
      %v3556 = vmax.f32 %v1373, %v2049
      %v3557 = vmax.f32 %v1378, %v2054
      %v3558 = vmax.f32 %v1383, %v2059
      %v3559 = vmax.f32 %v1388, %v2064
      %v3560 = vmax.f32 %v1393, %v2069
      %v3561 = vmax.f32 %v1398, %v2074
      %v3562 = vmax.f32 %v1403, %v2079
      %v3563 = vmax.f32 %v1408, %v2084
      %v3564 = vmax.f32 %v1413, %v2089
      %v3565 = vmax.f32 %v2165, %v2841
      %v3566 = vmax.f32 %v2170, %v2846
      %v3567 = vmax.f32 %v2175, %v2851
      %v3568 = vmax.f32 %v2180, %v2856
      %v3569 = vmax.f32 %v2185, %v2861
      %v3570 = vmax.f32 %v2190, %v2866
      %v3571 = vmax.f32 %v2195, %v2871
      %v3572 = vmax.f32 %v2200, %v2876
      %v3573 = vmax.f32 %v2205, %v2881
      %v3574 = vmax.f32 %v2210, %v2886
      %v3575 = vmax.f32 %v2215, %v2891
      %v3576 = vmax.f32 %v2220, %v2896
      %v3577 = vmax.f32 %v2225, %v2901
      %v3578 = vmax.f32 %v2230, %v2906
      %v3579 = vmax.f32 %v2235, %v2911
      %v3580 = vmax.f32 %v2240, %v2916
      %v3581 = vmax.f32 %v2245, %v2921
      %v3582 = vmax.f32 %v2250, %v2926
      %v3583 = vmax.f32 %v2255, %v2931
      %v3584 = vmax.f32 %v2260, %v2936
      %v3585 = vmax.f32 %v2265, %v2941
      %v3586 = vmax.f32 %v2270, %v2946
      %v3587 = vmax.f32 %v2275, %v2951
      %v3588 = vmax.f32 %v2280, %v2956
      %v3589 = vmax.f32 %v2285, %v2961
      %v3590 = vmax.f32 %v2290, %v2966
      %v3591 = vmax.f32 %v2295, %v2971
      %v3592 = vmax.f32 %v2300, %v2976
      %v3593 = vmax.f32 %v2305, %v2981
      %v3594 = vmax.f32 %v2310, %v2986
      %v3595 = vmax.f32 %v2315, %v2991
      %v3596 = vmax.f32 %v2320, %v2996
      %v3597 = vmax.f32 %v2325, %v3001
      %v3598 = vmax.f32 %v2330, %v3006
      %v3599 = vmax.f32 %v2335, %v3011
      %v3600 = vmax.f32 %v2340, %v3016
      %v3601 = vmax.f32 %v2345, %v3021
      %v3602 = vmax.f32 %v2350, %v3026
      %v3603 = vmax.f32 %v2355, %v3031
      %v3604 = vmax.f32 %v2360, %v3036
      %v3605 = vmax.f32 %v2365, %v3041
      %v3606 = vmax.f32 %v2370, %v3046
      %v3607 = vmax.f32 %v2375, %v3051
      %v3608 = vmax.f32 %v2380, %v3056
      %v3609 = vmax.f32 %v2385, %v3061
      %v3610 = vmax.f32 %v2390, %v3066
      %v3611 = vmax.f32 %v2395, %v3071
      %v3612 = vmax.f32 %v2400, %v3076
      %v3613 = vmax.f32 %v2405, %v3081
      %v3614 = vmax.f32 %v2410, %v3086
      %v3615 = vmax.f32 %v2415, %v3091
      %v3616 = vmax.f32 %v2420, %v3096
      %v3617 = vmax.f32 %v2425, %v3101
      %v3618 = vmax.f32 %v2430, %v3106
      %v3619 = vmax.f32 %v2435, %v3111
      %v3620 = vmax.f32 %v2440, %v3116
      %v3621 = vmax.f32 %v2445, %v3121
      %v3622 = vmax.f32 %v2450, %v3126
      %v3623 = vmax.f32 %v2455, %v3131
      %v3624 = vmax.f32 %v2460, %v3136
      %v3625 = vmax.f32 %v2465, %v3141
      %v3626 = vmax.f32 %v2470, %v3146
      %v3627 = vmax.f32 %v2475, %v3151
      %v3628 = vmax.f32 %v2480, %v3156
      %v3629 = vmax.f32 %v2485, %v3161
      %v3630 = vmax.f32 %v2490, %v3166
      %v3631 = vmax.f32 %v2495, %v3171
      %v3632 = vmax.f32 %v2500, %v3176
      %v3633 = vmax.f32 %v2505, %v3181
      %v3634 = vmax.f32 %v2510, %v3186
      %v3635 = vmax.f32 %v2515, %v3191
      %v3636 = vmax.f32 %v2520, %v3196
      %v3637 = vmax.f32 %v2525, %v3201
      %v3638 = vmax.f32 %v2530, %v3206
      %v3639 = vmax.f32 %v2535, %v3211
      %v3640 = vmax.f32 %v2540, %v3216
      %v3641 = vmax.f32 %v2545, %v3221
      %v3642 = vmax.f32 %v2550, %v3226
      %v3643 = vmax.f32 %v2555, %v3231
      %v3644 = vmax.f32 %v2560, %v3236
      %v3645 = vmax.f32 %v2565, %v3241
      %v3646 = vmax.f32 %v2570, %v3246
      %v3647 = vmax.f32 %v2575, %v3251
      %v3648 = vmax.f32 %v2580, %v3256
      %v3649 = vmax.f32 %v2585, %v3261
      %v3650 = vmax.f32 %v2590, %v3266
      %v3651 = vmax.f32 %v2595, %v3271
      %v3652 = vmax.f32 %v2600, %v3276
      %v3653 = vmax.f32 %v2605, %v3281
      %v3654 = vmax.f32 %v2610, %v3286
      %v3655 = vmax.f32 %v2615, %v3291
      %v3656 = vmax.f32 %v2620, %v3296
      %v3657 = vmax.f32 %v2625, %v3301
      %v3658 = vmax.f32 %v2630, %v3306
      %v3659 = vmax.f32 %v2635, %v3311
      %v3660 = vmax.f32 %v2640, %v3316
      %v3661 = vmax.f32 %v2645, %v3321
      %v3662 = vmax.f32 %v2650, %v3326
      %v3663 = vmax.f32 %v2655, %v3331
      %v3664 = vmax.f32 %v2660, %v3336
      %v3665 = vmax.f32 %v2665, %v3341
      %v3666 = vmax.f32 %v2670, %v3346
      %v3667 = vmax.f32 %v2675, %v3351
      %v3668 = vmax.f32 %v2680, %v3356
      %v3669 = vmax.f32 %v2685, %v3361
      %v3670 = vmax.f32 %v2690, %v3366
      %v3671 = vmax.f32 %v2695, %v3371
      %v3672 = vmax.f32 %v2700, %v3376
      %v3673 = vmax.f32 %v2705, %v3381
      %v3674 = vmax.f32 %v2710, %v3386
      %v3675 = vmax.f32 %v2715, %v3391
      %v3676 = vmax.f32 %v2720, %v3396
      %v3677 = vmax.f32 %v2725, %v3401
      %v3678 = vmax.f32 %v2730, %v3406
      %v3679 = vmax.f32 %v2735, %v3411
      %v3680 = vmax.f32 %v2740, %v3416
      %v3681 = vmax.f32 %v2745, %v3421
      %v3682 = vmax.f32 %v2750, %v3426
      %v3683 = vmax.f32 %v2755, %v3431
      %v3684 = vmax.f32 %v2760, %v3436
      %v3685 = vmax.f32 %v2765, %v3441
      %v3686 = vmax.f32 %v3444, %v3565
      %v3687 = vmax.f32 %v3445, %v3566
      %v3688 = vmax.f32 %v3446, %v3567
      %v3689 = vmax.f32 %v3447, %v3568
      %v3690 = vmax.f32 %v3448, %v3569
      %v3691 = vmax.f32 %v3449, %v3570
      %v3692 = vmax.f32 %v3450, %v3571
      %v3693 = vmax.f32 %v3451, %v3572
      %v3694 = vmax.f32 %v3452, %v3573
      %v3695 = vmax.f32 %v3453, %v3574
      %v3696 = vmax.f32 %v3454, %v3575
      %v3697 = vmax.f32 %v3455, %v3576
      %v3698 = vmax.f32 %v3456, %v3577
      %v3699 = vmax.f32 %v3457, %v3578
      %v3700 = vmax.f32 %v3458, %v3579
      %v3701 = vmax.f32 %v3459, %v3580
      %v3702 = vmax.f32 %v3460, %v3581
      %v3703 = vmax.f32 %v3461, %v3582
      %v3704 = vmax.f32 %v3462, %v3583
      %v3705 = vmax.f32 %v3463, %v3584
      %v3706 = vmax.f32 %v3464, %v3585
      %v3707 = vmax.f32 %v3465, %v3586
      %v3708 = vmax.f32 %v3466, %v3587
      %v3709 = vmax.f32 %v3467, %v3588
      %v3710 = vmax.f32 %v3468, %v3589
      %v3711 = vmax.f32 %v3469, %v3590
      %v3712 = vmax.f32 %v3470, %v3591
      %v3713 = vmax.f32 %v3471, %v3592
      %v3714 = vmax.f32 %v3472, %v3593
      %v3715 = vmax.f32 %v3473, %v3594
      %v3716 = vmax.f32 %v3474, %v3595
      %v3717 = vmax.f32 %v3475, %v3596
      %v3718 = vmax.f32 %v3476, %v3597
      %v3719 = vmax.f32 %v3477, %v3598
      %v3720 = vmax.f32 %v3478, %v3599
      %v3721 = vmax.f32 %v3479, %v3600
      %v3722 = vmax.f32 %v3480, %v3601
      %v3723 = vmax.f32 %v3481, %v3602
      %v3724 = vmax.f32 %v3482, %v3603
      %v3725 = vmax.f32 %v3483, %v3604
      %v3726 = vmax.f32 %v3484, %v3605
      %v3727 = vmax.f32 %v3485, %v3606
      %v3728 = vmax.f32 %v3486, %v3607
      %v3729 = vmax.f32 %v3487, %v3608
      %v3730 = vmax.f32 %v3488, %v3609
      %v3731 = vmax.f32 %v3489, %v3610
      %v3732 = vmax.f32 %v3490, %v3611
      %v3733 = vmax.f32 %v3491, %v3612
      %v3734 = vmax.f32 %v3492, %v3613
      %v3735 = vmax.f32 %v3493, %v3614
      %v3736 = vmax.f32 %v3494, %v3615
      %v3737 = vmax.f32 %v3495, %v3616
      %v3738 = vmax.f32 %v3496, %v3617
      %v3739 = vmax.f32 %v3497, %v3618
      %v3740 = vmax.f32 %v3498, %v3619
      %v3741 = vmax.f32 %v3499, %v3620
      %v3742 = vmax.f32 %v3500, %v3621
      %v3743 = vmax.f32 %v3501, %v3622
      %v3744 = vmax.f32 %v3502, %v3623
      %v3745 = vmax.f32 %v3503, %v3624
      %v3746 = vmax.f32 %v3504, %v3625
      %v3747 = vmax.f32 %v3505, %v3626
      %v3748 = vmax.f32 %v3506, %v3627
      %v3749 = vmax.f32 %v3507, %v3628
      %v3750 = vmax.f32 %v3508, %v3629
      %v3751 = vmax.f32 %v3509, %v3630
      %v3752 = vmax.f32 %v3510, %v3631
      %v3753 = vmax.f32 %v3511, %v3632
      %v3754 = vmax.f32 %v3512, %v3633
      %v3755 = vmax.f32 %v3513, %v3634
      %v3756 = vmax.f32 %v3514, %v3635
      %v3757 = vmax.f32 %v3515, %v3636
      %v3758 = vmax.f32 %v3516, %v3637
      %v3759 = vmax.f32 %v3517, %v3638
      %v3760 = vmax.f32 %v3518, %v3639
      %v3761 = vmax.f32 %v3519, %v3640
      %v3762 = vmax.f32 %v3520, %v3641
      %v3763 = vmax.f32 %v3521, %v3642
      %v3764 = vmax.f32 %v3522, %v3643
      %v3765 = vmax.f32 %v3523, %v3644
      %v3766 = vmax.f32 %v3524, %v3645
      %v3767 = vmax.f32 %v3525, %v3646
      %v3768 = vmax.f32 %v3526, %v3647
      %v3769 = vmax.f32 %v3527, %v3648
      %v3770 = vmax.f32 %v3528, %v3649
      %v3771 = vmax.f32 %v3529, %v3650
      %v3772 = vmax.f32 %v3530, %v3651
      %v3773 = vmax.f32 %v3531, %v3652
      %v3774 = vmax.f32 %v3532, %v3653
      %v3775 = vmax.f32 %v3533, %v3654
      %v3776 = vmax.f32 %v3534, %v3655
      %v3777 = vmax.f32 %v3535, %v3656
      %v3778 = vmax.f32 %v3536, %v3657
      %v3779 = vmax.f32 %v3537, %v3658
      %v3780 = vmax.f32 %v3538, %v3659
      %v3781 = vmax.f32 %v3539, %v3660
      %v3782 = vmax.f32 %v3540, %v3661
      %v3783 = vmax.f32 %v3541, %v3662
      %v3784 = vmax.f32 %v3542, %v3663
      %v3785 = vmax.f32 %v3543, %v3664
      %v3786 = vmax.f32 %v3544, %v3665
      %v3787 = vmax.f32 %v3545, %v3666
      %v3788 = vmax.f32 %v3546, %v3667
      %v3789 = vmax.f32 %v3547, %v3668
      %v3790 = vmax.f32 %v3548, %v3669
      %v3791 = vmax.f32 %v3549, %v3670
      %v3792 = vmax.f32 %v3550, %v3671
      %v3793 = vmax.f32 %v3551, %v3672
      %v3794 = vmax.f32 %v3552, %v3673
      %v3795 = vmax.f32 %v3553, %v3674
      %v3796 = vmax.f32 %v3554, %v3675
      %v3797 = vmax.f32 %v3555, %v3676
      %v3798 = vmax.f32 %v3556, %v3677
      %v3799 = vmax.f32 %v3557, %v3678
      %v3800 = vmax.f32 %v3558, %v3679
      %v3801 = vmax.f32 %v3559, %v3680
      %v3802 = vmax.f32 %v3560, %v3681
      %v3803 = vmax.f32 %v3561, %v3682
      %v3804 = vmax.f32 %v3562, %v3683
      %v3805 = vmax.f32 %v3563, %v3684
      %v3806 = vmax.f32 %v3564, %v3685
      %v3807 = vld [vmem:[%s5] sm:$0x1]
      %v3809 = vlaneseq
      %v3810 = vshrl.u32 %v3809, 7
      %v3811 = vsub.s32 0, %v3810
      %v3812 = vrot.slane %v3807, %v3811
      %v3814 = vadd.f32 %v3686, %v3812
      %v3815 = vadd.f32 %v3687, %v3812
      %v3816 = vadd.f32 %v3688, %v3812
      %v3817 = vadd.f32 %v3689, %v3812
      %v3818 = vadd.f32 %v3690, %v3812
      %v3819 = vadd.f32 %v3691, %v3812
      %v3820 = vadd.f32 %v3692, %v3812
      %v3821 = vadd.f32 %v3693, %v3812
      %v3822 = vadd.f32 %v3694, %v3812
      %v3823 = vadd.f32 %v3695, %v3812
      %v3824 = vadd.f32 %v3696, %v3812
      %v3825 = vadd.f32 %v3697, %v3812
      %v3826 = vadd.f32 %v3698, %v3812
      %v3827 = vadd.f32 %v3699, %v3812
      %v3828 = vadd.f32 %v3700, %v3812
      %v3829 = vadd.f32 %v3701, %v3812
      %v3830 = vadd.f32 %v3702, %v3812
      %v3831 = vadd.f32 %v3703, %v3812
      %v3832 = vadd.f32 %v3704, %v3812
      %v3833 = vadd.f32 %v3705, %v3812
      %v3834 = vadd.f32 %v3706, %v3812
      %v3835 = vadd.f32 %v3707, %v3812
      %v3836 = vadd.f32 %v3708, %v3812
      %v3837 = vadd.f32 %v3709, %v3812
      %v3838 = vadd.f32 %v3710, %v3812
      %v3839 = vadd.f32 %v3711, %v3812
      %v3840 = vadd.f32 %v3712, %v3812
      %v3841 = vadd.f32 %v3713, %v3812
      %v3842 = vadd.f32 %v3714, %v3812
      %v3843 = vadd.f32 %v3715, %v3812
      %v3844 = vadd.f32 %v3716, %v3812
      %v3845 = vadd.f32 %v3717, %v3812
      %v3846 = vadd.f32 %v3718, %v3812
      %v3847 = vadd.f32 %v3719, %v3812
      %v3848 = vadd.f32 %v3720, %v3812
      %v3849 = vadd.f32 %v3721, %v3812
      %v3850 = vadd.f32 %v3722, %v3812
      %v3851 = vadd.f32 %v3723, %v3812
      %v3852 = vadd.f32 %v3724, %v3812
      %v3853 = vadd.f32 %v3725, %v3812
      %v3854 = vadd.f32 %v3726, %v3812
      %v3855 = vadd.f32 %v3727, %v3812
      %v3856 = vadd.f32 %v3728, %v3812
      %v3857 = vadd.f32 %v3729, %v3812
      %v3858 = vadd.f32 %v3730, %v3812
      %v3859 = vadd.f32 %v3731, %v3812
      %v3860 = vadd.f32 %v3732, %v3812
      %v3861 = vadd.f32 %v3733, %v3812
      %v3862 = vadd.f32 %v3734, %v3812
      %v3863 = vadd.f32 %v3735, %v3812
      %v3864 = vadd.f32 %v3736, %v3812
      %v3865 = vadd.f32 %v3737, %v3812
      %v3866 = vadd.f32 %v3738, %v3812
      %v3867 = vadd.f32 %v3739, %v3812
      %v3868 = vadd.f32 %v3740, %v3812
      %v3869 = vadd.f32 %v3741, %v3812
      %v3870 = vadd.f32 %v3742, %v3812
      %v3871 = vadd.f32 %v3743, %v3812
      %v3872 = vadd.f32 %v3744, %v3812
      %v3873 = vadd.f32 %v3745, %v3812
      %v3874 = vadd.f32 %v3746, %v3812
      %v3875 = vadd.f32 %v3747, %v3812
      %v3876 = vadd.f32 %v3748, %v3812
      %v3877 = vadd.f32 %v3749, %v3812
      %v3878 = vadd.f32 %v3750, %v3812
      %v3879 = vadd.f32 %v3751, %v3812
      %v3880 = vadd.f32 %v3752, %v3812
      %v3881 = vadd.f32 %v3753, %v3812
      %v3882 = vadd.f32 %v3754, %v3812
      %v3883 = vadd.f32 %v3755, %v3812
      %v3884 = vadd.f32 %v3756, %v3812
      %v3885 = vadd.f32 %v3757, %v3812
      %v3886 = vadd.f32 %v3758, %v3812
      %v3887 = vadd.f32 %v3759, %v3812
      %v3888 = vadd.f32 %v3760, %v3812
      %v3889 = vadd.f32 %v3761, %v3812
      %v3890 = vadd.f32 %v3762, %v3812
      %v3891 = vadd.f32 %v3763, %v3812
      %v3892 = vadd.f32 %v3764, %v3812
      %v3893 = vadd.f32 %v3765, %v3812
      %v3894 = vadd.f32 %v3766, %v3812
      %v3895 = vadd.f32 %v3767, %v3812
      %v3896 = vadd.f32 %v3768, %v3812
      %v3897 = vadd.f32 %v3769, %v3812
      %v3898 = vadd.f32 %v3770, %v3812
      %v3899 = vadd.f32 %v3771, %v3812
      %v3900 = vadd.f32 %v3772, %v3812
      %v3901 = vadd.f32 %v3773, %v3812
      %v3902 = vadd.f32 %v3774, %v3812
      %v3903 = vadd.f32 %v3775, %v3812
      %v3904 = vadd.f32 %v3776, %v3812
      %v3905 = vadd.f32 %v3777, %v3812
      %v3906 = vadd.f32 %v3778, %v3812
      %v3907 = vadd.f32 %v3779, %v3812
      %v3908 = vadd.f32 %v3780, %v3812
      %v3909 = vadd.f32 %v3781, %v3812
      %v3910 = vadd.f32 %v3782, %v3812
      %v3911 = vadd.f32 %v3783, %v3812
      %v3912 = vadd.f32 %v3784, %v3812
      %v3913 = vadd.f32 %v3785, %v3812
      %v3914 = vadd.f32 %v3786, %v3812
      %v3915 = vadd.f32 %v3787, %v3812
      %v3916 = vadd.f32 %v3788, %v3812
      %v3917 = vadd.f32 %v3789, %v3812
      %v3918 = vadd.f32 %v3790, %v3812
      %v3919 = vadd.f32 %v3791, %v3812
      %v3920 = vadd.f32 %v3792, %v3812
      %v3921 = vadd.f32 %v3793, %v3812
      %v3922 = vadd.f32 %v3794, %v3812
      %v3923 = vadd.f32 %v3795, %v3812
      %v3924 = vadd.f32 %v3796, %v3812
      %v3925 = vadd.f32 %v3797, %v3812
      %v3926 = vadd.f32 %v3798, %v3812
      %v3927 = vadd.f32 %v3799, %v3812
      %v3928 = vadd.f32 %v3800, %v3812
      %v3929 = vadd.f32 %v3801, %v3812
      %v3930 = vadd.f32 %v3802, %v3812
      %v3931 = vadd.f32 %v3803, %v3812
      %v3932 = vadd.f32 %v3804, %v3812
      %v3933 = vadd.f32 %v3805, %v3812
      %v3934 = vadd.f32 %v3806, %v3812
      %v3935 = vmax.f32 %v3814, 0.0
      %v3936 = vmax.f32 %v3815, 0.0
      %v3937 = vmax.f32 %v3816, 0.0
      %v3938 = vmax.f32 %v3817, 0.0
      %v3939 = vmax.f32 %v3818, 0.0
      %v3940 = vmax.f32 %v3819, 0.0
      %v3941 = vmax.f32 %v3820, 0.0
      %v3942 = vmax.f32 %v3821, 0.0
      %v3943 = vmax.f32 %v3822, 0.0
      %v3944 = vmax.f32 %v3823, 0.0
      %v3945 = vmax.f32 %v3824, 0.0
      %v3946 = vmax.f32 %v3825, 0.0
      %v3947 = vmax.f32 %v3826, 0.0
      %v3948 = vmax.f32 %v3827, 0.0
      %v3949 = vmax.f32 %v3828, 0.0
      %v3950 = vmax.f32 %v3829, 0.0
      %v3951 = vmax.f32 %v3830, 0.0
      %v3952 = vmax.f32 %v3831, 0.0
      %v3953 = vmax.f32 %v3832, 0.0
      %v3954 = vmax.f32 %v3833, 0.0
      %v3955 = vmax.f32 %v3834, 0.0
      %v3956 = vmax.f32 %v3835, 0.0
      %v3957 = vmax.f32 %v3836, 0.0
      %v3958 = vmax.f32 %v3837, 0.0
      %v3959 = vmax.f32 %v3838, 0.0
      %v3960 = vmax.f32 %v3839, 0.0
      %v3961 = vmax.f32 %v3840, 0.0
      %v3962 = vmax.f32 %v3841, 0.0
      %v3963 = vmax.f32 %v3842, 0.0
      %v3964 = vmax.f32 %v3843, 0.0
      %v3965 = vmax.f32 %v3844, 0.0
      %v3966 = vmax.f32 %v3845, 0.0
      %v3967 = vmax.f32 %v3846, 0.0
      %v3968 = vmax.f32 %v3847, 0.0
      %v3969 = vmax.f32 %v3848, 0.0
      %v3970 = vmax.f32 %v3849, 0.0
      %v3971 = vmax.f32 %v3850, 0.0
      %v3972 = vmax.f32 %v3851, 0.0
      %v3973 = vmax.f32 %v3852, 0.0
      %v3974 = vmax.f32 %v3853, 0.0
      %v3975 = vmax.f32 %v3854, 0.0
      %v3976 = vmax.f32 %v3855, 0.0
      %v3977 = vmax.f32 %v3856, 0.0
      %v3978 = vmax.f32 %v3857, 0.0
      %v3979 = vmax.f32 %v3858, 0.0
      %v3980 = vmax.f32 %v3859, 0.0
      %v3981 = vmax.f32 %v3860, 0.0
      %v3982 = vmax.f32 %v3861, 0.0
      %v3983 = vmax.f32 %v3862, 0.0
      %v3984 = vmax.f32 %v3863, 0.0
      %v3985 = vmax.f32 %v3864, 0.0
      %v3986 = vmax.f32 %v3865, 0.0
      %v3987 = vmax.f32 %v3866, 0.0
      %v3988 = vmax.f32 %v3867, 0.0
      %v3989 = vmax.f32 %v3868, 0.0
      %v3990 = vmax.f32 %v3869, 0.0
      %v3991 = vmax.f32 %v3870, 0.0
      %v3992 = vmax.f32 %v3871, 0.0
      %v3993 = vmax.f32 %v3872, 0.0
      %v3994 = vmax.f32 %v3873, 0.0
      %v3995 = vmax.f32 %v3874, 0.0
      %v3996 = vmax.f32 %v3875, 0.0
      %v3997 = vmax.f32 %v3876, 0.0
      %v3998 = vmax.f32 %v3877, 0.0
      %v3999 = vmax.f32 %v3878, 0.0
      %v4000 = vmax.f32 %v3879, 0.0
      %v4001 = vmax.f32 %v3880, 0.0
      %v4002 = vmax.f32 %v3881, 0.0
      %v4003 = vmax.f32 %v3882, 0.0
      %v4004 = vmax.f32 %v3883, 0.0
      %v4005 = vmax.f32 %v3884, 0.0
      %v4006 = vmax.f32 %v3885, 0.0
      %v4007 = vmax.f32 %v3886, 0.0
      %v4008 = vmax.f32 %v3887, 0.0
      %v4009 = vmax.f32 %v3888, 0.0
      %v4010 = vmax.f32 %v3889, 0.0
      %v4011 = vmax.f32 %v3890, 0.0
      %v4012 = vmax.f32 %v3891, 0.0
      %v4013 = vmax.f32 %v3892, 0.0
      %v4014 = vmax.f32 %v3893, 0.0
      %v4015 = vmax.f32 %v3894, 0.0
      %v4016 = vmax.f32 %v3895, 0.0
      %v4017 = vmax.f32 %v3896, 0.0
      %v4018 = vmax.f32 %v3897, 0.0
      %v4019 = vmax.f32 %v3898, 0.0
      %v4020 = vmax.f32 %v3899, 0.0
      %v4021 = vmax.f32 %v3900, 0.0
      %v4022 = vmax.f32 %v3901, 0.0
      %v4023 = vmax.f32 %v3902, 0.0
      %v4024 = vmax.f32 %v3903, 0.0
      %v4025 = vmax.f32 %v3904, 0.0
      %v4026 = vmax.f32 %v3905, 0.0
      %v4027 = vmax.f32 %v3906, 0.0
      %v4028 = vmax.f32 %v3907, 0.0
      %v4029 = vmax.f32 %v3908, 0.0
      %v4030 = vmax.f32 %v3909, 0.0
      %v4031 = vmax.f32 %v3910, 0.0
      %v4032 = vmax.f32 %v3911, 0.0
      %v4033 = vmax.f32 %v3912, 0.0
      %v4034 = vmax.f32 %v3913, 0.0
      %v4035 = vmax.f32 %v3914, 0.0
      %v4036 = vmax.f32 %v3915, 0.0
      %v4037 = vmax.f32 %v3916, 0.0
      %v4038 = vmax.f32 %v3917, 0.0
      %v4039 = vmax.f32 %v3918, 0.0
      %v4040 = vmax.f32 %v3919, 0.0
      %v4041 = vmax.f32 %v3920, 0.0
      %v4042 = vmax.f32 %v3921, 0.0
      %v4043 = vmax.f32 %v3922, 0.0
      %v4044 = vmax.f32 %v3923, 0.0
      %v4045 = vmax.f32 %v3924, 0.0
      %v4046 = vmax.f32 %v3925, 0.0
      %v4047 = vmax.f32 %v3926, 0.0
      %v4048 = vmax.f32 %v3927, 0.0
      %v4049 = vmax.f32 %v3928, 0.0
      %v4050 = vmax.f32 %v3929, 0.0
      %v4051 = vmax.f32 %v3930, 0.0
      %v4052 = vmax.f32 %v3931, 0.0
      %v4053 = vmax.f32 %v3932, 0.0
      %v4054 = vmax.f32 %v3933, 0.0
      %v4055 = vmax.f32 %v3934, 0.0
      %vm4056 = vcmask 97280
      %4057 = vst.msk [vmem:[%s253] sm:$0xff] %vm4056, %v3935
      %4058 = vst.msk [vmem:[%s253 + $0x8] sm:$0xff] %vm4056, %v3936
      %4059 = vst.msk [vmem:[%s253 + $0x10] sm:$0xff] %vm4056, %v3937
      %4060 = vst.msk [vmem:[%s253 + $0x18] sm:$0xff] %vm4056, %v3938
      %4061 = vst.msk [vmem:[%s253 + $0x20] sm:$0xff] %vm4056, %v3939
      %4062 = vst.msk [vmem:[%s253 + $0x28] sm:$0xff] %vm4056, %v3940
      %4063 = vst.msk [vmem:[%s253 + $0x30] sm:$0xff] %vm4056, %v3941
      %4064 = vst.msk [vmem:[%s253 + $0x38] sm:$0xff] %vm4056, %v3942
      %4065 = vst.msk [vmem:[%s253 + $0x40] sm:$0xff] %vm4056, %v3943
      %4066 = vst.msk [vmem:[%s253 + $0x48] sm:$0xff] %vm4056, %v3944
      %4067 = vst.msk [vmem:[%s253 + $0x50] sm:$0xff] %vm4056, %v3945
      %4068 = vst.msk [vmem:[%s253 + $0x58] sm:$0xff] %vm4056, %v3946
      %4069 = vst.msk [vmem:[%s253 + $0x60] sm:$0xff] %vm4056, %v3947
      %4070 = vst.msk [vmem:[%s253 + $0x68] sm:$0xff] %vm4056, %v3948
      %4071 = vst.msk [vmem:[%s253 + $0x70] sm:$0xff] %vm4056, %v3949
      %4072 = vst.msk [vmem:[%s253 + $0x78] sm:$0xff] %vm4056, %v3950
      %4073 = vst.msk [vmem:[%s253 + $0x80] sm:$0xff] %vm4056, %v3951
      %4074 = vst.msk [vmem:[%s253 + $0x88] sm:$0xff] %vm4056, %v3952
      %4075 = vst.msk [vmem:[%s253 + $0x90] sm:$0xff] %vm4056, %v3953
      %4076 = vst.msk [vmem:[%s253 + $0x98] sm:$0xff] %vm4056, %v3954
      %4077 = vst.msk [vmem:[%s253 + $0xa0] sm:$0xff] %vm4056, %v3955
      %4078 = vst.msk [vmem:[%s253 + $0xa8] sm:$0xff] %vm4056, %v3956
      %4079 = vst.msk [vmem:[%s253 + $0xb0] sm:$0xff] %vm4056, %v3957
      %4080 = vst.msk [vmem:[%s253 + $0xb8] sm:$0xff] %vm4056, %v3958
      %4081 = vst.msk [vmem:[%s253 + $0xc0] sm:$0xff] %vm4056, %v3959
      %4082 = vst.msk [vmem:[%s253 + $0xc8] sm:$0xff] %vm4056, %v3960
      %4083 = vst.msk [vmem:[%s253 + $0xd0] sm:$0xff] %vm4056, %v3961
      %4084 = vst.msk [vmem:[%s253 + $0xd8] sm:$0xff] %vm4056, %v3962
      %4085 = vst.msk [vmem:[%s253 + $0xe0] sm:$0xff] %vm4056, %v3963
      %4086 = vst.msk [vmem:[%s253 + $0xe8] sm:$0xff] %vm4056, %v3964
      %4087 = vst.msk [vmem:[%s253 + $0xf0] sm:$0xff] %vm4056, %v3965
      %4088 = vst.msk [vmem:[%s253 + $0xf8] sm:$0xff] %vm4056, %v3966
      %4089 = vst.msk [vmem:[%s253 + $0x100] sm:$0xff] %vm4056, %v3967
      %4090 = vst.msk [vmem:[%s253 + $0x108] sm:$0xff] %vm4056, %v3968
      %4091 = vst.msk [vmem:[%s253 + $0x110] sm:$0xff] %vm4056, %v3969
      %4092 = vst.msk [vmem:[%s253 + $0x118] sm:$0xff] %vm4056, %v3970
      %4093 = vst.msk [vmem:[%s253 + $0x120] sm:$0xff] %vm4056, %v3971
      %4094 = vst.msk [vmem:[%s253 + $0x128] sm:$0xff] %vm4056, %v3972
      %4095 = vst.msk [vmem:[%s253 + $0x130] sm:$0xff] %vm4056, %v3973
      %4096 = vst.msk [vmem:[%s253 + $0x138] sm:$0xff] %vm4056, %v3974
      %4097 = vst.msk [vmem:[%s253 + $0x140] sm:$0xff] %vm4056, %v3975
      %4098 = vst.msk [vmem:[%s253 + $0x148] sm:$0xff] %vm4056, %v3976
      %4099 = vst.msk [vmem:[%s253 + $0x150] sm:$0xff] %vm4056, %v3977
      %4100 = vst.msk [vmem:[%s253 + $0x158] sm:$0xff] %vm4056, %v3978
      %4101 = vst.msk [vmem:[%s253 + $0x160] sm:$0xff] %vm4056, %v3979
      %4102 = vst.msk [vmem:[%s253 + $0x168] sm:$0xff] %vm4056, %v3980
      %4103 = vst.msk [vmem:[%s253 + $0x170] sm:$0xff] %vm4056, %v3981
      %4104 = vst.msk [vmem:[%s253 + $0x178] sm:$0xff] %vm4056, %v3982
      %4105 = vst.msk [vmem:[%s253 + $0x180] sm:$0xff] %vm4056, %v3983
      %4106 = vst.msk [vmem:[%s253 + $0x188] sm:$0xff] %vm4056, %v3984
      %4107 = vst.msk [vmem:[%s253 + $0x190] sm:$0xff] %vm4056, %v3985
      %4108 = vst.msk [vmem:[%s253 + $0x198] sm:$0xff] %vm4056, %v3986
      %4109 = vst.msk [vmem:[%s253 + $0x1a0] sm:$0xff] %vm4056, %v3987
      %4110 = vst.msk [vmem:[%s253 + $0x1a8] sm:$0xff] %vm4056, %v3988
      %4111 = vst.msk [vmem:[%s253 + $0x1b0] sm:$0xff] %vm4056, %v3989
      %4112 = vst.msk [vmem:[%s253 + $0x1b8] sm:$0xff] %vm4056, %v3990
      %4113 = vst.msk [vmem:[%s253 + $0x1c0] sm:$0xff] %vm4056, %v3991
      %4114 = vst.msk [vmem:[%s253 + $0x1c8] sm:$0xff] %vm4056, %v3992
      %4115 = vst.msk [vmem:[%s253 + $0x1d0] sm:$0xff] %vm4056, %v3993
      %4116 = vst.msk [vmem:[%s253 + $0x1d8] sm:$0xff] %vm4056, %v3994
      %4117 = vst.msk [vmem:[%s253 + $0x1e0] sm:$0xff] %vm4056, %v3995
      %4118 = vst.msk [vmem:[%s253 + $0x1e8] sm:$0xff] %vm4056, %v3996
      %4119 = vst.msk [vmem:[%s253 + $0x1f0] sm:$0xff] %vm4056, %v3997
      %4120 = vst.msk [vmem:[%s253 + $0x1f8] sm:$0xff] %vm4056, %v3998
      %4121 = vst.msk [vmem:[%s253 + $0x200] sm:$0xff] %vm4056, %v3999
      %4122 = vst.msk [vmem:[%s253 + $0x208] sm:$0xff] %vm4056, %v4000
      %4123 = vst.msk [vmem:[%s253 + $0x210] sm:$0xff] %vm4056, %v4001
      %4124 = vst.msk [vmem:[%s253 + $0x218] sm:$0xff] %vm4056, %v4002
      %4125 = vst.msk [vmem:[%s253 + $0x220] sm:$0xff] %vm4056, %v4003
      %4126 = vst.msk [vmem:[%s253 + $0x228] sm:$0xff] %vm4056, %v4004
      %4127 = vst.msk [vmem:[%s253 + $0x230] sm:$0xff] %vm4056, %v4005
      %4128 = vst.msk [vmem:[%s253 + $0x238] sm:$0xff] %vm4056, %v4006
      %4129 = vst.msk [vmem:[%s253 + $0x240] sm:$0xff] %vm4056, %v4007
      %4130 = vst.msk [vmem:[%s253 + $0x248] sm:$0xff] %vm4056, %v4008
      %4131 = vst.msk [vmem:[%s253 + $0x250] sm:$0xff] %vm4056, %v4009
      %4132 = vst.msk [vmem:[%s253 + $0x258] sm:$0xff] %vm4056, %v4010
      %4133 = vst.msk [vmem:[%s253 + $0x260] sm:$0xff] %vm4056, %v4011
      %4134 = vst.msk [vmem:[%s253 + $0x268] sm:$0xff] %vm4056, %v4012
      %4135 = vst.msk [vmem:[%s253 + $0x270] sm:$0xff] %vm4056, %v4013
      %4136 = vst.msk [vmem:[%s253 + $0x278] sm:$0xff] %vm4056, %v4014
      %4137 = vst.msk [vmem:[%s253 + $0x280] sm:$0xff] %vm4056, %v4015
      %4138 = vst.msk [vmem:[%s253 + $0x288] sm:$0xff] %vm4056, %v4016
      %4139 = vst.msk [vmem:[%s253 + $0x290] sm:$0xff] %vm4056, %v4017
      %4140 = vst.msk [vmem:[%s253 + $0x298] sm:$0xff] %vm4056, %v4018
      %4141 = vst.msk [vmem:[%s253 + $0x2a0] sm:$0xff] %vm4056, %v4019
      %4142 = vst.msk [vmem:[%s253 + $0x2a8] sm:$0xff] %vm4056, %v4020
      %4143 = vst.msk [vmem:[%s253 + $0x2b0] sm:$0xff] %vm4056, %v4021
      %4144 = vst.msk [vmem:[%s253 + $0x2b8] sm:$0xff] %vm4056, %v4022
      %4145 = vst.msk [vmem:[%s253 + $0x2c0] sm:$0xff] %vm4056, %v4023
      %4146 = vst.msk [vmem:[%s253 + $0x2c8] sm:$0xff] %vm4056, %v4024
      %4147 = vst.msk [vmem:[%s253 + $0x2d0] sm:$0xff] %vm4056, %v4025
      %4148 = vst.msk [vmem:[%s253 + $0x2d8] sm:$0xff] %vm4056, %v4026
      %4149 = vst.msk [vmem:[%s253 + $0x2e0] sm:$0xff] %vm4056, %v4027
      %4150 = vst.msk [vmem:[%s253 + $0x2e8] sm:$0xff] %vm4056, %v4028
      %4151 = vst.msk [vmem:[%s253 + $0x2f0] sm:$0xff] %vm4056, %v4029
      %4152 = vst.msk [vmem:[%s253 + $0x2f8] sm:$0xff] %vm4056, %v4030
      %4153 = vst.msk [vmem:[%s253 + $0x300] sm:$0xff] %vm4056, %v4031
      %4154 = vst.msk [vmem:[%s253 + $0x308] sm:$0xff] %vm4056, %v4032
      %4155 = vst.msk [vmem:[%s253 + $0x310] sm:$0xff] %vm4056, %v4033
      %4156 = vst.msk [vmem:[%s253 + $0x318] sm:$0xff] %vm4056, %v4034
      %4157 = vst.msk [vmem:[%s253 + $0x320] sm:$0xff] %vm4056, %v4035
      %4158 = vst.msk [vmem:[%s253 + $0x328] sm:$0xff] %vm4056, %v4036
      %4159 = vst.msk [vmem:[%s253 + $0x330] sm:$0xff] %vm4056, %v4037
      %4160 = vst.msk [vmem:[%s253 + $0x338] sm:$0xff] %vm4056, %v4038
      %4161 = vst.msk [vmem:[%s253 + $0x340] sm:$0xff] %vm4056, %v4039
      %4162 = vst.msk [vmem:[%s253 + $0x348] sm:$0xff] %vm4056, %v4040
      %4163 = vst.msk [vmem:[%s253 + $0x350] sm:$0xff] %vm4056, %v4041
      %4164 = vst.msk [vmem:[%s253 + $0x358] sm:$0xff] %vm4056, %v4042
      %4165 = vst.msk [vmem:[%s253 + $0x360] sm:$0xff] %vm4056, %v4043
      %4166 = vst.msk [vmem:[%s253 + $0x368] sm:$0xff] %vm4056, %v4044
      %4167 = vst.msk [vmem:[%s253 + $0x370] sm:$0xff] %vm4056, %v4045
      %4168 = vst.msk [vmem:[%s253 + $0x378] sm:$0xff] %vm4056, %v4046
      %4169 = vst.msk [vmem:[%s253 + $0x380] sm:$0xff] %vm4056, %v4047
      %4170 = vst.msk [vmem:[%s253 + $0x388] sm:$0xff] %vm4056, %v4048
      %4171 = vst.msk [vmem:[%s253 + $0x390] sm:$0xff] %vm4056, %v4049
      %4172 = vst.msk [vmem:[%s253 + $0x398] sm:$0xff] %vm4056, %v4050
      %4173 = vst.msk [vmem:[%s253 + $0x3a0] sm:$0xff] %vm4056, %v4051
      %4174 = vst.msk [vmem:[%s253 + $0x3a8] sm:$0xff] %vm4056, %v4052
      %4175 = vst.msk [vmem:[%s253 + $0x3b0] sm:$0xff] %vm4056, %v4053
      %4176 = vst.msk [vmem:[%s253 + $0x3b8] sm:$0xff] %vm4056, %v4054
      %4177 = vst.msk [vmem:[%s253 + $0x3c0] sm:$0xff] %vm4056, %v4055
      %s4178 = smul.u32 121, %s17
      %p4179 = scmp.lt.s32.totalorder %s4178, 967
      %s4180 = scalar_select %p4179, %s4178, 967
      %s4181 = smul.addr %s4180, 8
      %s4182 = scalar_lea.vmem %s6, %s4181
      // Predicated region
      $region45: #{convnet_forward.5} parent=43 // pred_check
        %p4183 = pneg %p166
      $region46: #{convnet_forward.5} parent=43 // pred_check_branch
        %4185 = sbr.rel (%p4183) target = $region48
      $region47: #{convnet_forward.5} parent=43 // pred_region
        %s4186 = smul.u32 121, %s17
      $region48: #{convnet_forward.5} parent=43 // pred_fallthru
        _
    $region44: #{convnet_forward.5} parent=5 // pred_fallthru
      _
    %p4187 = scmp.le.s32.totalorder 2, %s12
    // Predicated region
    $region49: #{convnet_forward.5} parent=5 // pred_check
      %p4188 = pneg %p4187
    $region50: #{convnet_forward.5} parent=5 // pred_check_branch
      %4190 = sbr.rel (%p4188) target = $region52
    $region51: #{convnet_forward.5} parent=5 // pred_region
      %s4191 = ssub.s32 %s12, 2
      // Predicated region
      $region53: #{convnet_forward.5} parent=51 // pred_check
        %p4192 = pneg %p172
      $region54: #{convnet_forward.5} parent=51 // pred_check_branch
        %4194 = sbr.rel (%p4192) target = $region56
      $region55: #{convnet_forward.5} parent=51 // pred_region
        %s4195 = smul.u32 121, %s18
        %p4196 = scmp.lt.s32.totalorder %s4195, 967
        %s4197 = scalar_select %p4196, %s4195, 967
        %s4198 = smul.addr %s4197, 8
        %s4199 = scalar_lea.vmem %s6, %s4198
      $region56: #{convnet_forward.5} parent=51 // pred_fallthru
        _
    $region52: #{convnet_forward.5} parent=5 // pred_fallthru
      _
  $region6: #{convnet_forward.5} parent=0 // loop_footer
    %s16 = sadd.s32 1, %s12
  $region7: #{convnet_forward.5} parent=0 // loop_footer_branch
    %11 = sbr.rel target = $region3
  $region8: #{convnet_forward.5} parent=0 // loop_exit
    _

// kernel: convnet_forward.6
$region0: #{convnet_forward.6}
  #allocation0 [shape = 'u32[]', space=smem, size = 0x4, offset = 0x4, fixed_abs, tag = 'smem constant byte address 0x4 - core index']
  #allocation1 [shape = 'u32[144,128]{1,0:T(1,128)}', space=vmem, size = 0x12000, scoped, tag = 'internal scratch']
  %s0 = inlined_call_operand.vmem [shape: f32[1856,192], index: 0, kind: input, shape index: {}]
  %s1 = inlined_call_operand.vmem [shape: f32[192,24], index: 1, kind: input, shape index: {}]
  %s2 = inlined_call_operand.vmem [shape: f32[192,24], index: 2, kind: input, shape index: {}]
  %s3 = inlined_call_operand.vmem [shape: f32[192,24], index: 3, kind: input, shape index: {}]
  %s4 = inlined_call_operand.vmem [shape: f32[192,24], index: 4, kind: input, shape index: {}]
  %s5 = inlined_call_operand.vmem [shape: f32[1,24], index: 5, kind: input, shape index: {}]
  %s6 = inlined_call_operand.vmem [shape: f32[1856,24], index: 6, kind: output, shape index: {}]
  %s7 = sld [smem:[#allocation0]]
  $region57: #{convnet_forward.6} parent=0
    _
  %s9 = ssub.s32 1, %s7
  %s10 = scalar_select 0, %s9, %s7
  loop: start=0, step=1, limit=10
  $region2: #{convnet_forward.6} parent=0 // loop_pre_header
    _
  $region3: #{convnet_forward.6} parent=0 // loop_header
    %s12 = sphi 0, %s16
    %p13 = scmp.ge.s32.totalorder %s12, 10
    %s22 = sphi 0, %s24
    %s25 = sphi 0, %s22
    %s26 = sphi 0, %s25
    %s42 = sphi 0, %s26
    %s46 = sphi 0, %s46
    %s48 = sphi 0, %s46
    %s49 = sphi 0, %s48
    %s63 = sphi 0, %s49
    %s67 = sphi 0, %s67
    %s69 = sphi 0, %s67
    %s70 = sphi 0, %s69
    %s84 = sphi 0, %s70
    %s88 = sphi 0, %s88
    %s90 = sphi 0, %s88
    %s91 = sphi 0, %s90
    %s105 = sphi 0, %s91
    %s109 = sphi 0, %s109
    %s111 = sphi 0, %s109
    %s112 = sphi 0, %s111
    %s126 = sphi 0, %s112
    %s130 = sphi 0, %s130
    %s132 = sphi 0, %s130
    %s133 = sphi 0, %s132
    %s147 = sphi 0, %s133
    %s153 = sphi 0, %s155
    %s156 = sphi 0, %s153
    %s157 = sphi 0, %s156
    %s173 = sphi 0, %s157
  $region4: #{convnet_forward.6} parent=0 // loop_header_branch
    %15 = sbr.rel (%p13) target = $region8
  $region5: #{convnet_forward.6} parent=0 // loop_body
    %s17 = ssub.s32 %s12, 1
    %s18 = ssub.s32 %s12, 2
    %s19 = sadd.s32 %s12, 1
    %s20 = ssub.s32 %s12, %s19
    %p21 = scmp.eq.s32.totalorder %s20, 0
    %s23 = sadd.s32 %s22, 1
    %s24 = scalar_select %p21, %s22, %s23
    %p27 = pneg %p21
    %p28 = scmp.eq.s32.totalorder %s12, 7
    %p29 = por %p27, %p28
    %p30 = scmp.ne.s32.totalorder %s22, %s25
    %p31 = scmp.eq.s32.totalorder %s12, 0
    %p32 = por %p30, %p31
    %p33 = scmp.ne.s32.totalorder %s22, %s25
    %p34 = scmp.eq.s32.totalorder %s17, 7
    %p35 = por %p33, %p34
    %p36 = scmp.ne.s32.totalorder %s25, %s26
    %p37 = scmp.eq.s32.totalorder %s17, 0
    %p38 = por %p36, %p37
    %p39 = scmp.ne.s32.totalorder %s25, %s26
    %p40 = scmp.eq.s32.totalorder %s18, 7
    %p41 = por %p39, %p40
    %p43 = scmp.ne.s32.totalorder %s26, %s42
    %p44 = scmp.eq.s32.totalorder %s18, 0
    %p45 = por %p43, %p44
    %s47 = sadd.s32 %s46, 1
    %p50 = scmp.eq.s32.totalorder %s12, 7
    %p51 = scmp.ne.s32.totalorder %s46, %s48
    %p52 = scmp.eq.s32.totalorder %s12, 0
    %p53 = por %p51, %p52
    %p54 = scmp.ne.s32.totalorder %s46, %s48
    %p55 = scmp.eq.s32.totalorder %s17, 7
    %p56 = por %p54, %p55
    %p57 = scmp.ne.s32.totalorder %s48, %s49
    %p58 = scmp.eq.s32.totalorder %s17, 0
    %p59 = por %p57, %p58
    %p60 = scmp.ne.s32.totalorder %s48, %s49
    %p61 = scmp.eq.s32.totalorder %s18, 7
    %p62 = por %p60, %p61
    %p64 = scmp.ne.s32.totalorder %s49, %s63
    %p65 = scmp.eq.s32.totalorder %s18, 0
    %p66 = por %p64, %p65
    %s68 = sadd.s32 %s67, 1
    %p71 = scmp.eq.s32.totalorder %s12, 7
    %p72 = scmp.ne.s32.totalorder %s67, %s69
    %p73 = scmp.eq.s32.totalorder %s12, 0
    %p74 = por %p72, %p73
    %p75 = scmp.ne.s32.totalorder %s67, %s69
    %p76 = scmp.eq.s32.totalorder %s17, 7
    %p77 = por %p75, %p76
    %p78 = scmp.ne.s32.totalorder %s69, %s70
    %p79 = scmp.eq.s32.totalorder %s17, 0
    %p80 = por %p78, %p79
    %p81 = scmp.ne.s32.totalorder %s69, %s70
    %p82 = scmp.eq.s32.totalorder %s18, 7
    %p83 = por %p81, %p82
    %p85 = scmp.ne.s32.totalorder %s70, %s84
    %p86 = scmp.eq.s32.totalorder %s18, 0
    %p87 = por %p85, %p86
    %s89 = sadd.s32 %s88, 1
    %p92 = scmp.eq.s32.totalorder %s12, 7
    %p93 = scmp.ne.s32.totalorder %s88, %s90
    %p94 = scmp.eq.s32.totalorder %s12, 0
    %p95 = por %p93, %p94
    %p96 = scmp.ne.s32.totalorder %s88, %s90
    %p97 = scmp.eq.s32.totalorder %s17, 7
    %p98 = por %p96, %p97
    %p99 = scmp.ne.s32.totalorder %s90, %s91
    %p100 = scmp.eq.s32.totalorder %s17, 0
    %p101 = por %p99, %p100
    %p102 = scmp.ne.s32.totalorder %s90, %s91
    %p103 = scmp.eq.s32.totalorder %s18, 7
    %p104 = por %p102, %p103
    %p106 = scmp.ne.s32.totalorder %s91, %s105
    %p107 = scmp.eq.s32.totalorder %s18, 0
    %p108 = por %p106, %p107
    %s110 = sadd.s32 %s109, 1
    %p113 = scmp.eq.s32.totalorder %s12, 7
    %p114 = scmp.ne.s32.totalorder %s109, %s111
    %p115 = scmp.eq.s32.totalorder %s12, 0
    %p116 = por %p114, %p115
    %p117 = scmp.ne.s32.totalorder %s109, %s111
    %p118 = scmp.eq.s32.totalorder %s17, 7
    %p119 = por %p117, %p118
    %p120 = scmp.ne.s32.totalorder %s111, %s112
    %p121 = scmp.eq.s32.totalorder %s17, 0
    %p122 = por %p120, %p121
    %p123 = scmp.ne.s32.totalorder %s111, %s112
    %p124 = scmp.eq.s32.totalorder %s18, 7
    %p125 = por %p123, %p124
    %p127 = scmp.ne.s32.totalorder %s112, %s126
    %p128 = scmp.eq.s32.totalorder %s18, 0
    %p129 = por %p127, %p128
    %s131 = sadd.s32 %s130, 1
    %p134 = scmp.eq.s32.totalorder %s12, 7
    %p135 = scmp.ne.s32.totalorder %s130, %s132
    %p136 = scmp.eq.s32.totalorder %s12, 0
    %p137 = por %p135, %p136
    %p138 = scmp.ne.s32.totalorder %s130, %s132
    %p139 = scmp.eq.s32.totalorder %s17, 7
    %p140 = por %p138, %p139
    %p141 = scmp.ne.s32.totalorder %s132, %s133
    %p142 = scmp.eq.s32.totalorder %s17, 0
    %p143 = por %p141, %p142
    %p144 = scmp.ne.s32.totalorder %s132, %s133
    %p145 = scmp.eq.s32.totalorder %s18, 7
    %p146 = por %p144, %p145
    %p148 = scmp.ne.s32.totalorder %s133, %s147
    %p149 = scmp.eq.s32.totalorder %s18, 0
    %p150 = por %p148, %p149
    %s151 = ssub.s32 %s12, %s19
    %p152 = scmp.eq.s32.totalorder %s151, 0
    %s154 = sadd.s32 %s153, 1
    %s155 = scalar_select %p152, %s153, %s154
    %p158 = pneg %p152
    %p159 = scmp.eq.s32.totalorder %s12, 7
    %p160 = por %p158, %p159
    %p161 = scmp.ne.s32.totalorder %s153, %s156
    %p162 = scmp.eq.s32.totalorder %s12, 0
    %p163 = por %p161, %p162
    %p164 = scmp.ne.s32.totalorder %s153, %s156
    %p165 = scmp.eq.s32.totalorder %s17, 7
    %p166 = por %p164, %p165
    %p167 = scmp.ne.s32.totalorder %s156, %s157
    %p168 = scmp.eq.s32.totalorder %s17, 0
    %p169 = por %p167, %p168
    %p170 = scmp.ne.s32.totalorder %s156, %s157
    %p171 = scmp.eq.s32.totalorder %s18, 7
    %p172 = por %p170, %p171
    %p174 = scmp.ne.s32.totalorder %s157, %s173
    %p175 = scmp.eq.s32.totalorder %s18, 0
    %p176 = por %p174, %p175
    %p177 = scmp.le.s32.totalorder 1, %s12
    %p178 = scmp.lt.s32.totalorder %s12, 9
    %p179 = pnand %p177, %p178
    %p180 = pneg %p179
    // Predicated region
    $region9: #{convnet_forward.6} parent=5 // pred_check
      _
    $region10: #{convnet_forward.6} parent=5 // pred_check_branch
      %182 = sbr.rel (%p179) target = $region12
    $region11: #{convnet_forward.6} parent=5 // pred_region
      %s183 = ssub.s32 %s12, 1
      // Predicated region
      $region13: #{convnet_forward.6} parent=11 // pred_check
        %p184 = pneg %p59
      $region14: #{convnet_forward.6} parent=11 // pred_check_branch
        %186 = sbr.rel (%p184) target = $region16
      $region15: #{convnet_forward.6} parent=11 // pred_region
        _
      $region16: #{convnet_forward.6} parent=11 // pred_fallthru
        _
      // Predicated region
      $region17: #{convnet_forward.6} parent=11 // pred_check
        %p187 = pneg %p80
      $region18: #{convnet_forward.6} parent=11 // pred_check_branch
        %189 = sbr.rel (%p187) target = $region20
      $region19: #{convnet_forward.6} parent=11 // pred_region
        _
      $region20: #{convnet_forward.6} parent=11 // pred_fallthru
        _
      // Predicated region
      $region21: #{convnet_forward.6} parent=11 // pred_check
        %p190 = pneg %p101
      $region22: #{convnet_forward.6} parent=11 // pred_check_branch
        %192 = sbr.rel (%p190) target = $region24
      $region23: #{convnet_forward.6} parent=11 // pred_region
        _
      $region24: #{convnet_forward.6} parent=11 // pred_fallthru
        _
      // Predicated region
      $region25: #{convnet_forward.6} parent=11 // pred_check
        %p193 = pneg %p122
      $region26: #{convnet_forward.6} parent=11 // pred_check_branch
        %195 = sbr.rel (%p193) target = $region28
      $region27: #{convnet_forward.6} parent=11 // pred_region
        _
      $region28: #{convnet_forward.6} parent=11 // pred_fallthru
        _
      // Predicated region
      $region29: #{convnet_forward.6} parent=11 // pred_check
        %p196 = pneg %p143
      $region30: #{convnet_forward.6} parent=11 // pred_check_branch
        %198 = sbr.rel (%p196) target = $region32
      $region31: #{convnet_forward.6} parent=11 // pred_region
        _
      $region32: #{convnet_forward.6} parent=11 // pred_fallthru
        _
    $region12: #{convnet_forward.6} parent=5 // pred_fallthru
      _
    %p199 = scmp.lt.s32.totalorder %s12, 8
    // Predicated region
    $region33: #{convnet_forward.6} parent=5 // pred_check
      %p200 = pneg %p199
    $region34: #{convnet_forward.6} parent=5 // pred_check_branch
      %202 = sbr.rel (%p200) target = $region36
    $region35: #{convnet_forward.6} parent=5 // pred_region
      // Predicated region
      $region37: #{convnet_forward.6} parent=35 // pred_check
        %p203 = pneg %p32
      $region38: #{convnet_forward.6} parent=35 // pred_check_branch
        %205 = sbr.rel (%p203) target = $region40
      $region39: #{convnet_forward.6} parent=35 // pred_region
        %s206 = smul.u32 29, %s12
        %p207 = scmp.lt.s32.totalorder %s206, 231
        %s208 = scalar_select %p207, %s206, 231
        %s209 = smul.addr %s208, 2
        %s210 = smul.addr %s209, 8
        %s211 = scalar_lea.vmem %s0, %s210
        %s212 = smul.u32 29, %s12
      $region40: #{convnet_forward.6} parent=35 // pred_fallthru
        _
    $region36: #{convnet_forward.6} parent=5 // pred_fallthru
      _
    %p213 = scmp.le.s32.totalorder 1, %s12
    %p214 = scmp.lt.s32.totalorder %s12, 9
    %p215 = pnand %p213, %p214
    %p216 = pneg %p215
    // Predicated region
    $region41: #{convnet_forward.6} parent=5 // pred_check
      _
    $region42: #{convnet_forward.6} parent=5 // pred_check_branch
      %218 = sbr.rel (%p215) target = $region44
    $region43: #{convnet_forward.6} parent=5 // pred_region
      %s219 = ssub.s32 %s12, 1
      %s220 = smul.u32 29, %s17
      %p221 = scmp.lt.s32.totalorder %s220, 231
      %s222 = scalar_select %p221, %s220, 231
      %s223 = smul.addr %s222, 2
      %s224 = smul.addr %s223, 8
      %s225 = scalar_lea.vmem %s0, %s224
      %p226 = pneg %p38
      %p227 = pneg %p35
      %p228 = pneg %p59
      %p229 = pneg %p56
      %p230 = pneg %p80
      %p231 = pneg %p77
      %p232 = pneg %p101
      %p233 = pneg %p98
      %p234 = pneg %p122
      %p235 = pneg %p119
      %p236 = pneg %p143
      %p237 = pneg %p140
      %p238 = pneg %p169
      %p239 = pneg %p166
      %s240 = smul.u32 29, %s17
      %p241 = scmp.lt.s32.totalorder %s240, 231
      %s242 = scalar_select %p241, %s240, 231
      %s243 = smul.addr %s242, 8
      %s244 = scalar_lea.vmem %s6, %s243
      %s245 = smul.u32 29, %s17
      %p246 = scmp.lt.s32.totalorder %s245, 231
      %s247 = scalar_select %p246, %s245, 231
      %s248 = smul.addr %s247, 2
      %s249 = smul.addr %s248, 8
      %s250 = scalar_lea.vmem %s0, %s249
      %s251 = smul.u32 29, %s17
      %s252 = smul.u32 29, %s17
      %p253 = scmp.lt.s32.totalorder %s252, 231
      %s254 = scalar_select %p253, %s252, 231
      %s255 = smul.addr %s254, 8
      %s256 = scalar_lea.vmem %s6, %s255
      %s257 = smul.u32 29, %s17
      %v258 = vld [vmem:[%s250] sm:$0xff]
      %v259 = vld [vmem:[%s250 + $0x8] sm:$0xff]
      %v260 = vld [vmem:[%s250 + $0x10] sm:$0xff]
      %v261 = vld [vmem:[%s250 + $0x18] sm:$0xff]
      %v262 = vld [vmem:[%s250 + $0x20] sm:$0xff]
      %v263 = vld [vmem:[%s250 + $0x28] sm:$0xff]
      %v264 = vld [vmem:[%s250 + $0x30] sm:$0xff]
      %v265 = vld [vmem:[%s250 + $0x38] sm:$0xff]
      %v266 = vld [vmem:[%s250 + $0x40] sm:$0xff]
      %v267 = vld [vmem:[%s250 + $0x48] sm:$0xff]
      %v268 = vld [vmem:[%s250 + $0x50] sm:$0xff]
      %v269 = vld [vmem:[%s250 + $0x58] sm:$0xff]
      %v270 = vld [vmem:[%s250 + $0x60] sm:$0xff]
      %v271 = vld [vmem:[%s250 + $0x68] sm:$0xff]
      %v272 = vld [vmem:[%s250 + $0x70] sm:$0xff]
      %v273 = vld [vmem:[%s250 + $0x78] sm:$0xff]
      %v274 = vld [vmem:[%s250 + $0x80] sm:$0xff]
      %v275 = vld [vmem:[%s250 + $0x88] sm:$0xff]
      %v276 = vld [vmem:[%s250 + $0x90] sm:$0xff]
      %v277 = vld [vmem:[%s250 + $0x98] sm:$0xff]
      %v278 = vld [vmem:[%s250 + $0xa0] sm:$0xff]
      %v279 = vld [vmem:[%s250 + $0xa8] sm:$0xff]
      %v280 = vld [vmem:[%s250 + $0xb0] sm:$0xff]
      %v281 = vld [vmem:[%s250 + $0xb8] sm:$0xff]
      %v282 = vld [vmem:[%s250 + $0xc0] sm:$0xff]
      %v283 = vld [vmem:[%s250 + $0xc8] sm:$0xff]
      %v284 = vld [vmem:[%s250 + $0xd0] sm:$0xff]
      %v285 = vld [vmem:[%s250 + $0xd8] sm:$0xff]
      %v286 = vld [vmem:[%s250 + $0xe0] sm:$0xff]
      %v287 = vld [vmem:[%s250 + $0xe8] sm:$0xff]
      %v288 = vld [vmem:[%s250 + $0xf0] sm:$0xff]
      %v289 = vld [vmem:[%s250 + $0xf8] sm:$0xff]
      %v290 = vld [vmem:[%s250 + $0x100] sm:$0xff]
      %v291 = vld [vmem:[%s250 + $0x108] sm:$0xff]
      %v292 = vld [vmem:[%s250 + $0x110] sm:$0xff]
      %v293 = vld [vmem:[%s250 + $0x118] sm:$0xff]
      %v294 = vld [vmem:[%s250 + $0x120] sm:$0xff]
      %v295 = vld [vmem:[%s250 + $0x128] sm:$0xff]
      %v296 = vld [vmem:[%s250 + $0x130] sm:$0xff]
      %v297 = vld [vmem:[%s250 + $0x138] sm:$0xff]
      %v298 = vld [vmem:[%s250 + $0x140] sm:$0xff]
      %v299 = vld [vmem:[%s250 + $0x148] sm:$0xff]
      %v300 = vld [vmem:[%s250 + $0x150] sm:$0xff]
      %v301 = vld [vmem:[%s250 + $0x158] sm:$0xff]
      %v302 = vld [vmem:[%s250 + $0x160] sm:$0xff]
      %v303 = vld [vmem:[%s250 + $0x168] sm:$0xff]
      %v304 = vld [vmem:[%s250 + $0x170] sm:$0xff]
      %v305 = vld [vmem:[%s250 + $0x178] sm:$0xff]
      %v306 = vld [vmem:[%s250 + $0x180] sm:$0xff]
      %v307 = vld [vmem:[%s250 + $0x188] sm:$0xff]
      %v308 = vld [vmem:[%s250 + $0x190] sm:$0xff]
      %v309 = vld [vmem:[%s250 + $0x198] sm:$0xff]
      %v310 = vld [vmem:[%s250 + $0x1a0] sm:$0xff]
      %v311 = vld [vmem:[%s250 + $0x1a8] sm:$0xff]
      %v312 = vld [vmem:[%s250 + $0x1b0] sm:$0xff]
      %v313 = vld [vmem:[%s250 + $0x1b8] sm:$0xff]
      %v314 = vld [vmem:[%s250 + $0x1c0] sm:$0xff]
      %v315 = vld [vmem:[%s250 + $0x1c8] sm:$0xff]
      %v316 = vld [vmem:[%s1] sm:$0xff]
      %v317 = vld [vmem:[%s1 + $0x8] sm:$0xff]
      %v318 = vld [vmem:[%s1 + $0x10] sm:$0xff]
      %v319 = vld [vmem:[%s1 + $0x18] sm:$0xff]
      %v320 = vld [vmem:[%s1 + $0x20] sm:$0xff]
      %v321 = vld [vmem:[%s1 + $0x28] sm:$0xff]
      %v322 = vld [vmem:[%s1 + $0x30] sm:$0xff]
      %v323 = vld [vmem:[%s1 + $0x38] sm:$0xff]
      %v324 = vld [vmem:[%s1 + $0x40] sm:$0xff]
      %v325 = vld [vmem:[%s1 + $0x48] sm:$0xff]
      %v326 = vld [vmem:[%s1 + $0x50] sm:$0xff]
      %v327 = vld [vmem:[%s1 + $0x58] sm:$0xff]
      %v328 = vld [vmem:[%s1 + $0x60] sm:$0xff]
      %v329 = vld [vmem:[%s1 + $0x68] sm:$0xff]
      %v330 = vld [vmem:[%s1 + $0x70] sm:$0xff]
      %v331 = vld [vmem:[%s1 + $0x78] sm:$0xff]
      %v332 = vld [vmem:[%s1 + $0x80] sm:$0xff]
      %v333 = vld [vmem:[%s1 + $0x88] sm:$0xff]
      %v334 = vld [vmem:[%s1 + $0x90] sm:$0xff]
      %v335 = vld [vmem:[%s1 + $0x98] sm:$0xff]
      %v336 = vld [vmem:[%s1 + $0xa0] sm:$0xff]
      %v337 = vld [vmem:[%s1 + $0xa8] sm:$0xff]
      %v338 = vld [vmem:[%s1 + $0xb0] sm:$0xff]
      %v339 = vld [vmem:[%s1 + $0xb8] sm:$0xff]
      %vm340 = vcmask 523264
      %v342 = vsel %vm340, %v259, 0
      %v345 = vsel %vm340, %v261, 0
      %v348 = vsel %vm340, %v263, 0
      %v351 = vsel %vm340, %v265, 0
      %v354 = vsel %vm340, %v267, 0
      %v357 = vsel %vm340, %v269, 0
      %v360 = vsel %vm340, %v271, 0
      %v363 = vsel %vm340, %v273, 0
      %v366 = vsel %vm340, %v275, 0
      %v369 = vsel %vm340, %v277, 0
      %v372 = vsel %vm340, %v279, 0
      %v375 = vsel %vm340, %v281, 0
      %v378 = vsel %vm340, %v283, 0
      %v381 = vsel %vm340, %v285, 0
      %v384 = vsel %vm340, %v287, 0
      %v387 = vsel %vm340, %v289, 0
      %v390 = vsel %vm340, %v291, 0
      %v393 = vsel %vm340, %v293, 0
      %v396 = vsel %vm340, %v295, 0
      %v399 = vsel %vm340, %v297, 0
      %v402 = vsel %vm340, %v299, 0
      %v405 = vsel %vm340, %v301, 0
      %v408 = vsel %vm340, %v303, 0
      %v411 = vsel %vm340, %v305, 0
      %v414 = vsel %vm340, %v307, 0
      %v417 = vsel %vm340, %v309, 0
      %v420 = vsel %vm340, %v311, 0
      %v423 = vsel %vm340, %v313, 0
      %v426 = vsel %vm340, %v315, 0
      %428 = vmatprep.subr.mxu0 0.0
      %429 = vmatpush1.msra.mxu0 %v316
      %430 = vmatprep.subr.mxu0 0.0
      %431 = vmatpush1.msra.mxu0 %v317
      %432 = vmatprep.subr.mxu0 0.0
      %433 = vmatpush1.msra.mxu0 %v318
      %434 = vmatprep.subr.mxu0 0.0
      %435 = vmatpush1.msra.mxu0 %v319
      %436 = vmatprep.subr.mxu0 0.0
      %437 = vmatpush1.msra.mxu0 %v320
      %438 = vmatprep.subr.mxu0 0.0
      %439 = vmatpush1.msra.mxu0 %v321
      %440 = vmatprep.subr.mxu0 0.0
      %441 = vmatpush1.msra.mxu0 %v322
      %442 = vmatprep.subr.mxu0 0.0
      %443 = vmatpush1.msra.mxu0 %v323
      %444 = vmatprep.subr.mxu0 0.0
      %445 = vmatpush1.msra.mxu0 %v324
      %446 = vmatprep.subr.mxu0 0.0
      %447 = vmatpush1.msra.mxu0 %v325
      %448 = vmatprep.subr.mxu0 0.0
      %449 = vmatpush1.msra.mxu0 %v326
      %450 = vmatprep.subr.mxu0 0.0
      %451 = vmatpush1.msra.mxu0 %v327
      %452 = vmatprep.subr.mxu0 0.0
      %453 = vmatpush1.msra.mxu0 %v328
      %454 = vmatprep.subr.mxu0 0.0
      %455 = vmatpush1.msra.mxu0 %v329
      %456 = vmatprep.subr.mxu0 0.0
      %457 = vmatpush1.msra.mxu0 %v330
      %458 = vmatprep.subr.mxu0 0.0
      %459 = vmatpush1.msra.mxu0 %v331
      %460 = vmatprep.subr.mxu0 0.0
      %461 = vmatpush1.msra.mxu0 %v332
      %462 = vmatprep.subr.mxu0 0.0
      %463 = vmatpush1.msra.mxu0 %v333
      %464 = vmatprep.subr.mxu0 0.0
      %465 = vmatpush1.msra.mxu0 %v334
      %466 = vmatprep.subr.mxu0 0.0
      %467 = vmatpush1.msra.mxu0 %v335
      %468 = vmatprep.subr.mxu0 0.0
      %469 = vmatpush1.msra.mxu0 %v336
      %470 = vmatprep.subr.mxu0 0.0
      %471 = vmatpush1.msra.mxu0 %v337
      %472 = vmatprep.subr.mxu0 0.0
      %473 = vmatpush1.msra.mxu0 %v338
      %474 = vmatprep.subr.mxu0 0.0
      %475 = vmatpush1.msra.mxu0 %v339
      %476 = vmatprep.subr.mxu0 0.0
      %477 = vmatpush1.msra.mxu0 0.0
      %478 = vmatprep.subr.mxu0 0.0
      %479 = vmatpush1.msra.mxu0 0.0
      %480 = vmatprep.subr.mxu0 0.0
      %481 = vmatpush1.msra.mxu0 0.0
      %482 = vmatprep.subr.mxu0 0.0
      %483 = vmatpush1.msra.mxu0 0.0
      %484 = vmatprep.subr.mxu0 0.0
      %485 = vmatpush1.msra.mxu0 0.0
      %486 = vmatprep.subr.mxu0 0.0
      %487 = vmatpush1.msra.mxu0 0.0
      %488 = vmatprep.subr.mxu0 0.0
      %489 = vmatpush1.msra.mxu0 0.0
      %490 = vmatprep.subr.mxu0 0.0
      %491 = vmatpush1.msra.mxu0 0.0
      %492 = vmatprep.mubr.f32.mxu0 %v342
      %493 = vmatmul.mubr.f32.gmra.mrb[0].mxu0 %v258
      %v494 = vpop.f32.mrb[0].mxu0
      %v495 = vadd.f32 0.0, %v494
      %v496 = vpop.f32.mrb[0].mxu0
      %497 = vmatprep.mubr.f32.mxu0 %v345
      %498 = vmatmul.mubr.f32.gmra.mrb[0].mxu0 %v260
      %v499 = vpop.f32.mrb[0].mxu0
      %v500 = vadd.f32 0.0, %v499
      %v501 = vpop.f32.mrb[0].mxu0
      %502 = vmatprep.mubr.f32.mxu0 %v348
      %503 = vmatmul.mubr.f32.gmra.mrb[0].mxu0 %v262
      %v504 = vpop.f32.mrb[0].mxu0
      %v505 = vadd.f32 0.0, %v504
      %v506 = vpop.f32.mrb[0].mxu0
      %507 = vmatprep.mubr.f32.mxu0 %v351
      %508 = vmatmul.mubr.f32.gmra.mrb[0].mxu0 %v264
      %v509 = vpop.f32.mrb[0].mxu0
      %v510 = vadd.f32 0.0, %v509
      %v511 = vpop.f32.mrb[0].mxu0
      %512 = vmatprep.mubr.f32.mxu0 %v354
      %513 = vmatmul.mubr.f32.gmra.mrb[0].mxu0 %v266
      %v514 = vpop.f32.mrb[0].mxu0
      %v515 = vadd.f32 0.0, %v514
      %v516 = vpop.f32.mrb[0].mxu0
      %517 = vmatprep.mubr.f32.mxu0 %v357
      %518 = vmatmul.mubr.f32.gmra.mrb[0].mxu0 %v268
      %v519 = vpop.f32.mrb[0].mxu0
      %v520 = vadd.f32 0.0, %v519
      %v521 = vpop.f32.mrb[0].mxu0
      %522 = vmatprep.mubr.f32.mxu0 %v360
      %523 = vmatmul.mubr.f32.gmra.mrb[0].mxu0 %v270
      %v524 = vpop.f32.mrb[0].mxu0
      %v525 = vadd.f32 0.0, %v524
      %v526 = vpop.f32.mrb[0].mxu0
      %527 = vmatprep.mubr.f32.mxu0 %v363
      %528 = vmatmul.mubr.f32.gmra.mrb[0].mxu0 %v272
      %v529 = vpop.f32.mrb[0].mxu0
      %v530 = vadd.f32 0.0, %v529
      %v531 = vpop.f32.mrb[0].mxu0
      %532 = vmatprep.mubr.f32.mxu0 %v366
      %533 = vmatmul.mubr.f32.gmra.mrb[0].mxu0 %v274
      %v534 = vpop.f32.mrb[0].mxu0
      %v535 = vadd.f32 0.0, %v534
      %v536 = vpop.f32.mrb[0].mxu0
      %537 = vmatprep.mubr.f32.mxu0 %v369
      %538 = vmatmul.mubr.f32.gmra.mrb[0].mxu0 %v276
      %v539 = vpop.f32.mrb[0].mxu0
      %v540 = vadd.f32 0.0, %v539
      %v541 = vpop.f32.mrb[0].mxu0
      %542 = vmatprep.mubr.f32.mxu0 %v372
      %543 = vmatmul.mubr.f32.gmra.mrb[0].mxu0 %v278
      %v544 = vpop.f32.mrb[0].mxu0
      %v545 = vadd.f32 0.0, %v544
      %v546 = vpop.f32.mrb[0].mxu0
      %547 = vmatprep.mubr.f32.mxu0 %v375
      %548 = vmatmul.mubr.f32.gmra.mrb[0].mxu0 %v280
      %v549 = vpop.f32.mrb[0].mxu0
      %v550 = vadd.f32 0.0, %v549
      %v551 = vpop.f32.mrb[0].mxu0
      %552 = vmatprep.mubr.f32.mxu0 %v378
      %553 = vmatmul.mubr.f32.gmra.mrb[0].mxu0 %v282
      %v554 = vpop.f32.mrb[0].mxu0
      %v555 = vadd.f32 0.0, %v554
      %v556 = vpop.f32.mrb[0].mxu0
      %557 = vmatprep.mubr.f32.mxu0 %v381
      %558 = vmatmul.mubr.f32.gmra.mrb[0].mxu0 %v284
      %v559 = vpop.f32.mrb[0].mxu0
      %v560 = vadd.f32 0.0, %v559
      %v561 = vpop.f32.mrb[0].mxu0
      %562 = vmatprep.mubr.f32.mxu0 %v384
      %563 = vmatmul.mubr.f32.gmra.mrb[0].mxu0 %v286
      %v564 = vpop.f32.mrb[0].mxu0
      %v565 = vadd.f32 0.0, %v564
      %v566 = vpop.f32.mrb[0].mxu0
      %567 = vmatprep.mubr.f32.mxu0 %v387
      %568 = vmatmul.mubr.f32.gmra.mrb[0].mxu0 %v288
      %v569 = vpop.f32.mrb[0].mxu0
      %v570 = vadd.f32 0.0, %v569
      %v571 = vpop.f32.mrb[0].mxu0
      %572 = vmatprep.mubr.f32.mxu0 %v390
      %573 = vmatmul.mubr.f32.gmra.mrb[0].mxu0 %v290
      %v574 = vpop.f32.mrb[0].mxu0
      %v575 = vadd.f32 0.0, %v574
      %v576 = vpop.f32.mrb[0].mxu0
      %577 = vmatprep.mubr.f32.mxu0 %v393
      %578 = vmatmul.mubr.f32.gmra.mrb[0].mxu0 %v292
      %v579 = vpop.f32.mrb[0].mxu0
      %v580 = vadd.f32 0.0, %v579
      %v581 = vpop.f32.mrb[0].mxu0
      %582 = vmatprep.mubr.f32.mxu0 %v396
      %583 = vmatmul.mubr.f32.gmra.mrb[0].mxu0 %v294
      %v584 = vpop.f32.mrb[0].mxu0
      %v585 = vadd.f32 0.0, %v584
      %v586 = vpop.f32.mrb[0].mxu0
      %587 = vmatprep.mubr.f32.mxu0 %v399
      %588 = vmatmul.mubr.f32.gmra.mrb[0].mxu0 %v296
      %v589 = vpop.f32.mrb[0].mxu0
      %v590 = vadd.f32 0.0, %v589
      %v591 = vpop.f32.mrb[0].mxu0
      %592 = vmatprep.mubr.f32.mxu0 %v402
      %593 = vmatmul.mubr.f32.gmra.mrb[0].mxu0 %v298
      %v594 = vpop.f32.mrb[0].mxu0
      %v595 = vadd.f32 0.0, %v594
      %v596 = vpop.f32.mrb[0].mxu0
      %597 = vmatprep.mubr.f32.mxu0 %v405
      %598 = vmatmul.mubr.f32.gmra.mrb[0].mxu0 %v300
      %v599 = vpop.f32.mrb[0].mxu0
      %v600 = vadd.f32 0.0, %v599
      %v601 = vpop.f32.mrb[0].mxu0
      %602 = vmatprep.mubr.f32.mxu0 %v408
      %603 = vmatmul.mubr.f32.gmra.mrb[0].mxu0 %v302
      %v604 = vpop.f32.mrb[0].mxu0
      %v605 = vadd.f32 0.0, %v604
      %v606 = vpop.f32.mrb[0].mxu0
      %607 = vmatprep.mubr.f32.mxu0 %v411
      %608 = vmatmul.mubr.f32.gmra.mrb[0].mxu0 %v304
      %v609 = vpop.f32.mrb[0].mxu0
      %v610 = vadd.f32 0.0, %v609
      %v611 = vpop.f32.mrb[0].mxu0
      %612 = vmatprep.mubr.f32.mxu0 %v414
      %613 = vmatmul.mubr.f32.gmra.mrb[0].mxu0 %v306
      %v614 = vpop.f32.mrb[0].mxu0
      %v615 = vadd.f32 0.0, %v614
      %v616 = vpop.f32.mrb[0].mxu0
      %617 = vmatprep.mubr.f32.mxu0 %v417
      %618 = vmatmul.mubr.f32.gmra.mrb[0].mxu0 %v308
      %v619 = vpop.f32.mrb[0].mxu0
      %v620 = vadd.f32 0.0, %v619
      %v621 = vpop.f32.mrb[0].mxu0
      %622 = vmatprep.mubr.f32.mxu0 %v420
      %623 = vmatmul.mubr.f32.gmra.mrb[0].mxu0 %v310
      %v624 = vpop.f32.mrb[0].mxu0
      %v625 = vadd.f32 0.0, %v624
      %v626 = vpop.f32.mrb[0].mxu0
      %627 = vmatprep.mubr.f32.mxu0 %v423
      %628 = vmatmul.mubr.f32.gmra.mrb[0].mxu0 %v312
      %v629 = vpop.f32.mrb[0].mxu0
      %v630 = vadd.f32 0.0, %v629
      %v631 = vpop.f32.mrb[0].mxu0
      %632 = vmatprep.mubr.f32.mxu0 %v426
      %633 = vmatmul.mubr.f32.gmra.mrb[0].mxu0 %v314
      %v634 = vpop.f32.mrb[0].mxu0
      %v635 = vadd.f32 0.0, %v634
      %v636 = vpop.f32.mrb[0].mxu0
      %637 = vdwg.mxu0
      %v638 = vld [vmem:[%s2] sm:$0xff]
      %v639 = vld [vmem:[%s2 + $0x8] sm:$0xff]
      %v640 = vld [vmem:[%s2 + $0x10] sm:$0xff]
      %v641 = vld [vmem:[%s2 + $0x18] sm:$0xff]
      %v642 = vld [vmem:[%s2 + $0x20] sm:$0xff]
      %v643 = vld [vmem:[%s2 + $0x28] sm:$0xff]
      %v644 = vld [vmem:[%s2 + $0x30] sm:$0xff]
      %v645 = vld [vmem:[%s2 + $0x38] sm:$0xff]
      %v646 = vld [vmem:[%s2 + $0x40] sm:$0xff]
      %v647 = vld [vmem:[%s2 + $0x48] sm:$0xff]
      %v648 = vld [vmem:[%s2 + $0x50] sm:$0xff]
      %v649 = vld [vmem:[%s2 + $0x58] sm:$0xff]
      %v650 = vld [vmem:[%s2 + $0x60] sm:$0xff]
      %v651 = vld [vmem:[%s2 + $0x68] sm:$0xff]
      %v652 = vld [vmem:[%s2 + $0x70] sm:$0xff]
      %v653 = vld [vmem:[%s2 + $0x78] sm:$0xff]
      %v654 = vld [vmem:[%s2 + $0x80] sm:$0xff]
      %v655 = vld [vmem:[%s2 + $0x88] sm:$0xff]
      %v656 = vld [vmem:[%s2 + $0x90] sm:$0xff]
      %v657 = vld [vmem:[%s2 + $0x98] sm:$0xff]
      %v658 = vld [vmem:[%s2 + $0xa0] sm:$0xff]
      %v659 = vld [vmem:[%s2 + $0xa8] sm:$0xff]
      %v660 = vld [vmem:[%s2 + $0xb0] sm:$0xff]
      %v661 = vld [vmem:[%s2 + $0xb8] sm:$0xff]
      %662 = vmatprep.subr.mxu0 0.0
      %663 = vmatpush1.msra.mxu0 %v638
      %664 = vmatprep.subr.mxu0 0.0
      %665 = vmatpush1.msra.mxu0 %v639
      %666 = vmatprep.subr.mxu0 0.0
      %667 = vmatpush1.msra.mxu0 %v640
      %668 = vmatprep.subr.mxu0 0.0
      %669 = vmatpush1.msra.mxu0 %v641
      %670 = vmatprep.subr.mxu0 0.0
      %671 = vmatpush1.msra.mxu0 %v642
      %672 = vmatprep.subr.mxu0 0.0
      %673 = vmatpush1.msra.mxu0 %v643
      %674 = vmatprep.subr.mxu0 0.0
      %675 = vmatpush1.msra.mxu0 %v644
      %676 = vmatprep.subr.mxu0 0.0
      %677 = vmatpush1.msra.mxu0 %v645
      %678 = vmatprep.subr.mxu0 0.0
      %679 = vmatpush1.msra.mxu0 %v646
      %680 = vmatprep.subr.mxu0 0.0
      %681 = vmatpush1.msra.mxu0 %v647
      %682 = vmatprep.subr.mxu0 0.0
      %683 = vmatpush1.msra.mxu0 %v648
      %684 = vmatprep.subr.mxu0 0.0
      %685 = vmatpush1.msra.mxu0 %v649
      %686 = vmatprep.subr.mxu0 0.0
      %687 = vmatpush1.msra.mxu0 %v650
      %688 = vmatprep.subr.mxu0 0.0
      %689 = vmatpush1.msra.mxu0 %v651
      %690 = vmatprep.subr.mxu0 0.0
      %691 = vmatpush1.msra.mxu0 %v652
      %692 = vmatprep.subr.mxu0 0.0
      %693 = vmatpush1.msra.mxu0 %v653
      %694 = vmatprep.subr.mxu0 0.0
      %695 = vmatpush1.msra.mxu0 %v654
      %696 = vmatprep.subr.mxu0 0.0
      %697 = vmatpush1.msra.mxu0 %v655
      %698 = vmatprep.subr.mxu0 0.0
      %699 = vmatpush1.msra.mxu0 %v656
      %700 = vmatprep.subr.mxu0 0.0
      %701 = vmatpush1.msra.mxu0 %v657
      %702 = vmatprep.subr.mxu0 0.0
      %703 = vmatpush1.msra.mxu0 %v658
      %704 = vmatprep.subr.mxu0 0.0
      %705 = vmatpush1.msra.mxu0 %v659
      %706 = vmatprep.subr.mxu0 0.0
      %707 = vmatpush1.msra.mxu0 %v660
      %708 = vmatprep.subr.mxu0 0.0
      %709 = vmatpush1.msra.mxu0 %v661
      %710 = vmatprep.subr.mxu0 0.0
      %711 = vmatpush1.msra.mxu0 0.0
      %712 = vmatprep.subr.mxu0 0.0
      %713 = vmatpush1.msra.mxu0 0.0
      %714 = vmatprep.subr.mxu0 0.0
      %715 = vmatpush1.msra.mxu0 0.0
      %716 = vmatprep.subr.mxu0 0.0
      %717 = vmatpush1.msra.mxu0 0.0
      %718 = vmatprep.subr.mxu0 0.0
      %719 = vmatpush1.msra.mxu0 0.0
      %720 = vmatprep.subr.mxu0 0.0
      %721 = vmatpush1.msra.mxu0 0.0
      %722 = vmatprep.subr.mxu0 0.0
      %723 = vmatpush1.msra.mxu0 0.0
      %724 = vmatprep.subr.mxu0 0.0
      %725 = vmatpush1.msra.mxu0 0.0
      %726 = vmatprep.mubr.f32.mxu0 %v342
      %727 = vmatmul.mubr.f32.gmra.mrb[0].mxu0 %v258
      %v728 = vpop.f32.mrb[0].mxu0
      %v729 = vadd.f32 0.0, %v728
      %v730 = vpop.f32.mrb[0].mxu0
      %731 = vmatprep.mubr.f32.mxu0 %v345
      %732 = vmatmul.mubr.f32.gmra.mrb[0].mxu0 %v260
      %v733 = vpop.f32.mrb[0].mxu0
      %v734 = vadd.f32 0.0, %v733
      %v735 = vpop.f32.mrb[0].mxu0
      %736 = vmatprep.mubr.f32.mxu0 %v348
      %737 = vmatmul.mubr.f32.gmra.mrb[0].mxu0 %v262
      %v738 = vpop.f32.mrb[0].mxu0
      %v739 = vadd.f32 0.0, %v738
      %v740 = vpop.f32.mrb[0].mxu0
      %741 = vmatprep.mubr.f32.mxu0 %v351
      %742 = vmatmul.mubr.f32.gmra.mrb[0].mxu0 %v264
      %v743 = vpop.f32.mrb[0].mxu0
      %v744 = vadd.f32 0.0, %v743
      %v745 = vpop.f32.mrb[0].mxu0
      %746 = vmatprep.mubr.f32.mxu0 %v354
      %747 = vmatmul.mubr.f32.gmra.mrb[0].mxu0 %v266
      %v748 = vpop.f32.mrb[0].mxu0
      %v749 = vadd.f32 0.0, %v748
      %v750 = vpop.f32.mrb[0].mxu0
      %751 = vmatprep.mubr.f32.mxu0 %v357
      %752 = vmatmul.mubr.f32.gmra.mrb[0].mxu0 %v268
      %v753 = vpop.f32.mrb[0].mxu0
      %v754 = vadd.f32 0.0, %v753
      %v755 = vpop.f32.mrb[0].mxu0
      %756 = vmatprep.mubr.f32.mxu0 %v360
      %757 = vmatmul.mubr.f32.gmra.mrb[0].mxu0 %v270
      %v758 = vpop.f32.mrb[0].mxu0
      %v759 = vadd.f32 0.0, %v758
      %v760 = vpop.f32.mrb[0].mxu0
      %761 = vmatprep.mubr.f32.mxu0 %v363
      %762 = vmatmul.mubr.f32.gmra.mrb[0].mxu0 %v272
      %v763 = vpop.f32.mrb[0].mxu0
      %v764 = vadd.f32 0.0, %v763
      %v765 = vpop.f32.mrb[0].mxu0
      %766 = vmatprep.mubr.f32.mxu0 %v366
      %767 = vmatmul.mubr.f32.gmra.mrb[0].mxu0 %v274
      %v768 = vpop.f32.mrb[0].mxu0
      %v769 = vadd.f32 0.0, %v768
      %v770 = vpop.f32.mrb[0].mxu0
      %771 = vmatprep.mubr.f32.mxu0 %v369
      %772 = vmatmul.mubr.f32.gmra.mrb[0].mxu0 %v276
      %v773 = vpop.f32.mrb[0].mxu0
      %v774 = vadd.f32 0.0, %v773
      %v775 = vpop.f32.mrb[0].mxu0
      %776 = vmatprep.mubr.f32.mxu0 %v372
      %777 = vmatmul.mubr.f32.gmra.mrb[0].mxu0 %v278
      %v778 = vpop.f32.mrb[0].mxu0
      %v779 = vadd.f32 0.0, %v778
      %v780 = vpop.f32.mrb[0].mxu0
      %781 = vmatprep.mubr.f32.mxu0 %v375
      %782 = vmatmul.mubr.f32.gmra.mrb[0].mxu0 %v280
      %v783 = vpop.f32.mrb[0].mxu0
      %v784 = vadd.f32 0.0, %v783
      %v785 = vpop.f32.mrb[0].mxu0
      %786 = vmatprep.mubr.f32.mxu0 %v378
      %787 = vmatmul.mubr.f32.gmra.mrb[0].mxu0 %v282
      %v788 = vpop.f32.mrb[0].mxu0
      %v789 = vadd.f32 0.0, %v788
      %v790 = vpop.f32.mrb[0].mxu0
      %791 = vmatprep.mubr.f32.mxu0 %v381
      %792 = vmatmul.mubr.f32.gmra.mrb[0].mxu0 %v284
      %v793 = vpop.f32.mrb[0].mxu0
      %v794 = vadd.f32 0.0, %v793
      %v795 = vpop.f32.mrb[0].mxu0
      %796 = vmatprep.mubr.f32.mxu0 %v384
      %797 = vmatmul.mubr.f32.gmra.mrb[0].mxu0 %v286
      %v798 = vpop.f32.mrb[0].mxu0
      %v799 = vadd.f32 0.0, %v798
      %v800 = vpop.f32.mrb[0].mxu0
      %801 = vmatprep.mubr.f32.mxu0 %v387
      %802 = vmatmul.mubr.f32.gmra.mrb[0].mxu0 %v288
      %v803 = vpop.f32.mrb[0].mxu0
      %v804 = vadd.f32 0.0, %v803
      %v805 = vpop.f32.mrb[0].mxu0
      %806 = vmatprep.mubr.f32.mxu0 %v390
      %807 = vmatmul.mubr.f32.gmra.mrb[0].mxu0 %v290
      %v808 = vpop.f32.mrb[0].mxu0
      %v809 = vadd.f32 0.0, %v808
      %v810 = vpop.f32.mrb[0].mxu0
      %811 = vmatprep.mubr.f32.mxu0 %v393
      %812 = vmatmul.mubr.f32.gmra.mrb[0].mxu0 %v292
      %v813 = vpop.f32.mrb[0].mxu0
      %v814 = vadd.f32 0.0, %v813
      %v815 = vpop.f32.mrb[0].mxu0
      %816 = vmatprep.mubr.f32.mxu0 %v396
      %817 = vmatmul.mubr.f32.gmra.mrb[0].mxu0 %v294
      %v818 = vpop.f32.mrb[0].mxu0
      %v819 = vadd.f32 0.0, %v818
      %v820 = vpop.f32.mrb[0].mxu0
      %821 = vmatprep.mubr.f32.mxu0 %v399
      %822 = vmatmul.mubr.f32.gmra.mrb[0].mxu0 %v296
      %v823 = vpop.f32.mrb[0].mxu0
      %v824 = vadd.f32 0.0, %v823
      %v825 = vpop.f32.mrb[0].mxu0
      %826 = vmatprep.mubr.f32.mxu0 %v402
      %827 = vmatmul.mubr.f32.gmra.mrb[0].mxu0 %v298
      %v828 = vpop.f32.mrb[0].mxu0
      %v829 = vadd.f32 0.0, %v828
      %v830 = vpop.f32.mrb[0].mxu0
      %831 = vmatprep.mubr.f32.mxu0 %v405
      %832 = vmatmul.mubr.f32.gmra.mrb[0].mxu0 %v300
      %v833 = vpop.f32.mrb[0].mxu0
      %v834 = vadd.f32 0.0, %v833
      %v835 = vpop.f32.mrb[0].mxu0
      %836 = vmatprep.mubr.f32.mxu0 %v408
      %837 = vmatmul.mubr.f32.gmra.mrb[0].mxu0 %v302
      %v838 = vpop.f32.mrb[0].mxu0
      %v839 = vadd.f32 0.0, %v838
      %v840 = vpop.f32.mrb[0].mxu0
      %841 = vmatprep.mubr.f32.mxu0 %v411
      %842 = vmatmul.mubr.f32.gmra.mrb[0].mxu0 %v304
      %v843 = vpop.f32.mrb[0].mxu0
      %v844 = vadd.f32 0.0, %v843
      %v845 = vpop.f32.mrb[0].mxu0
      %846 = vmatprep.mubr.f32.mxu0 %v414
      %847 = vmatmul.mubr.f32.gmra.mrb[0].mxu0 %v306
      %v848 = vpop.f32.mrb[0].mxu0
      %v849 = vadd.f32 0.0, %v848
      %v850 = vpop.f32.mrb[0].mxu0
      %851 = vmatprep.mubr.f32.mxu0 %v417
      %852 = vmatmul.mubr.f32.gmra.mrb[0].mxu0 %v308
      %v853 = vpop.f32.mrb[0].mxu0
      %v854 = vadd.f32 0.0, %v853
      %v855 = vpop.f32.mrb[0].mxu0
      %856 = vmatprep.mubr.f32.mxu0 %v420
      %857 = vmatmul.mubr.f32.gmra.mrb[0].mxu0 %v310
      %v858 = vpop.f32.mrb[0].mxu0
      %v859 = vadd.f32 0.0, %v858
      %v860 = vpop.f32.mrb[0].mxu0
      %861 = vmatprep.mubr.f32.mxu0 %v423
      %862 = vmatmul.mubr.f32.gmra.mrb[0].mxu0 %v312
      %v863 = vpop.f32.mrb[0].mxu0
      %v864 = vadd.f32 0.0, %v863
      %v865 = vpop.f32.mrb[0].mxu0
      %866 = vmatprep.mubr.f32.mxu0 %v426
      %867 = vmatmul.mubr.f32.gmra.mrb[0].mxu0 %v314
      %v868 = vpop.f32.mrb[0].mxu0
      %v869 = vadd.f32 0.0, %v868
      %v870 = vpop.f32.mrb[0].mxu0
      %871 = vdwg.mxu0
      %v872 = vld [vmem:[%s3] sm:$0xff]
      %v873 = vld [vmem:[%s3 + $0x8] sm:$0xff]
      %v874 = vld [vmem:[%s3 + $0x10] sm:$0xff]
      %v875 = vld [vmem:[%s3 + $0x18] sm:$0xff]
      %v876 = vld [vmem:[%s3 + $0x20] sm:$0xff]
      %v877 = vld [vmem:[%s3 + $0x28] sm:$0xff]
      %v878 = vld [vmem:[%s3 + $0x30] sm:$0xff]
      %v879 = vld [vmem:[%s3 + $0x38] sm:$0xff]
      %v880 = vld [vmem:[%s3 + $0x40] sm:$0xff]
      %v881 = vld [vmem:[%s3 + $0x48] sm:$0xff]
      %v882 = vld [vmem:[%s3 + $0x50] sm:$0xff]
      %v883 = vld [vmem:[%s3 + $0x58] sm:$0xff]
      %v884 = vld [vmem:[%s3 + $0x60] sm:$0xff]
      %v885 = vld [vmem:[%s3 + $0x68] sm:$0xff]
      %v886 = vld [vmem:[%s3 + $0x70] sm:$0xff]
      %v887 = vld [vmem:[%s3 + $0x78] sm:$0xff]
      %v888 = vld [vmem:[%s3 + $0x80] sm:$0xff]
      %v889 = vld [vmem:[%s3 + $0x88] sm:$0xff]
      %v890 = vld [vmem:[%s3 + $0x90] sm:$0xff]
      %v891 = vld [vmem:[%s3 + $0x98] sm:$0xff]
      %v892 = vld [vmem:[%s3 + $0xa0] sm:$0xff]
      %v893 = vld [vmem:[%s3 + $0xa8] sm:$0xff]
      %v894 = vld [vmem:[%s3 + $0xb0] sm:$0xff]
      %v895 = vld [vmem:[%s3 + $0xb8] sm:$0xff]
      %896 = vmatprep.subr.mxu0 0.0
      %897 = vmatpush1.msra.mxu0 %v872
      %898 = vmatprep.subr.mxu0 0.0
      %899 = vmatpush1.msra.mxu0 %v873
      %900 = vmatprep.subr.mxu0 0.0
      %901 = vmatpush1.msra.mxu0 %v874
      %902 = vmatprep.subr.mxu0 0.0
      %903 = vmatpush1.msra.mxu0 %v875
      %904 = vmatprep.subr.mxu0 0.0
      %905 = vmatpush1.msra.mxu0 %v876
      %906 = vmatprep.subr.mxu0 0.0
      %907 = vmatpush1.msra.mxu0 %v877
      %908 = vmatprep.subr.mxu0 0.0
      %909 = vmatpush1.msra.mxu0 %v878
      %910 = vmatprep.subr.mxu0 0.0
      %911 = vmatpush1.msra.mxu0 %v879
      %912 = vmatprep.subr.mxu0 0.0
      %913 = vmatpush1.msra.mxu0 %v880
      %914 = vmatprep.subr.mxu0 0.0
      %915 = vmatpush1.msra.mxu0 %v881
      %916 = vmatprep.subr.mxu0 0.0
      %917 = vmatpush1.msra.mxu0 %v882
      %918 = vmatprep.subr.mxu0 0.0
      %919 = vmatpush1.msra.mxu0 %v883
      %920 = vmatprep.subr.mxu0 0.0
      %921 = vmatpush1.msra.mxu0 %v884
      %922 = vmatprep.subr.mxu0 0.0
      %923 = vmatpush1.msra.mxu0 %v885
      %924 = vmatprep.subr.mxu0 0.0
      %925 = vmatpush1.msra.mxu0 %v886
      %926 = vmatprep.subr.mxu0 0.0
      %927 = vmatpush1.msra.mxu0 %v887
      %928 = vmatprep.subr.mxu0 0.0
      %929 = vmatpush1.msra.mxu0 %v888
      %930 = vmatprep.subr.mxu0 0.0
      %931 = vmatpush1.msra.mxu0 %v889
      %932 = vmatprep.subr.mxu0 0.0
      %933 = vmatpush1.msra.mxu0 %v890
      %934 = vmatprep.subr.mxu0 0.0
      %935 = vmatpush1.msra.mxu0 %v891
      %936 = vmatprep.subr.mxu0 0.0
      %937 = vmatpush1.msra.mxu0 %v892
      %938 = vmatprep.subr.mxu0 0.0
      %939 = vmatpush1.msra.mxu0 %v893
      %940 = vmatprep.subr.mxu0 0.0
      %941 = vmatpush1.msra.mxu0 %v894
      %942 = vmatprep.subr.mxu0 0.0
      %943 = vmatpush1.msra.mxu0 %v895
      %944 = vmatprep.subr.mxu0 0.0
      %945 = vmatpush1.msra.mxu0 0.0
      %946 = vmatprep.subr.mxu0 0.0
      %947 = vmatpush1.msra.mxu0 0.0
      %948 = vmatprep.subr.mxu0 0.0
      %949 = vmatpush1.msra.mxu0 0.0
      %950 = vmatprep.subr.mxu0 0.0
      %951 = vmatpush1.msra.mxu0 0.0
      %952 = vmatprep.subr.mxu0 0.0
      %953 = vmatpush1.msra.mxu0 0.0
      %954 = vmatprep.subr.mxu0 0.0
      %955 = vmatpush1.msra.mxu0 0.0
      %956 = vmatprep.subr.mxu0 0.0
      %957 = vmatpush1.msra.mxu0 0.0
      %958 = vmatprep.subr.mxu0 0.0
      %959 = vmatpush1.msra.mxu0 0.0
      %960 = vmatprep.mubr.f32.mxu0 %v342
      %961 = vmatmul.mubr.f32.gmra.mrb[0].mxu0 %v258
      %v962 = vpop.f32.mrb[0].mxu0
      %v963 = vadd.f32 0.0, %v962
      %v964 = vpop.f32.mrb[0].mxu0
      %965 = vmatprep.mubr.f32.mxu0 %v345
      %966 = vmatmul.mubr.f32.gmra.mrb[0].mxu0 %v260
      %v967 = vpop.f32.mrb[0].mxu0
      %v968 = vadd.f32 0.0, %v967
      %v969 = vpop.f32.mrb[0].mxu0
      %970 = vmatprep.mubr.f32.mxu0 %v348
      %971 = vmatmul.mubr.f32.gmra.mrb[0].mxu0 %v262
      %v972 = vpop.f32.mrb[0].mxu0
      %v973 = vadd.f32 0.0, %v972
      %v974 = vpop.f32.mrb[0].mxu0
      %975 = vmatprep.mubr.f32.mxu0 %v351
      %976 = vmatmul.mubr.f32.gmra.mrb[0].mxu0 %v264
      %v977 = vpop.f32.mrb[0].mxu0
      %v978 = vadd.f32 0.0, %v977
      %v979 = vpop.f32.mrb[0].mxu0
      %980 = vmatprep.mubr.f32.mxu0 %v354
      %981 = vmatmul.mubr.f32.gmra.mrb[0].mxu0 %v266
      %v982 = vpop.f32.mrb[0].mxu0
      %v983 = vadd.f32 0.0, %v982
      %v984 = vpop.f32.mrb[0].mxu0
      %985 = vmatprep.mubr.f32.mxu0 %v357
      %986 = vmatmul.mubr.f32.gmra.mrb[0].mxu0 %v268
      %v987 = vpop.f32.mrb[0].mxu0
      %v988 = vadd.f32 0.0, %v987
      %v989 = vpop.f32.mrb[0].mxu0
      %990 = vmatprep.mubr.f32.mxu0 %v360
      %991 = vmatmul.mubr.f32.gmra.mrb[0].mxu0 %v270
      %v992 = vpop.f32.mrb[0].mxu0
      %v993 = vadd.f32 0.0, %v992
      %v994 = vpop.f32.mrb[0].mxu0
      %995 = vmatprep.mubr.f32.mxu0 %v363
      %996 = vmatmul.mubr.f32.gmra.mrb[0].mxu0 %v272
      %v997 = vpop.f32.mrb[0].mxu0
      %v998 = vadd.f32 0.0, %v997
      %v999 = vpop.f32.mrb[0].mxu0
      %1000 = vmatprep.mubr.f32.mxu0 %v366
      %1001 = vmatmul.mubr.f32.gmra.mrb[0].mxu0 %v274
      %v1002 = vpop.f32.mrb[0].mxu0
      %v1003 = vadd.f32 0.0, %v1002
      %v1004 = vpop.f32.mrb[0].mxu0
      %1005 = vmatprep.mubr.f32.mxu0 %v369
      %1006 = vmatmul.mubr.f32.gmra.mrb[0].mxu0 %v276
      %v1007 = vpop.f32.mrb[0].mxu0
      %v1008 = vadd.f32 0.0, %v1007
      %v1009 = vpop.f32.mrb[0].mxu0
      %1010 = vmatprep.mubr.f32.mxu0 %v372
      %1011 = vmatmul.mubr.f32.gmra.mrb[0].mxu0 %v278
      %v1012 = vpop.f32.mrb[0].mxu0
      %v1013 = vadd.f32 0.0, %v1012
      %v1014 = vpop.f32.mrb[0].mxu0
      %1015 = vmatprep.mubr.f32.mxu0 %v375
      %1016 = vmatmul.mubr.f32.gmra.mrb[0].mxu0 %v280
      %v1017 = vpop.f32.mrb[0].mxu0
      %v1018 = vadd.f32 0.0, %v1017
      %v1019 = vpop.f32.mrb[0].mxu0
      %1020 = vmatprep.mubr.f32.mxu0 %v378
      %1021 = vmatmul.mubr.f32.gmra.mrb[0].mxu0 %v282
      %v1022 = vpop.f32.mrb[0].mxu0
      %v1023 = vadd.f32 0.0, %v1022
      %v1024 = vpop.f32.mrb[0].mxu0
      %1025 = vmatprep.mubr.f32.mxu0 %v381
      %1026 = vmatmul.mubr.f32.gmra.mrb[0].mxu0 %v284
      %v1027 = vpop.f32.mrb[0].mxu0
      %v1028 = vadd.f32 0.0, %v1027
      %v1029 = vpop.f32.mrb[0].mxu0
      %1030 = vmatprep.mubr.f32.mxu0 %v384
      %1031 = vmatmul.mubr.f32.gmra.mrb[0].mxu0 %v286
      %v1032 = vpop.f32.mrb[0].mxu0
      %v1033 = vadd.f32 0.0, %v1032
      %v1034 = vpop.f32.mrb[0].mxu0
      %1035 = vmatprep.mubr.f32.mxu0 %v387
      %1036 = vmatmul.mubr.f32.gmra.mrb[0].mxu0 %v288
      %v1037 = vpop.f32.mrb[0].mxu0
      %v1038 = vadd.f32 0.0, %v1037
      %v1039 = vpop.f32.mrb[0].mxu0
      %1040 = vmatprep.mubr.f32.mxu0 %v390
      %1041 = vmatmul.mubr.f32.gmra.mrb[0].mxu0 %v290
      %v1042 = vpop.f32.mrb[0].mxu0
      %v1043 = vadd.f32 0.0, %v1042
      %v1044 = vpop.f32.mrb[0].mxu0
      %1045 = vmatprep.mubr.f32.mxu0 %v393
      %1046 = vmatmul.mubr.f32.gmra.mrb[0].mxu0 %v292
      %v1047 = vpop.f32.mrb[0].mxu0
      %v1048 = vadd.f32 0.0, %v1047
      %v1049 = vpop.f32.mrb[0].mxu0
      %1050 = vmatprep.mubr.f32.mxu0 %v396
      %1051 = vmatmul.mubr.f32.gmra.mrb[0].mxu0 %v294
      %v1052 = vpop.f32.mrb[0].mxu0
      %v1053 = vadd.f32 0.0, %v1052
      %v1054 = vpop.f32.mrb[0].mxu0
      %1055 = vmatprep.mubr.f32.mxu0 %v399
      %1056 = vmatmul.mubr.f32.gmra.mrb[0].mxu0 %v296
      %v1057 = vpop.f32.mrb[0].mxu0
      %v1058 = vadd.f32 0.0, %v1057
      %v1059 = vpop.f32.mrb[0].mxu0
      %1060 = vmatprep.mubr.f32.mxu0 %v402
      %1061 = vmatmul.mubr.f32.gmra.mrb[0].mxu0 %v298
      %v1062 = vpop.f32.mrb[0].mxu0
      %v1063 = vadd.f32 0.0, %v1062
      %v1064 = vpop.f32.mrb[0].mxu0
      %1065 = vmatprep.mubr.f32.mxu0 %v405
      %1066 = vmatmul.mubr.f32.gmra.mrb[0].mxu0 %v300
      %v1067 = vpop.f32.mrb[0].mxu0
      %v1068 = vadd.f32 0.0, %v1067
      %v1069 = vpop.f32.mrb[0].mxu0
      %1070 = vmatprep.mubr.f32.mxu0 %v408
      %1071 = vmatmul.mubr.f32.gmra.mrb[0].mxu0 %v302
      %v1072 = vpop.f32.mrb[0].mxu0
      %v1073 = vadd.f32 0.0, %v1072
      %v1074 = vpop.f32.mrb[0].mxu0
      %1075 = vmatprep.mubr.f32.mxu0 %v411
      %1076 = vmatmul.mubr.f32.gmra.mrb[0].mxu0 %v304
      %v1077 = vpop.f32.mrb[0].mxu0
      %v1078 = vadd.f32 0.0, %v1077
      %v1079 = vpop.f32.mrb[0].mxu0
      %1080 = vmatprep.mubr.f32.mxu0 %v414
      %1081 = vmatmul.mubr.f32.gmra.mrb[0].mxu0 %v306
      %v1082 = vpop.f32.mrb[0].mxu0
      %v1083 = vadd.f32 0.0, %v1082
      %v1084 = vpop.f32.mrb[0].mxu0
      %1085 = vmatprep.mubr.f32.mxu0 %v417
      %1086 = vmatmul.mubr.f32.gmra.mrb[0].mxu0 %v308
      %v1087 = vpop.f32.mrb[0].mxu0
      %v1088 = vadd.f32 0.0, %v1087
      %v1089 = vpop.f32.mrb[0].mxu0
      %1090 = vmatprep.mubr.f32.mxu0 %v420
      %1091 = vmatmul.mubr.f32.gmra.mrb[0].mxu0 %v310
      %v1092 = vpop.f32.mrb[0].mxu0
      %v1093 = vadd.f32 0.0, %v1092
      %v1094 = vpop.f32.mrb[0].mxu0
      %1095 = vmatprep.mubr.f32.mxu0 %v423
      %1096 = vmatmul.mubr.f32.gmra.mrb[0].mxu0 %v312
      %v1097 = vpop.f32.mrb[0].mxu0
      %v1098 = vadd.f32 0.0, %v1097
      %v1099 = vpop.f32.mrb[0].mxu0
      %1100 = vmatprep.mubr.f32.mxu0 %v426
      %1101 = vmatmul.mubr.f32.gmra.mrb[0].mxu0 %v314
      %v1102 = vpop.f32.mrb[0].mxu0
      %v1103 = vadd.f32 0.0, %v1102
      %v1104 = vpop.f32.mrb[0].mxu0
      %1105 = vdwg.mxu0
      %v1106 = vld [vmem:[%s4] sm:$0xff]
      %v1107 = vld [vmem:[%s4 + $0x8] sm:$0xff]
      %v1108 = vld [vmem:[%s4 + $0x10] sm:$0xff]
      %v1109 = vld [vmem:[%s4 + $0x18] sm:$0xff]
      %v1110 = vld [vmem:[%s4 + $0x20] sm:$0xff]
      %v1111 = vld [vmem:[%s4 + $0x28] sm:$0xff]
      %v1112 = vld [vmem:[%s4 + $0x30] sm:$0xff]
      %v1113 = vld [vmem:[%s4 + $0x38] sm:$0xff]
      %v1114 = vld [vmem:[%s4 + $0x40] sm:$0xff]
      %v1115 = vld [vmem:[%s4 + $0x48] sm:$0xff]
      %v1116 = vld [vmem:[%s4 + $0x50] sm:$0xff]
      %v1117 = vld [vmem:[%s4 + $0x58] sm:$0xff]
      %v1118 = vld [vmem:[%s4 + $0x60] sm:$0xff]
      %v1119 = vld [vmem:[%s4 + $0x68] sm:$0xff]
      %v1120 = vld [vmem:[%s4 + $0x70] sm:$0xff]
      %v1121 = vld [vmem:[%s4 + $0x78] sm:$0xff]
      %v1122 = vld [vmem:[%s4 + $0x80] sm:$0xff]
      %v1123 = vld [vmem:[%s4 + $0x88] sm:$0xff]
      %v1124 = vld [vmem:[%s4 + $0x90] sm:$0xff]
      %v1125 = vld [vmem:[%s4 + $0x98] sm:$0xff]
      %v1126 = vld [vmem:[%s4 + $0xa0] sm:$0xff]
      %v1127 = vld [vmem:[%s4 + $0xa8] sm:$0xff]
      %v1128 = vld [vmem:[%s4 + $0xb0] sm:$0xff]
      %v1129 = vld [vmem:[%s4 + $0xb8] sm:$0xff]
      %1130 = vmatprep.subr.mxu0 0.0
      %1131 = vmatpush1.msra.mxu0 %v1106
      %1132 = vmatprep.subr.mxu0 0.0
      %1133 = vmatpush1.msra.mxu0 %v1107
      %1134 = vmatprep.subr.mxu0 0.0
      %1135 = vmatpush1.msra.mxu0 %v1108
      %1136 = vmatprep.subr.mxu0 0.0
      %1137 = vmatpush1.msra.mxu0 %v1109
      %1138 = vmatprep.subr.mxu0 0.0
      %1139 = vmatpush1.msra.mxu0 %v1110
      %1140 = vmatprep.subr.mxu0 0.0
      %1141 = vmatpush1.msra.mxu0 %v1111
      %1142 = vmatprep.subr.mxu0 0.0
      %1143 = vmatpush1.msra.mxu0 %v1112
      %1144 = vmatprep.subr.mxu0 0.0
      %1145 = vmatpush1.msra.mxu0 %v1113
      %1146 = vmatprep.subr.mxu0 0.0
      %1147 = vmatpush1.msra.mxu0 %v1114
      %1148 = vmatprep.subr.mxu0 0.0
      %1149 = vmatpush1.msra.mxu0 %v1115
      %1150 = vmatprep.subr.mxu0 0.0
      %1151 = vmatpush1.msra.mxu0 %v1116
      %1152 = vmatprep.subr.mxu0 0.0
      %1153 = vmatpush1.msra.mxu0 %v1117
      %1154 = vmatprep.subr.mxu0 0.0
      %1155 = vmatpush1.msra.mxu0 %v1118
      %1156 = vmatprep.subr.mxu0 0.0
      %1157 = vmatpush1.msra.mxu0 %v1119
      %1158 = vmatprep.subr.mxu0 0.0
      %1159 = vmatpush1.msra.mxu0 %v1120
      %1160 = vmatprep.subr.mxu0 0.0
      %1161 = vmatpush1.msra.mxu0 %v1121
      %1162 = vmatprep.subr.mxu0 0.0
      %1163 = vmatpush1.msra.mxu0 %v1122
      %1164 = vmatprep.subr.mxu0 0.0
      %1165 = vmatpush1.msra.mxu0 %v1123
      %1166 = vmatprep.subr.mxu0 0.0
      %1167 = vmatpush1.msra.mxu0 %v1124
      %1168 = vmatprep.subr.mxu0 0.0
      %1169 = vmatpush1.msra.mxu0 %v1125
      %1170 = vmatprep.subr.mxu0 0.0
      %1171 = vmatpush1.msra.mxu0 %v1126
      %1172 = vmatprep.subr.mxu0 0.0
      %1173 = vmatpush1.msra.mxu0 %v1127
      %1174 = vmatprep.subr.mxu0 0.0
      %1175 = vmatpush1.msra.mxu0 %v1128
      %1176 = vmatprep.subr.mxu0 0.0
      %1177 = vmatpush1.msra.mxu0 %v1129
      %1178 = vmatprep.subr.mxu0 0.0
      %1179 = vmatpush1.msra.mxu0 0.0
      %1180 = vmatprep.subr.mxu0 0.0
      %1181 = vmatpush1.msra.mxu0 0.0
      %1182 = vmatprep.subr.mxu0 0.0
      %1183 = vmatpush1.msra.mxu0 0.0
      %1184 = vmatprep.subr.mxu0 0.0
      %1185 = vmatpush1.msra.mxu0 0.0
      %1186 = vmatprep.subr.mxu0 0.0
      %1187 = vmatpush1.msra.mxu0 0.0
      %1188 = vmatprep.subr.mxu0 0.0
      %1189 = vmatpush1.msra.mxu0 0.0
      %1190 = vmatprep.subr.mxu0 0.0
      %1191 = vmatpush1.msra.mxu0 0.0
      %1192 = vmatprep.subr.mxu0 0.0
      %1193 = vmatpush1.msra.mxu0 0.0
      %1194 = vmatprep.mubr.f32.mxu0 %v342
      %1195 = vmatmul.mubr.f32.gmra.mrb[0].mxu0 %v258
      %v1196 = vpop.f32.mrb[0].mxu0
      %v1197 = vadd.f32 0.0, %v1196
      %v1198 = vpop.f32.mrb[0].mxu0
      %1199 = vmatprep.mubr.f32.mxu0 %v345
      %1200 = vmatmul.mubr.f32.gmra.mrb[0].mxu0 %v260
      %v1201 = vpop.f32.mrb[0].mxu0
      %v1202 = vadd.f32 0.0, %v1201
      %v1203 = vpop.f32.mrb[0].mxu0
      %1204 = vmatprep.mubr.f32.mxu0 %v348
      %1205 = vmatmul.mubr.f32.gmra.mrb[0].mxu0 %v262
      %v1206 = vpop.f32.mrb[0].mxu0
      %v1207 = vadd.f32 0.0, %v1206
      %v1208 = vpop.f32.mrb[0].mxu0
      %1209 = vmatprep.mubr.f32.mxu0 %v351
      %1210 = vmatmul.mubr.f32.gmra.mrb[0].mxu0 %v264
      %v1211 = vpop.f32.mrb[0].mxu0
      %v1212 = vadd.f32 0.0, %v1211
      %v1213 = vpop.f32.mrb[0].mxu0
      %1214 = vmatprep.mubr.f32.mxu0 %v354
      %1215 = vmatmul.mubr.f32.gmra.mrb[0].mxu0 %v266
      %v1216 = vpop.f32.mrb[0].mxu0
      %v1217 = vadd.f32 0.0, %v1216
      %v1218 = vpop.f32.mrb[0].mxu0
      %1219 = vmatprep.mubr.f32.mxu0 %v357
      %1220 = vmatmul.mubr.f32.gmra.mrb[0].mxu0 %v268
      %v1221 = vpop.f32.mrb[0].mxu0
      %v1222 = vadd.f32 0.0, %v1221
      %v1223 = vpop.f32.mrb[0].mxu0
      %1224 = vmatprep.mubr.f32.mxu0 %v360
      %1225 = vmatmul.mubr.f32.gmra.mrb[0].mxu0 %v270
      %v1226 = vpop.f32.mrb[0].mxu0
      %v1227 = vadd.f32 0.0, %v1226
      %v1228 = vpop.f32.mrb[0].mxu0
      %1229 = vmatprep.mubr.f32.mxu0 %v363
      %1230 = vmatmul.mubr.f32.gmra.mrb[0].mxu0 %v272
      %v1231 = vpop.f32.mrb[0].mxu0
      %v1232 = vadd.f32 0.0, %v1231
      %v1233 = vpop.f32.mrb[0].mxu0
      %1234 = vmatprep.mubr.f32.mxu0 %v366
      %1235 = vmatmul.mubr.f32.gmra.mrb[0].mxu0 %v274
      %v1236 = vpop.f32.mrb[0].mxu0
      %v1237 = vadd.f32 0.0, %v1236
      %v1238 = vpop.f32.mrb[0].mxu0
      %1239 = vmatprep.mubr.f32.mxu0 %v369
      %1240 = vmatmul.mubr.f32.gmra.mrb[0].mxu0 %v276
      %v1241 = vpop.f32.mrb[0].mxu0
      %v1242 = vadd.f32 0.0, %v1241
      %v1243 = vpop.f32.mrb[0].mxu0
      %1244 = vmatprep.mubr.f32.mxu0 %v372
      %1245 = vmatmul.mubr.f32.gmra.mrb[0].mxu0 %v278
      %v1246 = vpop.f32.mrb[0].mxu0
      %v1247 = vadd.f32 0.0, %v1246
      %v1248 = vpop.f32.mrb[0].mxu0
      %1249 = vmatprep.mubr.f32.mxu0 %v375
      %1250 = vmatmul.mubr.f32.gmra.mrb[0].mxu0 %v280
      %v1251 = vpop.f32.mrb[0].mxu0
      %v1252 = vadd.f32 0.0, %v1251
      %v1253 = vpop.f32.mrb[0].mxu0
      %1254 = vmatprep.mubr.f32.mxu0 %v378
      %1255 = vmatmul.mubr.f32.gmra.mrb[0].mxu0 %v282
      %v1256 = vpop.f32.mrb[0].mxu0
      %v1257 = vadd.f32 0.0, %v1256
      %v1258 = vpop.f32.mrb[0].mxu0
      %1259 = vmatprep.mubr.f32.mxu0 %v381
      %1260 = vmatmul.mubr.f32.gmra.mrb[0].mxu0 %v284
      %v1261 = vpop.f32.mrb[0].mxu0
      %v1262 = vadd.f32 0.0, %v1261
      %v1263 = vpop.f32.mrb[0].mxu0
      %1264 = vmatprep.mubr.f32.mxu0 %v384
      %1265 = vmatmul.mubr.f32.gmra.mrb[0].mxu0 %v286
      %v1266 = vpop.f32.mrb[0].mxu0
      %v1267 = vadd.f32 0.0, %v1266
      %v1268 = vpop.f32.mrb[0].mxu0
      %1269 = vmatprep.mubr.f32.mxu0 %v387
      %1270 = vmatmul.mubr.f32.gmra.mrb[0].mxu0 %v288
      %v1271 = vpop.f32.mrb[0].mxu0
      %v1272 = vadd.f32 0.0, %v1271
      %v1273 = vpop.f32.mrb[0].mxu0
      %1274 = vmatprep.mubr.f32.mxu0 %v390
      %1275 = vmatmul.mubr.f32.gmra.mrb[0].mxu0 %v290
      %v1276 = vpop.f32.mrb[0].mxu0
      %v1277 = vadd.f32 0.0, %v1276
      %v1278 = vpop.f32.mrb[0].mxu0
      %1279 = vmatprep.mubr.f32.mxu0 %v393
      %1280 = vmatmul.mubr.f32.gmra.mrb[0].mxu0 %v292
      %v1281 = vpop.f32.mrb[0].mxu0
      %v1282 = vadd.f32 0.0, %v1281
      %v1283 = vpop.f32.mrb[0].mxu0
      %1284 = vmatprep.mubr.f32.mxu0 %v396
      %1285 = vmatmul.mubr.f32.gmra.mrb[0].mxu0 %v294
      %v1286 = vpop.f32.mrb[0].mxu0
      %v1287 = vadd.f32 0.0, %v1286
      %v1288 = vpop.f32.mrb[0].mxu0
      %1289 = vmatprep.mubr.f32.mxu0 %v399
      %1290 = vmatmul.mubr.f32.gmra.mrb[0].mxu0 %v296
      %v1291 = vpop.f32.mrb[0].mxu0
      %v1292 = vadd.f32 0.0, %v1291
      %v1293 = vpop.f32.mrb[0].mxu0
      %1294 = vmatprep.mubr.f32.mxu0 %v402
      %1295 = vmatmul.mubr.f32.gmra.mrb[0].mxu0 %v298
      %v1296 = vpop.f32.mrb[0].mxu0
      %v1297 = vadd.f32 0.0, %v1296
      %v1298 = vpop.f32.mrb[0].mxu0
      %1299 = vmatprep.mubr.f32.mxu0 %v405
      %1300 = vmatmul.mubr.f32.gmra.mrb[0].mxu0 %v300
      %v1301 = vpop.f32.mrb[0].mxu0
      %v1302 = vadd.f32 0.0, %v1301
      %v1303 = vpop.f32.mrb[0].mxu0
      %1304 = vmatprep.mubr.f32.mxu0 %v408
      %1305 = vmatmul.mubr.f32.gmra.mrb[0].mxu0 %v302
      %v1306 = vpop.f32.mrb[0].mxu0
      %v1307 = vadd.f32 0.0, %v1306
      %v1308 = vpop.f32.mrb[0].mxu0
      %1309 = vmatprep.mubr.f32.mxu0 %v411
      %1310 = vmatmul.mubr.f32.gmra.mrb[0].mxu0 %v304
      %v1311 = vpop.f32.mrb[0].mxu0
      %v1312 = vadd.f32 0.0, %v1311
      %v1313 = vpop.f32.mrb[0].mxu0
      %1314 = vmatprep.mubr.f32.mxu0 %v414
      %1315 = vmatmul.mubr.f32.gmra.mrb[0].mxu0 %v306
      %v1316 = vpop.f32.mrb[0].mxu0
      %v1317 = vadd.f32 0.0, %v1316
      %v1318 = vpop.f32.mrb[0].mxu0
      %1319 = vmatprep.mubr.f32.mxu0 %v417
      %1320 = vmatmul.mubr.f32.gmra.mrb[0].mxu0 %v308
      %v1321 = vpop.f32.mrb[0].mxu0
      %v1322 = vadd.f32 0.0, %v1321
      %v1323 = vpop.f32.mrb[0].mxu0
      %1324 = vmatprep.mubr.f32.mxu0 %v420
      %1325 = vmatmul.mubr.f32.gmra.mrb[0].mxu0 %v310
      %v1326 = vpop.f32.mrb[0].mxu0
      %v1327 = vadd.f32 0.0, %v1326
      %v1328 = vpop.f32.mrb[0].mxu0
      %1329 = vmatprep.mubr.f32.mxu0 %v423
      %1330 = vmatmul.mubr.f32.gmra.mrb[0].mxu0 %v312
      %v1331 = vpop.f32.mrb[0].mxu0
      %v1332 = vadd.f32 0.0, %v1331
      %v1333 = vpop.f32.mrb[0].mxu0
      %1334 = vmatprep.mubr.f32.mxu0 %v426
      %1335 = vmatmul.mubr.f32.gmra.mrb[0].mxu0 %v314
      %v1336 = vpop.f32.mrb[0].mxu0
      %v1337 = vadd.f32 0.0, %v1336
      %v1338 = vpop.f32.mrb[0].mxu0
      %1339 = vdwg.mxu0
      %v1340 = vmax.f32 %v495, %v729
      %v1341 = vmax.f32 %v500, %v734
      %v1342 = vmax.f32 %v505, %v739
      %v1343 = vmax.f32 %v510, %v744
      %v1344 = vmax.f32 %v515, %v749
      %v1345 = vmax.f32 %v520, %v754
      %v1346 = vmax.f32 %v525, %v759
      %v1347 = vmax.f32 %v530, %v764
      %v1348 = vmax.f32 %v535, %v769
      %v1349 = vmax.f32 %v540, %v774
      %v1350 = vmax.f32 %v545, %v779
      %v1351 = vmax.f32 %v550, %v784
      %v1352 = vmax.f32 %v555, %v789
      %v1353 = vmax.f32 %v560, %v794
      %v1354 = vmax.f32 %v565, %v799
      %v1355 = vmax.f32 %v570, %v804
      %v1356 = vmax.f32 %v575, %v809
      %v1357 = vmax.f32 %v580, %v814
      %v1358 = vmax.f32 %v585, %v819
      %v1359 = vmax.f32 %v590, %v824
      %v1360 = vmax.f32 %v595, %v829
      %v1361 = vmax.f32 %v600, %v834
      %v1362 = vmax.f32 %v605, %v839
      %v1363 = vmax.f32 %v610, %v844
      %v1364 = vmax.f32 %v615, %v849
      %v1365 = vmax.f32 %v620, %v854
      %v1366 = vmax.f32 %v625, %v859
      %v1367 = vmax.f32 %v630, %v864
      %v1368 = vmax.f32 %v635, %v869
      %v1369 = vmax.f32 %v963, %v1197
      %v1370 = vmax.f32 %v968, %v1202
      %v1371 = vmax.f32 %v973, %v1207
      %v1372 = vmax.f32 %v978, %v1212
      %v1373 = vmax.f32 %v983, %v1217
      %v1374 = vmax.f32 %v988, %v1222
      %v1375 = vmax.f32 %v993, %v1227
      %v1376 = vmax.f32 %v998, %v1232
      %v1377 = vmax.f32 %v1003, %v1237
      %v1378 = vmax.f32 %v1008, %v1242
      %v1379 = vmax.f32 %v1013, %v1247
      %v1380 = vmax.f32 %v1018, %v1252
      %v1381 = vmax.f32 %v1023, %v1257
      %v1382 = vmax.f32 %v1028, %v1262
      %v1383 = vmax.f32 %v1033, %v1267
      %v1384 = vmax.f32 %v1038, %v1272
      %v1385 = vmax.f32 %v1043, %v1277
      %v1386 = vmax.f32 %v1048, %v1282
      %v1387 = vmax.f32 %v1053, %v1287
      %v1388 = vmax.f32 %v1058, %v1292
      %v1389 = vmax.f32 %v1063, %v1297
      %v1390 = vmax.f32 %v1068, %v1302
      %v1391 = vmax.f32 %v1073, %v1307
      %v1392 = vmax.f32 %v1078, %v1312
      %v1393 = vmax.f32 %v1083, %v1317
      %v1394 = vmax.f32 %v1088, %v1322
      %v1395 = vmax.f32 %v1093, %v1327
      %v1396 = vmax.f32 %v1098, %v1332
      %v1397 = vmax.f32 %v1103, %v1337
      %v1398 = vmax.f32 %v1340, %v1369
      %v1399 = vmax.f32 %v1341, %v1370
      %v1400 = vmax.f32 %v1342, %v1371
      %v1401 = vmax.f32 %v1343, %v1372
      %v1402 = vmax.f32 %v1344, %v1373
      %v1403 = vmax.f32 %v1345, %v1374
      %v1404 = vmax.f32 %v1346, %v1375
      %v1405 = vmax.f32 %v1347, %v1376
      %v1406 = vmax.f32 %v1348, %v1377
      %v1407 = vmax.f32 %v1349, %v1378
      %v1408 = vmax.f32 %v1350, %v1379
      %v1409 = vmax.f32 %v1351, %v1380
      %v1410 = vmax.f32 %v1352, %v1381
      %v1411 = vmax.f32 %v1353, %v1382
      %v1412 = vmax.f32 %v1354, %v1383
      %v1413 = vmax.f32 %v1355, %v1384
      %v1414 = vmax.f32 %v1356, %v1385
      %v1415 = vmax.f32 %v1357, %v1386
      %v1416 = vmax.f32 %v1358, %v1387
      %v1417 = vmax.f32 %v1359, %v1388
      %v1418 = vmax.f32 %v1360, %v1389
      %v1419 = vmax.f32 %v1361, %v1390
      %v1420 = vmax.f32 %v1362, %v1391
      %v1421 = vmax.f32 %v1363, %v1392
      %v1422 = vmax.f32 %v1364, %v1393
      %v1423 = vmax.f32 %v1365, %v1394
      %v1424 = vmax.f32 %v1366, %v1395
      %v1425 = vmax.f32 %v1367, %v1396
      %v1426 = vmax.f32 %v1368, %v1397
      %v1427 = vld [vmem:[%s5] sm:$0x1]
      %v1429 = vlaneseq
      %v1430 = vshrl.u32 %v1429, 7
      %v1431 = vsub.s32 0, %v1430
      %v1432 = vrot.slane %v1427, %v1431
      %v1434 = vadd.f32 %v1398, %v1432
      %v1435 = vadd.f32 %v1399, %v1432
      %v1436 = vadd.f32 %v1400, %v1432
      %v1437 = vadd.f32 %v1401, %v1432
      %v1438 = vadd.f32 %v1402, %v1432
      %v1439 = vadd.f32 %v1403, %v1432
      %v1440 = vadd.f32 %v1404, %v1432
      %v1441 = vadd.f32 %v1405, %v1432
      %v1442 = vadd.f32 %v1406, %v1432
      %v1443 = vadd.f32 %v1407, %v1432
      %v1444 = vadd.f32 %v1408, %v1432
      %v1445 = vadd.f32 %v1409, %v1432
      %v1446 = vadd.f32 %v1410, %v1432
      %v1447 = vadd.f32 %v1411, %v1432
      %v1448 = vadd.f32 %v1412, %v1432
      %v1449 = vadd.f32 %v1413, %v1432
      %v1450 = vadd.f32 %v1414, %v1432
      %v1451 = vadd.f32 %v1415, %v1432
      %v1452 = vadd.f32 %v1416, %v1432
      %v1453 = vadd.f32 %v1417, %v1432
      %v1454 = vadd.f32 %v1418, %v1432
      %v1455 = vadd.f32 %v1419, %v1432
      %v1456 = vadd.f32 %v1420, %v1432
      %v1457 = vadd.f32 %v1421, %v1432
      %v1458 = vadd.f32 %v1422, %v1432
      %v1459 = vadd.f32 %v1423, %v1432
      %v1460 = vadd.f32 %v1424, %v1432
      %v1461 = vadd.f32 %v1425, %v1432
      %v1462 = vadd.f32 %v1426, %v1432
      %v1463 = vmax.f32 %v1434, 0.0
      %v1464 = vmax.f32 %v1435, 0.0
      %v1465 = vmax.f32 %v1436, 0.0
      %v1466 = vmax.f32 %v1437, 0.0
      %v1467 = vmax.f32 %v1438, 0.0
      %v1468 = vmax.f32 %v1439, 0.0
      %v1469 = vmax.f32 %v1440, 0.0
      %v1470 = vmax.f32 %v1441, 0.0
      %v1471 = vmax.f32 %v1442, 0.0
      %v1472 = vmax.f32 %v1443, 0.0
      %v1473 = vmax.f32 %v1444, 0.0
      %v1474 = vmax.f32 %v1445, 0.0
      %v1475 = vmax.f32 %v1446, 0.0
      %v1476 = vmax.f32 %v1447, 0.0
      %v1477 = vmax.f32 %v1448, 0.0
      %v1478 = vmax.f32 %v1449, 0.0
      %v1479 = vmax.f32 %v1450, 0.0
      %v1480 = vmax.f32 %v1451, 0.0
      %v1481 = vmax.f32 %v1452, 0.0
      %v1482 = vmax.f32 %v1453, 0.0
      %v1483 = vmax.f32 %v1454, 0.0
      %v1484 = vmax.f32 %v1455, 0.0
      %v1485 = vmax.f32 %v1456, 0.0
      %v1486 = vmax.f32 %v1457, 0.0
      %v1487 = vmax.f32 %v1458, 0.0
      %v1488 = vmax.f32 %v1459, 0.0
      %v1489 = vmax.f32 %v1460, 0.0
      %v1490 = vmax.f32 %v1461, 0.0
      %v1491 = vmax.f32 %v1462, 0.0
      %vm1492 = vcmask 195584
      %1493 = vst.msk [vmem:[%s256] sm:$0xff] %vm1492, %v1463
      %1494 = vst.msk [vmem:[%s256 + $0x8] sm:$0xff] %vm1492, %v1464
      %1495 = vst.msk [vmem:[%s256 + $0x10] sm:$0xff] %vm1492, %v1465
      %1496 = vst.msk [vmem:[%s256 + $0x18] sm:$0xff] %vm1492, %v1466
      %1497 = vst.msk [vmem:[%s256 + $0x20] sm:$0xff] %vm1492, %v1467
      %1498 = vst.msk [vmem:[%s256 + $0x28] sm:$0xff] %vm1492, %v1468
      %1499 = vst.msk [vmem:[%s256 + $0x30] sm:$0xff] %vm1492, %v1469
      %1500 = vst.msk [vmem:[%s256 + $0x38] sm:$0xff] %vm1492, %v1470
      %1501 = vst.msk [vmem:[%s256 + $0x40] sm:$0xff] %vm1492, %v1471
      %1502 = vst.msk [vmem:[%s256 + $0x48] sm:$0xff] %vm1492, %v1472
      %1503 = vst.msk [vmem:[%s256 + $0x50] sm:$0xff] %vm1492, %v1473
      %1504 = vst.msk [vmem:[%s256 + $0x58] sm:$0xff] %vm1492, %v1474
      %1505 = vst.msk [vmem:[%s256 + $0x60] sm:$0xff] %vm1492, %v1475
      %1506 = vst.msk [vmem:[%s256 + $0x68] sm:$0xff] %vm1492, %v1476
      %1507 = vst.msk [vmem:[%s256 + $0x70] sm:$0xff] %vm1492, %v1477
      %1508 = vst.msk [vmem:[%s256 + $0x78] sm:$0xff] %vm1492, %v1478
      %1509 = vst.msk [vmem:[%s256 + $0x80] sm:$0xff] %vm1492, %v1479
      %1510 = vst.msk [vmem:[%s256 + $0x88] sm:$0xff] %vm1492, %v1480
      %1511 = vst.msk [vmem:[%s256 + $0x90] sm:$0xff] %vm1492, %v1481
      %1512 = vst.msk [vmem:[%s256 + $0x98] sm:$0xff] %vm1492, %v1482
      %1513 = vst.msk [vmem:[%s256 + $0xa0] sm:$0xff] %vm1492, %v1483
      %1514 = vst.msk [vmem:[%s256 + $0xa8] sm:$0xff] %vm1492, %v1484
      %1515 = vst.msk [vmem:[%s256 + $0xb0] sm:$0xff] %vm1492, %v1485
      %1516 = vst.msk [vmem:[%s256 + $0xb8] sm:$0xff] %vm1492, %v1486
      %1517 = vst.msk [vmem:[%s256 + $0xc0] sm:$0xff] %vm1492, %v1487
      %1518 = vst.msk [vmem:[%s256 + $0xc8] sm:$0xff] %vm1492, %v1488
      %1519 = vst.msk [vmem:[%s256 + $0xd0] sm:$0xff] %vm1492, %v1489
      %1520 = vst.msk [vmem:[%s256 + $0xd8] sm:$0xff] %vm1492, %v1490
      %1521 = vst.msk [vmem:[%s256 + $0xe0] sm:$0xff] %vm1492, %v1491
      %s1522 = smul.u32 29, %s17
      %p1523 = scmp.lt.s32.totalorder %s1522, 231
      %s1524 = scalar_select %p1523, %s1522, 231
      %s1525 = smul.addr %s1524, 8
      %s1526 = scalar_lea.vmem %s6, %s1525
      // Predicated region
      $region45: #{convnet_forward.6} parent=43 // pred_check
        %p1527 = pneg %p166
      $region46: #{convnet_forward.6} parent=43 // pred_check_branch
        %1529 = sbr.rel (%p1527) target = $region48
      $region47: #{convnet_forward.6} parent=43 // pred_region
        %s1530 = smul.u32 29, %s17
      $region48: #{convnet_forward.6} parent=43 // pred_fallthru
        _
    $region44: #{convnet_forward.6} parent=5 // pred_fallthru
      _
    %p1531 = scmp.le.s32.totalorder 2, %s12
    // Predicated region
    $region49: #{convnet_forward.6} parent=5 // pred_check
      %p1532 = pneg %p1531
    $region50: #{convnet_forward.6} parent=5 // pred_check_branch
      %1534 = sbr.rel (%p1532) target = $region52
    $region51: #{convnet_forward.6} parent=5 // pred_region
      %s1535 = ssub.s32 %s12, 2
      // Predicated region
      $region53: #{convnet_forward.6} parent=51 // pred_check
        %p1536 = pneg %p172
      $region54: #{convnet_forward.6} parent=51 // pred_check_branch
        %1538 = sbr.rel (%p1536) target = $region56
      $region55: #{convnet_forward.6} parent=51 // pred_region
        %s1539 = smul.u32 29, %s18
        %p1540 = scmp.lt.s32.totalorder %s1539, 231
        %s1541 = scalar_select %p1540, %s1539, 231
        %s1542 = smul.addr %s1541, 8
        %s1543 = scalar_lea.vmem %s6, %s1542
      $region56: #{convnet_forward.6} parent=51 // pred_fallthru
        _
    $region52: #{convnet_forward.6} parent=5 // pred_fallthru
      _
  $region6: #{convnet_forward.6} parent=0 // loop_footer
    %s16 = sadd.s32 1, %s12
  $region7: #{convnet_forward.6} parent=0 // loop_footer_branch
    %11 = sbr.rel target = $region3
  $region8: #{convnet_forward.6} parent=0 // loop_exit
    _

// kernel: convnet_forward.7
$region0: #{convnet_forward.7}
  #allocation0 [shape = 'u32[]', space=smem, size = 0x4, offset = 0x4, fixed_abs, tag = 'smem constant byte address 0x4 - core index']
  #allocation1 [shape = 'u32[144,128]{1,0:T(1,128)}', space=vmem, size = 0x12000, scoped, tag = 'internal scratch']
  %s0 = inlined_call_operand.vmem [shape: f32[1600,216], index: 0, kind: input, shape index: {}]
  %s1 = inlined_call_operand.vmem [shape: f32[216,48], index: 1, kind: input, shape index: {}]
  %s2 = inlined_call_operand.vmem [shape: f32[1,48], index: 2, kind: input, shape index: {}]
  %s3 = inlined_call_operand.vmem [shape: f32[1600,48], index: 3, kind: output, shape index: {}]
  %s4 = sld [smem:[#allocation0]]
  $region45: #{convnet_forward.7} parent=0
    _
  %s6 = ssub.s32 1, %s4
  %s7 = scalar_select 0, %s6, %s4
  loop: start=0, step=1, limit=10
  $region2: #{convnet_forward.7} parent=0 // loop_pre_header
    _
  $region3: #{convnet_forward.7} parent=0 // loop_header
    %s9 = sphi 0, %s13
    %p10 = scmp.ge.s32.totalorder %s9, 10
    %s19 = sphi 0, %s21
    %s22 = sphi 0, %s19
    %s23 = sphi 0, %s22
    %s39 = sphi 0, %s23
    %s43 = sphi 0, %s43
    %s45 = sphi 0, %s43
    %s46 = sphi 0, %s45
    %s60 = sphi 0, %s46
    %s64 = sphi 0, %s64
    %s66 = sphi 0, %s64
    %s67 = sphi 0, %s66
    %s81 = sphi 0, %s67
    %s87 = sphi 0, %s89
    %s90 = sphi 0, %s87
    %s91 = sphi 0, %s90
    %s107 = sphi 0, %s91
  $region4: #{convnet_forward.7} parent=0 // loop_header_branch
    %12 = sbr.rel (%p10) target = $region8
  $region5: #{convnet_forward.7} parent=0 // loop_body
    %s14 = ssub.s32 %s9, 1
    %s15 = ssub.s32 %s9, 2
    %s16 = sadd.s32 %s9, 1
    %s17 = ssub.s32 %s9, %s16
    %p18 = scmp.eq.s32.totalorder %s17, 0
    %s20 = sadd.s32 %s19, 1
    %s21 = scalar_select %p18, %s19, %s20
    %p24 = pneg %p18
    %p25 = scmp.eq.s32.totalorder %s9, 7
    %p26 = por %p24, %p25
    %p27 = scmp.ne.s32.totalorder %s19, %s22
    %p28 = scmp.eq.s32.totalorder %s9, 0
    %p29 = por %p27, %p28
    %p30 = scmp.ne.s32.totalorder %s19, %s22
    %p31 = scmp.eq.s32.totalorder %s14, 7
    %p32 = por %p30, %p31
    %p33 = scmp.ne.s32.totalorder %s22, %s23
    %p34 = scmp.eq.s32.totalorder %s14, 0
    %p35 = por %p33, %p34
    %p36 = scmp.ne.s32.totalorder %s22, %s23
    %p37 = scmp.eq.s32.totalorder %s15, 7
    %p38 = por %p36, %p37
    %p40 = scmp.ne.s32.totalorder %s23, %s39
    %p41 = scmp.eq.s32.totalorder %s15, 0
    %p42 = por %p40, %p41
    %s44 = sadd.s32 %s43, 1
    %p47 = scmp.eq.s32.totalorder %s9, 7
    %p48 = scmp.ne.s32.totalorder %s43, %s45
    %p49 = scmp.eq.s32.totalorder %s9, 0
    %p50 = por %p48, %p49
    %p51 = scmp.ne.s32.totalorder %s43, %s45
    %p52 = scmp.eq.s32.totalorder %s14, 7
    %p53 = por %p51, %p52
    %p54 = scmp.ne.s32.totalorder %s45, %s46
    %p55 = scmp.eq.s32.totalorder %s14, 0
    %p56 = por %p54, %p55
    %p57 = scmp.ne.s32.totalorder %s45, %s46
    %p58 = scmp.eq.s32.totalorder %s15, 7
    %p59 = por %p57, %p58
    %p61 = scmp.ne.s32.totalorder %s46, %s60
    %p62 = scmp.eq.s32.totalorder %s15, 0
    %p63 = por %p61, %p62
    %s65 = sadd.s32 %s64, 1
    %p68 = scmp.eq.s32.totalorder %s9, 7
    %p69 = scmp.ne.s32.totalorder %s64, %s66
    %p70 = scmp.eq.s32.totalorder %s9, 0
    %p71 = por %p69, %p70
    %p72 = scmp.ne.s32.totalorder %s64, %s66
    %p73 = scmp.eq.s32.totalorder %s14, 7
    %p74 = por %p72, %p73
    %p75 = scmp.ne.s32.totalorder %s66, %s67
    %p76 = scmp.eq.s32.totalorder %s14, 0
    %p77 = por %p75, %p76
    %p78 = scmp.ne.s32.totalorder %s66, %s67
    %p79 = scmp.eq.s32.totalorder %s15, 7
    %p80 = por %p78, %p79
    %p82 = scmp.ne.s32.totalorder %s67, %s81
    %p83 = scmp.eq.s32.totalorder %s15, 0
    %p84 = por %p82, %p83
    %s85 = ssub.s32 %s9, %s16
    %p86 = scmp.eq.s32.totalorder %s85, 0
    %s88 = sadd.s32 %s87, 1
    %s89 = scalar_select %p86, %s87, %s88
    %p92 = pneg %p86
    %p93 = scmp.eq.s32.totalorder %s9, 7
    %p94 = por %p92, %p93
    %p95 = scmp.ne.s32.totalorder %s87, %s90
    %p96 = scmp.eq.s32.totalorder %s9, 0
    %p97 = por %p95, %p96
    %p98 = scmp.ne.s32.totalorder %s87, %s90
    %p99 = scmp.eq.s32.totalorder %s14, 7
    %p100 = por %p98, %p99
    %p101 = scmp.ne.s32.totalorder %s90, %s91
    %p102 = scmp.eq.s32.totalorder %s14, 0
    %p103 = por %p101, %p102
    %p104 = scmp.ne.s32.totalorder %s90, %s91
    %p105 = scmp.eq.s32.totalorder %s15, 7
    %p106 = por %p104, %p105
    %p108 = scmp.ne.s32.totalorder %s91, %s107
    %p109 = scmp.eq.s32.totalorder %s15, 0
    %p110 = por %p108, %p109
    %p111 = scmp.le.s32.totalorder 1, %s9
    %p112 = scmp.lt.s32.totalorder %s9, 9
    %p113 = pnand %p111, %p112
    %p114 = pneg %p113
    // Predicated region
    $region9: #{convnet_forward.7} parent=5 // pred_check
      _
    $region10: #{convnet_forward.7} parent=5 // pred_check_branch
      %116 = sbr.rel (%p113) target = $region12
    $region11: #{convnet_forward.7} parent=5 // pred_region
      %s117 = ssub.s32 %s9, 1
      // Predicated region
      $region13: #{convnet_forward.7} parent=11 // pred_check
        %p118 = pneg %p56
      $region14: #{convnet_forward.7} parent=11 // pred_check_branch
        %120 = sbr.rel (%p118) target = $region16
      $region15: #{convnet_forward.7} parent=11 // pred_region
        _
      $region16: #{convnet_forward.7} parent=11 // pred_fallthru
        _
      // Predicated region
      $region17: #{convnet_forward.7} parent=11 // pred_check
        %p121 = pneg %p77
      $region18: #{convnet_forward.7} parent=11 // pred_check_branch
        %123 = sbr.rel (%p121) target = $region20
      $region19: #{convnet_forward.7} parent=11 // pred_region
        _
      $region20: #{convnet_forward.7} parent=11 // pred_fallthru
        _
    $region12: #{convnet_forward.7} parent=5 // pred_fallthru
      _
    %p124 = scmp.lt.s32.totalorder %s9, 8
    // Predicated region
    $region21: #{convnet_forward.7} parent=5 // pred_check
      %p125 = pneg %p124
    $region22: #{convnet_forward.7} parent=5 // pred_check_branch
      %127 = sbr.rel (%p125) target = $region24
    $region23: #{convnet_forward.7} parent=5 // pred_region
      // Predicated region
      $region25: #{convnet_forward.7} parent=23 // pred_check
        %p128 = pneg %p29
      $region26: #{convnet_forward.7} parent=23 // pred_check_branch
        %130 = sbr.rel (%p128) target = $region28
      $region27: #{convnet_forward.7} parent=23 // pred_region
        %s131 = smul.u32 25, %s9
        %p132 = scmp.lt.s32.totalorder %s131, 199
        %s133 = scalar_select %p132, %s131, 199
        %s134 = smul.addr %s133, 2
        %s135 = smul.addr %s134, 8
        %s136 = scalar_lea.vmem %s0, %s135
        %s137 = smul.u32 25, %s9
      $region28: #{convnet_forward.7} parent=23 // pred_fallthru
        _
    $region24: #{convnet_forward.7} parent=5 // pred_fallthru
      _
    %p138 = scmp.le.s32.totalorder 1, %s9
    %p139 = scmp.lt.s32.totalorder %s9, 9
    %p140 = pnand %p138, %p139
    %p141 = pneg %p140
    // Predicated region
    $region29: #{convnet_forward.7} parent=5 // pred_check
      _
    $region30: #{convnet_forward.7} parent=5 // pred_check_branch
      %143 = sbr.rel (%p140) target = $region32
    $region31: #{convnet_forward.7} parent=5 // pred_region
      %s144 = ssub.s32 %s9, 1
      %s145 = smul.u32 25, %s14
      %p146 = scmp.lt.s32.totalorder %s145, 199
      %s147 = scalar_select %p146, %s145, 199
      %s148 = smul.addr %s147, 2
      %s149 = smul.addr %s148, 8
      %s150 = scalar_lea.vmem %s0, %s149
      %p151 = pneg %p35
      %p152 = pneg %p32
      %p153 = pneg %p56
      %p154 = pneg %p53
      %p155 = pneg %p77
      %p156 = pneg %p74
      %p157 = pneg %p103
      %p158 = pneg %p100
      %s159 = smul.u32 25, %s14
      %p160 = scmp.lt.s32.totalorder %s159, 199
      %s161 = scalar_select %p160, %s159, 199
      %s162 = smul.addr %s161, 8
      %s163 = scalar_lea.vmem %s3, %s162
      %s164 = smul.u32 25, %s14
      %p165 = scmp.lt.s32.totalorder %s164, 199
      %s166 = scalar_select %p165, %s164, 199
      %s167 = smul.addr %s166, 2
      %s168 = smul.addr %s167, 8
      %s169 = scalar_lea.vmem %s0, %s168
      %s170 = smul.u32 25, %s14
      %s171 = smul.u32 25, %s14
      %p172 = scmp.lt.s32.totalorder %s171, 199
      %s173 = scalar_select %p172, %s171, 199
      %s174 = smul.addr %s173, 8
      %s175 = scalar_lea.vmem %s3, %s174
      %s176 = smul.u32 25, %s14
      %v177 = vld [vmem:[%s169] sm:$0xff]
      %v178 = vld [vmem:[%s169 + $0x8] sm:$0xff]
      %v179 = vld [vmem:[%s169 + $0x10] sm:$0xff]
      %v180 = vld [vmem:[%s169 + $0x18] sm:$0xff]
      %v181 = vld [vmem:[%s169 + $0x20] sm:$0xff]
      %v182 = vld [vmem:[%s169 + $0x28] sm:$0xff]
      %v183 = vld [vmem:[%s169 + $0x30] sm:$0xff]
      %v184 = vld [vmem:[%s169 + $0x38] sm:$0xff]
      %v185 = vld [vmem:[%s169 + $0x40] sm:$0xff]
      %v186 = vld [vmem:[%s169 + $0x48] sm:$0xff]
      %v187 = vld [vmem:[%s169 + $0x50] sm:$0xff]
      %v188 = vld [vmem:[%s169 + $0x58] sm:$0xff]
      %v189 = vld [vmem:[%s169 + $0x60] sm:$0xff]
      %v190 = vld [vmem:[%s169 + $0x68] sm:$0xff]
      %v191 = vld [vmem:[%s169 + $0x70] sm:$0xff]
      %v192 = vld [vmem:[%s169 + $0x78] sm:$0xff]
      %v193 = vld [vmem:[%s169 + $0x80] sm:$0xff]
      %v194 = vld [vmem:[%s169 + $0x88] sm:$0xff]
      %v195 = vld [vmem:[%s169 + $0x90] sm:$0xff]
      %v196 = vld [vmem:[%s169 + $0x98] sm:$0xff]
      %v197 = vld [vmem:[%s169 + $0xa0] sm:$0xff]
      %v198 = vld [vmem:[%s169 + $0xa8] sm:$0xff]
      %v199 = vld [vmem:[%s169 + $0xb0] sm:$0xff]
      %v200 = vld [vmem:[%s169 + $0xb8] sm:$0xff]
      %v201 = vld [vmem:[%s169 + $0xc0] sm:$0xff]
      %v202 = vld [vmem:[%s169 + $0xc8] sm:$0xff]
      %v203 = vld [vmem:[%s169 + $0xd0] sm:$0xff]
      %v204 = vld [vmem:[%s169 + $0xd8] sm:$0xff]
      %v205 = vld [vmem:[%s169 + $0xe0] sm:$0xff]
      %v206 = vld [vmem:[%s169 + $0xe8] sm:$0xff]
      %v207 = vld [vmem:[%s169 + $0xf0] sm:$0xff]
      %v208 = vld [vmem:[%s169 + $0xf8] sm:$0xff]
      %v209 = vld [vmem:[%s169 + $0x100] sm:$0xff]
      %v210 = vld [vmem:[%s169 + $0x108] sm:$0xff]
      %v211 = vld [vmem:[%s169 + $0x110] sm:$0xff]
      %v212 = vld [vmem:[%s169 + $0x118] sm:$0xff]
      %v213 = vld [vmem:[%s169 + $0x120] sm:$0xff]
      %v214 = vld [vmem:[%s169 + $0x128] sm:$0xff]
      %v215 = vld [vmem:[%s169 + $0x130] sm:$0xff]
      %v216 = vld [vmem:[%s169 + $0x138] sm:$0xff]
      %v217 = vld [vmem:[%s169 + $0x140] sm:$0xff]
      %v218 = vld [vmem:[%s169 + $0x148] sm:$0xff]
      %v219 = vld [vmem:[%s169 + $0x150] sm:$0xff]
      %v220 = vld [vmem:[%s169 + $0x158] sm:$0xff]
      %v221 = vld [vmem:[%s169 + $0x160] sm:$0xff]
      %v222 = vld [vmem:[%s169 + $0x168] sm:$0xff]
      %v223 = vld [vmem:[%s169 + $0x170] sm:$0xff]
      %v224 = vld [vmem:[%s169 + $0x178] sm:$0xff]
      %v225 = vld [vmem:[%s169 + $0x180] sm:$0xff]
      %v226 = vld [vmem:[%s169 + $0x188] sm:$0xff]
      %v227 = vld [vmem:[%s1] sm:$0xff]
      %v228 = vld [vmem:[%s1 + $0x8] sm:$0xff]
      %v229 = vld [vmem:[%s1 + $0x10] sm:$0xff]
      %v230 = vld [vmem:[%s1 + $0x18] sm:$0xff]
      %v231 = vld [vmem:[%s1 + $0x20] sm:$0xff]
      %v232 = vld [vmem:[%s1 + $0x28] sm:$0xff]
      %v233 = vld [vmem:[%s1 + $0x30] sm:$0xff]
      %v234 = vld [vmem:[%s1 + $0x38] sm:$0xff]
      %v235 = vld [vmem:[%s1 + $0x40] sm:$0xff]
      %v236 = vld [vmem:[%s1 + $0x48] sm:$0xff]
      %v237 = vld [vmem:[%s1 + $0x50] sm:$0xff]
      %v238 = vld [vmem:[%s1 + $0x58] sm:$0xff]
      %v239 = vld [vmem:[%s1 + $0x60] sm:$0xff]
      %v240 = vld [vmem:[%s1 + $0x68] sm:$0xff]
      %v241 = vld [vmem:[%s1 + $0x70] sm:$0xff]
      %v242 = vld [vmem:[%s1 + $0x78] sm:$0xff]
      %v243 = vld [vmem:[%s1 + $0x80] sm:$0xff]
      %v244 = vld [vmem:[%s1 + $0x88] sm:$0xff]
      %v245 = vld [vmem:[%s1 + $0x90] sm:$0xff]
      %v246 = vld [vmem:[%s1 + $0x98] sm:$0xff]
      %v247 = vld [vmem:[%s1 + $0xa0] sm:$0xff]
      %v248 = vld [vmem:[%s1 + $0xa8] sm:$0xff]
      %v249 = vld [vmem:[%s1 + $0xb0] sm:$0xff]
      %v250 = vld [vmem:[%s1 + $0xb8] sm:$0xff]
      %v251 = vld [vmem:[%s1 + $0xc0] sm:$0xff]
      %v252 = vld [vmem:[%s1 + $0xc8] sm:$0xff]
      %v253 = vld [vmem:[%s1 + $0xd0] sm:$0xff]
      %v254 = vld [vmem:[%s2] sm:$0x1]
      %v256 = vlaneseq
      %v257 = vshrl.u32 %v256, 7
      %v258 = vsub.s32 0, %v257
      %v259 = vrot.slane %v254, %v258
      %vm261 = vcmask 719872
      %v263 = vsel %vm261, %v178, 0
      %v266 = vsel %vm261, %v180, 0
      %v269 = vsel %vm261, %v182, 0
      %v272 = vsel %vm261, %v184, 0
      %v275 = vsel %vm261, %v186, 0
      %v278 = vsel %vm261, %v188, 0
      %v281 = vsel %vm261, %v190, 0
      %v284 = vsel %vm261, %v192, 0
      %v287 = vsel %vm261, %v194, 0
      %v290 = vsel %vm261, %v196, 0
      %v293 = vsel %vm261, %v198, 0
      %v296 = vsel %vm261, %v200, 0
      %v299 = vsel %vm261, %v202, 0
      %v302 = vsel %vm261, %v204, 0
      %v305 = vsel %vm261, %v206, 0
      %v308 = vsel %vm261, %v208, 0
      %v311 = vsel %vm261, %v210, 0
      %v314 = vsel %vm261, %v212, 0
      %v317 = vsel %vm261, %v214, 0
      %v320 = vsel %vm261, %v216, 0
      %v323 = vsel %vm261, %v218, 0
      %v326 = vsel %vm261, %v220, 0
      %v329 = vsel %vm261, %v222, 0
      %v332 = vsel %vm261, %v224, 0
      %v335 = vsel %vm261, %v226, 0
      %337 = vmatprep.subr.mxu0 0.0
      %338 = vmatpush1.msra.mxu0 %v227
      %339 = vmatprep.subr.mxu0 0.0
      %340 = vmatpush1.msra.mxu0 %v228
      %341 = vmatprep.subr.mxu0 0.0
      %342 = vmatpush1.msra.mxu0 %v229
      %343 = vmatprep.subr.mxu0 0.0
      %344 = vmatpush1.msra.mxu0 %v230
      %345 = vmatprep.subr.mxu0 0.0
      %346 = vmatpush1.msra.mxu0 %v231
      %347 = vmatprep.subr.mxu0 0.0
      %348 = vmatpush1.msra.mxu0 %v232
      %349 = vmatprep.subr.mxu0 0.0
      %350 = vmatpush1.msra.mxu0 %v233
      %351 = vmatprep.subr.mxu0 0.0
      %352 = vmatpush1.msra.mxu0 %v234
      %353 = vmatprep.subr.mxu0 0.0
      %354 = vmatpush1.msra.mxu0 %v235
      %355 = vmatprep.subr.mxu0 0.0
      %356 = vmatpush1.msra.mxu0 %v236
      %357 = vmatprep.subr.mxu0 0.0
      %358 = vmatpush1.msra.mxu0 %v237
      %359 = vmatprep.subr.mxu0 0.0
      %360 = vmatpush1.msra.mxu0 %v238
      %361 = vmatprep.subr.mxu0 0.0
      %362 = vmatpush1.msra.mxu0 %v239
      %363 = vmatprep.subr.mxu0 0.0
      %364 = vmatpush1.msra.mxu0 %v240
      %365 = vmatprep.subr.mxu0 0.0
      %366 = vmatpush1.msra.mxu0 %v241
      %367 = vmatprep.subr.mxu0 0.0
      %368 = vmatpush1.msra.mxu0 %v242
      %369 = vmatprep.subr.mxu0 0.0
      %370 = vmatpush1.msra.mxu0 %v243
      %371 = vmatprep.subr.mxu0 0.0
      %372 = vmatpush1.msra.mxu0 %v244
      %373 = vmatprep.subr.mxu0 0.0
      %374 = vmatpush1.msra.mxu0 %v245
      %375 = vmatprep.subr.mxu0 0.0
      %376 = vmatpush1.msra.mxu0 %v246
      %377 = vmatprep.subr.mxu0 0.0
      %378 = vmatpush1.msra.mxu0 %v247
      %379 = vmatprep.subr.mxu0 0.0
      %380 = vmatpush1.msra.mxu0 %v248
      %381 = vmatprep.subr.mxu0 0.0
      %382 = vmatpush1.msra.mxu0 %v249
      %383 = vmatprep.subr.mxu0 0.0
      %384 = vmatpush1.msra.mxu0 %v250
      %385 = vmatprep.subr.mxu0 0.0
      %386 = vmatpush1.msra.mxu0 %v251
      %387 = vmatprep.subr.mxu0 0.0
      %388 = vmatpush1.msra.mxu0 %v252
      %389 = vmatprep.subr.mxu0 0.0
      %390 = vmatpush1.msra.mxu0 %v253
      %391 = vmatprep.subr.mxu0 0.0
      %392 = vmatpush1.msra.mxu0 0.0
      %393 = vmatprep.subr.mxu0 0.0
      %394 = vmatpush1.msra.mxu0 0.0
      %395 = vmatprep.subr.mxu0 0.0
      %396 = vmatpush1.msra.mxu0 0.0
      %397 = vmatprep.subr.mxu0 0.0
      %398 = vmatpush1.msra.mxu0 0.0
      %399 = vmatprep.subr.mxu0 0.0
      %400 = vmatpush1.msra.mxu0 0.0
      %401 = vmatprep.mubr.f32.mxu0 %v263
      %402 = vmatmul.mubr.f32.gmra.mrb[0].mxu0 %v177
      %v403 = vpop.f32.mrb[0].mxu0
      %v404 = vadd.f32 %v259, %v403
      %v405 = vpop.f32.mrb[0].mxu0
      %406 = vmatprep.mubr.f32.mxu0 %v266
      %407 = vmatmul.mubr.f32.gmra.mrb[0].mxu0 %v179
      %v408 = vpop.f32.mrb[0].mxu0
      %v409 = vadd.f32 %v259, %v408
      %v410 = vpop.f32.mrb[0].mxu0
      %411 = vmatprep.mubr.f32.mxu0 %v269
      %412 = vmatmul.mubr.f32.gmra.mrb[0].mxu0 %v181
      %v413 = vpop.f32.mrb[0].mxu0
      %v414 = vadd.f32 %v259, %v413
      %v415 = vpop.f32.mrb[0].mxu0
      %416 = vmatprep.mubr.f32.mxu0 %v272
      %417 = vmatmul.mubr.f32.gmra.mrb[0].mxu0 %v183
      %v418 = vpop.f32.mrb[0].mxu0
      %v419 = vadd.f32 %v259, %v418
      %v420 = vpop.f32.mrb[0].mxu0
      %421 = vmatprep.mubr.f32.mxu0 %v275
      %422 = vmatmul.mubr.f32.gmra.mrb[0].mxu0 %v185
      %v423 = vpop.f32.mrb[0].mxu0
      %v424 = vadd.f32 %v259, %v423
      %v425 = vpop.f32.mrb[0].mxu0
      %426 = vmatprep.mubr.f32.mxu0 %v278
      %427 = vmatmul.mubr.f32.gmra.mrb[0].mxu0 %v187
      %v428 = vpop.f32.mrb[0].mxu0
      %v429 = vadd.f32 %v259, %v428
      %v430 = vpop.f32.mrb[0].mxu0
      %431 = vmatprep.mubr.f32.mxu0 %v281
      %432 = vmatmul.mubr.f32.gmra.mrb[0].mxu0 %v189
      %v433 = vpop.f32.mrb[0].mxu0
      %v434 = vadd.f32 %v259, %v433
      %v435 = vpop.f32.mrb[0].mxu0
      %436 = vmatprep.mubr.f32.mxu0 %v284
      %437 = vmatmul.mubr.f32.gmra.mrb[0].mxu0 %v191
      %v438 = vpop.f32.mrb[0].mxu0
      %v439 = vadd.f32 %v259, %v438
      %v440 = vpop.f32.mrb[0].mxu0
      %441 = vmatprep.mubr.f32.mxu0 %v287
      %442 = vmatmul.mubr.f32.gmra.mrb[0].mxu0 %v193
      %v443 = vpop.f32.mrb[0].mxu0
      %v444 = vadd.f32 %v259, %v443
      %v445 = vpop.f32.mrb[0].mxu0
      %446 = vmatprep.mubr.f32.mxu0 %v290
      %447 = vmatmul.mubr.f32.gmra.mrb[0].mxu0 %v195
      %v448 = vpop.f32.mrb[0].mxu0
      %v449 = vadd.f32 %v259, %v448
      %v450 = vpop.f32.mrb[0].mxu0
      %451 = vmatprep.mubr.f32.mxu0 %v293
      %452 = vmatmul.mubr.f32.gmra.mrb[0].mxu0 %v197
      %v453 = vpop.f32.mrb[0].mxu0
      %v454 = vadd.f32 %v259, %v453
      %v455 = vpop.f32.mrb[0].mxu0
      %456 = vmatprep.mubr.f32.mxu0 %v296
      %457 = vmatmul.mubr.f32.gmra.mrb[0].mxu0 %v199
      %v458 = vpop.f32.mrb[0].mxu0
      %v459 = vadd.f32 %v259, %v458
      %v460 = vpop.f32.mrb[0].mxu0
      %461 = vmatprep.mubr.f32.mxu0 %v299
      %462 = vmatmul.mubr.f32.gmra.mrb[0].mxu0 %v201
      %v463 = vpop.f32.mrb[0].mxu0
      %v464 = vadd.f32 %v259, %v463
      %v465 = vpop.f32.mrb[0].mxu0
      %466 = vmatprep.mubr.f32.mxu0 %v302
      %467 = vmatmul.mubr.f32.gmra.mrb[0].mxu0 %v203
      %v468 = vpop.f32.mrb[0].mxu0
      %v469 = vadd.f32 %v259, %v468
      %v470 = vpop.f32.mrb[0].mxu0
      %471 = vmatprep.mubr.f32.mxu0 %v305
      %472 = vmatmul.mubr.f32.gmra.mrb[0].mxu0 %v205
      %v473 = vpop.f32.mrb[0].mxu0
      %v474 = vadd.f32 %v259, %v473
      %v475 = vpop.f32.mrb[0].mxu0
      %476 = vmatprep.mubr.f32.mxu0 %v308
      %477 = vmatmul.mubr.f32.gmra.mrb[0].mxu0 %v207
      %v478 = vpop.f32.mrb[0].mxu0
      %v479 = vadd.f32 %v259, %v478
      %v480 = vpop.f32.mrb[0].mxu0
      %481 = vmatprep.mubr.f32.mxu0 %v311
      %482 = vmatmul.mubr.f32.gmra.mrb[0].mxu0 %v209
      %v483 = vpop.f32.mrb[0].mxu0
      %v484 = vadd.f32 %v259, %v483
      %v485 = vpop.f32.mrb[0].mxu0
      %486 = vmatprep.mubr.f32.mxu0 %v314
      %487 = vmatmul.mubr.f32.gmra.mrb[0].mxu0 %v211
      %v488 = vpop.f32.mrb[0].mxu0
      %v489 = vadd.f32 %v259, %v488
      %v490 = vpop.f32.mrb[0].mxu0
      %491 = vmatprep.mubr.f32.mxu0 %v317
      %492 = vmatmul.mubr.f32.gmra.mrb[0].mxu0 %v213
      %v493 = vpop.f32.mrb[0].mxu0
      %v494 = vadd.f32 %v259, %v493
      %v495 = vpop.f32.mrb[0].mxu0
      %496 = vmatprep.mubr.f32.mxu0 %v320
      %497 = vmatmul.mubr.f32.gmra.mrb[0].mxu0 %v215
      %v498 = vpop.f32.mrb[0].mxu0
      %v499 = vadd.f32 %v259, %v498
      %v500 = vpop.f32.mrb[0].mxu0
      %501 = vmatprep.mubr.f32.mxu0 %v323
      %502 = vmatmul.mubr.f32.gmra.mrb[0].mxu0 %v217
      %v503 = vpop.f32.mrb[0].mxu0
      %v504 = vadd.f32 %v259, %v503
      %v505 = vpop.f32.mrb[0].mxu0
      %506 = vmatprep.mubr.f32.mxu0 %v326
      %507 = vmatmul.mubr.f32.gmra.mrb[0].mxu0 %v219
      %v508 = vpop.f32.mrb[0].mxu0
      %v509 = vadd.f32 %v259, %v508
      %v510 = vpop.f32.mrb[0].mxu0
      %511 = vmatprep.mubr.f32.mxu0 %v329
      %512 = vmatmul.mubr.f32.gmra.mrb[0].mxu0 %v221
      %v513 = vpop.f32.mrb[0].mxu0
      %v514 = vadd.f32 %v259, %v513
      %v515 = vpop.f32.mrb[0].mxu0
      %516 = vmatprep.mubr.f32.mxu0 %v332
      %517 = vmatmul.mubr.f32.gmra.mrb[0].mxu0 %v223
      %v518 = vpop.f32.mrb[0].mxu0
      %v519 = vadd.f32 %v259, %v518
      %v520 = vpop.f32.mrb[0].mxu0
      %521 = vmatprep.mubr.f32.mxu0 %v335
      %522 = vmatmul.mubr.f32.gmra.mrb[0].mxu0 %v225
      %v523 = vpop.f32.mrb[0].mxu0
      %v524 = vadd.f32 %v259, %v523
      %v525 = vpop.f32.mrb[0].mxu0
      %526 = vdwg.mxu0
      %v527 = vmax.f32 %v404, 0.0
      %v528 = vmax.f32 %v409, 0.0
      %v529 = vmax.f32 %v414, 0.0
      %v530 = vmax.f32 %v419, 0.0
      %v531 = vmax.f32 %v424, 0.0
      %v532 = vmax.f32 %v429, 0.0
      %v533 = vmax.f32 %v434, 0.0
      %v534 = vmax.f32 %v439, 0.0
      %v535 = vmax.f32 %v444, 0.0
      %v536 = vmax.f32 %v449, 0.0
      %v537 = vmax.f32 %v454, 0.0
      %v538 = vmax.f32 %v459, 0.0
      %v539 = vmax.f32 %v464, 0.0
      %v540 = vmax.f32 %v469, 0.0
      %v541 = vmax.f32 %v474, 0.0
      %v542 = vmax.f32 %v479, 0.0
      %v543 = vmax.f32 %v484, 0.0
      %v544 = vmax.f32 %v489, 0.0
      %v545 = vmax.f32 %v494, 0.0
      %v546 = vmax.f32 %v499, 0.0
      %v547 = vmax.f32 %v504, 0.0
      %v548 = vmax.f32 %v509, 0.0
      %v549 = vmax.f32 %v514, 0.0
      %v550 = vmax.f32 %v519, 0.0
      %v551 = vmax.f32 %v524, 0.0
      %vm552 = vcmask 392192
      %553 = vst.msk [vmem:[%s175] sm:$0xff] %vm552, %v527
      %554 = vst.msk [vmem:[%s175 + $0x8] sm:$0xff] %vm552, %v528
      %555 = vst.msk [vmem:[%s175 + $0x10] sm:$0xff] %vm552, %v529
      %556 = vst.msk [vmem:[%s175 + $0x18] sm:$0xff] %vm552, %v530
      %557 = vst.msk [vmem:[%s175 + $0x20] sm:$0xff] %vm552, %v531
      %558 = vst.msk [vmem:[%s175 + $0x28] sm:$0xff] %vm552, %v532
      %559 = vst.msk [vmem:[%s175 + $0x30] sm:$0xff] %vm552, %v533
      %560 = vst.msk [vmem:[%s175 + $0x38] sm:$0xff] %vm552, %v534
      %561 = vst.msk [vmem:[%s175 + $0x40] sm:$0xff] %vm552, %v535
      %562 = vst.msk [vmem:[%s175 + $0x48] sm:$0xff] %vm552, %v536
      %563 = vst.msk [vmem:[%s175 + $0x50] sm:$0xff] %vm552, %v537
      %564 = vst.msk [vmem:[%s175 + $0x58] sm:$0xff] %vm552, %v538
      %565 = vst.msk [vmem:[%s175 + $0x60] sm:$0xff] %vm552, %v539
      %566 = vst.msk [vmem:[%s175 + $0x68] sm:$0xff] %vm552, %v540
      %567 = vst.msk [vmem:[%s175 + $0x70] sm:$0xff] %vm552, %v541
      %568 = vst.msk [vmem:[%s175 + $0x78] sm:$0xff] %vm552, %v542
      %569 = vst.msk [vmem:[%s175 + $0x80] sm:$0xff] %vm552, %v543
      %570 = vst.msk [vmem:[%s175 + $0x88] sm:$0xff] %vm552, %v544
      %571 = vst.msk [vmem:[%s175 + $0x90] sm:$0xff] %vm552, %v545
      %572 = vst.msk [vmem:[%s175 + $0x98] sm:$0xff] %vm552, %v546
      %573 = vst.msk [vmem:[%s175 + $0xa0] sm:$0xff] %vm552, %v547
      %574 = vst.msk [vmem:[%s175 + $0xa8] sm:$0xff] %vm552, %v548
      %575 = vst.msk [vmem:[%s175 + $0xb0] sm:$0xff] %vm552, %v549
      %576 = vst.msk [vmem:[%s175 + $0xb8] sm:$0xff] %vm552, %v550
      %577 = vst.msk [vmem:[%s175 + $0xc0] sm:$0xff] %vm552, %v551
      %s578 = smul.u32 25, %s14
      %p579 = scmp.lt.s32.totalorder %s578, 199
      %s580 = scalar_select %p579, %s578, 199
      %s581 = smul.addr %s580, 8
      %s582 = scalar_lea.vmem %s3, %s581
      // Predicated region
      $region33: #{convnet_forward.7} parent=31 // pred_check
        %p583 = pneg %p100
      $region34: #{convnet_forward.7} parent=31 // pred_check_branch
        %585 = sbr.rel (%p583) target = $region36
      $region35: #{convnet_forward.7} parent=31 // pred_region
        %s586 = smul.u32 25, %s14
      $region36: #{convnet_forward.7} parent=31 // pred_fallthru
        _
    $region32: #{convnet_forward.7} parent=5 // pred_fallthru
      _
    %p587 = scmp.le.s32.totalorder 2, %s9
    // Predicated region
    $region37: #{convnet_forward.7} parent=5 // pred_check
      %p588 = pneg %p587
    $region38: #{convnet_forward.7} parent=5 // pred_check_branch
      %590 = sbr.rel (%p588) target = $region40
    $region39: #{convnet_forward.7} parent=5 // pred_region
      %s591 = ssub.s32 %s9, 2
      // Predicated region
      $region41: #{convnet_forward.7} parent=39 // pred_check
        %p592 = pneg %p106
      $region42: #{convnet_forward.7} parent=39 // pred_check_branch
        %594 = sbr.rel (%p592) target = $region44
      $region43: #{convnet_forward.7} parent=39 // pred_region
        %s595 = smul.u32 25, %s15
        %p596 = scmp.lt.s32.totalorder %s595, 199
        %s597 = scalar_select %p596, %s595, 199
        %s598 = smul.addr %s597, 8
        %s599 = scalar_lea.vmem %s3, %s598
      $region44: #{convnet_forward.7} parent=39 // pred_fallthru
        _
    $region40: #{convnet_forward.7} parent=5 // pred_fallthru
      _
  $region6: #{convnet_forward.7} parent=0 // loop_footer
    %s13 = sadd.s32 1, %s9
  $region7: #{convnet_forward.7} parent=0 // loop_footer_branch
    %8 = sbr.rel target = $region3
  $region8: #{convnet_forward.7} parent=0 // loop_exit
    _

// kernel: convnet_forward.8
$region0: #{convnet_forward.8}
  #allocation0 [shape = 'u32[]', space=smem, size = 0x4, offset = 0x4, fixed_abs, tag = 'smem constant byte address 0x4 - core index']
  #allocation1 [shape = 'u32[144,128]{1,0:T(1,128)}', space=vmem, size = 0x12000, scoped, tag = 'internal scratch']
  #allocation2 [shape = 'f32[2,100]{1,0:T(2,128)}', space=vmem, size = 0x400, scoped, tag = 'scratch operand']
  %s0 = inlined_call_operand.vmem [shape: f32[2,37632], index: 0, kind: input, shape index: {}]
  %s1 = inlined_call_operand.vmem [shape: bf16[2,37632,100], index: 1, kind: input, shape index: {}]
  %s2 = inlined_call_operand.vmem [shape: f32[2,1,100], index: 2, kind: input, shape index: {}]
  %s3 = inlined_call_operand.vmem [shape: f32[2,2,100], index: 3, kind: output, shape index: {}]
  %s4 = sld [smem:[#allocation0]]
  $region53: #{convnet_forward.8} parent=0
    _
  %s6 = ssub.s32 1, %s4
  %s7 = scalar_select 0, %s6, %s4
  loop: start=0, step=1, limit=16
  $region2: #{convnet_forward.8} parent=0 // loop_pre_header
    _
  $region3: #{convnet_forward.8} parent=0 // loop_header
    %s9 = sphi 0, %s13
    %p10 = scmp.ge.s32.totalorder %s9, 16
    %s16 = sphi 0, %s28
    %s17 = sphi 0, %s24
    %s18 = sphi 0, %s16
    %s19 = sphi 0, %s17
    %s20 = sphi 0, %s18
    %s21 = sphi 0, %s19
    %s31 = sphi 0, %s33
    %s34 = sphi 0, %s31
    %s35 = sphi 0, %s34
    %s51 = sphi 0, %s35
    %s59 = sphi 0, %s61
    %s62 = sphi 0, %s59
    %s63 = sphi 0, %s62
    %s79 = sphi 0, %s63
    %s85 = sphi 0, %s87
    %s88 = sphi 0, %s85
    %s89 = sphi 0, %s88
    %s105 = sphi 0, %s89
    %s111 = sphi 0, %s113
    %s114 = sphi 0, %s111
    %s115 = sphi 0, %s114
    %s131 = sphi 0, %s115
  $region4: #{convnet_forward.8} parent=0 // loop_header_branch
    %12 = sbr.rel (%p10) target = $region8
  $region5: #{convnet_forward.8} parent=0 // loop_body
    %s14 = ssub.s32 %s9, 1
    %s15 = ssub.s32 %s9, 2
    %s22 = sadd.s32 1, %s17
    %p23 = scmp.ge.s32.totalorder %s22, 7
    %s24 = scalar_select %p23, 0, %s22
    %s25 = sadd.s32 1, %s16
    %s26 = scalar_select %p23, %s25, %s16
    %p27 = scmp.ge.s32.totalorder %s26, 2
    %s28 = scalar_select %p27, 0, %s26
    %s29 = ssub.s32 %s17, %s24
    %p30 = scmp.eq.s32.totalorder %s29, 0
    %s32 = sadd.s32 %s31, 1
    %s33 = scalar_select %p30, %s31, %s32
    %p36 = pneg %p30
    %p37 = scmp.eq.s32.totalorder %s9, 13
    %p38 = por %p36, %p37
    %p39 = scmp.ne.s32.totalorder %s31, %s34
    %p40 = scmp.eq.s32.totalorder %s9, 0
    %p41 = por %p39, %p40
    %p42 = scmp.ne.s32.totalorder %s31, %s34
    %p43 = scmp.eq.s32.totalorder %s14, 13
    %p44 = por %p42, %p43
    %p45 = scmp.ne.s32.totalorder %s34, %s35
    %p46 = scmp.eq.s32.totalorder %s14, 0
    %p47 = por %p45, %p46
    %p48 = scmp.ne.s32.totalorder %s34, %s35
    %p49 = scmp.eq.s32.totalorder %s15, 13
    %p50 = por %p48, %p49
    %p52 = scmp.ne.s32.totalorder %s35, %s51
    %p53 = scmp.eq.s32.totalorder %s15, 0
    %p54 = por %p52, %p53
    %s55 = ssub.s32 %s16, %s28
    %s56 = ssub.s32 %s17, %s24
    %s57 = sor.u32 %s55, %s56
    %p58 = scmp.eq.s32.totalorder %s57, 0
    %s60 = sadd.s32 %s59, 1
    %s61 = scalar_select %p58, %s59, %s60
    %p64 = pneg %p58
    %p65 = scmp.eq.s32.totalorder %s9, 13
    %p66 = por %p64, %p65
    %p67 = scmp.ne.s32.totalorder %s59, %s62
    %p68 = scmp.eq.s32.totalorder %s9, 0
    %p69 = por %p67, %p68
    %p70 = scmp.ne.s32.totalorder %s59, %s62
    %p71 = scmp.eq.s32.totalorder %s14, 13
    %p72 = por %p70, %p71
    %p73 = scmp.ne.s32.totalorder %s62, %s63
    %p74 = scmp.eq.s32.totalorder %s14, 0
    %p75 = por %p73, %p74
    %p76 = scmp.ne.s32.totalorder %s62, %s63
    %p77 = scmp.eq.s32.totalorder %s15, 13
    %p78 = por %p76, %p77
    %p80 = scmp.ne.s32.totalorder %s63, %s79
    %p81 = scmp.eq.s32.totalorder %s15, 0
    %p82 = por %p80, %p81
    %s83 = ssub.s32 %s16, %s28
    %p84 = scmp.eq.s32.totalorder %s83, 0
    %s86 = sadd.s32 %s85, 1
    %s87 = scalar_select %p84, %s85, %s86
    %p90 = pneg %p84
    %p91 = scmp.eq.s32.totalorder %s9, 13
    %p92 = por %p90, %p91
    %p93 = scmp.ne.s32.totalorder %s85, %s88
    %p94 = scmp.eq.s32.totalorder %s9, 0
    %p95 = por %p93, %p94
    %p96 = scmp.ne.s32.totalorder %s85, %s88
    %p97 = scmp.eq.s32.totalorder %s14, 13
    %p98 = por %p96, %p97
    %p99 = scmp.ne.s32.totalorder %s88, %s89
    %p100 = scmp.eq.s32.totalorder %s14, 0
    %p101 = por %p99, %p100
    %p102 = scmp.ne.s32.totalorder %s88, %s89
    %p103 = scmp.eq.s32.totalorder %s15, 13
    %p104 = por %p102, %p103
    %p106 = scmp.ne.s32.totalorder %s89, %s105
    %p107 = scmp.eq.s32.totalorder %s15, 0
    %p108 = por %p106, %p107
    %s109 = ssub.s32 %s16, %s28
    %p110 = scmp.eq.s32.totalorder %s109, 0
    %s112 = sadd.s32 %s111, 1
    %s113 = scalar_select %p110, %s111, %s112
    %p116 = pneg %p110
    %p117 = scmp.eq.s32.totalorder %s9, 13
    %p118 = por %p116, %p117
    %p119 = scmp.ne.s32.totalorder %s111, %s114
    %p120 = scmp.eq.s32.totalorder %s9, 0
    %p121 = por %p119, %p120
    %p122 = scmp.ne.s32.totalorder %s111, %s114
    %p123 = scmp.eq.s32.totalorder %s14, 13
    %p124 = por %p122, %p123
    %p125 = scmp.ne.s32.totalorder %s114, %s115
    %p126 = scmp.eq.s32.totalorder %s14, 0
    %p127 = por %p125, %p126
    %p128 = scmp.ne.s32.totalorder %s114, %s115
    %p129 = scmp.eq.s32.totalorder %s15, 13
    %p130 = por %p128, %p129
    %p132 = scmp.ne.s32.totalorder %s115, %s131
    %p133 = scmp.eq.s32.totalorder %s15, 0
    %p134 = por %p132, %p133
    %p135 = scmp.le.s32.totalorder 1, %s9
    %p136 = scmp.lt.s32.totalorder %s9, 15
    %p137 = pnand %p135, %p136
    %p138 = pneg %p137
    // Predicated region
    $region9: #{convnet_forward.8} parent=5 // pred_check
      _
    $region10: #{convnet_forward.8} parent=5 // pred_check_branch
      %140 = sbr.rel (%p137) target = $region12
    $region11: #{convnet_forward.8} parent=5 // pred_region
      %s141 = ssub.s32 %s9, 1
    $region12: #{convnet_forward.8} parent=5 // pred_fallthru
      _
    %p142 = scmp.lt.s32.totalorder %s9, 14
    // Predicated region
    $region13: #{convnet_forward.8} parent=5 // pred_check
      %p143 = pneg %p142
    $region14: #{convnet_forward.8} parent=5 // pred_check_branch
      %145 = sbr.rel (%p143) target = $region16
    $region15: #{convnet_forward.8} parent=5 // pred_region
      // Predicated region
      $region17: #{convnet_forward.8} parent=15 // pred_check
        %p146 = pneg %p41
      $region18: #{convnet_forward.8} parent=15 // pred_check_branch
        %148 = sbr.rel (%p146) target = $region20
      $region19: #{convnet_forward.8} parent=15 // pred_region
        %s149 = smul.u32 42, %s17
        %p150 = scmp.lt.s32.totalorder %s149, 293
        %s151 = scalar_select %p150, %s149, 293
        %s152 = smul.addr %s151, 2
        %s153 = scalar_lea.vmem %s0, %s152
        %s154 = smul.u32 42, %s17
      $region20: #{convnet_forward.8} parent=15 // pred_fallthru
        _
      // Predicated region
      $region21: #{convnet_forward.8} parent=15 // pred_check
        %p155 = pneg %p69
      $region22: #{convnet_forward.8} parent=15 // pred_check_branch
        %157 = sbr.rel (%p155) target = $region24
      $region23: #{convnet_forward.8} parent=15 // pred_region
        %s158 = smul.u32 672, %s17
        %p159 = scmp.lt.s32.totalorder %s16, 1
        %s160 = scalar_select %p159, %s16, 1
        %p161 = scmp.lt.s32.totalorder %s158, 4703
        %s162 = scalar_select %p161, %s158, 4703
        %s163 = smul.addr %s160, 4704
        %s164 = sadd.s32 %s162, %s163
        %s165 = smul.addr %s164, 4
        %s166 = scalar_lea.vmem %s1, %s165
        %s167 = smul.u32 672, %s17
      $region24: #{convnet_forward.8} parent=15 // pred_fallthru
        _
      // Predicated region
      $region25: #{convnet_forward.8} parent=15 // pred_check
        %p168 = pneg %p95
      $region26: #{convnet_forward.8} parent=15 // pred_check_branch
        %170 = sbr.rel (%p168) target = $region28
      $region27: #{convnet_forward.8} parent=15 // pred_region
        %p171 = scmp.lt.s32.totalorder %s16, 1
        %s172 = scalar_select %p171, %s16, 1
        %s173 = scalar_lea.vmem %s2, %s172
      $region28: #{convnet_forward.8} parent=15 // pred_fallthru
        _
    $region16: #{convnet_forward.8} parent=5 // pred_fallthru
      _
    %p174 = scmp.le.s32.totalorder 1, %s9
    %p175 = scmp.lt.s32.totalorder %s9, 15
    %p176 = pnand %p174, %p175
    %p177 = pneg %p176
    // Predicated region
    $region29: #{convnet_forward.8} parent=5 // pred_check
      _
    $region30: #{convnet_forward.8} parent=5 // pred_check_branch
      %179 = sbr.rel (%p176) target = $region32
    $region31: #{convnet_forward.8} parent=5 // pred_region
      %s180 = ssub.s32 %s9, 1
      %s181 = smul.u32 42, %s19
      %p182 = scmp.lt.s32.totalorder %s181, 293
      %s183 = scalar_select %p182, %s181, 293
      %s184 = smul.addr %s183, 2
      %s185 = scalar_lea.vmem %s0, %s184
      %p186 = pneg %p47
      %p187 = pneg %p44
      %s188 = smul.u32 672, %s19
      %p189 = scmp.lt.s32.totalorder %s18, 1
      %s190 = scalar_select %p189, %s18, 1
      %p191 = scmp.lt.s32.totalorder %s188, 4703
      %s192 = scalar_select %p191, %s188, 4703
      %s193 = smul.addr %s190, 4704
      %s194 = sadd.s32 %s192, %s193
      %s195 = smul.addr %s194, 4
      %s196 = scalar_lea.vmem %s1, %s195
      %p197 = pneg %p75
      %p198 = pneg %p72
      %p199 = scmp.lt.s32.totalorder %s18, 1
      %s200 = scalar_select %p199, %s18, 1
      %s201 = scalar_lea.vmem %s2, %s200
      %p202 = pneg %p101
      %p203 = pneg %p98
      %p204 = pneg %p127
      %p205 = pneg %p124
      %p206 = scmp.lt.s32.totalorder %s18, 1
      %s207 = scalar_select %p206, %s18, 1
      %s208 = smul.addr %s207, 2
      %s209 = scalar_lea.vmem %s3, %s208
      %s210 = smul.u32 42, %s19
      %p211 = scmp.lt.s32.totalorder %s210, 293
      %s212 = scalar_select %p211, %s210, 293
      %s213 = smul.addr %s212, 2
      %s214 = scalar_lea.vmem %s0, %s213
      %s215 = smul.u32 42, %s19
      %s216 = smul.u32 672, %s19
      %p217 = scmp.lt.s32.totalorder %s18, 1
      %s218 = scalar_select %p217, %s18, 1
      %p219 = scmp.lt.s32.totalorder %s216, 4703
      %s220 = scalar_select %p219, %s216, 4703
      %s221 = smul.addr %s218, 4704
      %s222 = sadd.s32 %s220, %s221
      %s223 = smul.addr %s222, 4
      %s224 = scalar_lea.vmem %s1, %s223
      %s225 = smul.u32 672, %s19
      %p226 = scmp.lt.s32.totalorder %s18, 1
      %s227 = scalar_select %p226, %s18, 1
      %s228 = scalar_lea.vmem %s2, %s227
      %p229 = scmp.lt.s32.totalorder %s18, 1
      %s230 = scalar_select %p229, %s18, 1
      %s231 = smul.addr %s230, 2
      %s232 = scalar_lea.vmem %s3, %s231
      %p234 = scmp.eq.s32.totalorder %s19, 0
      // Predicated region
      $region33: #{convnet_forward.8} parent=31 // pred_check
        %p235 = pneg %p234
      $region34: #{convnet_forward.8} parent=31 // pred_check_branch
        %237 = sbr.rel (%p235) target = $region36
      $region35: #{convnet_forward.8} parent=31 // pred_region
        %vm238 = vcmask 812032
        %239 = vst.msk [vmem:[#allocation2] sm:$0x3] %vm238, 0.0
      $region36: #{convnet_forward.8} parent=31 // pred_fallthru
        _
      %v240 = vld [vmem:[#allocation2] sm:$0x3]
      %v241 = vld [vmem:[%s214] sm:$0xff]
      %v242 = vld [vmem:[%s214 + $0x8] sm:$0xff]
      %v243 = vld [vmem:[%s214 + $0x10] sm:$0xff]
      %v244 = vld [vmem:[%s214 + $0x18] sm:$0xff]
      %v245 = vld [vmem:[%s214 + $0x20] sm:$0xff]
      %v246 = vld [vmem:[%s214 + $0x28] sm:$0xff]
      %v247 = vld [vmem:[%s214 + $0x30] sm:$0xff]
      %v248 = vld [vmem:[%s214 + $0x38] sm:$0xff]
      %v249 = vld [vmem:[%s214 + $0x40] sm:$0xff]
      %v250 = vld [vmem:[%s214 + $0x48] sm:$0xff]
      %v251 = vld [vmem:[%s214 + $0x50] sm:$0xf]
      %v263 = vcombine.high %v241, %v241
      %v265 = vunpack.c.l.s4 1983009808
      %v266 = vunpack.c.0.s8 %v265
      %v267 = vlaneseq
      %v268 = vshrl.u32 %v267, 7
      %v269 = vsub.s32 %v266, %v268
      %v270 = vrot.slane %v241, %v269
      %v272 = vunpack.c.l.s4 1983009808
      %v273 = vunpack.c.0.s8 %v272
      %v274 = vlaneseq
      %v275 = vshrl.u32 %v274, 7
      %v276 = vsub.s32 %v273, %v275
      %v277 = vrot.slane %v263, %v276
      %v278 = vcombine.high %v270, %v270
      %v279 = vcombine.high %v277, %v277
      %v280 = vcombine.high %v242, %v242
      %v282 = vunpack.c.l.s4 1983009808
      %v283 = vunpack.c.0.s8 %v282
      %v284 = vlaneseq
      %v285 = vshrl.u32 %v284, 7
      %v286 = vsub.s32 %v283, %v285
      %v287 = vrot.slane %v242, %v286
      %v289 = vunpack.c.l.s4 1983009808
      %v290 = vunpack.c.0.s8 %v289
      %v291 = vlaneseq
      %v292 = vshrl.u32 %v291, 7
      %v293 = vsub.s32 %v290, %v292
      %v294 = vrot.slane %v280, %v293
      %v295 = vcombine.high %v287, %v287
      %v296 = vcombine.high %v294, %v294
      %v297 = vcombine.high %v243, %v243
      %v299 = vunpack.c.l.s4 1983009808
      %v300 = vunpack.c.0.s8 %v299
      %v301 = vlaneseq
      %v302 = vshrl.u32 %v301, 7
      %v303 = vsub.s32 %v300, %v302
      %v304 = vrot.slane %v243, %v303
      %v306 = vunpack.c.l.s4 1983009808
      %v307 = vunpack.c.0.s8 %v306
      %v308 = vlaneseq
      %v309 = vshrl.u32 %v308, 7
      %v310 = vsub.s32 %v307, %v309
      %v311 = vrot.slane %v297, %v310
      %v312 = vcombine.high %v304, %v304
      %v313 = vcombine.high %v311, %v311
      %v314 = vcombine.high %v244, %v244
      %v316 = vunpack.c.l.s4 1983009808
      %v317 = vunpack.c.0.s8 %v316
      %v318 = vlaneseq
      %v319 = vshrl.u32 %v318, 7
      %v320 = vsub.s32 %v317, %v319
      %v321 = vrot.slane %v244, %v320
      %v323 = vunpack.c.l.s4 1983009808
      %v324 = vunpack.c.0.s8 %v323
      %v325 = vlaneseq
      %v326 = vshrl.u32 %v325, 7
      %v327 = vsub.s32 %v324, %v326
      %v328 = vrot.slane %v314, %v327
      %v329 = vcombine.high %v321, %v321
      %v330 = vcombine.high %v328, %v328
      %v331 = vcombine.high %v245, %v245
      %v333 = vunpack.c.l.s4 1983009808
      %v334 = vunpack.c.0.s8 %v333
      %v335 = vlaneseq
      %v336 = vshrl.u32 %v335, 7
      %v337 = vsub.s32 %v334, %v336
      %v338 = vrot.slane %v245, %v337
      %v340 = vunpack.c.l.s4 1983009808
      %v341 = vunpack.c.0.s8 %v340
      %v342 = vlaneseq
      %v343 = vshrl.u32 %v342, 7
      %v344 = vsub.s32 %v341, %v343
      %v345 = vrot.slane %v331, %v344
      %v346 = vcombine.high %v338, %v338
      %v347 = vcombine.high %v345, %v345
      %v348 = vcombine.high %v246, %v246
      %v350 = vunpack.c.l.s4 1983009808
      %v351 = vunpack.c.0.s8 %v350
      %v352 = vlaneseq
      %v353 = vshrl.u32 %v352, 7
      %v354 = vsub.s32 %v351, %v353
      %v355 = vrot.slane %v246, %v354
      %v357 = vunpack.c.l.s4 1983009808
      %v358 = vunpack.c.0.s8 %v357
      %v359 = vlaneseq
      %v360 = vshrl.u32 %v359, 7
      %v361 = vsub.s32 %v358, %v360
      %v362 = vrot.slane %v348, %v361
      %v363 = vcombine.high %v355, %v355
      %v364 = vcombine.high %v362, %v362
      %v365 = vcombine.high %v247, %v247
      %v367 = vunpack.c.l.s4 1983009808
      %v368 = vunpack.c.0.s8 %v367
      %v369 = vlaneseq
      %v370 = vshrl.u32 %v369, 7
      %v371 = vsub.s32 %v368, %v370
      %v372 = vrot.slane %v247, %v371
      %v374 = vunpack.c.l.s4 1983009808
      %v375 = vunpack.c.0.s8 %v374
      %v376 = vlaneseq
      %v377 = vshrl.u32 %v376, 7
      %v378 = vsub.s32 %v375, %v377
      %v379 = vrot.slane %v365, %v378
      %v380 = vcombine.high %v372, %v372
      %v381 = vcombine.high %v379, %v379
      %v382 = vcombine.high %v248, %v248
      %v384 = vunpack.c.l.s4 1983009808
      %v385 = vunpack.c.0.s8 %v384
      %v386 = vlaneseq
      %v387 = vshrl.u32 %v386, 7
      %v388 = vsub.s32 %v385, %v387
      %v389 = vrot.slane %v248, %v388
      %v391 = vunpack.c.l.s4 1983009808
      %v392 = vunpack.c.0.s8 %v391
      %v393 = vlaneseq
      %v394 = vshrl.u32 %v393, 7
      %v395 = vsub.s32 %v392, %v394
      %v396 = vrot.slane %v382, %v395
      %v397 = vcombine.high %v389, %v389
      %v398 = vcombine.high %v396, %v396
      %v399 = vcombine.high %v249, %v249
      %v401 = vunpack.c.l.s4 1983009808
      %v402 = vunpack.c.0.s8 %v401
      %v403 = vlaneseq
      %v404 = vshrl.u32 %v403, 7
      %v405 = vsub.s32 %v402, %v404
      %v406 = vrot.slane %v249, %v405
      %v408 = vunpack.c.l.s4 1983009808
      %v409 = vunpack.c.0.s8 %v408
      %v410 = vlaneseq
      %v411 = vshrl.u32 %v410, 7
      %v412 = vsub.s32 %v409, %v411
      %v413 = vrot.slane %v399, %v412
      %v414 = vcombine.high %v406, %v406
      %v415 = vcombine.high %v413, %v413
      %v416 = vcombine.high %v250, %v250
      %v418 = vunpack.c.l.s4 1983009808
      %v419 = vunpack.c.0.s8 %v418
      %v420 = vlaneseq
      %v421 = vshrl.u32 %v420, 7
      %v422 = vsub.s32 %v419, %v421
      %v423 = vrot.slane %v250, %v422
      %v425 = vunpack.c.l.s4 1983009808
      %v426 = vunpack.c.0.s8 %v425
      %v427 = vlaneseq
      %v428 = vshrl.u32 %v427, 7
      %v429 = vsub.s32 %v426, %v428
      %v430 = vrot.slane %v416, %v429
      %v431 = vcombine.high %v423, %v423
      %v432 = vcombine.high %v430, %v430
      %v434 = vunpack.c.l.s4 1983009808
      %v435 = vunpack.c.0.s8 %v434
      %v436 = vlaneseq
      %v437 = vshrl.u32 %v436, 7
      %v438 = vsub.s32 %v435, %v437
      %v439 = vrot.slane %v251, %v438
      %v440 = vcombine.high %v439, %v439
      %v483 = vpack.c.bf16 %v270, %v270
      %v484 = vpack.c.bf16 %v278, %v278
      %v485 = vpack.c.bf16 %v277, %v277
      %v486 = vpack.c.bf16 %v279, %v279
      %v487 = vpack.c.bf16 %v287, %v287
      %v488 = vpack.c.bf16 %v295, %v295
      %v489 = vpack.c.bf16 %v294, %v294
      %v490 = vpack.c.bf16 %v296, %v296
      %v491 = vpack.c.bf16 %v304, %v304
      %v492 = vpack.c.bf16 %v312, %v312
      %v493 = vpack.c.bf16 %v311, %v311
      %v494 = vpack.c.bf16 %v313, %v313
      %v495 = vpack.c.bf16 %v321, %v321
      %v496 = vpack.c.bf16 %v329, %v329
      %v497 = vpack.c.bf16 %v328, %v328
      %v498 = vpack.c.bf16 %v330, %v330
      %v499 = vpack.c.bf16 %v338, %v338
      %v500 = vpack.c.bf16 %v346, %v346
      %v501 = vpack.c.bf16 %v345, %v345
      %v502 = vpack.c.bf16 %v347, %v347
      %v503 = vpack.c.bf16 %v355, %v355
      %v504 = vpack.c.bf16 %v363, %v363
      %v505 = vpack.c.bf16 %v362, %v362
      %v506 = vpack.c.bf16 %v364, %v364
      %v507 = vpack.c.bf16 %v372, %v372
      %v508 = vpack.c.bf16 %v380, %v380
      %v509 = vpack.c.bf16 %v379, %v379
      %v510 = vpack.c.bf16 %v381, %v381
      %v511 = vpack.c.bf16 %v389, %v389
      %v512 = vpack.c.bf16 %v397, %v397
      %v513 = vpack.c.bf16 %v396, %v396
      %v514 = vpack.c.bf16 %v398, %v398
      %v515 = vpack.c.bf16 %v406, %v406
      %v516 = vpack.c.bf16 %v414, %v414
      %v517 = vpack.c.bf16 %v413, %v413
      %v518 = vpack.c.bf16 %v415, %v415
      %v519 = vpack.c.bf16 %v423, %v423
      %v520 = vpack.c.bf16 %v431, %v431
      %v521 = vpack.c.bf16 %v430, %v430
      %v522 = vpack.c.bf16 %v432, %v432
      %v523 = vpack.c.bf16 %v439, %v439
      %v524 = vpack.c.bf16 %v440, %v440
      %v525 = vld [vmem:[%s224] sm:$0xf]
      %v526 = vld [vmem:[%s224 + $0x4] sm:$0xf]
      %v527 = vld [vmem:[%s224 + $0x8] sm:$0xf]
      %v528 = vld [vmem:[%s224 + $0xc] sm:$0xf]
      %v529 = vld [vmem:[%s224 + $0x10] sm:$0xf]
      %v530 = vld [vmem:[%s224 + $0x14] sm:$0xf]
      %v531 = vld [vmem:[%s224 + $0x18] sm:$0xf]
      %v532 = vld [vmem:[%s224 + $0x1c] sm:$0xf]
      %v533 = vld [vmem:[%s224 + $0x20] sm:$0xf]
      %v534 = vld [vmem:[%s224 + $0x24] sm:$0xf]
      %v535 = vld [vmem:[%s224 + $0x28] sm:$0xf]
      %v536 = vld [vmem:[%s224 + $0x2c] sm:$0xf]
      %v537 = vld [vmem:[%s224 + $0x30] sm:$0xf]
      %v538 = vld [vmem:[%s224 + $0x34] sm:$0xf]
      %v539 = vld [vmem:[%s224 + $0x38] sm:$0xf]
      %v540 = vld [vmem:[%s224 + $0x3c] sm:$0xf]
      %v541 = vld [vmem:[%s224 + $0x40] sm:$0xf]
      %v542 = vld [vmem:[%s224 + $0x44] sm:$0xf]
      %v543 = vld [vmem:[%s224 + $0x48] sm:$0xf]
      %v544 = vld [vmem:[%s224 + $0x4c] sm:$0xf]
      %v545 = vld [vmem:[%s224 + $0x50] sm:$0xf]
      %v546 = vld [vmem:[%s224 + $0x54] sm:$0xf]
      %v547 = vld [vmem:[%s224 + $0x58] sm:$0xf]
      %v548 = vld [vmem:[%s224 + $0x5c] sm:$0xf]
      %v549 = vld [vmem:[%s224 + $0x60] sm:$0xf]
      %v550 = vld [vmem:[%s224 + $0x64] sm:$0xf]
      %v551 = vld [vmem:[%s224 + $0x68] sm:$0xf]
      %v552 = vld [vmem:[%s224 + $0x6c] sm:$0xf]
      %v553 = vld [vmem:[%s224 + $0x70] sm:$0xf]
      %v554 = vld [vmem:[%s224 + $0x74] sm:$0xf]
      %v555 = vld [vmem:[%s224 + $0x78] sm:$0xf]
      %v556 = vld [vmem:[%s224 + $0x7c] sm:$0xf]
      %v557 = vld [vmem:[%s224 + $0x80] sm:$0xf]
      %v558 = vld [vmem:[%s224 + $0x84] sm:$0xf]
      %v559 = vld [vmem:[%s224 + $0x88] sm:$0xf]
      %v560 = vld [vmem:[%s224 + $0x8c] sm:$0xf]
      %v561 = vld [vmem:[%s224 + $0x90] sm:$0xf]
      %v562 = vld [vmem:[%s224 + $0x94] sm:$0xf]
      %v563 = vld [vmem:[%s224 + $0x98] sm:$0xf]
      %v564 = vld [vmem:[%s224 + $0x9c] sm:$0xf]
      %v565 = vld [vmem:[%s224 + $0xa0] sm:$0xf]
      %v566 = vld [vmem:[%s224 + $0xa4] sm:$0xf]
      %v567 = vld [vmem:[%s224 + $0xa8] sm:$0xf]
      %v568 = vld [vmem:[%s224 + $0xac] sm:$0xf]
      %v569 = vld [vmem:[%s224 + $0xb0] sm:$0xf]
      %v570 = vld [vmem:[%s224 + $0xb4] sm:$0xf]
      %v571 = vld [vmem:[%s224 + $0xb8] sm:$0xf]
      %v572 = vld [vmem:[%s224 + $0xbc] sm:$0xf]
      %v573 = vld [vmem:[%s224 + $0xc0] sm:$0xf]
      %v574 = vld [vmem:[%s224 + $0xc4] sm:$0xf]
      %v575 = vld [vmem:[%s224 + $0xc8] sm:$0xf]
      %v576 = vld [vmem:[%s224 + $0xcc] sm:$0xf]
      %v577 = vld [vmem:[%s224 + $0xd0] sm:$0xf]
      %v578 = vld [vmem:[%s224 + $0xd4] sm:$0xf]
      %v579 = vld [vmem:[%s224 + $0xd8] sm:$0xf]
      %v580 = vld [vmem:[%s224 + $0xdc] sm:$0xf]
      %v581 = vld [vmem:[%s224 + $0xe0] sm:$0xf]
      %v582 = vld [vmem:[%s224 + $0xe4] sm:$0xf]
      %v583 = vld [vmem:[%s224 + $0xe8] sm:$0xf]
      %v584 = vld [vmem:[%s224 + $0xec] sm:$0xf]
      %v585 = vld [vmem:[%s224 + $0xf0] sm:$0xf]
      %v586 = vld [vmem:[%s224 + $0xf4] sm:$0xf]
      %v587 = vld [vmem:[%s224 + $0xf8] sm:$0xf]
      %v588 = vld [vmem:[%s224 + $0xfc] sm:$0xf]
      %v589 = vld [vmem:[%s224 + $0x100] sm:$0xf]
      %v590 = vld [vmem:[%s224 + $0x104] sm:$0xf]
      %v591 = vld [vmem:[%s224 + $0x108] sm:$0xf]
      %v592 = vld [vmem:[%s224 + $0x10c] sm:$0xf]
      %v593 = vld [vmem:[%s224 + $0x110] sm:$0xf]
      %v594 = vld [vmem:[%s224 + $0x114] sm:$0xf]
      %v595 = vld [vmem:[%s224 + $0x118] sm:$0xf]
      %v596 = vld [vmem:[%s224 + $0x11c] sm:$0xf]
      %v597 = vld [vmem:[%s224 + $0x120] sm:$0xf]
      %v598 = vld [vmem:[%s224 + $0x124] sm:$0xf]
      %v599 = vld [vmem:[%s224 + $0x128] sm:$0xf]
      %v600 = vld [vmem:[%s224 + $0x12c] sm:$0xf]
      %v601 = vld [vmem:[%s224 + $0x130] sm:$0xf]
      %v602 = vld [vmem:[%s224 + $0x134] sm:$0xf]
      %v603 = vld [vmem:[%s224 + $0x138] sm:$0xf]
      %v604 = vld [vmem:[%s224 + $0x13c] sm:$0xf]
      %v605 = vld [vmem:[%s224 + $0x140] sm:$0xf]
      %v606 = vld [vmem:[%s224 + $0x144] sm:$0xf]
      %v607 = vld [vmem:[%s224 + $0x148] sm:$0xf]
      %v608 = vld [vmem:[%s224 + $0x14c] sm:$0xf]
      %v609 = vld [vmem:[%s224 + $0x150] sm:$0xf]
      %v610 = vld [vmem:[%s224 + $0x154] sm:$0xf]
      %v611 = vld [vmem:[%s224 + $0x158] sm:$0xf]
      %v612 = vld [vmem:[%s224 + $0x15c] sm:$0xf]
      %v613 = vld [vmem:[%s224 + $0x160] sm:$0xf]
      %v614 = vld [vmem:[%s224 + $0x164] sm:$0xf]
      %v615 = vld [vmem:[%s224 + $0x168] sm:$0xf]
      %v616 = vld [vmem:[%s224 + $0x16c] sm:$0xf]
      %v617 = vld [vmem:[%s224 + $0x170] sm:$0xf]
      %v618 = vld [vmem:[%s224 + $0x174] sm:$0xf]
      %v619 = vld [vmem:[%s224 + $0x178] sm:$0xf]
      %v620 = vld [vmem:[%s224 + $0x17c] sm:$0xf]
      %v621 = vld [vmem:[%s224 + $0x180] sm:$0xf]
      %v622 = vld [vmem:[%s224 + $0x184] sm:$0xf]
      %v623 = vld [vmem:[%s224 + $0x188] sm:$0xf]
      %v624 = vld [vmem:[%s224 + $0x18c] sm:$0xf]
      %v625 = vld [vmem:[%s224 + $0x190] sm:$0xf]
      %v626 = vld [vmem:[%s224 + $0x194] sm:$0xf]
      %v627 = vld [vmem:[%s224 + $0x198] sm:$0xf]
      %v628 = vld [vmem:[%s224 + $0x19c] sm:$0xf]
      %v629 = vld [vmem:[%s224 + $0x1a0] sm:$0xf]
      %v630 = vld [vmem:[%s224 + $0x1a4] sm:$0xf]
      %v631 = vld [vmem:[%s224 + $0x1a8] sm:$0xf]
      %v632 = vld [vmem:[%s224 + $0x1ac] sm:$0xf]
      %v633 = vld [vmem:[%s224 + $0x1b0] sm:$0xf]
      %v634 = vld [vmem:[%s224 + $0x1b4] sm:$0xf]
      %v635 = vld [vmem:[%s224 + $0x1b8] sm:$0xf]
      %v636 = vld [vmem:[%s224 + $0x1bc] sm:$0xf]
      %v637 = vld [vmem:[%s224 + $0x1c0] sm:$0xf]
      %v638 = vld [vmem:[%s224 + $0x1c4] sm:$0xf]
      %v639 = vld [vmem:[%s224 + $0x1c8] sm:$0xf]
      %v640 = vld [vmem:[%s224 + $0x1cc] sm:$0xf]
      %v641 = vld [vmem:[%s224 + $0x1d0] sm:$0xf]
      %v642 = vld [vmem:[%s224 + $0x1d4] sm:$0xf]
      %v643 = vld [vmem:[%s224 + $0x1d8] sm:$0xf]
      %v644 = vld [vmem:[%s224 + $0x1dc] sm:$0xf]
      %v645 = vld [vmem:[%s224 + $0x1e0] sm:$0xf]
      %v646 = vld [vmem:[%s224 + $0x1e4] sm:$0xf]
      %v647 = vld [vmem:[%s224 + $0x1e8] sm:$0xf]
      %v648 = vld [vmem:[%s224 + $0x1ec] sm:$0xf]
      %v649 = vld [vmem:[%s224 + $0x1f0] sm:$0xf]
      %v650 = vld [vmem:[%s224 + $0x1f4] sm:$0xf]
      %v651 = vld [vmem:[%s224 + $0x1f8] sm:$0xf]
      %v652 = vld [vmem:[%s224 + $0x1fc] sm:$0xf]
      %v653 = vld [vmem:[%s224 + $0x200] sm:$0xf]
      %v654 = vld [vmem:[%s224 + $0x204] sm:$0xf]
      %v655 = vld [vmem:[%s224 + $0x208] sm:$0xf]
      %v656 = vld [vmem:[%s224 + $0x20c] sm:$0xf]
      %v657 = vld [vmem:[%s224 + $0x210] sm:$0xf]
      %v658 = vld [vmem:[%s224 + $0x214] sm:$0xf]
      %v659 = vld [vmem:[%s224 + $0x218] sm:$0xf]
      %v660 = vld [vmem:[%s224 + $0x21c] sm:$0xf]
      %v661 = vld [vmem:[%s224 + $0x220] sm:$0xf]
      %v662 = vld [vmem:[%s224 + $0x224] sm:$0xf]
      %v663 = vld [vmem:[%s224 + $0x228] sm:$0xf]
      %v664 = vld [vmem:[%s224 + $0x22c] sm:$0xf]
      %v665 = vld [vmem:[%s224 + $0x230] sm:$0xf]
      %v666 = vld [vmem:[%s224 + $0x234] sm:$0xf]
      %v667 = vld [vmem:[%s224 + $0x238] sm:$0xf]
      %v668 = vld [vmem:[%s224 + $0x23c] sm:$0xf]
      %v669 = vld [vmem:[%s224 + $0x240] sm:$0xf]
      %v670 = vld [vmem:[%s224 + $0x244] sm:$0xf]
      %v671 = vld [vmem:[%s224 + $0x248] sm:$0xf]
      %v672 = vld [vmem:[%s224 + $0x24c] sm:$0xf]
      %v673 = vld [vmem:[%s224 + $0x250] sm:$0xf]
      %v674 = vld [vmem:[%s224 + $0x254] sm:$0xf]
      %v675 = vld [vmem:[%s224 + $0x258] sm:$0xf]
      %v676 = vld [vmem:[%s224 + $0x25c] sm:$0xf]
      %v677 = vld [vmem:[%s224 + $0x260] sm:$0xf]
      %v678 = vld [vmem:[%s224 + $0x264] sm:$0xf]
      %v679 = vld [vmem:[%s224 + $0x268] sm:$0xf]
      %v680 = vld [vmem:[%s224 + $0x26c] sm:$0xf]
      %v681 = vld [vmem:[%s224 + $0x270] sm:$0xf]
      %v682 = vld [vmem:[%s224 + $0x274] sm:$0xf]
      %v683 = vld [vmem:[%s224 + $0x278] sm:$0xf]
      %v684 = vld [vmem:[%s224 + $0x27c] sm:$0xf]
      %v685 = vld [vmem:[%s224 + $0x280] sm:$0xf]
      %v686 = vld [vmem:[%s224 + $0x284] sm:$0xf]
      %v687 = vld [vmem:[%s224 + $0x288] sm:$0xf]
      %v688 = vld [vmem:[%s224 + $0x28c] sm:$0xf]
      %v689 = vld [vmem:[%s224 + $0x290] sm:$0xf]
      %v690 = vld [vmem:[%s224 + $0x294] sm:$0xf]
      %v691 = vld [vmem:[%s224 + $0x298] sm:$0xf]
      %v692 = vld [vmem:[%s224 + $0x29c] sm:$0xf]
      %v693 = vld [vmem:[%s224 + $0x2a0] sm:$0xf]
      %v694 = vld [vmem:[%s224 + $0x2a4] sm:$0xf]
      %v695 = vld [vmem:[%s224 + $0x2a8] sm:$0xf]
      %v696 = vld [vmem:[%s224 + $0x2ac] sm:$0xf]
      %v697 = vld [vmem:[%s224 + $0x2b0] sm:$0xf]
      %v698 = vld [vmem:[%s224 + $0x2b4] sm:$0xf]
      %v699 = vld [vmem:[%s224 + $0x2b8] sm:$0xf]
      %v700 = vld [vmem:[%s224 + $0x2bc] sm:$0xf]
      %v701 = vld [vmem:[%s224 + $0x2c0] sm:$0xf]
      %v702 = vld [vmem:[%s224 + $0x2c4] sm:$0xf]
      %v703 = vld [vmem:[%s224 + $0x2c8] sm:$0xf]
      %v704 = vld [vmem:[%s224 + $0x2cc] sm:$0xf]
      %v705 = vld [vmem:[%s224 + $0x2d0] sm:$0xf]
      %v706 = vld [vmem:[%s224 + $0x2d4] sm:$0xf]
      %v707 = vld [vmem:[%s224 + $0x2d8] sm:$0xf]
      %v708 = vld [vmem:[%s224 + $0x2dc] sm:$0xf]
      %v709 = vld [vmem:[%s224 + $0x2e0] sm:$0xf]
      %v710 = vld [vmem:[%s224 + $0x2e4] sm:$0xf]
      %v711 = vld [vmem:[%s224 + $0x2e8] sm:$0xf]
      %v712 = vld [vmem:[%s224 + $0x2ec] sm:$0xf]
      %v713 = vld [vmem:[%s224 + $0x2f0] sm:$0xf]
      %v714 = vld [vmem:[%s224 + $0x2f4] sm:$0xf]
      %v715 = vld [vmem:[%s224 + $0x2f8] sm:$0xf]
      %v716 = vld [vmem:[%s224 + $0x2fc] sm:$0xf]
      %v717 = vld [vmem:[%s224 + $0x300] sm:$0xf]
      %v718 = vld [vmem:[%s224 + $0x304] sm:$0xf]
      %v719 = vld [vmem:[%s224 + $0x308] sm:$0xf]
      %v720 = vld [vmem:[%s224 + $0x30c] sm:$0xf]
      %v721 = vld [vmem:[%s224 + $0x310] sm:$0xf]
      %v722 = vld [vmem:[%s224 + $0x314] sm:$0xf]
      %v723 = vld [vmem:[%s224 + $0x318] sm:$0xf]
      %v724 = vld [vmem:[%s224 + $0x31c] sm:$0xf]
      %v725 = vld [vmem:[%s224 + $0x320] sm:$0xf]
      %v726 = vld [vmem:[%s224 + $0x324] sm:$0xf]
      %v727 = vld [vmem:[%s224 + $0x328] sm:$0xf]
      %v728 = vld [vmem:[%s224 + $0x32c] sm:$0xf]
      %v729 = vld [vmem:[%s224 + $0x330] sm:$0xf]
      %v730 = vld [vmem:[%s224 + $0x334] sm:$0xf]
      %v731 = vld [vmem:[%s224 + $0x338] sm:$0xf]
      %v732 = vld [vmem:[%s224 + $0x33c] sm:$0xf]
      %v733 = vld [vmem:[%s224 + $0x340] sm:$0xf]
      %v734 = vld [vmem:[%s224 + $0x344] sm:$0xf]
      %v735 = vld [vmem:[%s224 + $0x348] sm:$0xf]
      %v736 = vld [vmem:[%s224 + $0x34c] sm:$0xf]
      %v737 = vld [vmem:[%s224 + $0x350] sm:$0xf]
      %v738 = vld [vmem:[%s224 + $0x354] sm:$0xf]
      %v739 = vld [vmem:[%s224 + $0x358] sm:$0xf]
      %v740 = vld [vmem:[%s224 + $0x35c] sm:$0xf]
      %v741 = vld [vmem:[%s224 + $0x360] sm:$0xf]
      %v742 = vld [vmem:[%s224 + $0x364] sm:$0xf]
      %v743 = vld [vmem:[%s224 + $0x368] sm:$0xf]
      %v744 = vld [vmem:[%s224 + $0x36c] sm:$0xf]
      %v745 = vld [vmem:[%s224 + $0x370] sm:$0xf]
      %v746 = vld [vmem:[%s224 + $0x374] sm:$0xf]
      %v747 = vld [vmem:[%s224 + $0x378] sm:$0xf]
      %v748 = vld [vmem:[%s224 + $0x37c] sm:$0xf]
      %v749 = vld [vmem:[%s224 + $0x380] sm:$0xf]
      %v750 = vld [vmem:[%s224 + $0x384] sm:$0xf]
      %v751 = vld [vmem:[%s224 + $0x388] sm:$0xf]
      %v752 = vld [vmem:[%s224 + $0x38c] sm:$0xf]
      %v753 = vld [vmem:[%s224 + $0x390] sm:$0xf]
      %v754 = vld [vmem:[%s224 + $0x394] sm:$0xf]
      %v755 = vld [vmem:[%s224 + $0x398] sm:$0xf]
      %v756 = vld [vmem:[%s224 + $0x39c] sm:$0xf]
      %v757 = vld [vmem:[%s224 + $0x3a0] sm:$0xf]
      %v758 = vld [vmem:[%s224 + $0x3a4] sm:$0xf]
      %v759 = vld [vmem:[%s224 + $0x3a8] sm:$0xf]
      %v760 = vld [vmem:[%s224 + $0x3ac] sm:$0xf]
      %v761 = vld [vmem:[%s224 + $0x3b0] sm:$0xf]
      %v762 = vld [vmem:[%s224 + $0x3b4] sm:$0xf]
      %v763 = vld [vmem:[%s224 + $0x3b8] sm:$0xf]
      %v764 = vld [vmem:[%s224 + $0x3bc] sm:$0xf]
      %v765 = vld [vmem:[%s224 + $0x3c0] sm:$0xf]
      %v766 = vld [vmem:[%s224 + $0x3c4] sm:$0xf]
      %v767 = vld [vmem:[%s224 + $0x3c8] sm:$0xf]
      %v768 = vld [vmem:[%s224 + $0x3cc] sm:$0xf]
      %v769 = vld [vmem:[%s224 + $0x3d0] sm:$0xf]
      %v770 = vld [vmem:[%s224 + $0x3d4] sm:$0xf]
      %v771 = vld [vmem:[%s224 + $0x3d8] sm:$0xf]
      %v772 = vld [vmem:[%s224 + $0x3dc] sm:$0xf]
      %v773 = vld [vmem:[%s224 + $0x3e0] sm:$0xf]
      %v774 = vld [vmem:[%s224 + $0x3e4] sm:$0xf]
      %v775 = vld [vmem:[%s224 + $0x3e8] sm:$0xf]
      %v776 = vld [vmem:[%s224 + $0x3ec] sm:$0xf]
      %v777 = vld [vmem:[%s224 + $0x3f0] sm:$0xf]
      %v778 = vld [vmem:[%s224 + $0x3f4] sm:$0xf]
      %v779 = vld [vmem:[%s224 + $0x3f8] sm:$0xf]
      %v780 = vld [vmem:[%s224 + $0x3fc] sm:$0xf]
      %v781 = vld [vmem:[%s224 + $0x400] sm:$0xf]
      %v782 = vld [vmem:[%s224 + $0x404] sm:$0xf]
      %v783 = vld [vmem:[%s224 + $0x408] sm:$0xf]
      %v784 = vld [vmem:[%s224 + $0x40c] sm:$0xf]
      %v785 = vld [vmem:[%s224 + $0x410] sm:$0xf]
      %v786 = vld [vmem:[%s224 + $0x414] sm:$0xf]
      %v787 = vld [vmem:[%s224 + $0x418] sm:$0xf]
      %v788 = vld [vmem:[%s224 + $0x41c] sm:$0xf]
      %v789 = vld [vmem:[%s224 + $0x420] sm:$0xf]
      %v790 = vld [vmem:[%s224 + $0x424] sm:$0xf]
      %v791 = vld [vmem:[%s224 + $0x428] sm:$0xf]
      %v792 = vld [vmem:[%s224 + $0x42c] sm:$0xf]
      %v793 = vld [vmem:[%s224 + $0x430] sm:$0xf]
      %v794 = vld [vmem:[%s224 + $0x434] sm:$0xf]
      %v795 = vld [vmem:[%s224 + $0x438] sm:$0xf]
      %v796 = vld [vmem:[%s224 + $0x43c] sm:$0xf]
      %v797 = vld [vmem:[%s224 + $0x440] sm:$0xf]
      %v798 = vld [vmem:[%s224 + $0x444] sm:$0xf]
      %v799 = vld [vmem:[%s224 + $0x448] sm:$0xf]
      %v800 = vld [vmem:[%s224 + $0x44c] sm:$0xf]
      %v801 = vld [vmem:[%s224 + $0x450] sm:$0xf]
      %v802 = vld [vmem:[%s224 + $0x454] sm:$0xf]
      %v803 = vld [vmem:[%s224 + $0x458] sm:$0xf]
      %v804 = vld [vmem:[%s224 + $0x45c] sm:$0xf]
      %v805 = vld [vmem:[%s224 + $0x460] sm:$0xf]
      %v806 = vld [vmem:[%s224 + $0x464] sm:$0xf]
      %v807 = vld [vmem:[%s224 + $0x468] sm:$0xf]
      %v808 = vld [vmem:[%s224 + $0x46c] sm:$0xf]
      %v809 = vld [vmem:[%s224 + $0x470] sm:$0xf]
      %v810 = vld [vmem:[%s224 + $0x474] sm:$0xf]
      %v811 = vld [vmem:[%s224 + $0x478] sm:$0xf]
      %v812 = vld [vmem:[%s224 + $0x47c] sm:$0xf]
      %v813 = vld [vmem:[%s224 + $0x480] sm:$0xf]
      %v814 = vld [vmem:[%s224 + $0x484] sm:$0xf]
      %v815 = vld [vmem:[%s224 + $0x488] sm:$0xf]
      %v816 = vld [vmem:[%s224 + $0x48c] sm:$0xf]
      %v817 = vld [vmem:[%s224 + $0x490] sm:$0xf]
      %v818 = vld [vmem:[%s224 + $0x494] sm:$0xf]
      %v819 = vld [vmem:[%s224 + $0x498] sm:$0xf]
      %v820 = vld [vmem:[%s224 + $0x49c] sm:$0xf]
      %v821 = vld [vmem:[%s224 + $0x4a0] sm:$0xf]
      %v822 = vld [vmem:[%s224 + $0x4a4] sm:$0xf]
      %v823 = vld [vmem:[%s224 + $0x4a8] sm:$0xf]
      %v824 = vld [vmem:[%s224 + $0x4ac] sm:$0xf]
      %v825 = vld [vmem:[%s224 + $0x4b0] sm:$0xf]
      %v826 = vld [vmem:[%s224 + $0x4b4] sm:$0xf]
      %v827 = vld [vmem:[%s224 + $0x4b8] sm:$0xf]
      %v828 = vld [vmem:[%s224 + $0x4bc] sm:$0xf]
      %v829 = vld [vmem:[%s224 + $0x4c0] sm:$0xf]
      %v830 = vld [vmem:[%s224 + $0x4c4] sm:$0xf]
      %v831 = vld [vmem:[%s224 + $0x4c8] sm:$0xf]
      %v832 = vld [vmem:[%s224 + $0x4cc] sm:$0xf]
      %v833 = vld [vmem:[%s224 + $0x4d0] sm:$0xf]
      %v834 = vld [vmem:[%s224 + $0x4d4] sm:$0xf]
      %v835 = vld [vmem:[%s224 + $0x4d8] sm:$0xf]
      %v836 = vld [vmem:[%s224 + $0x4dc] sm:$0xf]
      %v837 = vld [vmem:[%s224 + $0x4e0] sm:$0xf]
      %v838 = vld [vmem:[%s224 + $0x4e4] sm:$0xf]
      %v839 = vld [vmem:[%s224 + $0x4e8] sm:$0xf]
      %v840 = vld [vmem:[%s224 + $0x4ec] sm:$0xf]
      %v841 = vld [vmem:[%s224 + $0x4f0] sm:$0xf]
      %v842 = vld [vmem:[%s224 + $0x4f4] sm:$0xf]
      %v843 = vld [vmem:[%s224 + $0x4f8] sm:$0xf]
      %v844 = vld [vmem:[%s224 + $0x4fc] sm:$0xf]
      %v845 = vld [vmem:[%s224 + $0x500] sm:$0xf]
      %v846 = vld [vmem:[%s224 + $0x504] sm:$0xf]
      %v847 = vld [vmem:[%s224 + $0x508] sm:$0xf]
      %v848 = vld [vmem:[%s224 + $0x50c] sm:$0xf]
      %v849 = vld [vmem:[%s224 + $0x510] sm:$0xf]
      %v850 = vld [vmem:[%s224 + $0x514] sm:$0xf]
      %v851 = vld [vmem:[%s224 + $0x518] sm:$0xf]
      %v852 = vld [vmem:[%s224 + $0x51c] sm:$0xf]
      %v853 = vld [vmem:[%s224 + $0x520] sm:$0xf]
      %v854 = vld [vmem:[%s224 + $0x524] sm:$0xf]
      %v855 = vld [vmem:[%s224 + $0x528] sm:$0xf]
      %v856 = vld [vmem:[%s224 + $0x52c] sm:$0xf]
      %v857 = vld [vmem:[%s224 + $0x530] sm:$0xf]
      %v858 = vld [vmem:[%s224 + $0x534] sm:$0xf]
      %v859 = vld [vmem:[%s224 + $0x538] sm:$0xf]
      %v860 = vld [vmem:[%s224 + $0x53c] sm:$0xf]
      %v861 = vld [vmem:[%s224 + $0x540] sm:$0xf]
      %v862 = vld [vmem:[%s224 + $0x544] sm:$0xf]
      %v863 = vld [vmem:[%s224 + $0x548] sm:$0xf]
      %v864 = vld [vmem:[%s224 + $0x54c] sm:$0xf]
      %v865 = vld [vmem:[%s224 + $0x550] sm:$0xf]
      %v866 = vld [vmem:[%s224 + $0x554] sm:$0xf]
      %v867 = vld [vmem:[%s224 + $0x558] sm:$0xf]
      %v868 = vld [vmem:[%s224 + $0x55c] sm:$0xf]
      %v869 = vld [vmem:[%s224 + $0x560] sm:$0xf]
      %v870 = vld [vmem:[%s224 + $0x564] sm:$0xf]
      %v871 = vld [vmem:[%s224 + $0x568] sm:$0xf]
      %v872 = vld [vmem:[%s224 + $0x56c] sm:$0xf]
      %v873 = vld [vmem:[%s224 + $0x570] sm:$0xf]
      %v874 = vld [vmem:[%s224 + $0x574] sm:$0xf]
      %v875 = vld [vmem:[%s224 + $0x578] sm:$0xf]
      %v876 = vld [vmem:[%s224 + $0x57c] sm:$0xf]
      %v877 = vld [vmem:[%s224 + $0x580] sm:$0xf]
      %v878 = vld [vmem:[%s224 + $0x584] sm:$0xf]
      %v879 = vld [vmem:[%s224 + $0x588] sm:$0xf]
      %v880 = vld [vmem:[%s224 + $0x58c] sm:$0xf]
      %v881 = vld [vmem:[%s224 + $0x590] sm:$0xf]
      %v882 = vld [vmem:[%s224 + $0x594] sm:$0xf]
      %v883 = vld [vmem:[%s224 + $0x598] sm:$0xf]
      %v884 = vld [vmem:[%s224 + $0x59c] sm:$0xf]
      %v885 = vld [vmem:[%s224 + $0x5a0] sm:$0xf]
      %v886 = vld [vmem:[%s224 + $0x5a4] sm:$0xf]
      %v887 = vld [vmem:[%s224 + $0x5a8] sm:$0xf]
      %v888 = vld [vmem:[%s224 + $0x5ac] sm:$0xf]
      %v889 = vld [vmem:[%s224 + $0x5b0] sm:$0xf]
      %v890 = vld [vmem:[%s224 + $0x5b4] sm:$0xf]
      %v891 = vld [vmem:[%s224 + $0x5b8] sm:$0xf]
      %v892 = vld [vmem:[%s224 + $0x5bc] sm:$0xf]
      %v893 = vld [vmem:[%s224 + $0x5c0] sm:$0xf]
      %v894 = vld [vmem:[%s224 + $0x5c4] sm:$0xf]
      %v895 = vld [vmem:[%s224 + $0x5c8] sm:$0xf]
      %v896 = vld [vmem:[%s224 + $0x5cc] sm:$0xf]
      %v897 = vld [vmem:[%s224 + $0x5d0] sm:$0xf]
      %v898 = vld [vmem:[%s224 + $0x5d4] sm:$0xf]
      %v899 = vld [vmem:[%s224 + $0x5d8] sm:$0xf]
      %v900 = vld [vmem:[%s224 + $0x5dc] sm:$0xf]
      %v901 = vld [vmem:[%s224 + $0x5e0] sm:$0xf]
      %v902 = vld [vmem:[%s224 + $0x5e4] sm:$0xf]
      %v903 = vld [vmem:[%s224 + $0x5e8] sm:$0xf]
      %v904 = vld [vmem:[%s224 + $0x5ec] sm:$0xf]
      %v905 = vld [vmem:[%s224 + $0x5f0] sm:$0xf]
      %v906 = vld [vmem:[%s224 + $0x5f4] sm:$0xf]
      %v907 = vld [vmem:[%s224 + $0x5f8] sm:$0xf]
      %v908 = vld [vmem:[%s224 + $0x5fc] sm:$0xf]
      %v909 = vld [vmem:[%s224 + $0x600] sm:$0xf]
      %v910 = vld [vmem:[%s224 + $0x604] sm:$0xf]
      %v911 = vld [vmem:[%s224 + $0x608] sm:$0xf]
      %v912 = vld [vmem:[%s224 + $0x60c] sm:$0xf]
      %v913 = vld [vmem:[%s224 + $0x610] sm:$0xf]
      %v914 = vld [vmem:[%s224 + $0x614] sm:$0xf]
      %v915 = vld [vmem:[%s224 + $0x618] sm:$0xf]
      %v916 = vld [vmem:[%s224 + $0x61c] sm:$0xf]
      %v917 = vld [vmem:[%s224 + $0x620] sm:$0xf]
      %v918 = vld [vmem:[%s224 + $0x624] sm:$0xf]
      %v919 = vld [vmem:[%s224 + $0x628] sm:$0xf]
      %v920 = vld [vmem:[%s224 + $0x62c] sm:$0xf]
      %v921 = vld [vmem:[%s224 + $0x630] sm:$0xf]
      %v922 = vld [vmem:[%s224 + $0x634] sm:$0xf]
      %v923 = vld [vmem:[%s224 + $0x638] sm:$0xf]
      %v924 = vld [vmem:[%s224 + $0x63c] sm:$0xf]
      %v925 = vld [vmem:[%s224 + $0x640] sm:$0xf]
      %v926 = vld [vmem:[%s224 + $0x644] sm:$0xf]
      %v927 = vld [vmem:[%s224 + $0x648] sm:$0xf]
      %v928 = vld [vmem:[%s224 + $0x64c] sm:$0xf]
      %v929 = vld [vmem:[%s224 + $0x650] sm:$0xf]
      %v930 = vld [vmem:[%s224 + $0x654] sm:$0xf]
      %v931 = vld [vmem:[%s224 + $0x658] sm:$0xf]
      %v932 = vld [vmem:[%s224 + $0x65c] sm:$0xf]
      %v933 = vld [vmem:[%s224 + $0x660] sm:$0xf]
      %v934 = vld [vmem:[%s224 + $0x664] sm:$0xf]
      %v935 = vld [vmem:[%s224 + $0x668] sm:$0xf]
      %v936 = vld [vmem:[%s224 + $0x66c] sm:$0xf]
      %v937 = vld [vmem:[%s224 + $0x670] sm:$0xf]
      %v938 = vld [vmem:[%s224 + $0x674] sm:$0xf]
      %v939 = vld [vmem:[%s224 + $0x678] sm:$0xf]
      %v940 = vld [vmem:[%s224 + $0x67c] sm:$0xf]
      %v941 = vld [vmem:[%s224 + $0x680] sm:$0xf]
      %v942 = vld [vmem:[%s224 + $0x684] sm:$0xf]
      %v943 = vld [vmem:[%s224 + $0x688] sm:$0xf]
      %v944 = vld [vmem:[%s224 + $0x68c] sm:$0xf]
      %v945 = vld [vmem:[%s224 + $0x690] sm:$0xf]
      %v946 = vld [vmem:[%s224 + $0x694] sm:$0xf]
      %v947 = vld [vmem:[%s224 + $0x698] sm:$0xf]
      %v948 = vld [vmem:[%s224 + $0x69c] sm:$0xf]
      %v949 = vld [vmem:[%s224 + $0x6a0] sm:$0xf]
      %v950 = vld [vmem:[%s224 + $0x6a4] sm:$0xf]
      %v951 = vld [vmem:[%s224 + $0x6a8] sm:$0xf]
      %v952 = vld [vmem:[%s224 + $0x6ac] sm:$0xf]
      %v953 = vld [vmem:[%s224 + $0x6b0] sm:$0xf]
      %v954 = vld [vmem:[%s224 + $0x6b4] sm:$0xf]
      %v955 = vld [vmem:[%s224 + $0x6b8] sm:$0xf]
      %v956 = vld [vmem:[%s224 + $0x6bc] sm:$0xf]
      %v957 = vld [vmem:[%s224 + $0x6c0] sm:$0xf]
      %v958 = vld [vmem:[%s224 + $0x6c4] sm:$0xf]
      %v959 = vld [vmem:[%s224 + $0x6c8] sm:$0xf]
      %v960 = vld [vmem:[%s224 + $0x6cc] sm:$0xf]
      %v961 = vld [vmem:[%s224 + $0x6d0] sm:$0xf]
      %v962 = vld [vmem:[%s224 + $0x6d4] sm:$0xf]
      %v963 = vld [vmem:[%s224 + $0x6d8] sm:$0xf]
      %v964 = vld [vmem:[%s224 + $0x6dc] sm:$0xf]
      %v965 = vld [vmem:[%s224 + $0x6e0] sm:$0xf]
      %v966 = vld [vmem:[%s224 + $0x6e4] sm:$0xf]
      %v967 = vld [vmem:[%s224 + $0x6e8] sm:$0xf]
      %v968 = vld [vmem:[%s224 + $0x6ec] sm:$0xf]
      %v969 = vld [vmem:[%s224 + $0x6f0] sm:$0xf]
      %v970 = vld [vmem:[%s224 + $0x6f4] sm:$0xf]
      %v971 = vld [vmem:[%s224 + $0x6f8] sm:$0xf]
      %v972 = vld [vmem:[%s224 + $0x6fc] sm:$0xf]
      %v973 = vld [vmem:[%s224 + $0x700] sm:$0xf]
      %v974 = vld [vmem:[%s224 + $0x704] sm:$0xf]
      %v975 = vld [vmem:[%s224 + $0x708] sm:$0xf]
      %v976 = vld [vmem:[%s224 + $0x70c] sm:$0xf]
      %v977 = vld [vmem:[%s224 + $0x710] sm:$0xf]
      %v978 = vld [vmem:[%s224 + $0x714] sm:$0xf]
      %v979 = vld [vmem:[%s224 + $0x718] sm:$0xf]
      %v980 = vld [vmem:[%s224 + $0x71c] sm:$0xf]
      %v981 = vld [vmem:[%s224 + $0x720] sm:$0xf]
      %v982 = vld [vmem:[%s224 + $0x724] sm:$0xf]
      %v983 = vld [vmem:[%s224 + $0x728] sm:$0xf]
      %v984 = vld [vmem:[%s224 + $0x72c] sm:$0xf]
      %v985 = vld [vmem:[%s224 + $0x730] sm:$0xf]
      %v986 = vld [vmem:[%s224 + $0x734] sm:$0xf]
      %v987 = vld [vmem:[%s224 + $0x738] sm:$0xf]
      %v988 = vld [vmem:[%s224 + $0x73c] sm:$0xf]
      %v989 = vld [vmem:[%s224 + $0x740] sm:$0xf]
      %v990 = vld [vmem:[%s224 + $0x744] sm:$0xf]
      %v991 = vld [vmem:[%s224 + $0x748] sm:$0xf]
      %v992 = vld [vmem:[%s224 + $0x74c] sm:$0xf]
      %v993 = vld [vmem:[%s224 + $0x750] sm:$0xf]
      %v994 = vld [vmem:[%s224 + $0x754] sm:$0xf]
      %v995 = vld [vmem:[%s224 + $0x758] sm:$0xf]
      %v996 = vld [vmem:[%s224 + $0x75c] sm:$0xf]
      %v997 = vld [vmem:[%s224 + $0x760] sm:$0xf]
      %v998 = vld [vmem:[%s224 + $0x764] sm:$0xf]
      %v999 = vld [vmem:[%s224 + $0x768] sm:$0xf]
      %v1000 = vld [vmem:[%s224 + $0x76c] sm:$0xf]
      %v1001 = vld [vmem:[%s224 + $0x770] sm:$0xf]
      %v1002 = vld [vmem:[%s224 + $0x774] sm:$0xf]
      %v1003 = vld [vmem:[%s224 + $0x778] sm:$0xf]
      %v1004 = vld [vmem:[%s224 + $0x77c] sm:$0xf]
      %v1005 = vld [vmem:[%s224 + $0x780] sm:$0xf]
      %v1006 = vld [vmem:[%s224 + $0x784] sm:$0xf]
      %v1007 = vld [vmem:[%s224 + $0x788] sm:$0xf]
      %v1008 = vld [vmem:[%s224 + $0x78c] sm:$0xf]
      %v1009 = vld [vmem:[%s224 + $0x790] sm:$0xf]
      %v1010 = vld [vmem:[%s224 + $0x794] sm:$0xf]
      %v1011 = vld [vmem:[%s224 + $0x798] sm:$0xf]
      %v1012 = vld [vmem:[%s224 + $0x79c] sm:$0xf]
      %v1013 = vld [vmem:[%s224 + $0x7a0] sm:$0xf]
      %v1014 = vld [vmem:[%s224 + $0x7a4] sm:$0xf]
      %v1015 = vld [vmem:[%s224 + $0x7a8] sm:$0xf]
      %v1016 = vld [vmem:[%s224 + $0x7ac] sm:$0xf]
      %v1017 = vld [vmem:[%s224 + $0x7b0] sm:$0xf]
      %v1018 = vld [vmem:[%s224 + $0x7b4] sm:$0xf]
      %v1019 = vld [vmem:[%s224 + $0x7b8] sm:$0xf]
      %v1020 = vld [vmem:[%s224 + $0x7bc] sm:$0xf]
      %v1021 = vld [vmem:[%s224 + $0x7c0] sm:$0xf]
      %v1022 = vld [vmem:[%s224 + $0x7c4] sm:$0xf]
      %v1023 = vld [vmem:[%s224 + $0x7c8] sm:$0xf]
      %v1024 = vld [vmem:[%s224 + $0x7cc] sm:$0xf]
      %v1025 = vld [vmem:[%s224 + $0x7d0] sm:$0xf]
      %v1026 = vld [vmem:[%s224 + $0x7d4] sm:$0xf]
      %v1027 = vld [vmem:[%s224 + $0x7d8] sm:$0xf]
      %v1028 = vld [vmem:[%s224 + $0x7dc] sm:$0xf]
      %v1029 = vld [vmem:[%s224 + $0x7e0] sm:$0xf]
      %v1030 = vld [vmem:[%s224 + $0x7e4] sm:$0xf]
      %v1031 = vld [vmem:[%s224 + $0x7e8] sm:$0xf]
      %v1032 = vld [vmem:[%s224 + $0x7ec] sm:$0xf]
      %v1033 = vld [vmem:[%s224 + $0x7f0] sm:$0xf]
      %v1034 = vld [vmem:[%s224 + $0x7f4] sm:$0xf]
      %v1035 = vld [vmem:[%s224 + $0x7f8] sm:$0xf]
      %v1036 = vld [vmem:[%s224 + $0x7fc] sm:$0xf]
      %v1037 = vld [vmem:[%s224 + $0x800] sm:$0xf]
      %v1038 = vld [vmem:[%s224 + $0x804] sm:$0xf]
      %v1039 = vld [vmem:[%s224 + $0x808] sm:$0xf]
      %v1040 = vld [vmem:[%s224 + $0x80c] sm:$0xf]
      %v1041 = vld [vmem:[%s224 + $0x810] sm:$0xf]
      %v1042 = vld [vmem:[%s224 + $0x814] sm:$0xf]
      %v1043 = vld [vmem:[%s224 + $0x818] sm:$0xf]
      %v1044 = vld [vmem:[%s224 + $0x81c] sm:$0xf]
      %v1045 = vld [vmem:[%s224 + $0x820] sm:$0xf]
      %v1046 = vld [vmem:[%s224 + $0x824] sm:$0xf]
      %v1047 = vld [vmem:[%s224 + $0x828] sm:$0xf]
      %v1048 = vld [vmem:[%s224 + $0x82c] sm:$0xf]
      %v1049 = vld [vmem:[%s224 + $0x830] sm:$0xf]
      %v1050 = vld [vmem:[%s224 + $0x834] sm:$0xf]
      %v1051 = vld [vmem:[%s224 + $0x838] sm:$0xf]
      %v1052 = vld [vmem:[%s224 + $0x83c] sm:$0xf]
      %v1053 = vld [vmem:[%s224 + $0x840] sm:$0xf]
      %v1054 = vld [vmem:[%s224 + $0x844] sm:$0xf]
      %v1055 = vld [vmem:[%s224 + $0x848] sm:$0xf]
      %v1056 = vld [vmem:[%s224 + $0x84c] sm:$0xf]
      %v1057 = vld [vmem:[%s224 + $0x850] sm:$0xf]
      %v1058 = vld [vmem:[%s224 + $0x854] sm:$0xf]
      %v1059 = vld [vmem:[%s224 + $0x858] sm:$0xf]
      %v1060 = vld [vmem:[%s224 + $0x85c] sm:$0xf]
      %v1061 = vld [vmem:[%s224 + $0x860] sm:$0xf]
      %v1062 = vld [vmem:[%s224 + $0x864] sm:$0xf]
      %v1063 = vld [vmem:[%s224 + $0x868] sm:$0xf]
      %v1064 = vld [vmem:[%s224 + $0x86c] sm:$0xf]
      %v1065 = vld [vmem:[%s224 + $0x870] sm:$0xf]
      %v1066 = vld [vmem:[%s224 + $0x874] sm:$0xf]
      %v1067 = vld [vmem:[%s224 + $0x878] sm:$0xf]
      %v1068 = vld [vmem:[%s224 + $0x87c] sm:$0xf]
      %v1069 = vld [vmem:[%s224 + $0x880] sm:$0xf]
      %v1070 = vld [vmem:[%s224 + $0x884] sm:$0xf]
      %v1071 = vld [vmem:[%s224 + $0x888] sm:$0xf]
      %v1072 = vld [vmem:[%s224 + $0x88c] sm:$0xf]
      %v1073 = vld [vmem:[%s224 + $0x890] sm:$0xf]
      %v1074 = vld [vmem:[%s224 + $0x894] sm:$0xf]
      %v1075 = vld [vmem:[%s224 + $0x898] sm:$0xf]
      %v1076 = vld [vmem:[%s224 + $0x89c] sm:$0xf]
      %v1077 = vld [vmem:[%s224 + $0x8a0] sm:$0xf]
      %v1078 = vld [vmem:[%s224 + $0x8a4] sm:$0xf]
      %v1079 = vld [vmem:[%s224 + $0x8a8] sm:$0xf]
      %v1080 = vld [vmem:[%s224 + $0x8ac] sm:$0xf]
      %v1081 = vld [vmem:[%s224 + $0x8b0] sm:$0xf]
      %v1082 = vld [vmem:[%s224 + $0x8b4] sm:$0xf]
      %v1083 = vld [vmem:[%s224 + $0x8b8] sm:$0xf]
      %v1084 = vld [vmem:[%s224 + $0x8bc] sm:$0xf]
      %v1085 = vld [vmem:[%s224 + $0x8c0] sm:$0xf]
      %v1086 = vld [vmem:[%s224 + $0x8c4] sm:$0xf]
      %v1087 = vld [vmem:[%s224 + $0x8c8] sm:$0xf]
      %v1088 = vld [vmem:[%s224 + $0x8cc] sm:$0xf]
      %v1089 = vld [vmem:[%s224 + $0x8d0] sm:$0xf]
      %v1090 = vld [vmem:[%s224 + $0x8d4] sm:$0xf]
      %v1091 = vld [vmem:[%s224 + $0x8d8] sm:$0xf]
      %v1092 = vld [vmem:[%s224 + $0x8dc] sm:$0xf]
      %v1093 = vld [vmem:[%s224 + $0x8e0] sm:$0xf]
      %v1094 = vld [vmem:[%s224 + $0x8e4] sm:$0xf]
      %v1095 = vld [vmem:[%s224 + $0x8e8] sm:$0xf]
      %v1096 = vld [vmem:[%s224 + $0x8ec] sm:$0xf]
      %v1097 = vld [vmem:[%s224 + $0x8f0] sm:$0xf]
      %v1098 = vld [vmem:[%s224 + $0x8f4] sm:$0xf]
      %v1099 = vld [vmem:[%s224 + $0x8f8] sm:$0xf]
      %v1100 = vld [vmem:[%s224 + $0x8fc] sm:$0xf]
      %v1101 = vld [vmem:[%s224 + $0x900] sm:$0xf]
      %v1102 = vld [vmem:[%s224 + $0x904] sm:$0xf]
      %v1103 = vld [vmem:[%s224 + $0x908] sm:$0xf]
      %v1104 = vld [vmem:[%s224 + $0x90c] sm:$0xf]
      %v1105 = vld [vmem:[%s224 + $0x910] sm:$0xf]
      %v1106 = vld [vmem:[%s224 + $0x914] sm:$0xf]
      %v1107 = vld [vmem:[%s224 + $0x918] sm:$0xf]
      %v1108 = vld [vmem:[%s224 + $0x91c] sm:$0xf]
      %v1109 = vld [vmem:[%s224 + $0x920] sm:$0xf]
      %v1110 = vld [vmem:[%s224 + $0x924] sm:$0xf]
      %v1111 = vld [vmem:[%s224 + $0x928] sm:$0xf]
      %v1112 = vld [vmem:[%s224 + $0x92c] sm:$0xf]
      %v1113 = vld [vmem:[%s224 + $0x930] sm:$0xf]
      %v1114 = vld [vmem:[%s224 + $0x934] sm:$0xf]
      %v1115 = vld [vmem:[%s224 + $0x938] sm:$0xf]
      %v1116 = vld [vmem:[%s224 + $0x93c] sm:$0xf]
      %v1117 = vld [vmem:[%s224 + $0x940] sm:$0xf]
      %v1118 = vld [vmem:[%s224 + $0x944] sm:$0xf]
      %v1119 = vld [vmem:[%s224 + $0x948] sm:$0xf]
      %v1120 = vld [vmem:[%s224 + $0x94c] sm:$0xf]
      %v1121 = vld [vmem:[%s224 + $0x950] sm:$0xf]
      %v1122 = vld [vmem:[%s224 + $0x954] sm:$0xf]
      %v1123 = vld [vmem:[%s224 + $0x958] sm:$0xf]
      %v1124 = vld [vmem:[%s224 + $0x95c] sm:$0xf]
      %v1125 = vld [vmem:[%s224 + $0x960] sm:$0xf]
      %v1126 = vld [vmem:[%s224 + $0x964] sm:$0xf]
      %v1127 = vld [vmem:[%s224 + $0x968] sm:$0xf]
      %v1128 = vld [vmem:[%s224 + $0x96c] sm:$0xf]
      %v1129 = vld [vmem:[%s224 + $0x970] sm:$0xf]
      %v1130 = vld [vmem:[%s224 + $0x974] sm:$0xf]
      %v1131 = vld [vmem:[%s224 + $0x978] sm:$0xf]
      %v1132 = vld [vmem:[%s224 + $0x97c] sm:$0xf]
      %v1133 = vld [vmem:[%s224 + $0x980] sm:$0xf]
      %v1134 = vld [vmem:[%s224 + $0x984] sm:$0xf]
      %v1135 = vld [vmem:[%s224 + $0x988] sm:$0xf]
      %v1136 = vld [vmem:[%s224 + $0x98c] sm:$0xf]
      %v1137 = vld [vmem:[%s224 + $0x990] sm:$0xf]
      %v1138 = vld [vmem:[%s224 + $0x994] sm:$0xf]
      %v1139 = vld [vmem:[%s224 + $0x998] sm:$0xf]
      %v1140 = vld [vmem:[%s224 + $0x99c] sm:$0xf]
      %v1141 = vld [vmem:[%s224 + $0x9a0] sm:$0xf]
      %v1142 = vld [vmem:[%s224 + $0x9a4] sm:$0xf]
      %v1143 = vld [vmem:[%s224 + $0x9a8] sm:$0xf]
      %v1144 = vld [vmem:[%s224 + $0x9ac] sm:$0xf]
      %v1145 = vld [vmem:[%s224 + $0x9b0] sm:$0xf]
      %v1146 = vld [vmem:[%s224 + $0x9b4] sm:$0xf]
      %v1147 = vld [vmem:[%s224 + $0x9b8] sm:$0xf]
      %v1148 = vld [vmem:[%s224 + $0x9bc] sm:$0xf]
      %v1149 = vld [vmem:[%s224 + $0x9c0] sm:$0xf]
      %v1150 = vld [vmem:[%s224 + $0x9c4] sm:$0xf]
      %v1151 = vld [vmem:[%s224 + $0x9c8] sm:$0xf]
      %v1152 = vld [vmem:[%s224 + $0x9cc] sm:$0xf]
      %v1153 = vld [vmem:[%s224 + $0x9d0] sm:$0xf]
      %v1154 = vld [vmem:[%s224 + $0x9d4] sm:$0xf]
      %v1155 = vld [vmem:[%s224 + $0x9d8] sm:$0xf]
      %v1156 = vld [vmem:[%s224 + $0x9dc] sm:$0xf]
      %v1157 = vld [vmem:[%s224 + $0x9e0] sm:$0xf]
      %v1158 = vld [vmem:[%s224 + $0x9e4] sm:$0xf]
      %v1159 = vld [vmem:[%s224 + $0x9e8] sm:$0xf]
      %v1160 = vld [vmem:[%s224 + $0x9ec] sm:$0xf]
      %v1161 = vld [vmem:[%s224 + $0x9f0] sm:$0xf]
      %v1162 = vld [vmem:[%s224 + $0x9f4] sm:$0xf]
      %v1163 = vld [vmem:[%s224 + $0x9f8] sm:$0xf]
      %v1164 = vld [vmem:[%s224 + $0x9fc] sm:$0xf]
      %v1165 = vld [vmem:[%s224 + $0xa00] sm:$0xf]
      %v1166 = vld [vmem:[%s224 + $0xa04] sm:$0xf]
      %v1167 = vld [vmem:[%s224 + $0xa08] sm:$0xf]
      %v1168 = vld [vmem:[%s224 + $0xa0c] sm:$0xf]
      %v1169 = vld [vmem:[%s224 + $0xa10] sm:$0xf]
      %v1170 = vld [vmem:[%s224 + $0xa14] sm:$0xf]
      %v1171 = vld [vmem:[%s224 + $0xa18] sm:$0xf]
      %v1172 = vld [vmem:[%s224 + $0xa1c] sm:$0xf]
      %v1173 = vld [vmem:[%s224 + $0xa20] sm:$0xf]
      %v1174 = vld [vmem:[%s224 + $0xa24] sm:$0xf]
      %v1175 = vld [vmem:[%s224 + $0xa28] sm:$0xf]
      %v1176 = vld [vmem:[%s224 + $0xa2c] sm:$0xf]
      %v1177 = vld [vmem:[%s224 + $0xa30] sm:$0xf]
      %v1178 = vld [vmem:[%s224 + $0xa34] sm:$0xf]
      %v1179 = vld [vmem:[%s224 + $0xa38] sm:$0xf]
      %v1180 = vld [vmem:[%s224 + $0xa3c] sm:$0xf]
      %v1181 = vld [vmem:[%s224 + $0xa40] sm:$0xf]
      %v1182 = vld [vmem:[%s224 + $0xa44] sm:$0xf]
      %v1183 = vld [vmem:[%s224 + $0xa48] sm:$0xf]
      %v1184 = vld [vmem:[%s224 + $0xa4c] sm:$0xf]
      %v1185 = vld [vmem:[%s224 + $0xa50] sm:$0xf]
      %v1186 = vld [vmem:[%s224 + $0xa54] sm:$0xf]
      %v1187 = vld [vmem:[%s224 + $0xa58] sm:$0xf]
      %v1188 = vld [vmem:[%s224 + $0xa5c] sm:$0xf]
      %v1189 = vld [vmem:[%s224 + $0xa60] sm:$0xf]
      %v1190 = vld [vmem:[%s224 + $0xa64] sm:$0xf]
      %v1191 = vld [vmem:[%s224 + $0xa68] sm:$0xf]
      %v1192 = vld [vmem:[%s224 + $0xa6c] sm:$0xf]
      %v1193 = vld [vmem:[%s224 + $0xa70] sm:$0xf]
      %v1194 = vld [vmem:[%s224 + $0xa74] sm:$0xf]
      %v1195 = vld [vmem:[%s224 + $0xa78] sm:$0xf]
      %v1196 = vld [vmem:[%s224 + $0xa7c] sm:$0xf]
      %v1869 = vunpack.c.l.b16 %v525
      %v1870 = vunpack.c.l.b16 %v526
      %v1871 = vunpack.c.l.b16 %v527
      %v1872 = vunpack.c.l.b16 %v528
      %v1873 = vunpack.c.l.b16 %v529
      %v1874 = vunpack.c.l.b16 %v530
      %v1875 = vunpack.c.l.b16 %v531
      %v1876 = vunpack.c.l.b16 %v532
      %v1877 = vunpack.c.l.b16 %v533
      %v1878 = vunpack.c.l.b16 %v534
      %v1879 = vunpack.c.l.b16 %v535
      %v1880 = vunpack.c.l.b16 %v536
      %v1881 = vunpack.c.l.b16 %v537
      %v1882 = vunpack.c.l.b16 %v538
      %v1883 = vunpack.c.l.b16 %v539
      %v1884 = vunpack.c.l.b16 %v540
      %v1885 = vunpack.c.l.b16 %v541
      %v1886 = vunpack.c.l.b16 %v542
      %v1887 = vunpack.c.l.b16 %v543
      %v1888 = vunpack.c.l.b16 %v544
      %v1889 = vunpack.c.l.b16 %v545
      %v1890 = vunpack.c.l.b16 %v546
      %v1891 = vunpack.c.l.b16 %v547
      %v1892 = vunpack.c.l.b16 %v548
      %v1893 = vunpack.c.l.b16 %v549
      %v1894 = vunpack.c.l.b16 %v550
      %v1895 = vunpack.c.l.b16 %v551
      %v1896 = vunpack.c.l.b16 %v552
      %v1897 = vunpack.c.l.b16 %v553
      %v1898 = vunpack.c.l.b16 %v554
      %v1899 = vunpack.c.l.b16 %v555
      %v1900 = vunpack.c.l.b16 %v556
      %v1901 = vunpack.c.l.b16 %v557
      %v1902 = vunpack.c.l.b16 %v558
      %v1903 = vunpack.c.l.b16 %v559
      %v1904 = vunpack.c.l.b16 %v560
      %v1905 = vunpack.c.l.b16 %v561
      %v1906 = vunpack.c.l.b16 %v562
      %v1907 = vunpack.c.l.b16 %v563
      %v1908 = vunpack.c.l.b16 %v564
      %v1909 = vunpack.c.l.b16 %v565
      %v1910 = vunpack.c.l.b16 %v566
      %v1911 = vunpack.c.l.b16 %v567
      %v1912 = vunpack.c.l.b16 %v568
      %v1913 = vunpack.c.l.b16 %v569
      %v1914 = vunpack.c.l.b16 %v570
      %v1915 = vunpack.c.l.b16 %v571
      %v1916 = vunpack.c.l.b16 %v572
      %v1917 = vunpack.c.l.b16 %v573
      %v1918 = vunpack.c.l.b16 %v574
      %v1919 = vunpack.c.l.b16 %v575
      %v1920 = vunpack.c.l.b16 %v576
      %v1921 = vunpack.c.l.b16 %v577
      %v1922 = vunpack.c.l.b16 %v578
      %v1923 = vunpack.c.l.b16 %v579
      %v1924 = vunpack.c.l.b16 %v580
      %v1925 = vunpack.c.l.b16 %v581
      %v1926 = vunpack.c.l.b16 %v582
      %v1927 = vunpack.c.l.b16 %v583
      %v1928 = vunpack.c.l.b16 %v584
      %v1929 = vunpack.c.l.b16 %v585
      %v1930 = vunpack.c.l.b16 %v586
      %v1931 = vunpack.c.l.b16 %v587
      %v1932 = vunpack.c.l.b16 %v588
      %v1933 = vunpack.c.l.b16 %v589
      %v1934 = vunpack.c.l.b16 %v590
      %v1935 = vunpack.c.l.b16 %v591
      %v1936 = vunpack.c.l.b16 %v592
      %v1937 = vunpack.c.l.b16 %v593
      %v1938 = vunpack.c.l.b16 %v594
      %v1939 = vunpack.c.l.b16 %v595
      %v1940 = vunpack.c.l.b16 %v596
      %v1941 = vunpack.c.l.b16 %v597
      %v1942 = vunpack.c.l.b16 %v598
      %v1943 = vunpack.c.l.b16 %v599
      %v1944 = vunpack.c.l.b16 %v600
      %v1945 = vunpack.c.l.b16 %v601
      %v1946 = vunpack.c.l.b16 %v602
      %v1947 = vunpack.c.l.b16 %v603
      %v1948 = vunpack.c.l.b16 %v604
      %v1949 = vunpack.c.l.b16 %v605
      %v1950 = vunpack.c.l.b16 %v606
      %v1951 = vunpack.c.l.b16 %v607
      %v1952 = vunpack.c.l.b16 %v608
      %v1953 = vunpack.c.l.b16 %v609
      %v1954 = vunpack.c.l.b16 %v610
      %v1955 = vunpack.c.l.b16 %v611
      %v1956 = vunpack.c.l.b16 %v612
      %v1957 = vunpack.c.l.b16 %v613
      %v1958 = vunpack.c.l.b16 %v614
      %v1959 = vunpack.c.l.b16 %v615
      %v1960 = vunpack.c.l.b16 %v616
      %v1961 = vunpack.c.l.b16 %v617
      %v1962 = vunpack.c.l.b16 %v618
      %v1963 = vunpack.c.l.b16 %v619
      %v1964 = vunpack.c.l.b16 %v620
      %v1965 = vunpack.c.l.b16 %v621
      %v1966 = vunpack.c.l.b16 %v622
      %v1967 = vunpack.c.l.b16 %v623
      %v1968 = vunpack.c.l.b16 %v624
      %v1969 = vunpack.c.l.b16 %v625
      %v1970 = vunpack.c.l.b16 %v626
      %v1971 = vunpack.c.l.b16 %v627
      %v1972 = vunpack.c.l.b16 %v628
      %v1973 = vunpack.c.l.b16 %v629
      %v1974 = vunpack.c.l.b16 %v630
      %v1975 = vunpack.c.l.b16 %v631
      %v1976 = vunpack.c.l.b16 %v632
      %v1977 = vunpack.c.l.b16 %v633
      %v1978 = vunpack.c.l.b16 %v634
      %v1979 = vunpack.c.l.b16 %v635
      %v1980 = vunpack.c.l.b16 %v636
      %v1981 = vunpack.c.l.b16 %v637
      %v1982 = vunpack.c.l.b16 %v638
      %v1983 = vunpack.c.l.b16 %v639
      %v1984 = vunpack.c.l.b16 %v640
      %v1985 = vunpack.c.l.b16 %v641
      %v1986 = vunpack.c.l.b16 %v642
      %v1987 = vunpack.c.l.b16 %v643
      %v1988 = vunpack.c.l.b16 %v644
      %v1989 = vunpack.c.l.b16 %v645
      %v1990 = vunpack.c.l.b16 %v646
      %v1991 = vunpack.c.l.b16 %v647
      %v1992 = vunpack.c.l.b16 %v648
      %v1993 = vunpack.c.l.b16 %v649
      %v1994 = vunpack.c.l.b16 %v650
      %v1995 = vunpack.c.l.b16 %v651
      %v1996 = vunpack.c.l.b16 %v652
      %v1997 = vunpack.c.l.b16 %v653
      %v1998 = vunpack.c.l.b16 %v654
      %v1999 = vunpack.c.l.b16 %v655
      %v2000 = vunpack.c.l.b16 %v656
      %v2001 = vunpack.c.l.b16 %v657
      %v2002 = vunpack.c.l.b16 %v658
      %v2003 = vunpack.c.l.b16 %v659
      %v2004 = vunpack.c.l.b16 %v660
      %v2005 = vunpack.c.l.b16 %v661
      %v2006 = vunpack.c.l.b16 %v662
      %v2007 = vunpack.c.l.b16 %v663
      %v2008 = vunpack.c.l.b16 %v664
      %v2009 = vunpack.c.l.b16 %v665
      %v2010 = vunpack.c.l.b16 %v666
      %v2011 = vunpack.c.l.b16 %v667
      %v2012 = vunpack.c.l.b16 %v668
      %v2013 = vunpack.c.l.b16 %v669
      %v2014 = vunpack.c.l.b16 %v670
      %v2015 = vunpack.c.l.b16 %v671
      %v2016 = vunpack.c.l.b16 %v672
      %v2017 = vunpack.c.l.b16 %v673
      %v2018 = vunpack.c.l.b16 %v674
      %v2019 = vunpack.c.l.b16 %v675
      %v2020 = vunpack.c.l.b16 %v676
      %v2021 = vunpack.c.l.b16 %v677
      %v2022 = vunpack.c.l.b16 %v678
      %v2023 = vunpack.c.l.b16 %v679
      %v2024 = vunpack.c.l.b16 %v680
      %v2025 = vunpack.c.l.b16 %v681
      %v2026 = vunpack.c.l.b16 %v682
      %v2027 = vunpack.c.l.b16 %v683
      %v2028 = vunpack.c.l.b16 %v684
      %v2029 = vunpack.c.l.b16 %v685
      %v2030 = vunpack.c.l.b16 %v686
      %v2031 = vunpack.c.l.b16 %v687
      %v2032 = vunpack.c.l.b16 %v688
      %v2033 = vunpack.c.l.b16 %v689
      %v2034 = vunpack.c.l.b16 %v690
      %v2035 = vunpack.c.l.b16 %v691
      %v2036 = vunpack.c.l.b16 %v692
      %v2037 = vunpack.c.l.b16 %v693
      %v2038 = vunpack.c.l.b16 %v694
      %v2039 = vunpack.c.l.b16 %v695
      %v2040 = vunpack.c.l.b16 %v696
      %v2041 = vunpack.c.l.b16 %v697
      %v2042 = vunpack.c.l.b16 %v698
      %v2043 = vunpack.c.l.b16 %v699
      %v2044 = vunpack.c.l.b16 %v700
      %v2045 = vunpack.c.l.b16 %v701
      %v2046 = vunpack.c.l.b16 %v702
      %v2047 = vunpack.c.l.b16 %v703
      %v2048 = vunpack.c.l.b16 %v704
      %v2049 = vunpack.c.l.b16 %v705
      %v2050 = vunpack.c.l.b16 %v706
      %v2051 = vunpack.c.l.b16 %v707
      %v2052 = vunpack.c.l.b16 %v708
      %v2053 = vunpack.c.l.b16 %v709
      %v2054 = vunpack.c.l.b16 %v710
      %v2055 = vunpack.c.l.b16 %v711
      %v2056 = vunpack.c.l.b16 %v712
      %v2057 = vunpack.c.l.b16 %v713
      %v2058 = vunpack.c.l.b16 %v714
      %v2059 = vunpack.c.l.b16 %v715
      %v2060 = vunpack.c.l.b16 %v716
      %v2061 = vunpack.c.l.b16 %v717
      %v2062 = vunpack.c.l.b16 %v718
      %v2063 = vunpack.c.l.b16 %v719
      %v2064 = vunpack.c.l.b16 %v720
      %v2065 = vunpack.c.l.b16 %v721
      %v2066 = vunpack.c.l.b16 %v722
      %v2067 = vunpack.c.l.b16 %v723
      %v2068 = vunpack.c.l.b16 %v724
      %v2069 = vunpack.c.l.b16 %v725
      %v2070 = vunpack.c.l.b16 %v726
      %v2071 = vunpack.c.l.b16 %v727
      %v2072 = vunpack.c.l.b16 %v728
      %v2073 = vunpack.c.l.b16 %v729
      %v2074 = vunpack.c.l.b16 %v730
      %v2075 = vunpack.c.l.b16 %v731
      %v2076 = vunpack.c.l.b16 %v732
      %v2077 = vunpack.c.l.b16 %v733
      %v2078 = vunpack.c.l.b16 %v734
      %v2079 = vunpack.c.l.b16 %v735
      %v2080 = vunpack.c.l.b16 %v736
      %v2081 = vunpack.c.l.b16 %v737
      %v2082 = vunpack.c.l.b16 %v738
      %v2083 = vunpack.c.l.b16 %v739
      %v2084 = vunpack.c.l.b16 %v740
      %v2085 = vunpack.c.l.b16 %v741
      %v2086 = vunpack.c.l.b16 %v742
      %v2087 = vunpack.c.l.b16 %v743
      %v2088 = vunpack.c.l.b16 %v744
      %v2089 = vunpack.c.l.b16 %v745
      %v2090 = vunpack.c.l.b16 %v746
      %v2091 = vunpack.c.l.b16 %v747
      %v2092 = vunpack.c.l.b16 %v748
      %v2093 = vunpack.c.l.b16 %v749
      %v2094 = vunpack.c.l.b16 %v750
      %v2095 = vunpack.c.l.b16 %v751
      %v2096 = vunpack.c.l.b16 %v752
      %v2097 = vunpack.c.l.b16 %v753
      %v2098 = vunpack.c.l.b16 %v754
      %v2099 = vunpack.c.l.b16 %v755
      %v2100 = vunpack.c.l.b16 %v756
      %v2101 = vunpack.c.l.b16 %v757
      %v2102 = vunpack.c.l.b16 %v758
      %v2103 = vunpack.c.l.b16 %v759
      %v2104 = vunpack.c.l.b16 %v760
      %v2105 = vunpack.c.l.b16 %v761
      %v2106 = vunpack.c.l.b16 %v762
      %v2107 = vunpack.c.l.b16 %v763
      %v2108 = vunpack.c.l.b16 %v764
      %v2109 = vunpack.c.l.b16 %v765
      %v2110 = vunpack.c.l.b16 %v766
      %v2111 = vunpack.c.l.b16 %v767
      %v2112 = vunpack.c.l.b16 %v768
      %v2113 = vunpack.c.l.b16 %v769
      %v2114 = vunpack.c.l.b16 %v770
      %v2115 = vunpack.c.l.b16 %v771
      %v2116 = vunpack.c.l.b16 %v772
      %v2117 = vunpack.c.l.b16 %v773
      %v2118 = vunpack.c.l.b16 %v774
      %v2119 = vunpack.c.l.b16 %v775
      %v2120 = vunpack.c.l.b16 %v776
      %v2121 = vunpack.c.l.b16 %v777
      %v2122 = vunpack.c.l.b16 %v778
      %v2123 = vunpack.c.l.b16 %v779
      %v2124 = vunpack.c.l.b16 %v780
      %v2125 = vunpack.c.l.b16 %v781
      %v2126 = vunpack.c.l.b16 %v782
      %v2127 = vunpack.c.l.b16 %v783
      %v2128 = vunpack.c.l.b16 %v784
      %v2129 = vunpack.c.l.b16 %v785
      %v2130 = vunpack.c.l.b16 %v786
      %v2131 = vunpack.c.l.b16 %v787
      %v2132 = vunpack.c.l.b16 %v788
      %v2133 = vunpack.c.l.b16 %v789
      %v2134 = vunpack.c.l.b16 %v790
      %v2135 = vunpack.c.l.b16 %v791
      %v2136 = vunpack.c.l.b16 %v792
      %v2137 = vunpack.c.l.b16 %v793
      %v2138 = vunpack.c.l.b16 %v794
      %v2139 = vunpack.c.l.b16 %v795
      %v2140 = vunpack.c.l.b16 %v796
      %v2141 = vunpack.c.l.b16 %v797
      %v2142 = vunpack.c.l.b16 %v798
      %v2143 = vunpack.c.l.b16 %v799
      %v2144 = vunpack.c.l.b16 %v800
      %v2145 = vunpack.c.l.b16 %v801
      %v2146 = vunpack.c.l.b16 %v802
      %v2147 = vunpack.c.l.b16 %v803
      %v2148 = vunpack.c.l.b16 %v804
      %v2149 = vunpack.c.l.b16 %v805
      %v2150 = vunpack.c.l.b16 %v806
      %v2151 = vunpack.c.l.b16 %v807
      %v2152 = vunpack.c.l.b16 %v808
      %v2153 = vunpack.c.l.b16 %v809
      %v2154 = vunpack.c.l.b16 %v810
      %v2155 = vunpack.c.l.b16 %v811
      %v2156 = vunpack.c.l.b16 %v812
      %v2157 = vunpack.c.l.b16 %v813
      %v2158 = vunpack.c.l.b16 %v814
      %v2159 = vunpack.c.l.b16 %v815
      %v2160 = vunpack.c.l.b16 %v816
      %v2161 = vunpack.c.l.b16 %v817
      %v2162 = vunpack.c.l.b16 %v818
      %v2163 = vunpack.c.l.b16 %v819
      %v2164 = vunpack.c.l.b16 %v820
      %v2165 = vunpack.c.l.b16 %v821
      %v2166 = vunpack.c.l.b16 %v822
      %v2167 = vunpack.c.l.b16 %v823
      %v2168 = vunpack.c.l.b16 %v824
      %v2169 = vunpack.c.l.b16 %v825
      %v2170 = vunpack.c.l.b16 %v826
      %v2171 = vunpack.c.l.b16 %v827
      %v2172 = vunpack.c.l.b16 %v828
      %v2173 = vunpack.c.l.b16 %v829
      %v2174 = vunpack.c.l.b16 %v830
      %v2175 = vunpack.c.l.b16 %v831
      %v2176 = vunpack.c.l.b16 %v832
      %v2177 = vunpack.c.l.b16 %v833
      %v2178 = vunpack.c.l.b16 %v834
      %v2179 = vunpack.c.l.b16 %v835
      %v2180 = vunpack.c.l.b16 %v836
      %v2181 = vunpack.c.l.b16 %v837
      %v2182 = vunpack.c.l.b16 %v838
      %v2183 = vunpack.c.l.b16 %v839
      %v2184 = vunpack.c.l.b16 %v840
      %v2185 = vunpack.c.l.b16 %v841
      %v2186 = vunpack.c.l.b16 %v842
      %v2187 = vunpack.c.l.b16 %v843
      %v2188 = vunpack.c.l.b16 %v844
      %v2189 = vunpack.c.l.b16 %v845
      %v2190 = vunpack.c.l.b16 %v846
      %v2191 = vunpack.c.l.b16 %v847
      %v2192 = vunpack.c.l.b16 %v848
      %v2193 = vunpack.c.l.b16 %v849
      %v2194 = vunpack.c.l.b16 %v850
      %v2195 = vunpack.c.l.b16 %v851
      %v2196 = vunpack.c.l.b16 %v852
      %v2197 = vunpack.c.l.b16 %v853
      %v2198 = vunpack.c.l.b16 %v854
      %v2199 = vunpack.c.l.b16 %v855
      %v2200 = vunpack.c.l.b16 %v856
      %v2201 = vunpack.c.l.b16 %v857
      %v2202 = vunpack.c.l.b16 %v858
      %v2203 = vunpack.c.l.b16 %v859
      %v2204 = vunpack.c.l.b16 %v860
      %v2205 = vunpack.c.l.b16 %v861
      %v2206 = vunpack.c.l.b16 %v862
      %v2207 = vunpack.c.l.b16 %v863
      %v2208 = vunpack.c.l.b16 %v864
      %v2209 = vunpack.c.l.b16 %v865
      %v2210 = vunpack.c.l.b16 %v866
      %v2211 = vunpack.c.l.b16 %v867
      %v2212 = vunpack.c.l.b16 %v868
      %v2213 = vunpack.c.l.b16 %v869
      %v2214 = vunpack.c.l.b16 %v870
      %v2215 = vunpack.c.l.b16 %v871
      %v2216 = vunpack.c.l.b16 %v872
      %v2217 = vunpack.c.l.b16 %v873
      %v2218 = vunpack.c.l.b16 %v874
      %v2219 = vunpack.c.l.b16 %v875
      %v2220 = vunpack.c.l.b16 %v876
      %v2221 = vunpack.c.l.b16 %v877
      %v2222 = vunpack.c.l.b16 %v878
      %v2223 = vunpack.c.l.b16 %v879
      %v2224 = vunpack.c.l.b16 %v880
      %v2225 = vunpack.c.l.b16 %v881
      %v2226 = vunpack.c.l.b16 %v882
      %v2227 = vunpack.c.l.b16 %v883
      %v2228 = vunpack.c.l.b16 %v884
      %v2229 = vunpack.c.l.b16 %v885
      %v2230 = vunpack.c.l.b16 %v886
      %v2231 = vunpack.c.l.b16 %v887
      %v2232 = vunpack.c.l.b16 %v888
      %v2233 = vunpack.c.l.b16 %v889
      %v2234 = vunpack.c.l.b16 %v890
      %v2235 = vunpack.c.l.b16 %v891
      %v2236 = vunpack.c.l.b16 %v892
      %v2237 = vunpack.c.l.b16 %v893
      %v2238 = vunpack.c.l.b16 %v894
      %v2239 = vunpack.c.l.b16 %v895
      %v2240 = vunpack.c.l.b16 %v896
      %v2241 = vunpack.c.l.b16 %v897
      %v2242 = vunpack.c.l.b16 %v898
      %v2243 = vunpack.c.l.b16 %v899
      %v2244 = vunpack.c.l.b16 %v900
      %v2245 = vunpack.c.l.b16 %v901
      %v2246 = vunpack.c.l.b16 %v902
      %v2247 = vunpack.c.l.b16 %v903
      %v2248 = vunpack.c.l.b16 %v904
      %v2249 = vunpack.c.l.b16 %v905
      %v2250 = vunpack.c.l.b16 %v906
      %v2251 = vunpack.c.l.b16 %v907
      %v2252 = vunpack.c.l.b16 %v908
      %v2253 = vunpack.c.l.b16 %v909
      %v2254 = vunpack.c.l.b16 %v910
      %v2255 = vunpack.c.l.b16 %v911
      %v2256 = vunpack.c.l.b16 %v912
      %v2257 = vunpack.c.l.b16 %v913
      %v2258 = vunpack.c.l.b16 %v914
      %v2259 = vunpack.c.l.b16 %v915
      %v2260 = vunpack.c.l.b16 %v916
      %v2261 = vunpack.c.l.b16 %v917
      %v2262 = vunpack.c.l.b16 %v918
      %v2263 = vunpack.c.l.b16 %v919
      %v2264 = vunpack.c.l.b16 %v920
      %v2265 = vunpack.c.l.b16 %v921
      %v2266 = vunpack.c.l.b16 %v922
      %v2267 = vunpack.c.l.b16 %v923
      %v2268 = vunpack.c.l.b16 %v924
      %v2269 = vunpack.c.l.b16 %v925
      %v2270 = vunpack.c.l.b16 %v926
      %v2271 = vunpack.c.l.b16 %v927
      %v2272 = vunpack.c.l.b16 %v928
      %v2273 = vunpack.c.l.b16 %v929
      %v2274 = vunpack.c.l.b16 %v930
      %v2275 = vunpack.c.l.b16 %v931
      %v2276 = vunpack.c.l.b16 %v932
      %v2277 = vunpack.c.l.b16 %v933
      %v2278 = vunpack.c.l.b16 %v934
      %v2279 = vunpack.c.l.b16 %v935
      %v2280 = vunpack.c.l.b16 %v936
      %v2281 = vunpack.c.l.b16 %v937
      %v2282 = vunpack.c.l.b16 %v938
      %v2283 = vunpack.c.l.b16 %v939
      %v2284 = vunpack.c.l.b16 %v940
      %v2285 = vunpack.c.l.b16 %v941
      %v2286 = vunpack.c.l.b16 %v942
      %v2287 = vunpack.c.l.b16 %v943
      %v2288 = vunpack.c.l.b16 %v944
      %v2289 = vunpack.c.l.b16 %v945
      %v2290 = vunpack.c.l.b16 %v946
      %v2291 = vunpack.c.l.b16 %v947
      %v2292 = vunpack.c.l.b16 %v948
      %v2293 = vunpack.c.l.b16 %v949
      %v2294 = vunpack.c.l.b16 %v950
      %v2295 = vunpack.c.l.b16 %v951
      %v2296 = vunpack.c.l.b16 %v952
      %v2297 = vunpack.c.l.b16 %v953
      %v2298 = vunpack.c.l.b16 %v954
      %v2299 = vunpack.c.l.b16 %v955
      %v2300 = vunpack.c.l.b16 %v956
      %v2301 = vunpack.c.l.b16 %v957
      %v2302 = vunpack.c.l.b16 %v958
      %v2303 = vunpack.c.l.b16 %v959
      %v2304 = vunpack.c.l.b16 %v960
      %v2305 = vunpack.c.l.b16 %v961
      %v2306 = vunpack.c.l.b16 %v962
      %v2307 = vunpack.c.l.b16 %v963
      %v2308 = vunpack.c.l.b16 %v964
      %v2309 = vunpack.c.l.b16 %v965
      %v2310 = vunpack.c.l.b16 %v966
      %v2311 = vunpack.c.l.b16 %v967
      %v2312 = vunpack.c.l.b16 %v968
      %v2313 = vunpack.c.l.b16 %v969
      %v2314 = vunpack.c.l.b16 %v970
      %v2315 = vunpack.c.l.b16 %v971
      %v2316 = vunpack.c.l.b16 %v972
      %v2317 = vunpack.c.l.b16 %v973
      %v2318 = vunpack.c.l.b16 %v974
      %v2319 = vunpack.c.l.b16 %v975
      %v2320 = vunpack.c.l.b16 %v976
      %v2321 = vunpack.c.l.b16 %v977
      %v2322 = vunpack.c.l.b16 %v978
      %v2323 = vunpack.c.l.b16 %v979
      %v2324 = vunpack.c.l.b16 %v980
      %v2325 = vunpack.c.l.b16 %v981
      %v2326 = vunpack.c.l.b16 %v982
      %v2327 = vunpack.c.l.b16 %v983
      %v2328 = vunpack.c.l.b16 %v984
      %v2329 = vunpack.c.l.b16 %v985
      %v2330 = vunpack.c.l.b16 %v986
      %v2331 = vunpack.c.l.b16 %v987
      %v2332 = vunpack.c.l.b16 %v988
      %v2333 = vunpack.c.l.b16 %v989
      %v2334 = vunpack.c.l.b16 %v990
      %v2335 = vunpack.c.l.b16 %v991
      %v2336 = vunpack.c.l.b16 %v992
      %v2337 = vunpack.c.l.b16 %v993
      %v2338 = vunpack.c.l.b16 %v994
      %v2339 = vunpack.c.l.b16 %v995
      %v2340 = vunpack.c.l.b16 %v996
      %v2341 = vunpack.c.l.b16 %v997
      %v2342 = vunpack.c.l.b16 %v998
      %v2343 = vunpack.c.l.b16 %v999
      %v2344 = vunpack.c.l.b16 %v1000
      %v2345 = vunpack.c.l.b16 %v1001
      %v2346 = vunpack.c.l.b16 %v1002
      %v2347 = vunpack.c.l.b16 %v1003
      %v2348 = vunpack.c.l.b16 %v1004
      %v2349 = vunpack.c.l.b16 %v1005
      %v2350 = vunpack.c.l.b16 %v1006
      %v2351 = vunpack.c.l.b16 %v1007
      %v2352 = vunpack.c.l.b16 %v1008
      %v2353 = vunpack.c.l.b16 %v1009
      %v2354 = vunpack.c.l.b16 %v1010
      %v2355 = vunpack.c.l.b16 %v1011
      %v2356 = vunpack.c.l.b16 %v1012
      %v2357 = vunpack.c.l.b16 %v1013
      %v2358 = vunpack.c.l.b16 %v1014
      %v2359 = vunpack.c.l.b16 %v1015
      %v2360 = vunpack.c.l.b16 %v1016
      %v2361 = vunpack.c.l.b16 %v1017
      %v2362 = vunpack.c.l.b16 %v1018
      %v2363 = vunpack.c.l.b16 %v1019
      %v2364 = vunpack.c.l.b16 %v1020
      %v2365 = vunpack.c.l.b16 %v1021
      %v2366 = vunpack.c.l.b16 %v1022
      %v2367 = vunpack.c.l.b16 %v1023
      %v2368 = vunpack.c.l.b16 %v1024
      %v2369 = vunpack.c.l.b16 %v1025
      %v2370 = vunpack.c.l.b16 %v1026
      %v2371 = vunpack.c.l.b16 %v1027
      %v2372 = vunpack.c.l.b16 %v1028
      %v2373 = vunpack.c.l.b16 %v1029
      %v2374 = vunpack.c.l.b16 %v1030
      %v2375 = vunpack.c.l.b16 %v1031
      %v2376 = vunpack.c.l.b16 %v1032
      %v2377 = vunpack.c.l.b16 %v1033
      %v2378 = vunpack.c.l.b16 %v1034
      %v2379 = vunpack.c.l.b16 %v1035
      %v2380 = vunpack.c.l.b16 %v1036
      %v2381 = vunpack.c.l.b16 %v1037
      %v2382 = vunpack.c.l.b16 %v1038
      %v2383 = vunpack.c.l.b16 %v1039
      %v2384 = vunpack.c.l.b16 %v1040
      %v2385 = vunpack.c.l.b16 %v1041
      %v2386 = vunpack.c.l.b16 %v1042
      %v2387 = vunpack.c.l.b16 %v1043
      %v2388 = vunpack.c.l.b16 %v1044
      %v2389 = vunpack.c.l.b16 %v1045
      %v2390 = vunpack.c.l.b16 %v1046
      %v2391 = vunpack.c.l.b16 %v1047
      %v2392 = vunpack.c.l.b16 %v1048
      %v2393 = vunpack.c.l.b16 %v1049
      %v2394 = vunpack.c.l.b16 %v1050
      %v2395 = vunpack.c.l.b16 %v1051
      %v2396 = vunpack.c.l.b16 %v1052
      %v2397 = vunpack.c.l.b16 %v1053
      %v2398 = vunpack.c.l.b16 %v1054
      %v2399 = vunpack.c.l.b16 %v1055
      %v2400 = vunpack.c.l.b16 %v1056
      %v2401 = vunpack.c.l.b16 %v1057
      %v2402 = vunpack.c.l.b16 %v1058
      %v2403 = vunpack.c.l.b16 %v1059
      %v2404 = vunpack.c.l.b16 %v1060
      %v2405 = vunpack.c.l.b16 %v1061
      %v2406 = vunpack.c.l.b16 %v1062
      %v2407 = vunpack.c.l.b16 %v1063
      %v2408 = vunpack.c.l.b16 %v1064
      %v2409 = vunpack.c.l.b16 %v1065
      %v2410 = vunpack.c.l.b16 %v1066
      %v2411 = vunpack.c.l.b16 %v1067
      %v2412 = vunpack.c.l.b16 %v1068
      %v2413 = vunpack.c.l.b16 %v1069
      %v2414 = vunpack.c.l.b16 %v1070
      %v2415 = vunpack.c.l.b16 %v1071
      %v2416 = vunpack.c.l.b16 %v1072
      %v2417 = vunpack.c.l.b16 %v1073
      %v2418 = vunpack.c.l.b16 %v1074
      %v2419 = vunpack.c.l.b16 %v1075
      %v2420 = vunpack.c.l.b16 %v1076
      %v2421 = vunpack.c.l.b16 %v1077
      %v2422 = vunpack.c.l.b16 %v1078
      %v2423 = vunpack.c.l.b16 %v1079
      %v2424 = vunpack.c.l.b16 %v1080
      %v2425 = vunpack.c.l.b16 %v1081
      %v2426 = vunpack.c.l.b16 %v1082
      %v2427 = vunpack.c.l.b16 %v1083
      %v2428 = vunpack.c.l.b16 %v1084
      %v2429 = vunpack.c.l.b16 %v1085
      %v2430 = vunpack.c.l.b16 %v1086
      %v2431 = vunpack.c.l.b16 %v1087
      %v2432 = vunpack.c.l.b16 %v1088
      %v2433 = vunpack.c.l.b16 %v1089
      %v2434 = vunpack.c.l.b16 %v1090
      %v2435 = vunpack.c.l.b16 %v1091
      %v2436 = vunpack.c.l.b16 %v1092
      %v2437 = vunpack.c.l.b16 %v1093
      %v2438 = vunpack.c.l.b16 %v1094
      %v2439 = vunpack.c.l.b16 %v1095
      %v2440 = vunpack.c.l.b16 %v1096
      %v2441 = vunpack.c.l.b16 %v1097
      %v2442 = vunpack.c.l.b16 %v1098
      %v2443 = vunpack.c.l.b16 %v1099
      %v2444 = vunpack.c.l.b16 %v1100
      %v2445 = vunpack.c.l.b16 %v1101
      %v2446 = vunpack.c.l.b16 %v1102
      %v2447 = vunpack.c.l.b16 %v1103
      %v2448 = vunpack.c.l.b16 %v1104
      %v2449 = vunpack.c.l.b16 %v1105
      %v2450 = vunpack.c.l.b16 %v1106
      %v2451 = vunpack.c.l.b16 %v1107
      %v2452 = vunpack.c.l.b16 %v1108
      %v2453 = vunpack.c.l.b16 %v1109
      %v2454 = vunpack.c.l.b16 %v1110
      %v2455 = vunpack.c.l.b16 %v1111
      %v2456 = vunpack.c.l.b16 %v1112
      %v2457 = vunpack.c.l.b16 %v1113
      %v2458 = vunpack.c.l.b16 %v1114
      %v2459 = vunpack.c.l.b16 %v1115
      %v2460 = vunpack.c.l.b16 %v1116
      %v2461 = vunpack.c.l.b16 %v1117
      %v2462 = vunpack.c.l.b16 %v1118
      %v2463 = vunpack.c.l.b16 %v1119
      %v2464 = vunpack.c.l.b16 %v1120
      %v2465 = vunpack.c.l.b16 %v1121
      %v2466 = vunpack.c.l.b16 %v1122
      %v2467 = vunpack.c.l.b16 %v1123
      %v2468 = vunpack.c.l.b16 %v1124
      %v2469 = vunpack.c.l.b16 %v1125
      %v2470 = vunpack.c.l.b16 %v1126
      %v2471 = vunpack.c.l.b16 %v1127
      %v2472 = vunpack.c.l.b16 %v1128
      %v2473 = vunpack.c.l.b16 %v1129
      %v2474 = vunpack.c.l.b16 %v1130
      %v2475 = vunpack.c.l.b16 %v1131
      %v2476 = vunpack.c.l.b16 %v1132
      %v2477 = vunpack.c.l.b16 %v1133
      %v2478 = vunpack.c.l.b16 %v1134
      %v2479 = vunpack.c.l.b16 %v1135
      %v2480 = vunpack.c.l.b16 %v1136
      %v2481 = vunpack.c.l.b16 %v1137
      %v2482 = vunpack.c.l.b16 %v1138
      %v2483 = vunpack.c.l.b16 %v1139
      %v2484 = vunpack.c.l.b16 %v1140
      %v2485 = vunpack.c.l.b16 %v1141
      %v2486 = vunpack.c.l.b16 %v1142
      %v2487 = vunpack.c.l.b16 %v1143
      %v2488 = vunpack.c.l.b16 %v1144
      %v2489 = vunpack.c.l.b16 %v1145
      %v2490 = vunpack.c.l.b16 %v1146
      %v2491 = vunpack.c.l.b16 %v1147
      %v2492 = vunpack.c.l.b16 %v1148
      %v2493 = vunpack.c.l.b16 %v1149
      %v2494 = vunpack.c.l.b16 %v1150
      %v2495 = vunpack.c.l.b16 %v1151
      %v2496 = vunpack.c.l.b16 %v1152
      %v2497 = vunpack.c.l.b16 %v1153
      %v2498 = vunpack.c.l.b16 %v1154
      %v2499 = vunpack.c.l.b16 %v1155
      %v2500 = vunpack.c.l.b16 %v1156
      %v2501 = vunpack.c.l.b16 %v1157
      %v2502 = vunpack.c.l.b16 %v1158
      %v2503 = vunpack.c.l.b16 %v1159
      %v2504 = vunpack.c.l.b16 %v1160
      %v2505 = vunpack.c.l.b16 %v1161
      %v2506 = vunpack.c.l.b16 %v1162
      %v2507 = vunpack.c.l.b16 %v1163
      %v2508 = vunpack.c.l.b16 %v1164
      %v2509 = vunpack.c.l.b16 %v1165
      %v2510 = vunpack.c.l.b16 %v1166
      %v2511 = vunpack.c.l.b16 %v1167
      %v2512 = vunpack.c.l.b16 %v1168
      %v2513 = vunpack.c.l.b16 %v1169
      %v2514 = vunpack.c.l.b16 %v1170
      %v2515 = vunpack.c.l.b16 %v1171
      %v2516 = vunpack.c.l.b16 %v1172
      %v2517 = vunpack.c.l.b16 %v1173
      %v2518 = vunpack.c.l.b16 %v1174
      %v2519 = vunpack.c.l.b16 %v1175
      %v2520 = vunpack.c.l.b16 %v1176
      %v2521 = vunpack.c.l.b16 %v1177
      %v2522 = vunpack.c.l.b16 %v1178
      %v2523 = vunpack.c.l.b16 %v1179
      %v2524 = vunpack.c.l.b16 %v1180
      %v2525 = vunpack.c.l.b16 %v1181
      %v2526 = vunpack.c.l.b16 %v1182
      %v2527 = vunpack.c.l.b16 %v1183
      %v2528 = vunpack.c.l.b16 %v1184
      %v2529 = vunpack.c.l.b16 %v1185
      %v2530 = vunpack.c.l.b16 %v1186
      %v2531 = vunpack.c.l.b16 %v1187
      %v2532 = vunpack.c.l.b16 %v1188
      %v2533 = vunpack.c.l.b16 %v1189
      %v2534 = vunpack.c.l.b16 %v1190
      %v2535 = vunpack.c.l.b16 %v1191
      %v2536 = vunpack.c.l.b16 %v1192
      %v2537 = vunpack.c.l.b16 %v1193
      %v2538 = vunpack.c.l.b16 %v1194
      %v2539 = vunpack.c.l.b16 %v1195
      %v2540 = vunpack.c.l.b16 %v1196
      %v2541 = vpack.c.b16 %v1870, %v1869
      %v2542 = vpack.c.b16 %v1872, %v1871
      %v2543 = vpack.c.b16 %v1874, %v1873
      %v2544 = vpack.c.b16 %v1876, %v1875
      %v2545 = vpack.c.b16 %v1878, %v1877
      %v2546 = vpack.c.b16 %v1880, %v1879
      %v2547 = vpack.c.b16 %v1882, %v1881
      %v2548 = vpack.c.b16 %v1884, %v1883
      %v2549 = vpack.c.b16 %v1886, %v1885
      %v2550 = vpack.c.b16 %v1888, %v1887
      %v2551 = vpack.c.b16 %v1890, %v1889
      %v2552 = vpack.c.b16 %v1892, %v1891
      %v2553 = vpack.c.b16 %v1894, %v1893
      %v2554 = vpack.c.b16 %v1896, %v1895
      %v2555 = vpack.c.b16 %v1898, %v1897
      %v2556 = vpack.c.b16 %v1900, %v1899
      %v2557 = vpack.c.b16 %v1902, %v1901
      %v2558 = vpack.c.b16 %v1904, %v1903
      %v2559 = vpack.c.b16 %v1906, %v1905
      %v2560 = vpack.c.b16 %v1908, %v1907
      %v2561 = vpack.c.b16 %v1910, %v1909
      %v2562 = vpack.c.b16 %v1912, %v1911
      %v2563 = vpack.c.b16 %v1914, %v1913
      %v2564 = vpack.c.b16 %v1916, %v1915
      %v2565 = vpack.c.b16 %v1918, %v1917
      %v2566 = vpack.c.b16 %v1920, %v1919
      %v2567 = vpack.c.b16 %v1922, %v1921
      %v2568 = vpack.c.b16 %v1924, %v1923
      %v2569 = vpack.c.b16 %v1926, %v1925
      %v2570 = vpack.c.b16 %v1928, %v1927
      %v2571 = vpack.c.b16 %v1930, %v1929
      %v2572 = vpack.c.b16 %v1932, %v1931
      %v2573 = vpack.c.b16 %v1934, %v1933
      %v2574 = vpack.c.b16 %v1936, %v1935
      %v2575 = vpack.c.b16 %v1938, %v1937
      %v2576 = vpack.c.b16 %v1940, %v1939
      %v2577 = vpack.c.b16 %v1942, %v1941
      %v2578 = vpack.c.b16 %v1944, %v1943
      %v2579 = vpack.c.b16 %v1946, %v1945
      %v2580 = vpack.c.b16 %v1948, %v1947
      %v2581 = vpack.c.b16 %v1950, %v1949
      %v2582 = vpack.c.b16 %v1952, %v1951
      %v2583 = vpack.c.b16 %v1954, %v1953
      %v2584 = vpack.c.b16 %v1956, %v1955
      %v2585 = vpack.c.b16 %v1958, %v1957
      %v2586 = vpack.c.b16 %v1960, %v1959
      %v2587 = vpack.c.b16 %v1962, %v1961
      %v2588 = vpack.c.b16 %v1964, %v1963
      %v2589 = vpack.c.b16 %v1966, %v1965
      %v2590 = vpack.c.b16 %v1968, %v1967
      %v2591 = vpack.c.b16 %v1970, %v1969
      %v2592 = vpack.c.b16 %v1972, %v1971
      %v2593 = vpack.c.b16 %v1974, %v1973
      %v2594 = vpack.c.b16 %v1976, %v1975
      %v2595 = vpack.c.b16 %v1978, %v1977
      %v2596 = vpack.c.b16 %v1980, %v1979
      %v2597 = vpack.c.b16 %v1982, %v1981
      %v2598 = vpack.c.b16 %v1984, %v1983
      %v2599 = vpack.c.b16 %v1986, %v1985
      %v2600 = vpack.c.b16 %v1988, %v1987
      %v2601 = vpack.c.b16 %v1990, %v1989
      %v2602 = vpack.c.b16 %v1992, %v1991
      %v2603 = vpack.c.b16 %v1994, %v1993
      %v2604 = vpack.c.b16 %v1996, %v1995
      %v2605 = vpack.c.b16 %v1998, %v1997
      %v2606 = vpack.c.b16 %v2000, %v1999
      %v2607 = vpack.c.b16 %v2002, %v2001
      %v2608 = vpack.c.b16 %v2004, %v2003
      %v2609 = vpack.c.b16 %v2006, %v2005
      %v2610 = vpack.c.b16 %v2008, %v2007
      %v2611 = vpack.c.b16 %v2010, %v2009
      %v2612 = vpack.c.b16 %v2012, %v2011
      %v2613 = vpack.c.b16 %v2014, %v2013
      %v2614 = vpack.c.b16 %v2016, %v2015
      %v2615 = vpack.c.b16 %v2018, %v2017
      %v2616 = vpack.c.b16 %v2020, %v2019
      %v2617 = vpack.c.b16 %v2022, %v2021
      %v2618 = vpack.c.b16 %v2024, %v2023
      %v2619 = vpack.c.b16 %v2026, %v2025
      %v2620 = vpack.c.b16 %v2028, %v2027
      %v2621 = vpack.c.b16 %v2030, %v2029
      %v2622 = vpack.c.b16 %v2032, %v2031
      %v2623 = vpack.c.b16 %v2034, %v2033
      %v2624 = vpack.c.b16 %v2036, %v2035
      %v2625 = vpack.c.b16 %v2038, %v2037
      %v2626 = vpack.c.b16 %v2040, %v2039
      %v2627 = vpack.c.b16 %v2042, %v2041
      %v2628 = vpack.c.b16 %v2044, %v2043
      %v2629 = vpack.c.b16 %v2046, %v2045
      %v2630 = vpack.c.b16 %v2048, %v2047
      %v2631 = vpack.c.b16 %v2050, %v2049
      %v2632 = vpack.c.b16 %v2052, %v2051
      %v2633 = vpack.c.b16 %v2054, %v2053
      %v2634 = vpack.c.b16 %v2056, %v2055
      %v2635 = vpack.c.b16 %v2058, %v2057
      %v2636 = vpack.c.b16 %v2060, %v2059
      %v2637 = vpack.c.b16 %v2062, %v2061
      %v2638 = vpack.c.b16 %v2064, %v2063
      %v2639 = vpack.c.b16 %v2066, %v2065
      %v2640 = vpack.c.b16 %v2068, %v2067
      %v2641 = vpack.c.b16 %v2070, %v2069
      %v2642 = vpack.c.b16 %v2072, %v2071
      %v2643 = vpack.c.b16 %v2074, %v2073
      %v2644 = vpack.c.b16 %v2076, %v2075
      %v2645 = vpack.c.b16 %v2078, %v2077
      %v2646 = vpack.c.b16 %v2080, %v2079
      %v2647 = vpack.c.b16 %v2082, %v2081
      %v2648 = vpack.c.b16 %v2084, %v2083
      %v2649 = vpack.c.b16 %v2086, %v2085
      %v2650 = vpack.c.b16 %v2088, %v2087
      %v2651 = vpack.c.b16 %v2090, %v2089
      %v2652 = vpack.c.b16 %v2092, %v2091
      %v2653 = vpack.c.b16 %v2094, %v2093
      %v2654 = vpack.c.b16 %v2096, %v2095
      %v2655 = vpack.c.b16 %v2098, %v2097
      %v2656 = vpack.c.b16 %v2100, %v2099
      %v2657 = vpack.c.b16 %v2102, %v2101
      %v2658 = vpack.c.b16 %v2104, %v2103
      %v2659 = vpack.c.b16 %v2106, %v2105
      %v2660 = vpack.c.b16 %v2108, %v2107
      %v2661 = vpack.c.b16 %v2110, %v2109
      %v2662 = vpack.c.b16 %v2112, %v2111
      %v2663 = vpack.c.b16 %v2114, %v2113
      %v2664 = vpack.c.b16 %v2116, %v2115
      %v2665 = vpack.c.b16 %v2118, %v2117
      %v2666 = vpack.c.b16 %v2120, %v2119
      %v2667 = vpack.c.b16 %v2122, %v2121
      %v2668 = vpack.c.b16 %v2124, %v2123
      %v2669 = vpack.c.b16 %v2126, %v2125
      %v2670 = vpack.c.b16 %v2128, %v2127
      %v2671 = vpack.c.b16 %v2130, %v2129
      %v2672 = vpack.c.b16 %v2132, %v2131
      %v2673 = vpack.c.b16 %v2134, %v2133
      %v2674 = vpack.c.b16 %v2136, %v2135
      %v2675 = vpack.c.b16 %v2138, %v2137
      %v2676 = vpack.c.b16 %v2140, %v2139
      %v2677 = vpack.c.b16 %v2142, %v2141
      %v2678 = vpack.c.b16 %v2144, %v2143
      %v2679 = vpack.c.b16 %v2146, %v2145
      %v2680 = vpack.c.b16 %v2148, %v2147
      %v2681 = vpack.c.b16 %v2150, %v2149
      %v2682 = vpack.c.b16 %v2152, %v2151
      %v2683 = vpack.c.b16 %v2154, %v2153
      %v2684 = vpack.c.b16 %v2156, %v2155
      %v2685 = vpack.c.b16 %v2158, %v2157
      %v2686 = vpack.c.b16 %v2160, %v2159
      %v2687 = vpack.c.b16 %v2162, %v2161
      %v2688 = vpack.c.b16 %v2164, %v2163
      %v2689 = vpack.c.b16 %v2166, %v2165
      %v2690 = vpack.c.b16 %v2168, %v2167
      %v2691 = vpack.c.b16 %v2170, %v2169
      %v2692 = vpack.c.b16 %v2172, %v2171
      %v2693 = vpack.c.b16 %v2174, %v2173
      %v2694 = vpack.c.b16 %v2176, %v2175
      %v2695 = vpack.c.b16 %v2178, %v2177
      %v2696 = vpack.c.b16 %v2180, %v2179
      %v2697 = vpack.c.b16 %v2182, %v2181
      %v2698 = vpack.c.b16 %v2184, %v2183
      %v2699 = vpack.c.b16 %v2186, %v2185
      %v2700 = vpack.c.b16 %v2188, %v2187
      %v2701 = vpack.c.b16 %v2190, %v2189
      %v2702 = vpack.c.b16 %v2192, %v2191
      %v2703 = vpack.c.b16 %v2194, %v2193
      %v2704 = vpack.c.b16 %v2196, %v2195
      %v2705 = vpack.c.b16 %v2198, %v2197
      %v2706 = vpack.c.b16 %v2200, %v2199
      %v2707 = vpack.c.b16 %v2202, %v2201
      %v2708 = vpack.c.b16 %v2204, %v2203
      %v2709 = vpack.c.b16 %v2206, %v2205
      %v2710 = vpack.c.b16 %v2208, %v2207
      %v2711 = vpack.c.b16 %v2210, %v2209
      %v2712 = vpack.c.b16 %v2212, %v2211
      %v2713 = vpack.c.b16 %v2214, %v2213
      %v2714 = vpack.c.b16 %v2216, %v2215
      %v2715 = vpack.c.b16 %v2218, %v2217
      %v2716 = vpack.c.b16 %v2220, %v2219
      %v2717 = vpack.c.b16 %v2222, %v2221
      %v2718 = vpack.c.b16 %v2224, %v2223
      %v2719 = vpack.c.b16 %v2226, %v2225
      %v2720 = vpack.c.b16 %v2228, %v2227
      %v2721 = vpack.c.b16 %v2230, %v2229
      %v2722 = vpack.c.b16 %v2232, %v2231
      %v2723 = vpack.c.b16 %v2234, %v2233
      %v2724 = vpack.c.b16 %v2236, %v2235
      %v2725 = vpack.c.b16 %v2238, %v2237
      %v2726 = vpack.c.b16 %v2240, %v2239
      %v2727 = vpack.c.b16 %v2242, %v2241
      %v2728 = vpack.c.b16 %v2244, %v2243
      %v2729 = vpack.c.b16 %v2246, %v2245
      %v2730 = vpack.c.b16 %v2248, %v2247
      %v2731 = vpack.c.b16 %v2250, %v2249
      %v2732 = vpack.c.b16 %v2252, %v2251
      %v2733 = vpack.c.b16 %v2254, %v2253
      %v2734 = vpack.c.b16 %v2256, %v2255
      %v2735 = vpack.c.b16 %v2258, %v2257
      %v2736 = vpack.c.b16 %v2260, %v2259
      %v2737 = vpack.c.b16 %v2262, %v2261
      %v2738 = vpack.c.b16 %v2264, %v2263
      %v2739 = vpack.c.b16 %v2266, %v2265
      %v2740 = vpack.c.b16 %v2268, %v2267
      %v2741 = vpack.c.b16 %v2270, %v2269
      %v2742 = vpack.c.b16 %v2272, %v2271
      %v2743 = vpack.c.b16 %v2274, %v2273
      %v2744 = vpack.c.b16 %v2276, %v2275
      %v2745 = vpack.c.b16 %v2278, %v2277
      %v2746 = vpack.c.b16 %v2280, %v2279
      %v2747 = vpack.c.b16 %v2282, %v2281
      %v2748 = vpack.c.b16 %v2284, %v2283
      %v2749 = vpack.c.b16 %v2286, %v2285
      %v2750 = vpack.c.b16 %v2288, %v2287
      %v2751 = vpack.c.b16 %v2290, %v2289
      %v2752 = vpack.c.b16 %v2292, %v2291
      %v2753 = vpack.c.b16 %v2294, %v2293
      %v2754 = vpack.c.b16 %v2296, %v2295
      %v2755 = vpack.c.b16 %v2298, %v2297
      %v2756 = vpack.c.b16 %v2300, %v2299
      %v2757 = vpack.c.b16 %v2302, %v2301
      %v2758 = vpack.c.b16 %v2304, %v2303
      %v2759 = vpack.c.b16 %v2306, %v2305
      %v2760 = vpack.c.b16 %v2308, %v2307
      %v2761 = vpack.c.b16 %v2310, %v2309
      %v2762 = vpack.c.b16 %v2312, %v2311
      %v2763 = vpack.c.b16 %v2314, %v2313
      %v2764 = vpack.c.b16 %v2316, %v2315
      %v2765 = vpack.c.b16 %v2318, %v2317
      %v2766 = vpack.c.b16 %v2320, %v2319
      %v2767 = vpack.c.b16 %v2322, %v2321
      %v2768 = vpack.c.b16 %v2324, %v2323
      %v2769 = vpack.c.b16 %v2326, %v2325
      %v2770 = vpack.c.b16 %v2328, %v2327
      %v2771 = vpack.c.b16 %v2330, %v2329
      %v2772 = vpack.c.b16 %v2332, %v2331
      %v2773 = vpack.c.b16 %v2334, %v2333
      %v2774 = vpack.c.b16 %v2336, %v2335
      %v2775 = vpack.c.b16 %v2338, %v2337
      %v2776 = vpack.c.b16 %v2340, %v2339
      %v2777 = vpack.c.b16 %v2342, %v2341
      %v2778 = vpack.c.b16 %v2344, %v2343
      %v2779 = vpack.c.b16 %v2346, %v2345
      %v2780 = vpack.c.b16 %v2348, %v2347
      %v2781 = vpack.c.b16 %v2350, %v2349
      %v2782 = vpack.c.b16 %v2352, %v2351
      %v2783 = vpack.c.b16 %v2354, %v2353
      %v2784 = vpack.c.b16 %v2356, %v2355
      %v2785 = vpack.c.b16 %v2358, %v2357
      %v2786 = vpack.c.b16 %v2360, %v2359
      %v2787 = vpack.c.b16 %v2362, %v2361
      %v2788 = vpack.c.b16 %v2364, %v2363
      %v2789 = vpack.c.b16 %v2366, %v2365
      %v2790 = vpack.c.b16 %v2368, %v2367
      %v2791 = vpack.c.b16 %v2370, %v2369
      %v2792 = vpack.c.b16 %v2372, %v2371
      %v2793 = vpack.c.b16 %v2374, %v2373
      %v2794 = vpack.c.b16 %v2376, %v2375
      %v2795 = vpack.c.b16 %v2378, %v2377
      %v2796 = vpack.c.b16 %v2380, %v2379
      %v2797 = vpack.c.b16 %v2382, %v2381
      %v2798 = vpack.c.b16 %v2384, %v2383
      %v2799 = vpack.c.b16 %v2386, %v2385
      %v2800 = vpack.c.b16 %v2388, %v2387
      %v2801 = vpack.c.b16 %v2390, %v2389
      %v2802 = vpack.c.b16 %v2392, %v2391
      %v2803 = vpack.c.b16 %v2394, %v2393
      %v2804 = vpack.c.b16 %v2396, %v2395
      %v2805 = vpack.c.b16 %v2398, %v2397
      %v2806 = vpack.c.b16 %v2400, %v2399
      %v2807 = vpack.c.b16 %v2402, %v2401
      %v2808 = vpack.c.b16 %v2404, %v2403
      %v2809 = vpack.c.b16 %v2406, %v2405
      %v2810 = vpack.c.b16 %v2408, %v2407
      %v2811 = vpack.c.b16 %v2410, %v2409
      %v2812 = vpack.c.b16 %v2412, %v2411
      %v2813 = vpack.c.b16 %v2414, %v2413
      %v2814 = vpack.c.b16 %v2416, %v2415
      %v2815 = vpack.c.b16 %v2418, %v2417
      %v2816 = vpack.c.b16 %v2420, %v2419
      %v2817 = vpack.c.b16 %v2422, %v2421
      %v2818 = vpack.c.b16 %v2424, %v2423
      %v2819 = vpack.c.b16 %v2426, %v2425
      %v2820 = vpack.c.b16 %v2428, %v2427
      %v2821 = vpack.c.b16 %v2430, %v2429
      %v2822 = vpack.c.b16 %v2432, %v2431
      %v2823 = vpack.c.b16 %v2434, %v2433
      %v2824 = vpack.c.b16 %v2436, %v2435
      %v2825 = vpack.c.b16 %v2438, %v2437
      %v2826 = vpack.c.b16 %v2440, %v2439
      %v2827 = vpack.c.b16 %v2442, %v2441
      %v2828 = vpack.c.b16 %v2444, %v2443
      %v2829 = vpack.c.b16 %v2446, %v2445
      %v2830 = vpack.c.b16 %v2448, %v2447
      %v2831 = vpack.c.b16 %v2450, %v2449
      %v2832 = vpack.c.b16 %v2452, %v2451
      %v2833 = vpack.c.b16 %v2454, %v2453
      %v2834 = vpack.c.b16 %v2456, %v2455
      %v2835 = vpack.c.b16 %v2458, %v2457
      %v2836 = vpack.c.b16 %v2460, %v2459
      %v2837 = vpack.c.b16 %v2462, %v2461
      %v2838 = vpack.c.b16 %v2464, %v2463
      %v2839 = vpack.c.b16 %v2466, %v2465
      %v2840 = vpack.c.b16 %v2468, %v2467
      %v2841 = vpack.c.b16 %v2470, %v2469
      %v2842 = vpack.c.b16 %v2472, %v2471
      %v2843 = vpack.c.b16 %v2474, %v2473
      %v2844 = vpack.c.b16 %v2476, %v2475
      %v2845 = vpack.c.b16 %v2478, %v2477
      %v2846 = vpack.c.b16 %v2480, %v2479
      %v2847 = vpack.c.b16 %v2482, %v2481
      %v2848 = vpack.c.b16 %v2484, %v2483
      %v2849 = vpack.c.b16 %v2486, %v2485
      %v2850 = vpack.c.b16 %v2488, %v2487
      %v2851 = vpack.c.b16 %v2490, %v2489
      %v2852 = vpack.c.b16 %v2492, %v2491
      %v2853 = vpack.c.b16 %v2494, %v2493
      %v2854 = vpack.c.b16 %v2496, %v2495
      %v2855 = vpack.c.b16 %v2498, %v2497
      %v2856 = vpack.c.b16 %v2500, %v2499
      %v2857 = vpack.c.b16 %v2502, %v2501
      %v2858 = vpack.c.b16 %v2504, %v2503
      %v2859 = vpack.c.b16 %v2506, %v2505
      %v2860 = vpack.c.b16 %v2508, %v2507
      %v2861 = vpack.c.b16 %v2510, %v2509
      %v2862 = vpack.c.b16 %v2512, %v2511
      %v2863 = vpack.c.b16 %v2514, %v2513
      %v2864 = vpack.c.b16 %v2516, %v2515
      %v2865 = vpack.c.b16 %v2518, %v2517
      %v2866 = vpack.c.b16 %v2520, %v2519
      %v2867 = vpack.c.b16 %v2522, %v2521
      %v2868 = vpack.c.b16 %v2524, %v2523
      %v2869 = vpack.c.b16 %v2526, %v2525
      %v2870 = vpack.c.b16 %v2528, %v2527
      %v2871 = vpack.c.b16 %v2530, %v2529
      %v2872 = vpack.c.b16 %v2532, %v2531
      %v2873 = vpack.c.b16 %v2534, %v2533
      %v2874 = vpack.c.b16 %v2536, %v2535
      %v2875 = vpack.c.b16 %v2538, %v2537
      %v2876 = vpack.c.b16 %v2540, %v2539
      %3213 = vmatprep.subr.bf16.mxu0 0
      %3214 = vmatpush1.bf16.msra.mxu0 %v2541
      %3215 = vmatprep.subr.bf16.mxu0 0
      %3216 = vmatpush1.bf16.msra.mxu0 %v2542
      %3217 = vmatprep.subr.bf16.mxu0 0
      %3218 = vmatpush1.bf16.msra.mxu0 %v2543
      %3219 = vmatprep.subr.bf16.mxu0 0
      %3220 = vmatpush1.bf16.msra.mxu0 %v2544
      %3221 = vmatprep.subr.bf16.mxu0 0
      %3222 = vmatpush1.bf16.msra.mxu0 %v2545
      %3223 = vmatprep.subr.bf16.mxu0 0
      %3224 = vmatpush1.bf16.msra.mxu0 %v2546
      %3225 = vmatprep.subr.bf16.mxu0 0
      %3226 = vmatpush1.bf16.msra.mxu0 %v2547
      %3227 = vmatprep.subr.bf16.mxu0 0
      %3228 = vmatpush1.bf16.msra.mxu0 %v2548
      %3229 = vmatprep.subr.bf16.mxu0 0
      %3230 = vmatpush1.bf16.msra.mxu0 %v2549
      %3231 = vmatprep.subr.bf16.mxu0 0
      %3232 = vmatpush1.bf16.msra.mxu0 %v2550
      %3233 = vmatprep.subr.bf16.mxu0 0
      %3234 = vmatpush1.bf16.msra.mxu0 %v2551
      %3235 = vmatprep.subr.bf16.mxu0 0
      %3236 = vmatpush1.bf16.msra.mxu0 %v2552
      %3237 = vmatprep.subr.bf16.mxu0 0
      %3238 = vmatpush1.bf16.msra.mxu0 %v2553
      %3239 = vmatprep.subr.bf16.mxu0 0
      %3240 = vmatpush1.bf16.msra.mxu0 %v2554
      %3241 = vmatprep.subr.bf16.mxu0 0
      %3242 = vmatpush1.bf16.msra.mxu0 %v2555
      %3243 = vmatprep.subr.bf16.mxu0 0
      %3244 = vmatpush1.bf16.msra.mxu0 %v2556
      %3245 = vmatprep.mubr.bf16.mxu0 %v484
      %3246 = vmatmul.mubr.bf16.gmra.mrb[0].mxu0 %v483
      %v3247 = vpop.f32.mrb[0].mxu0
      %v3248 = vadd.f32 0.0, %v3247
      %v3249 = vpop.f32.mrb[0].mxu0
      %v3250 = vpop.f32.mrb[0].mxu0
      %v3251 = vpop.f32.mrb[0].mxu0
      %3252 = vdwg.mxu0
      %3253 = vmatprep.subr.bf16.mxu0 0
      %3254 = vmatpush1.bf16.msra.mxu0 %v2557
      %3255 = vmatprep.subr.bf16.mxu0 0
      %3256 = vmatpush1.bf16.msra.mxu0 %v2558
      %3257 = vmatprep.subr.bf16.mxu0 0
      %3258 = vmatpush1.bf16.msra.mxu0 %v2559
      %3259 = vmatprep.subr.bf16.mxu0 0
      %3260 = vmatpush1.bf16.msra.mxu0 %v2560
      %3261 = vmatprep.subr.bf16.mxu0 0
      %3262 = vmatpush1.bf16.msra.mxu0 %v2561
      %3263 = vmatprep.subr.bf16.mxu0 0
      %3264 = vmatpush1.bf16.msra.mxu0 %v2562
      %3265 = vmatprep.subr.bf16.mxu0 0
      %3266 = vmatpush1.bf16.msra.mxu0 %v2563
      %3267 = vmatprep.subr.bf16.mxu0 0
      %3268 = vmatpush1.bf16.msra.mxu0 %v2564
      %3269 = vmatprep.subr.bf16.mxu0 0
      %3270 = vmatpush1.bf16.msra.mxu0 %v2565
      %3271 = vmatprep.subr.bf16.mxu0 0
      %3272 = vmatpush1.bf16.msra.mxu0 %v2566
      %3273 = vmatprep.subr.bf16.mxu0 0
      %3274 = vmatpush1.bf16.msra.mxu0 %v2567
      %3275 = vmatprep.subr.bf16.mxu0 0
      %3276 = vmatpush1.bf16.msra.mxu0 %v2568
      %3277 = vmatprep.subr.bf16.mxu0 0
      %3278 = vmatpush1.bf16.msra.mxu0 %v2569
      %3279 = vmatprep.subr.bf16.mxu0 0
      %3280 = vmatpush1.bf16.msra.mxu0 %v2570
      %3281 = vmatprep.subr.bf16.mxu0 0
      %3282 = vmatpush1.bf16.msra.mxu0 %v2571
      %3283 = vmatprep.subr.bf16.mxu0 0
      %3284 = vmatpush1.bf16.msra.mxu0 %v2572
      %3285 = vmatprep.mubr.bf16.mxu0 %v486
      %3286 = vmatmul.mubr.bf16.gmra.mrb[0].mxu0 %v485
      %v3287 = vpop.f32.mrb[0].mxu0
      %v3288 = vadd.f32 %v3248, %v3287
      %v3289 = vpop.f32.mrb[0].mxu0
      %v3290 = vpop.f32.mrb[0].mxu0
      %v3291 = vpop.f32.mrb[0].mxu0
      %3292 = vdwg.mxu0
      %3293 = vmatprep.subr.bf16.mxu0 0
      %3294 = vmatpush1.bf16.msra.mxu0 %v2573
      %3295 = vmatprep.subr.bf16.mxu0 0
      %3296 = vmatpush1.bf16.msra.mxu0 %v2574
      %3297 = vmatprep.subr.bf16.mxu0 0
      %3298 = vmatpush1.bf16.msra.mxu0 %v2575
      %3299 = vmatprep.subr.bf16.mxu0 0
      %3300 = vmatpush1.bf16.msra.mxu0 %v2576
      %3301 = vmatprep.subr.bf16.mxu0 0
      %3302 = vmatpush1.bf16.msra.mxu0 %v2577
      %3303 = vmatprep.subr.bf16.mxu0 0
      %3304 = vmatpush1.bf16.msra.mxu0 %v2578
      %3305 = vmatprep.subr.bf16.mxu0 0
      %3306 = vmatpush1.bf16.msra.mxu0 %v2579
      %3307 = vmatprep.subr.bf16.mxu0 0
      %3308 = vmatpush1.bf16.msra.mxu0 %v2580
      %3309 = vmatprep.subr.bf16.mxu0 0
      %3310 = vmatpush1.bf16.msra.mxu0 %v2581
      %3311 = vmatprep.subr.bf16.mxu0 0
      %3312 = vmatpush1.bf16.msra.mxu0 %v2582
      %3313 = vmatprep.subr.bf16.mxu0 0
      %3314 = vmatpush1.bf16.msra.mxu0 %v2583
      %3315 = vmatprep.subr.bf16.mxu0 0
      %3316 = vmatpush1.bf16.msra.mxu0 %v2584
      %3317 = vmatprep.subr.bf16.mxu0 0
      %3318 = vmatpush1.bf16.msra.mxu0 %v2585
      %3319 = vmatprep.subr.bf16.mxu0 0
      %3320 = vmatpush1.bf16.msra.mxu0 %v2586
      %3321 = vmatprep.subr.bf16.mxu0 0
      %3322 = vmatpush1.bf16.msra.mxu0 %v2587
      %3323 = vmatprep.subr.bf16.mxu0 0
      %3324 = vmatpush1.bf16.msra.mxu0 %v2588
      %3325 = vmatprep.mubr.bf16.mxu0 %v488
      %3326 = vmatmul.mubr.bf16.gmra.mrb[0].mxu0 %v487
      %v3327 = vpop.f32.mrb[0].mxu0
      %v3328 = vadd.f32 %v3288, %v3327
      %v3329 = vpop.f32.mrb[0].mxu0
      %v3330 = vpop.f32.mrb[0].mxu0
      %v3331 = vpop.f32.mrb[0].mxu0
      %3332 = vdwg.mxu0
      %3333 = vmatprep.subr.bf16.mxu0 0
      %3334 = vmatpush1.bf16.msra.mxu0 %v2589
      %3335 = vmatprep.subr.bf16.mxu0 0
      %3336 = vmatpush1.bf16.msra.mxu0 %v2590
      %3337 = vmatprep.subr.bf16.mxu0 0
      %3338 = vmatpush1.bf16.msra.mxu0 %v2591
      %3339 = vmatprep.subr.bf16.mxu0 0
      %3340 = vmatpush1.bf16.msra.mxu0 %v2592
      %3341 = vmatprep.subr.bf16.mxu0 0
      %3342 = vmatpush1.bf16.msra.mxu0 %v2593
      %3343 = vmatprep.subr.bf16.mxu0 0
      %3344 = vmatpush1.bf16.msra.mxu0 %v2594
      %3345 = vmatprep.subr.bf16.mxu0 0
      %3346 = vmatpush1.bf16.msra.mxu0 %v2595
      %3347 = vmatprep.subr.bf16.mxu0 0
      %3348 = vmatpush1.bf16.msra.mxu0 %v2596
      %3349 = vmatprep.subr.bf16.mxu0 0
      %3350 = vmatpush1.bf16.msra.mxu0 %v2597
      %3351 = vmatprep.subr.bf16.mxu0 0
      %3352 = vmatpush1.bf16.msra.mxu0 %v2598
      %3353 = vmatprep.subr.bf16.mxu0 0
      %3354 = vmatpush1.bf16.msra.mxu0 %v2599
      %3355 = vmatprep.subr.bf16.mxu0 0
      %3356 = vmatpush1.bf16.msra.mxu0 %v2600
      %3357 = vmatprep.subr.bf16.mxu0 0
      %3358 = vmatpush1.bf16.msra.mxu0 %v2601
      %3359 = vmatprep.subr.bf16.mxu0 0
      %3360 = vmatpush1.bf16.msra.mxu0 %v2602
      %3361 = vmatprep.subr.bf16.mxu0 0
      %3362 = vmatpush1.bf16.msra.mxu0 %v2603
      %3363 = vmatprep.subr.bf16.mxu0 0
      %3364 = vmatpush1.bf16.msra.mxu0 %v2604
      %3365 = vmatprep.mubr.bf16.mxu0 %v490
      %3366 = vmatmul.mubr.bf16.gmra.mrb[0].mxu0 %v489
      %v3367 = vpop.f32.mrb[0].mxu0
      %v3368 = vadd.f32 %v3328, %v3367
      %v3369 = vpop.f32.mrb[0].mxu0
      %v3370 = vpop.f32.mrb[0].mxu0
      %v3371 = vpop.f32.mrb[0].mxu0
      %3372 = vdwg.mxu0
      %3373 = vmatprep.subr.bf16.mxu0 0
      %3374 = vmatpush1.bf16.msra.mxu0 %v2605
      %3375 = vmatprep.subr.bf16.mxu0 0
      %3376 = vmatpush1.bf16.msra.mxu0 %v2606
      %3377 = vmatprep.subr.bf16.mxu0 0
      %3378 = vmatpush1.bf16.msra.mxu0 %v2607
      %3379 = vmatprep.subr.bf16.mxu0 0
      %3380 = vmatpush1.bf16.msra.mxu0 %v2608
      %3381 = vmatprep.subr.bf16.mxu0 0
      %3382 = vmatpush1.bf16.msra.mxu0 %v2609
      %3383 = vmatprep.subr.bf16.mxu0 0
      %3384 = vmatpush1.bf16.msra.mxu0 %v2610
      %3385 = vmatprep.subr.bf16.mxu0 0
      %3386 = vmatpush1.bf16.msra.mxu0 %v2611
      %3387 = vmatprep.subr.bf16.mxu0 0
      %3388 = vmatpush1.bf16.msra.mxu0 %v2612
      %3389 = vmatprep.subr.bf16.mxu0 0
      %3390 = vmatpush1.bf16.msra.mxu0 %v2613
      %3391 = vmatprep.subr.bf16.mxu0 0
      %3392 = vmatpush1.bf16.msra.mxu0 %v2614
      %3393 = vmatprep.subr.bf16.mxu0 0
      %3394 = vmatpush1.bf16.msra.mxu0 %v2615
      %3395 = vmatprep.subr.bf16.mxu0 0
      %3396 = vmatpush1.bf16.msra.mxu0 %v2616
      %3397 = vmatprep.subr.bf16.mxu0 0
      %3398 = vmatpush1.bf16.msra.mxu0 %v2617
      %3399 = vmatprep.subr.bf16.mxu0 0
      %3400 = vmatpush1.bf16.msra.mxu0 %v2618
      %3401 = vmatprep.subr.bf16.mxu0 0
      %3402 = vmatpush1.bf16.msra.mxu0 %v2619
      %3403 = vmatprep.subr.bf16.mxu0 0
      %3404 = vmatpush1.bf16.msra.mxu0 %v2620
      %3405 = vmatprep.mubr.bf16.mxu0 %v492
      %3406 = vmatmul.mubr.bf16.gmra.mrb[0].mxu0 %v491
      %v3407 = vpop.f32.mrb[0].mxu0
      %v3408 = vadd.f32 %v3368, %v3407
      %v3409 = vpop.f32.mrb[0].mxu0
      %v3410 = vpop.f32.mrb[0].mxu0
      %v3411 = vpop.f32.mrb[0].mxu0
      %3412 = vdwg.mxu0
      %3413 = vmatprep.subr.bf16.mxu0 0
      %3414 = vmatpush1.bf16.msra.mxu0 %v2621
      %3415 = vmatprep.subr.bf16.mxu0 0
      %3416 = vmatpush1.bf16.msra.mxu0 %v2622
      %3417 = vmatprep.subr.bf16.mxu0 0
      %3418 = vmatpush1.bf16.msra.mxu0 %v2623
      %3419 = vmatprep.subr.bf16.mxu0 0
      %3420 = vmatpush1.bf16.msra.mxu0 %v2624
      %3421 = vmatprep.subr.bf16.mxu0 0
      %3422 = vmatpush1.bf16.msra.mxu0 %v2625
      %3423 = vmatprep.subr.bf16.mxu0 0
      %3424 = vmatpush1.bf16.msra.mxu0 %v2626
      %3425 = vmatprep.subr.bf16.mxu0 0
      %3426 = vmatpush1.bf16.msra.mxu0 %v2627
      %3427 = vmatprep.subr.bf16.mxu0 0
      %3428 = vmatpush1.bf16.msra.mxu0 %v2628
      %3429 = vmatprep.subr.bf16.mxu0 0
      %3430 = vmatpush1.bf16.msra.mxu0 %v2629
      %3431 = vmatprep.subr.bf16.mxu0 0
      %3432 = vmatpush1.bf16.msra.mxu0 %v2630
      %3433 = vmatprep.subr.bf16.mxu0 0
      %3434 = vmatpush1.bf16.msra.mxu0 %v2631
      %3435 = vmatprep.subr.bf16.mxu0 0
      %3436 = vmatpush1.bf16.msra.mxu0 %v2632
      %3437 = vmatprep.subr.bf16.mxu0 0
      %3438 = vmatpush1.bf16.msra.mxu0 %v2633
      %3439 = vmatprep.subr.bf16.mxu0 0
      %3440 = vmatpush1.bf16.msra.mxu0 %v2634
      %3441 = vmatprep.subr.bf16.mxu0 0
      %3442 = vmatpush1.bf16.msra.mxu0 %v2635
      %3443 = vmatprep.subr.bf16.mxu0 0
      %3444 = vmatpush1.bf16.msra.mxu0 %v2636
      %3445 = vmatprep.mubr.bf16.mxu0 %v494
      %3446 = vmatmul.mubr.bf16.gmra.mrb[0].mxu0 %v493
      %v3447 = vpop.f32.mrb[0].mxu0
      %v3448 = vadd.f32 %v3408, %v3447
      %v3449 = vpop.f32.mrb[0].mxu0
      %v3450 = vpop.f32.mrb[0].mxu0
      %v3451 = vpop.f32.mrb[0].mxu0
      %3452 = vdwg.mxu0
      %3453 = vmatprep.subr.bf16.mxu0 0
      %3454 = vmatpush1.bf16.msra.mxu0 %v2637
      %3455 = vmatprep.subr.bf16.mxu0 0
      %3456 = vmatpush1.bf16.msra.mxu0 %v2638
      %3457 = vmatprep.subr.bf16.mxu0 0
      %3458 = vmatpush1.bf16.msra.mxu0 %v2639
      %3459 = vmatprep.subr.bf16.mxu0 0
      %3460 = vmatpush1.bf16.msra.mxu0 %v2640
      %3461 = vmatprep.subr.bf16.mxu0 0
      %3462 = vmatpush1.bf16.msra.mxu0 %v2641
      %3463 = vmatprep.subr.bf16.mxu0 0
      %3464 = vmatpush1.bf16.msra.mxu0 %v2642
      %3465 = vmatprep.subr.bf16.mxu0 0
      %3466 = vmatpush1.bf16.msra.mxu0 %v2643
      %3467 = vmatprep.subr.bf16.mxu0 0
      %3468 = vmatpush1.bf16.msra.mxu0 %v2644
      %3469 = vmatprep.subr.bf16.mxu0 0
      %3470 = vmatpush1.bf16.msra.mxu0 %v2645
      %3471 = vmatprep.subr.bf16.mxu0 0
      %3472 = vmatpush1.bf16.msra.mxu0 %v2646
      %3473 = vmatprep.subr.bf16.mxu0 0
      %3474 = vmatpush1.bf16.msra.mxu0 %v2647
      %3475 = vmatprep.subr.bf16.mxu0 0
      %3476 = vmatpush1.bf16.msra.mxu0 %v2648
      %3477 = vmatprep.subr.bf16.mxu0 0
      %3478 = vmatpush1.bf16.msra.mxu0 %v2649
      %3479 = vmatprep.subr.bf16.mxu0 0
      %3480 = vmatpush1.bf16.msra.mxu0 %v2650
      %3481 = vmatprep.subr.bf16.mxu0 0
      %3482 = vmatpush1.bf16.msra.mxu0 %v2651
      %3483 = vmatprep.subr.bf16.mxu0 0
      %3484 = vmatpush1.bf16.msra.mxu0 %v2652
      %3485 = vmatprep.mubr.bf16.mxu0 %v496
      %3486 = vmatmul.mubr.bf16.gmra.mrb[0].mxu0 %v495
      %v3487 = vpop.f32.mrb[0].mxu0
      %v3488 = vadd.f32 %v3448, %v3487
      %v3489 = vpop.f32.mrb[0].mxu0
      %v3490 = vpop.f32.mrb[0].mxu0
      %v3491 = vpop.f32.mrb[0].mxu0
      %3492 = vdwg.mxu0
      %3493 = vmatprep.subr.bf16.mxu0 0
      %3494 = vmatpush1.bf16.msra.mxu0 %v2653
      %3495 = vmatprep.subr.bf16.mxu0 0
      %3496 = vmatpush1.bf16.msra.mxu0 %v2654
      %3497 = vmatprep.subr.bf16.mxu0 0
      %3498 = vmatpush1.bf16.msra.mxu0 %v2655
      %3499 = vmatprep.subr.bf16.mxu0 0
      %3500 = vmatpush1.bf16.msra.mxu0 %v2656
      %3501 = vmatprep.subr.bf16.mxu0 0
      %3502 = vmatpush1.bf16.msra.mxu0 %v2657
      %3503 = vmatprep.subr.bf16.mxu0 0
      %3504 = vmatpush1.bf16.msra.mxu0 %v2658
      %3505 = vmatprep.subr.bf16.mxu0 0
      %3506 = vmatpush1.bf16.msra.mxu0 %v2659
      %3507 = vmatprep.subr.bf16.mxu0 0
      %3508 = vmatpush1.bf16.msra.mxu0 %v2660
      %3509 = vmatprep.subr.bf16.mxu0 0
      %3510 = vmatpush1.bf16.msra.mxu0 %v2661
      %3511 = vmatprep.subr.bf16.mxu0 0
      %3512 = vmatpush1.bf16.msra.mxu0 %v2662
      %3513 = vmatprep.subr.bf16.mxu0 0
      %3514 = vmatpush1.bf16.msra.mxu0 %v2663
      %3515 = vmatprep.subr.bf16.mxu0 0
      %3516 = vmatpush1.bf16.msra.mxu0 %v2664
      %3517 = vmatprep.subr.bf16.mxu0 0
      %3518 = vmatpush1.bf16.msra.mxu0 %v2665
      %3519 = vmatprep.subr.bf16.mxu0 0
      %3520 = vmatpush1.bf16.msra.mxu0 %v2666
      %3521 = vmatprep.subr.bf16.mxu0 0
      %3522 = vmatpush1.bf16.msra.mxu0 %v2667
      %3523 = vmatprep.subr.bf16.mxu0 0
      %3524 = vmatpush1.bf16.msra.mxu0 %v2668
      %3525 = vmatprep.mubr.bf16.mxu0 %v498
      %3526 = vmatmul.mubr.bf16.gmra.mrb[0].mxu0 %v497
      %v3527 = vpop.f32.mrb[0].mxu0
      %v3528 = vadd.f32 %v3488, %v3527
      %v3529 = vpop.f32.mrb[0].mxu0
      %v3530 = vpop.f32.mrb[0].mxu0
      %v3531 = vpop.f32.mrb[0].mxu0
      %3532 = vdwg.mxu0
      %3533 = vmatprep.subr.bf16.mxu0 0
      %3534 = vmatpush1.bf16.msra.mxu0 %v2669
      %3535 = vmatprep.subr.bf16.mxu0 0
      %3536 = vmatpush1.bf16.msra.mxu0 %v2670
      %3537 = vmatprep.subr.bf16.mxu0 0
      %3538 = vmatpush1.bf16.msra.mxu0 %v2671
      %3539 = vmatprep.subr.bf16.mxu0 0
      %3540 = vmatpush1.bf16.msra.mxu0 %v2672
      %3541 = vmatprep.subr.bf16.mxu0 0
      %3542 = vmatpush1.bf16.msra.mxu0 %v2673
      %3543 = vmatprep.subr.bf16.mxu0 0
      %3544 = vmatpush1.bf16.msra.mxu0 %v2674
      %3545 = vmatprep.subr.bf16.mxu0 0
      %3546 = vmatpush1.bf16.msra.mxu0 %v2675
      %3547 = vmatprep.subr.bf16.mxu0 0
      %3548 = vmatpush1.bf16.msra.mxu0 %v2676
      %3549 = vmatprep.subr.bf16.mxu0 0
      %3550 = vmatpush1.bf16.msra.mxu0 %v2677
      %3551 = vmatprep.subr.bf16.mxu0 0
      %3552 = vmatpush1.bf16.msra.mxu0 %v2678
      %3553 = vmatprep.subr.bf16.mxu0 0
      %3554 = vmatpush1.bf16.msra.mxu0 %v2679
      %3555 = vmatprep.subr.bf16.mxu0 0
      %3556 = vmatpush1.bf16.msra.mxu0 %v2680
      %3557 = vmatprep.subr.bf16.mxu0 0
      %3558 = vmatpush1.bf16.msra.mxu0 %v2681
      %3559 = vmatprep.subr.bf16.mxu0 0
      %3560 = vmatpush1.bf16.msra.mxu0 %v2682
      %3561 = vmatprep.subr.bf16.mxu0 0
      %3562 = vmatpush1.bf16.msra.mxu0 %v2683
      %3563 = vmatprep.subr.bf16.mxu0 0
      %3564 = vmatpush1.bf16.msra.mxu0 %v2684
      %3565 = vmatprep.mubr.bf16.mxu0 %v500
      %3566 = vmatmul.mubr.bf16.gmra.mrb[0].mxu0 %v499
      %v3567 = vpop.f32.mrb[0].mxu0
      %v3568 = vadd.f32 %v3528, %v3567
      %v3569 = vpop.f32.mrb[0].mxu0
      %v3570 = vpop.f32.mrb[0].mxu0
      %v3571 = vpop.f32.mrb[0].mxu0
      %3572 = vdwg.mxu0
      %3573 = vmatprep.subr.bf16.mxu0 0
      %3574 = vmatpush1.bf16.msra.mxu0 %v2685
      %3575 = vmatprep.subr.bf16.mxu0 0
      %3576 = vmatpush1.bf16.msra.mxu0 %v2686
      %3577 = vmatprep.subr.bf16.mxu0 0
      %3578 = vmatpush1.bf16.msra.mxu0 %v2687
      %3579 = vmatprep.subr.bf16.mxu0 0
      %3580 = vmatpush1.bf16.msra.mxu0 %v2688
      %3581 = vmatprep.subr.bf16.mxu0 0
      %3582 = vmatpush1.bf16.msra.mxu0 %v2689
      %3583 = vmatprep.subr.bf16.mxu0 0
      %3584 = vmatpush1.bf16.msra.mxu0 %v2690
      %3585 = vmatprep.subr.bf16.mxu0 0
      %3586 = vmatpush1.bf16.msra.mxu0 %v2691
      %3587 = vmatprep.subr.bf16.mxu0 0
      %3588 = vmatpush1.bf16.msra.mxu0 %v2692
      %3589 = vmatprep.subr.bf16.mxu0 0
      %3590 = vmatpush1.bf16.msra.mxu0 %v2693
      %3591 = vmatprep.subr.bf16.mxu0 0
      %3592 = vmatpush1.bf16.msra.mxu0 %v2694
      %3593 = vmatprep.subr.bf16.mxu0 0
      %3594 = vmatpush1.bf16.msra.mxu0 %v2695
      %3595 = vmatprep.subr.bf16.mxu0 0
      %3596 = vmatpush1.bf16.msra.mxu0 %v2696
      %3597 = vmatprep.subr.bf16.mxu0 0
      %3598 = vmatpush1.bf16.msra.mxu0 %v2697
      %3599 = vmatprep.subr.bf16.mxu0 0
      %3600 = vmatpush1.bf16.msra.mxu0 %v2698
      %3601 = vmatprep.subr.bf16.mxu0 0
      %3602 = vmatpush1.bf16.msra.mxu0 %v2699
      %3603 = vmatprep.subr.bf16.mxu0 0
      %3604 = vmatpush1.bf16.msra.mxu0 %v2700
      %3605 = vmatprep.mubr.bf16.mxu0 %v502
      %3606 = vmatmul.mubr.bf16.gmra.mrb[0].mxu0 %v501
      %v3607 = vpop.f32.mrb[0].mxu0
      %v3608 = vadd.f32 %v3568, %v3607
      %v3609 = vpop.f32.mrb[0].mxu0
      %v3610 = vpop.f32.mrb[0].mxu0
      %v3611 = vpop.f32.mrb[0].mxu0
      %3612 = vdwg.mxu0
      %3613 = vmatprep.subr.bf16.mxu0 0
      %3614 = vmatpush1.bf16.msra.mxu0 %v2701
      %3615 = vmatprep.subr.bf16.mxu0 0
      %3616 = vmatpush1.bf16.msra.mxu0 %v2702
      %3617 = vmatprep.subr.bf16.mxu0 0
      %3618 = vmatpush1.bf16.msra.mxu0 %v2703
      %3619 = vmatprep.subr.bf16.mxu0 0
      %3620 = vmatpush1.bf16.msra.mxu0 %v2704
      %3621 = vmatprep.subr.bf16.mxu0 0
      %3622 = vmatpush1.bf16.msra.mxu0 %v2705
      %3623 = vmatprep.subr.bf16.mxu0 0
      %3624 = vmatpush1.bf16.msra.mxu0 %v2706
      %3625 = vmatprep.subr.bf16.mxu0 0
      %3626 = vmatpush1.bf16.msra.mxu0 %v2707
      %3627 = vmatprep.subr.bf16.mxu0 0
      %3628 = vmatpush1.bf16.msra.mxu0 %v2708
      %3629 = vmatprep.subr.bf16.mxu0 0
      %3630 = vmatpush1.bf16.msra.mxu0 %v2709
      %3631 = vmatprep.subr.bf16.mxu0 0
      %3632 = vmatpush1.bf16.msra.mxu0 %v2710
      %3633 = vmatprep.subr.bf16.mxu0 0
      %3634 = vmatpush1.bf16.msra.mxu0 %v2711
      %3635 = vmatprep.subr.bf16.mxu0 0
      %3636 = vmatpush1.bf16.msra.mxu0 %v2712
      %3637 = vmatprep.subr.bf16.mxu0 0
      %3638 = vmatpush1.bf16.msra.mxu0 %v2713
      %3639 = vmatprep.subr.bf16.mxu0 0
      %3640 = vmatpush1.bf16.msra.mxu0 %v2714
      %3641 = vmatprep.subr.bf16.mxu0 0
      %3642 = vmatpush1.bf16.msra.mxu0 %v2715
      %3643 = vmatprep.subr.bf16.mxu0 0
      %3644 = vmatpush1.bf16.msra.mxu0 %v2716
      %3645 = vmatprep.mubr.bf16.mxu0 %v504
      %3646 = vmatmul.mubr.bf16.gmra.mrb[0].mxu0 %v503
      %v3647 = vpop.f32.mrb[0].mxu0
      %v3648 = vadd.f32 %v3608, %v3647
      %v3649 = vpop.f32.mrb[0].mxu0
      %v3650 = vpop.f32.mrb[0].mxu0
      %v3651 = vpop.f32.mrb[0].mxu0
      %3652 = vdwg.mxu0
      %3653 = vmatprep.subr.bf16.mxu0 0
      %3654 = vmatpush1.bf16.msra.mxu0 %v2717
      %3655 = vmatprep.subr.bf16.mxu0 0
      %3656 = vmatpush1.bf16.msra.mxu0 %v2718
      %3657 = vmatprep.subr.bf16.mxu0 0
      %3658 = vmatpush1.bf16.msra.mxu0 %v2719
      %3659 = vmatprep.subr.bf16.mxu0 0
      %3660 = vmatpush1.bf16.msra.mxu0 %v2720
      %3661 = vmatprep.subr.bf16.mxu0 0
      %3662 = vmatpush1.bf16.msra.mxu0 %v2721
      %3663 = vmatprep.subr.bf16.mxu0 0
      %3664 = vmatpush1.bf16.msra.mxu0 %v2722
      %3665 = vmatprep.subr.bf16.mxu0 0
      %3666 = vmatpush1.bf16.msra.mxu0 %v2723
      %3667 = vmatprep.subr.bf16.mxu0 0
      %3668 = vmatpush1.bf16.msra.mxu0 %v2724
      %3669 = vmatprep.subr.bf16.mxu0 0
      %3670 = vmatpush1.bf16.msra.mxu0 %v2725
      %3671 = vmatprep.subr.bf16.mxu0 0
      %3672 = vmatpush1.bf16.msra.mxu0 %v2726
      %3673 = vmatprep.subr.bf16.mxu0 0
      %3674 = vmatpush1.bf16.msra.mxu0 %v2727
      %3675 = vmatprep.subr.bf16.mxu0 0
      %3676 = vmatpush1.bf16.msra.mxu0 %v2728
      %3677 = vmatprep.subr.bf16.mxu0 0
      %3678 = vmatpush1.bf16.msra.mxu0 %v2729
      %3679 = vmatprep.subr.bf16.mxu0 0
      %3680 = vmatpush1.bf16.msra.mxu0 %v2730
      %3681 = vmatprep.subr.bf16.mxu0 0
      %3682 = vmatpush1.bf16.msra.mxu0 %v2731
      %3683 = vmatprep.subr.bf16.mxu0 0
      %3684 = vmatpush1.bf16.msra.mxu0 %v2732
      %3685 = vmatprep.mubr.bf16.mxu0 %v506
      %3686 = vmatmul.mubr.bf16.gmra.mrb[0].mxu0 %v505
      %v3687 = vpop.f32.mrb[0].mxu0
      %v3688 = vadd.f32 %v3648, %v3687
      %v3689 = vpop.f32.mrb[0].mxu0
      %v3690 = vpop.f32.mrb[0].mxu0
      %v3691 = vpop.f32.mrb[0].mxu0
      %3692 = vdwg.mxu0
      %3693 = vmatprep.subr.bf16.mxu0 0
      %3694 = vmatpush1.bf16.msra.mxu0 %v2733
      %3695 = vmatprep.subr.bf16.mxu0 0
      %3696 = vmatpush1.bf16.msra.mxu0 %v2734
      %3697 = vmatprep.subr.bf16.mxu0 0
      %3698 = vmatpush1.bf16.msra.mxu0 %v2735
      %3699 = vmatprep.subr.bf16.mxu0 0
      %3700 = vmatpush1.bf16.msra.mxu0 %v2736
      %3701 = vmatprep.subr.bf16.mxu0 0
      %3702 = vmatpush1.bf16.msra.mxu0 %v2737
      %3703 = vmatprep.subr.bf16.mxu0 0
      %3704 = vmatpush1.bf16.msra.mxu0 %v2738
      %3705 = vmatprep.subr.bf16.mxu0 0
      %3706 = vmatpush1.bf16.msra.mxu0 %v2739
      %3707 = vmatprep.subr.bf16.mxu0 0
      %3708 = vmatpush1.bf16.msra.mxu0 %v2740
      %3709 = vmatprep.subr.bf16.mxu0 0
      %3710 = vmatpush1.bf16.msra.mxu0 %v2741
      %3711 = vmatprep.subr.bf16.mxu0 0
      %3712 = vmatpush1.bf16.msra.mxu0 %v2742
      %3713 = vmatprep.subr.bf16.mxu0 0
      %3714 = vmatpush1.bf16.msra.mxu0 %v2743
      %3715 = vmatprep.subr.bf16.mxu0 0
      %3716 = vmatpush1.bf16.msra.mxu0 %v2744
      %3717 = vmatprep.subr.bf16.mxu0 0
      %3718 = vmatpush1.bf16.msra.mxu0 %v2745
      %3719 = vmatprep.subr.bf16.mxu0 0
      %3720 = vmatpush1.bf16.msra.mxu0 %v2746
      %3721 = vmatprep.subr.bf16.mxu0 0
      %3722 = vmatpush1.bf16.msra.mxu0 %v2747
      %3723 = vmatprep.subr.bf16.mxu0 0
      %3724 = vmatpush1.bf16.msra.mxu0 %v2748
      %3725 = vmatprep.mubr.bf16.mxu0 %v508
      %3726 = vmatmul.mubr.bf16.gmra.mrb[0].mxu0 %v507
      %v3727 = vpop.f32.mrb[0].mxu0
      %v3728 = vadd.f32 %v3688, %v3727
      %v3729 = vpop.f32.mrb[0].mxu0
      %v3730 = vpop.f32.mrb[0].mxu0
      %v3731 = vpop.f32.mrb[0].mxu0
      %3732 = vdwg.mxu0
      %3733 = vmatprep.subr.bf16.mxu0 0
      %3734 = vmatpush1.bf16.msra.mxu0 %v2749
      %3735 = vmatprep.subr.bf16.mxu0 0
      %3736 = vmatpush1.bf16.msra.mxu0 %v2750
      %3737 = vmatprep.subr.bf16.mxu0 0
      %3738 = vmatpush1.bf16.msra.mxu0 %v2751
      %3739 = vmatprep.subr.bf16.mxu0 0
      %3740 = vmatpush1.bf16.msra.mxu0 %v2752
      %3741 = vmatprep.subr.bf16.mxu0 0
      %3742 = vmatpush1.bf16.msra.mxu0 %v2753
      %3743 = vmatprep.subr.bf16.mxu0 0
      %3744 = vmatpush1.bf16.msra.mxu0 %v2754
      %3745 = vmatprep.subr.bf16.mxu0 0
      %3746 = vmatpush1.bf16.msra.mxu0 %v2755
      %3747 = vmatprep.subr.bf16.mxu0 0
      %3748 = vmatpush1.bf16.msra.mxu0 %v2756
      %3749 = vmatprep.subr.bf16.mxu0 0
      %3750 = vmatpush1.bf16.msra.mxu0 %v2757
      %3751 = vmatprep.subr.bf16.mxu0 0
      %3752 = vmatpush1.bf16.msra.mxu0 %v2758
      %3753 = vmatprep.subr.bf16.mxu0 0
      %3754 = vmatpush1.bf16.msra.mxu0 %v2759
      %3755 = vmatprep.subr.bf16.mxu0 0
      %3756 = vmatpush1.bf16.msra.mxu0 %v2760
      %3757 = vmatprep.subr.bf16.mxu0 0
      %3758 = vmatpush1.bf16.msra.mxu0 %v2761
      %3759 = vmatprep.subr.bf16.mxu0 0
      %3760 = vmatpush1.bf16.msra.mxu0 %v2762
      %3761 = vmatprep.subr.bf16.mxu0 0
      %3762 = vmatpush1.bf16.msra.mxu0 %v2763
      %3763 = vmatprep.subr.bf16.mxu0 0
      %3764 = vmatpush1.bf16.msra.mxu0 %v2764
      %3765 = vmatprep.mubr.bf16.mxu0 %v510
      %3766 = vmatmul.mubr.bf16.gmra.mrb[0].mxu0 %v509
      %v3767 = vpop.f32.mrb[0].mxu0
      %v3768 = vadd.f32 %v3728, %v3767
      %v3769 = vpop.f32.mrb[0].mxu0
      %v3770 = vpop.f32.mrb[0].mxu0
      %v3771 = vpop.f32.mrb[0].mxu0
      %3772 = vdwg.mxu0
      %3773 = vmatprep.subr.bf16.mxu0 0
      %3774 = vmatpush1.bf16.msra.mxu0 %v2765
      %3775 = vmatprep.subr.bf16.mxu0 0
      %3776 = vmatpush1.bf16.msra.mxu0 %v2766
      %3777 = vmatprep.subr.bf16.mxu0 0
      %3778 = vmatpush1.bf16.msra.mxu0 %v2767
      %3779 = vmatprep.subr.bf16.mxu0 0
      %3780 = vmatpush1.bf16.msra.mxu0 %v2768
      %3781 = vmatprep.subr.bf16.mxu0 0
      %3782 = vmatpush1.bf16.msra.mxu0 %v2769
      %3783 = vmatprep.subr.bf16.mxu0 0
      %3784 = vmatpush1.bf16.msra.mxu0 %v2770
      %3785 = vmatprep.subr.bf16.mxu0 0
      %3786 = vmatpush1.bf16.msra.mxu0 %v2771
      %3787 = vmatprep.subr.bf16.mxu0 0
      %3788 = vmatpush1.bf16.msra.mxu0 %v2772
      %3789 = vmatprep.subr.bf16.mxu0 0
      %3790 = vmatpush1.bf16.msra.mxu0 %v2773
      %3791 = vmatprep.subr.bf16.mxu0 0
      %3792 = vmatpush1.bf16.msra.mxu0 %v2774
      %3793 = vmatprep.subr.bf16.mxu0 0
      %3794 = vmatpush1.bf16.msra.mxu0 %v2775
      %3795 = vmatprep.subr.bf16.mxu0 0
      %3796 = vmatpush1.bf16.msra.mxu0 %v2776
      %3797 = vmatprep.subr.bf16.mxu0 0
      %3798 = vmatpush1.bf16.msra.mxu0 %v2777
      %3799 = vmatprep.subr.bf16.mxu0 0
      %3800 = vmatpush1.bf16.msra.mxu0 %v2778
      %3801 = vmatprep.subr.bf16.mxu0 0
      %3802 = vmatpush1.bf16.msra.mxu0 %v2779
      %3803 = vmatprep.subr.bf16.mxu0 0
      %3804 = vmatpush1.bf16.msra.mxu0 %v2780
      %3805 = vmatprep.mubr.bf16.mxu0 %v512
      %3806 = vmatmul.mubr.bf16.gmra.mrb[0].mxu0 %v511
      %v3807 = vpop.f32.mrb[0].mxu0
      %v3808 = vadd.f32 %v3768, %v3807
      %v3809 = vpop.f32.mrb[0].mxu0
      %v3810 = vpop.f32.mrb[0].mxu0
      %v3811 = vpop.f32.mrb[0].mxu0
      %3812 = vdwg.mxu0
      %3813 = vmatprep.subr.bf16.mxu0 0
      %3814 = vmatpush1.bf16.msra.mxu0 %v2781
      %3815 = vmatprep.subr.bf16.mxu0 0
      %3816 = vmatpush1.bf16.msra.mxu0 %v2782
      %3817 = vmatprep.subr.bf16.mxu0 0
      %3818 = vmatpush1.bf16.msra.mxu0 %v2783
      %3819 = vmatprep.subr.bf16.mxu0 0
      %3820 = vmatpush1.bf16.msra.mxu0 %v2784
      %3821 = vmatprep.subr.bf16.mxu0 0
      %3822 = vmatpush1.bf16.msra.mxu0 %v2785
      %3823 = vmatprep.subr.bf16.mxu0 0
      %3824 = vmatpush1.bf16.msra.mxu0 %v2786
      %3825 = vmatprep.subr.bf16.mxu0 0
      %3826 = vmatpush1.bf16.msra.mxu0 %v2787
      %3827 = vmatprep.subr.bf16.mxu0 0
      %3828 = vmatpush1.bf16.msra.mxu0 %v2788
      %3829 = vmatprep.subr.bf16.mxu0 0
      %3830 = vmatpush1.bf16.msra.mxu0 %v2789
      %3831 = vmatprep.subr.bf16.mxu0 0
      %3832 = vmatpush1.bf16.msra.mxu0 %v2790
      %3833 = vmatprep.subr.bf16.mxu0 0
      %3834 = vmatpush1.bf16.msra.mxu0 %v2791
      %3835 = vmatprep.subr.bf16.mxu0 0
      %3836 = vmatpush1.bf16.msra.mxu0 %v2792
      %3837 = vmatprep.subr.bf16.mxu0 0
      %3838 = vmatpush1.bf16.msra.mxu0 %v2793
      %3839 = vmatprep.subr.bf16.mxu0 0
      %3840 = vmatpush1.bf16.msra.mxu0 %v2794
      %3841 = vmatprep.subr.bf16.mxu0 0
      %3842 = vmatpush1.bf16.msra.mxu0 %v2795
      %3843 = vmatprep.subr.bf16.mxu0 0
      %3844 = vmatpush1.bf16.msra.mxu0 %v2796
      %3845 = vmatprep.mubr.bf16.mxu0 %v514
      %3846 = vmatmul.mubr.bf16.gmra.mrb[0].mxu0 %v513
      %v3847 = vpop.f32.mrb[0].mxu0
      %v3848 = vadd.f32 %v3808, %v3847
      %v3849 = vpop.f32.mrb[0].mxu0
      %v3850 = vpop.f32.mrb[0].mxu0
      %v3851 = vpop.f32.mrb[0].mxu0
      %3852 = vdwg.mxu0
      %3853 = vmatprep.subr.bf16.mxu0 0
      %3854 = vmatpush1.bf16.msra.mxu0 %v2797
      %3855 = vmatprep.subr.bf16.mxu0 0
      %3856 = vmatpush1.bf16.msra.mxu0 %v2798
      %3857 = vmatprep.subr.bf16.mxu0 0
      %3858 = vmatpush1.bf16.msra.mxu0 %v2799
      %3859 = vmatprep.subr.bf16.mxu0 0
      %3860 = vmatpush1.bf16.msra.mxu0 %v2800
      %3861 = vmatprep.subr.bf16.mxu0 0
      %3862 = vmatpush1.bf16.msra.mxu0 %v2801
      %3863 = vmatprep.subr.bf16.mxu0 0
      %3864 = vmatpush1.bf16.msra.mxu0 %v2802
      %3865 = vmatprep.subr.bf16.mxu0 0
      %3866 = vmatpush1.bf16.msra.mxu0 %v2803
      %3867 = vmatprep.subr.bf16.mxu0 0
      %3868 = vmatpush1.bf16.msra.mxu0 %v2804
      %3869 = vmatprep.subr.bf16.mxu0 0
      %3870 = vmatpush1.bf16.msra.mxu0 %v2805
      %3871 = vmatprep.subr.bf16.mxu0 0
      %3872 = vmatpush1.bf16.msra.mxu0 %v2806
      %3873 = vmatprep.subr.bf16.mxu0 0
      %3874 = vmatpush1.bf16.msra.mxu0 %v2807
      %3875 = vmatprep.subr.bf16.mxu0 0
      %3876 = vmatpush1.bf16.msra.mxu0 %v2808
      %3877 = vmatprep.subr.bf16.mxu0 0
      %3878 = vmatpush1.bf16.msra.mxu0 %v2809
      %3879 = vmatprep.subr.bf16.mxu0 0
      %3880 = vmatpush1.bf16.msra.mxu0 %v2810
      %3881 = vmatprep.subr.bf16.mxu0 0
      %3882 = vmatpush1.bf16.msra.mxu0 %v2811
      %3883 = vmatprep.subr.bf16.mxu0 0
      %3884 = vmatpush1.bf16.msra.mxu0 %v2812
      %3885 = vmatprep.mubr.bf16.mxu0 %v516
      %3886 = vmatmul.mubr.bf16.gmra.mrb[0].mxu0 %v515
      %v3887 = vpop.f32.mrb[0].mxu0
      %v3888 = vadd.f32 %v3848, %v3887
      %v3889 = vpop.f32.mrb[0].mxu0
      %v3890 = vpop.f32.mrb[0].mxu0
      %v3891 = vpop.f32.mrb[0].mxu0
      %3892 = vdwg.mxu0
      %3893 = vmatprep.subr.bf16.mxu0 0
      %3894 = vmatpush1.bf16.msra.mxu0 %v2813
      %3895 = vmatprep.subr.bf16.mxu0 0
      %3896 = vmatpush1.bf16.msra.mxu0 %v2814
      %3897 = vmatprep.subr.bf16.mxu0 0
      %3898 = vmatpush1.bf16.msra.mxu0 %v2815
      %3899 = vmatprep.subr.bf16.mxu0 0
      %3900 = vmatpush1.bf16.msra.mxu0 %v2816
      %3901 = vmatprep.subr.bf16.mxu0 0
      %3902 = vmatpush1.bf16.msra.mxu0 %v2817
      %3903 = vmatprep.subr.bf16.mxu0 0
      %3904 = vmatpush1.bf16.msra.mxu0 %v2818
      %3905 = vmatprep.subr.bf16.mxu0 0
      %3906 = vmatpush1.bf16.msra.mxu0 %v2819
      %3907 = vmatprep.subr.bf16.mxu0 0
      %3908 = vmatpush1.bf16.msra.mxu0 %v2820
      %3909 = vmatprep.subr.bf16.mxu0 0
      %3910 = vmatpush1.bf16.msra.mxu0 %v2821
      %3911 = vmatprep.subr.bf16.mxu0 0
      %3912 = vmatpush1.bf16.msra.mxu0 %v2822
      %3913 = vmatprep.subr.bf16.mxu0 0
      %3914 = vmatpush1.bf16.msra.mxu0 %v2823
      %3915 = vmatprep.subr.bf16.mxu0 0
      %3916 = vmatpush1.bf16.msra.mxu0 %v2824
      %3917 = vmatprep.subr.bf16.mxu0 0
      %3918 = vmatpush1.bf16.msra.mxu0 %v2825
      %3919 = vmatprep.subr.bf16.mxu0 0
      %3920 = vmatpush1.bf16.msra.mxu0 %v2826
      %3921 = vmatprep.subr.bf16.mxu0 0
      %3922 = vmatpush1.bf16.msra.mxu0 %v2827
      %3923 = vmatprep.subr.bf16.mxu0 0
      %3924 = vmatpush1.bf16.msra.mxu0 %v2828
      %3925 = vmatprep.mubr.bf16.mxu0 %v518
      %3926 = vmatmul.mubr.bf16.gmra.mrb[0].mxu0 %v517
      %v3927 = vpop.f32.mrb[0].mxu0
      %v3928 = vadd.f32 %v3888, %v3927
      %v3929 = vpop.f32.mrb[0].mxu0
      %v3930 = vpop.f32.mrb[0].mxu0
      %v3931 = vpop.f32.mrb[0].mxu0
      %3932 = vdwg.mxu0
      %3933 = vmatprep.subr.bf16.mxu0 0
      %3934 = vmatpush1.bf16.msra.mxu0 %v2829
      %3935 = vmatprep.subr.bf16.mxu0 0
      %3936 = vmatpush1.bf16.msra.mxu0 %v2830
      %3937 = vmatprep.subr.bf16.mxu0 0
      %3938 = vmatpush1.bf16.msra.mxu0 %v2831
      %3939 = vmatprep.subr.bf16.mxu0 0
      %3940 = vmatpush1.bf16.msra.mxu0 %v2832
      %3941 = vmatprep.subr.bf16.mxu0 0
      %3942 = vmatpush1.bf16.msra.mxu0 %v2833
      %3943 = vmatprep.subr.bf16.mxu0 0
      %3944 = vmatpush1.bf16.msra.mxu0 %v2834
      %3945 = vmatprep.subr.bf16.mxu0 0
      %3946 = vmatpush1.bf16.msra.mxu0 %v2835
      %3947 = vmatprep.subr.bf16.mxu0 0
      %3948 = vmatpush1.bf16.msra.mxu0 %v2836
      %3949 = vmatprep.subr.bf16.mxu0 0
      %3950 = vmatpush1.bf16.msra.mxu0 %v2837
      %3951 = vmatprep.subr.bf16.mxu0 0
      %3952 = vmatpush1.bf16.msra.mxu0 %v2838
      %3953 = vmatprep.subr.bf16.mxu0 0
      %3954 = vmatpush1.bf16.msra.mxu0 %v2839
      %3955 = vmatprep.subr.bf16.mxu0 0
      %3956 = vmatpush1.bf16.msra.mxu0 %v2840
      %3957 = vmatprep.subr.bf16.mxu0 0
      %3958 = vmatpush1.bf16.msra.mxu0 %v2841
      %3959 = vmatprep.subr.bf16.mxu0 0
      %3960 = vmatpush1.bf16.msra.mxu0 %v2842
      %3961 = vmatprep.subr.bf16.mxu0 0
      %3962 = vmatpush1.bf16.msra.mxu0 %v2843
      %3963 = vmatprep.subr.bf16.mxu0 0
      %3964 = vmatpush1.bf16.msra.mxu0 %v2844
      %3965 = vmatprep.mubr.bf16.mxu0 %v520
      %3966 = vmatmul.mubr.bf16.gmra.mrb[0].mxu0 %v519
      %v3967 = vpop.f32.mrb[0].mxu0
      %v3968 = vadd.f32 %v3928, %v3967
      %v3969 = vpop.f32.mrb[0].mxu0
      %v3970 = vpop.f32.mrb[0].mxu0
      %v3971 = vpop.f32.mrb[0].mxu0
      %3972 = vdwg.mxu0
      %3973 = vmatprep.subr.bf16.mxu0 0
      %3974 = vmatpush1.bf16.msra.mxu0 %v2845
      %3975 = vmatprep.subr.bf16.mxu0 0
      %3976 = vmatpush1.bf16.msra.mxu0 %v2846
      %3977 = vmatprep.subr.bf16.mxu0 0
      %3978 = vmatpush1.bf16.msra.mxu0 %v2847
      %3979 = vmatprep.subr.bf16.mxu0 0
      %3980 = vmatpush1.bf16.msra.mxu0 %v2848
      %3981 = vmatprep.subr.bf16.mxu0 0
      %3982 = vmatpush1.bf16.msra.mxu0 %v2849
      %3983 = vmatprep.subr.bf16.mxu0 0
      %3984 = vmatpush1.bf16.msra.mxu0 %v2850
      %3985 = vmatprep.subr.bf16.mxu0 0
      %3986 = vmatpush1.bf16.msra.mxu0 %v2851
      %3987 = vmatprep.subr.bf16.mxu0 0
      %3988 = vmatpush1.bf16.msra.mxu0 %v2852
      %3989 = vmatprep.subr.bf16.mxu0 0
      %3990 = vmatpush1.bf16.msra.mxu0 %v2853
      %3991 = vmatprep.subr.bf16.mxu0 0
      %3992 = vmatpush1.bf16.msra.mxu0 %v2854
      %3993 = vmatprep.subr.bf16.mxu0 0
      %3994 = vmatpush1.bf16.msra.mxu0 %v2855
      %3995 = vmatprep.subr.bf16.mxu0 0
      %3996 = vmatpush1.bf16.msra.mxu0 %v2856
      %3997 = vmatprep.subr.bf16.mxu0 0
      %3998 = vmatpush1.bf16.msra.mxu0 %v2857
      %3999 = vmatprep.subr.bf16.mxu0 0
      %4000 = vmatpush1.bf16.msra.mxu0 %v2858
      %4001 = vmatprep.subr.bf16.mxu0 0
      %4002 = vmatpush1.bf16.msra.mxu0 %v2859
      %4003 = vmatprep.subr.bf16.mxu0 0
      %4004 = vmatpush1.bf16.msra.mxu0 %v2860
      %4005 = vmatprep.mubr.bf16.mxu0 %v522
      %4006 = vmatmul.mubr.bf16.gmra.mrb[0].mxu0 %v521
      %v4007 = vpop.f32.mrb[0].mxu0
      %v4008 = vadd.f32 %v3968, %v4007
      %v4009 = vpop.f32.mrb[0].mxu0
      %v4010 = vpop.f32.mrb[0].mxu0
      %v4011 = vpop.f32.mrb[0].mxu0
      %4012 = vdwg.mxu0
      %4013 = vmatprep.subr.bf16.mxu0 0
      %4014 = vmatpush1.bf16.msra.mxu0 %v2861
      %4015 = vmatprep.subr.bf16.mxu0 0
      %4016 = vmatpush1.bf16.msra.mxu0 %v2862
      %4017 = vmatprep.subr.bf16.mxu0 0
      %4018 = vmatpush1.bf16.msra.mxu0 %v2863
      %4019 = vmatprep.subr.bf16.mxu0 0
      %4020 = vmatpush1.bf16.msra.mxu0 %v2864
      %4021 = vmatprep.subr.bf16.mxu0 0
      %4022 = vmatpush1.bf16.msra.mxu0 %v2865
      %4023 = vmatprep.subr.bf16.mxu0 0
      %4024 = vmatpush1.bf16.msra.mxu0 %v2866
      %4025 = vmatprep.subr.bf16.mxu0 0
      %4026 = vmatpush1.bf16.msra.mxu0 %v2867
      %4027 = vmatprep.subr.bf16.mxu0 0
      %4028 = vmatpush1.bf16.msra.mxu0 %v2868
      %4029 = vmatprep.subr.bf16.mxu0 0
      %4030 = vmatpush1.bf16.msra.mxu0 %v2869
      %4031 = vmatprep.subr.bf16.mxu0 0
      %4032 = vmatpush1.bf16.msra.mxu0 %v2870
      %4033 = vmatprep.subr.bf16.mxu0 0
      %4034 = vmatpush1.bf16.msra.mxu0 %v2871
      %4035 = vmatprep.subr.bf16.mxu0 0
      %4036 = vmatpush1.bf16.msra.mxu0 %v2872
      %4037 = vmatprep.subr.bf16.mxu0 0
      %4038 = vmatpush1.bf16.msra.mxu0 %v2873
      %4039 = vmatprep.subr.bf16.mxu0 0
      %4040 = vmatpush1.bf16.msra.mxu0 %v2874
      %4041 = vmatprep.subr.bf16.mxu0 0
      %4042 = vmatpush1.bf16.msra.mxu0 %v2875
      %4043 = vmatprep.subr.bf16.mxu0 0
      %4044 = vmatpush1.bf16.msra.mxu0 %v2876
      %4045 = vmatprep.mubr.bf16.mxu0 %v524
      %4046 = vmatmul.mubr.bf16.gmra.mrb[0].mxu0 %v523
      %v4047 = vpop.f32.mrb[0].mxu0
      %v4048 = vadd.f32 %v4008, %v4047
      %v4049 = vpop.f32.mrb[0].mxu0
      %v4050 = vpop.f32.mrb[0].mxu0
      %v4051 = vpop.f32.mrb[0].mxu0
      %4052 = vdwg.mxu0
      %v4053 = vadd.f32 %v240, %v4048
      %vm4054 = vcmask 812032
      %4055 = vst.msk [vmem:[#allocation2] sm:$0x3] %vm4054, %v4053
      %p4056 = scmp.eq.s32.totalorder %s19, 6
      // Predicated region
      $region37: #{convnet_forward.8} parent=31 // pred_check
        %p4057 = pneg %p4056
      $region38: #{convnet_forward.8} parent=31 // pred_check_branch
        %4059 = sbr.rel (%p4057) target = $region40
      $region39: #{convnet_forward.8} parent=31 // pred_region
        %v4060 = vld [vmem:[#allocation2] sm:$0x3]
        %v4061 = vld [vmem:[%s228] sm:$0x1]
        %v4063 = vlaneseq
        %v4064 = vshrl.u32 %v4063, 7
        %v4065 = vsub.s32 0, %v4064
        %v4066 = vrot.slane %v4061, %v4065
        %v4068 = vadd.f32 %v4060, %v4066
        %v4069 = vmax.f32 %v4068, 0.0
        %4070 = vst.msk [vmem:[%s232] sm:$0x3] %vm4054, %v4069
      $region40: #{convnet_forward.8} parent=31 // pred_fallthru
        _
      %p4071 = scmp.lt.s32.totalorder %s18, 1
      %s4072 = scalar_select %p4071, %s18, 1
      %s4073 = smul.addr %s4072, 2
      %s4074 = scalar_lea.vmem %s3, %s4073
      // Predicated region
      $region41: #{convnet_forward.8} parent=31 // pred_check
        %p4075 = pneg %p124
      $region42: #{convnet_forward.8} parent=31 // pred_check_branch
        %4077 = sbr.rel (%p4075) target = $region44
      $region43: #{convnet_forward.8} parent=31 // pred_region
        _
      $region44: #{convnet_forward.8} parent=31 // pred_fallthru
        _
    $region32: #{convnet_forward.8} parent=5 // pred_fallthru
      _
    %p4078 = scmp.le.s32.totalorder 2, %s9
    // Predicated region
    $region45: #{convnet_forward.8} parent=5 // pred_check
      %p4079 = pneg %p4078
    $region46: #{convnet_forward.8} parent=5 // pred_check_branch
      %4081 = sbr.rel (%p4079) target = $region48
    $region47: #{convnet_forward.8} parent=5 // pred_region
      %s4082 = ssub.s32 %s9, 2
      // Predicated region
      $region49: #{convnet_forward.8} parent=47 // pred_check
        %p4083 = pneg %p130
      $region50: #{convnet_forward.8} parent=47 // pred_check_branch
        %4085 = sbr.rel (%p4083) target = $region52
      $region51: #{convnet_forward.8} parent=47 // pred_region
        %p4086 = scmp.lt.s32.totalorder %s20, 1
        %s4087 = scalar_select %p4086, %s20, 1
        %s4088 = smul.addr %s4087, 2
        %s4089 = scalar_lea.vmem %s3, %s4088
      $region52: #{convnet_forward.8} parent=47 // pred_fallthru
        _
    $region48: #{convnet_forward.8} parent=5 // pred_fallthru
      _
  $region6: #{convnet_forward.8} parent=0 // loop_footer
    %s13 = sadd.s32 1, %s9
  $region7: #{convnet_forward.8} parent=0 // loop_footer_branch
    %8 = sbr.rel target = $region3
  $region8: #{convnet_forward.8} parent=0 // loop_exit
    _

// kernel: convnet_forward.9
$region0: #{convnet_forward.9}
  #allocation0 [shape = 'u32[]', space=smem, size = 0x4, offset = 0x4, fixed_abs, tag = 'smem constant byte address 0x4 - core index']
  #allocation1 [shape = 'u32[144,128]{1,0:T(1,128)}', space=vmem, size = 0x12000, scoped, tag = 'internal scratch']
  #allocation2 [shape = 'f32[1,1]{1,0:T(1,128)S(1)}', space=vmem, size = 0x200, scoped, tag = 'scoped memory for convnet_forward.9']
  %s0 = inlined_call_operand.vmem [shape: f32[2,2,100], index: 0, kind: input, shape index: {}]
  %s1 = inlined_call_operand.vmem [shape: f32[2,100,100], index: 1, kind: input, shape index: {}]
  %s2 = inlined_call_operand.vmem [shape: f32[1,100], index: 2, kind: input, shape index: {}]
  %s3 = inlined_call_operand.vmem [shape: f32[100,1], index: 3, kind: input, shape index: {}]
  %s4 = inlined_call_operand.<no memory space> [shape: f32[1,1], index: 4, kind: input, shape index: {}]
  %s5 = inlined_call_operand.vmem [shape: f32[2,1], index: 5, kind: output, shape index: {}]
  %s6 = sld [smem:[#allocation0]]
  $region30: #{convnet_forward.9} parent=0
    _
  %s8 = ssub.s32 1, %s6
  %s9 = scalar_select 0, %s8, %s6
  %v10 = vstv %s4
  %11 = vst [vmem:[#allocation2] sm:$0x1] %v10
  // Predicated region
  $region2: #{convnet_forward.9} parent=0 // pred_check
    _
  $region3: #{convnet_forward.9} parent=0 // pred_check_branch
    %13 = sbr.rel (0) target = $region5
  $region4: #{convnet_forward.9} parent=0 // pred_region
    _
  $region5: #{convnet_forward.9} parent=0 // pred_fallthru
    _
  // Predicated region
  $region6: #{convnet_forward.9} parent=0 // pred_check
    _
  $region7: #{convnet_forward.9} parent=0 // pred_check_branch
    %15 = sbr.rel (0) target = $region9
  $region8: #{convnet_forward.9} parent=0 // pred_region
    _
  $region9: #{convnet_forward.9} parent=0 // pred_fallthru
    _
  // Predicated region
  $region10: #{convnet_forward.9} parent=0 // pred_check
    _
  $region11: #{convnet_forward.9} parent=0 // pred_check_branch
    %17 = sbr.rel (0) target = $region13
  $region12: #{convnet_forward.9} parent=0 // pred_region
    _
  $region13: #{convnet_forward.9} parent=0 // pred_fallthru
    _
  // Predicated region
  $region14: #{convnet_forward.9} parent=0 // pred_check
    _
  $region15: #{convnet_forward.9} parent=0 // pred_check_branch
    %19 = sbr.rel (0) target = $region17
  $region16: #{convnet_forward.9} parent=0 // pred_region
    _
  $region17: #{convnet_forward.9} parent=0 // pred_fallthru
    _
  // Predicated region
  $region18: #{convnet_forward.9} parent=0 // pred_check
    _
  $region19: #{convnet_forward.9} parent=0 // pred_check_branch
    %21 = sbr.rel (0) target = $region21
  $region20: #{convnet_forward.9} parent=0 // pred_region
    _
  $region21: #{convnet_forward.9} parent=0 // pred_fallthru
    _
  %v22 = vld [vmem:[%s2] sm:$0x1]
  %v23 = vld [vmem:[%s0] sm:$0x3]
  %v24 = vld [vmem:[%s1] sm:$0xff]
  %v25 = vld [vmem:[%s1 + $0x8] sm:$0xff]
  %v26 = vld [vmem:[%s1 + $0x10] sm:$0xff]
  %v27 = vld [vmem:[%s1 + $0x18] sm:$0xff]
  %v28 = vld [vmem:[%s1 + $0x20] sm:$0xff]
  %v29 = vld [vmem:[%s1 + $0x28] sm:$0xff]
  %v30 = vld [vmem:[%s1 + $0x30] sm:$0xff]
  %v31 = vld [vmem:[%s1 + $0x38] sm:$0xff]
  %v32 = vld [vmem:[%s1 + $0x40] sm:$0xff]
  %v33 = vld [vmem:[%s1 + $0x48] sm:$0xff]
  %v34 = vld [vmem:[%s1 + $0x50] sm:$0xff]
  %v35 = vld [vmem:[%s1 + $0x58] sm:$0xff]
  %v36 = vld [vmem:[%s1 + $0x60] sm:$0xf]
  %vm37 = vcmask 818176
  %v39 = vsel %vm37, %v23, 0
  %vm41 = vcmask 1043456
  %v43 = vsel %vm41, %v36, 0
  %45 = vmatprep.subr.mxu0 0.0
  %46 = vmatpush1.msra.mxu0 %v24
  %47 = vmatprep.subr.mxu0 0.0
  %48 = vmatpush1.msra.mxu0 %v25
  %49 = vmatprep.subr.mxu0 0.0
  %50 = vmatpush1.msra.mxu0 %v26
  %51 = vmatprep.subr.mxu0 0.0
  %52 = vmatpush1.msra.mxu0 %v27
  %53 = vmatprep.subr.mxu0 0.0
  %54 = vmatpush1.msra.mxu0 %v28
  %55 = vmatprep.subr.mxu0 0.0
  %56 = vmatpush1.msra.mxu0 %v29
  %57 = vmatprep.subr.mxu0 0.0
  %58 = vmatpush1.msra.mxu0 %v30
  %59 = vmatprep.subr.mxu0 0.0
  %60 = vmatpush1.msra.mxu0 %v31
  %61 = vmatprep.subr.mxu0 0.0
  %62 = vmatpush1.msra.mxu0 %v32
  %63 = vmatprep.subr.mxu0 0.0
  %64 = vmatpush1.msra.mxu0 %v33
  %65 = vmatprep.subr.mxu0 0.0
  %66 = vmatpush1.msra.mxu0 %v34
  %67 = vmatprep.subr.mxu0 0.0
  %68 = vmatpush1.msra.mxu0 %v35
  %69 = vmatprep.subr.mxu0 0.0
  %70 = vmatpush1.msra.mxu0 %v43
  %71 = vmatprep.subr.mxu0 0.0
  %72 = vmatpush1.msra.mxu0 0.0
  %73 = vmatprep.subr.mxu0 0.0
  %74 = vmatpush1.msra.mxu0 0.0
  %75 = vmatprep.subr.mxu0 0.0
  %76 = vmatpush1.msra.mxu0 0.0
  %77 = vmatprep.subr.mxu0 0.0
  %78 = vmatpush1.msra.mxu0 0.0
  %79 = vmatprep.subr.mxu0 0.0
  %80 = vmatpush1.msra.mxu0 0.0
  %81 = vmatprep.subr.mxu0 0.0
  %82 = vmatpush1.msra.mxu0 0.0
  %83 = vmatprep.subr.mxu0 0.0
  %84 = vmatpush1.msra.mxu0 0.0
  %85 = vmatprep.subr.mxu0 0.0
  %86 = vmatpush1.msra.mxu0 0.0
  %87 = vmatprep.subr.mxu0 0.0
  %88 = vmatpush1.msra.mxu0 0.0
  %89 = vmatprep.subr.mxu0 0.0
  %90 = vmatpush1.msra.mxu0 0.0
  %91 = vmatprep.subr.mxu0 0.0
  %92 = vmatpush1.msra.mxu0 0.0
  %93 = vmatprep.subr.mxu0 0.0
  %94 = vmatpush1.msra.mxu0 0.0
  %95 = vmatprep.subr.mxu0 0.0
  %96 = vmatpush1.msra.mxu0 0.0
  %97 = vmatprep.subr.mxu0 0.0
  %98 = vmatpush1.msra.mxu0 0.0
  %99 = vmatprep.subr.mxu0 0.0
  %100 = vmatpush1.msra.mxu0 0.0
  %101 = vmatprep.subr.mxu0 0.0
  %102 = vmatpush1.msra.mxu0 0.0
  %103 = vmatprep.subr.mxu0 0.0
  %104 = vmatpush1.msra.mxu0 0.0
  %105 = vmatprep.subr.mxu0 0.0
  %106 = vmatpush1.msra.mxu0 0.0
  %107 = vmatprep.subr.mxu0 0.0
  %108 = vmatpush1.msra.mxu0 0.0
  %109 = vmatprep.mubr.f32.mxu0 0.0
  %110 = vmatmul.mubr.f32.gmra.mrb[0].mxu0 %v39
  %v111 = vpop.f32.mrb[0].mxu0
  %v112 = vadd.f32 0.0, %v111
  %v113 = vpop.f32.mrb[0].mxu0
  %114 = vdwg.mxu0
  %v116 = vlaneseq
  %v117 = vshrl.u32 %v116, 7
  %v118 = vsub.s32 0, %v117
  %v119 = vrot.slane %v22, %v118
  %v121 = vadd.f32 %v119, %v112
  %s122 = scalar_lea.vmem %s0, 2
  %v123 = vld [vmem:[%s122] sm:$0x3]
  %s124 = scalar_lea.vmem %s1, 104
  %v125 = vld [vmem:[%s124] sm:$0xff]
  %v126 = vld [vmem:[%s124 + $0x8] sm:$0xff]
  %v127 = vld [vmem:[%s124 + $0x10] sm:$0xff]
  %v128 = vld [vmem:[%s124 + $0x18] sm:$0xff]
  %v129 = vld [vmem:[%s124 + $0x20] sm:$0xff]
  %v130 = vld [vmem:[%s124 + $0x28] sm:$0xff]
  %v131 = vld [vmem:[%s124 + $0x30] sm:$0xff]
  %v132 = vld [vmem:[%s124 + $0x38] sm:$0xff]
  %v133 = vld [vmem:[%s124 + $0x40] sm:$0xff]
  %v134 = vld [vmem:[%s124 + $0x48] sm:$0xff]
  %v135 = vld [vmem:[%s124 + $0x50] sm:$0xff]
  %v136 = vld [vmem:[%s124 + $0x58] sm:$0xff]
  %v137 = vld [vmem:[%s124 + $0x60] sm:$0xf]
  %v139 = vsel %vm37, %v123, 0
  %v142 = vsel %vm41, %v137, 0
  %144 = vmatprep.subr.mxu0 0.0
  %145 = vmatpush1.msra.mxu0 %v125
  %146 = vmatprep.subr.mxu0 0.0
  %147 = vmatpush1.msra.mxu0 %v126
  %148 = vmatprep.subr.mxu0 0.0
  %149 = vmatpush1.msra.mxu0 %v127
  %150 = vmatprep.subr.mxu0 0.0
  %151 = vmatpush1.msra.mxu0 %v128
  %152 = vmatprep.subr.mxu0 0.0
  %153 = vmatpush1.msra.mxu0 %v129
  %154 = vmatprep.subr.mxu0 0.0
  %155 = vmatpush1.msra.mxu0 %v130
  %156 = vmatprep.subr.mxu0 0.0
  %157 = vmatpush1.msra.mxu0 %v131
  %158 = vmatprep.subr.mxu0 0.0
  %159 = vmatpush1.msra.mxu0 %v132
  %160 = vmatprep.subr.mxu0 0.0
  %161 = vmatpush1.msra.mxu0 %v133
  %162 = vmatprep.subr.mxu0 0.0
  %163 = vmatpush1.msra.mxu0 %v134
  %164 = vmatprep.subr.mxu0 0.0
  %165 = vmatpush1.msra.mxu0 %v135
  %166 = vmatprep.subr.mxu0 0.0
  %167 = vmatpush1.msra.mxu0 %v136
  %168 = vmatprep.subr.mxu0 0.0
  %169 = vmatpush1.msra.mxu0 %v142
  %170 = vmatprep.subr.mxu0 0.0
  %171 = vmatpush1.msra.mxu0 0.0
  %172 = vmatprep.subr.mxu0 0.0
  %173 = vmatpush1.msra.mxu0 0.0
  %174 = vmatprep.subr.mxu0 0.0
  %175 = vmatpush1.msra.mxu0 0.0
  %176 = vmatprep.subr.mxu0 0.0
  %177 = vmatpush1.msra.mxu0 0.0
  %178 = vmatprep.subr.mxu0 0.0
  %179 = vmatpush1.msra.mxu0 0.0
  %180 = vmatprep.subr.mxu0 0.0
  %181 = vmatpush1.msra.mxu0 0.0
  %182 = vmatprep.subr.mxu0 0.0
  %183 = vmatpush1.msra.mxu0 0.0
  %184 = vmatprep.subr.mxu0 0.0
  %185 = vmatpush1.msra.mxu0 0.0
  %186 = vmatprep.subr.mxu0 0.0
  %187 = vmatpush1.msra.mxu0 0.0
  %188 = vmatprep.subr.mxu0 0.0
  %189 = vmatpush1.msra.mxu0 0.0
  %190 = vmatprep.subr.mxu0 0.0
  %191 = vmatpush1.msra.mxu0 0.0
  %192 = vmatprep.subr.mxu0 0.0
  %193 = vmatpush1.msra.mxu0 0.0
  %194 = vmatprep.subr.mxu0 0.0
  %195 = vmatpush1.msra.mxu0 0.0
  %196 = vmatprep.subr.mxu0 0.0
  %197 = vmatpush1.msra.mxu0 0.0
  %198 = vmatprep.subr.mxu0 0.0
  %199 = vmatpush1.msra.mxu0 0.0
  %200 = vmatprep.subr.mxu0 0.0
  %201 = vmatpush1.msra.mxu0 0.0
  %202 = vmatprep.subr.mxu0 0.0
  %203 = vmatpush1.msra.mxu0 0.0
  %204 = vmatprep.subr.mxu0 0.0
  %205 = vmatpush1.msra.mxu0 0.0
  %206 = vmatprep.subr.mxu0 0.0
  %207 = vmatpush1.msra.mxu0 0.0
  %208 = vmatprep.mubr.f32.mxu0 0.0
  %209 = vmatmul.mubr.f32.gmra.mrb[0].mxu0 %v139
  %v210 = vpop.f32.mrb[0].mxu0
  %v211 = vadd.f32 0.0, %v210
  %v212 = vpop.f32.mrb[0].mxu0
  %213 = vdwg.mxu0
  %v214 = vadd.f32 %v121, %v211
  %v215 = vmax.f32 %v214, 0.0
  %v216 = vld [vmem:[%s3] sm:$0xff]
  %v217 = vld [vmem:[%s3 + $0x8] sm:$0xff]
  %v218 = vld [vmem:[%s3 + $0x10] sm:$0xff]
  %v219 = vld [vmem:[%s3 + $0x18] sm:$0xff]
  %v220 = vld [vmem:[%s3 + $0x20] sm:$0xff]
  %v221 = vld [vmem:[%s3 + $0x28] sm:$0xff]
  %v222 = vld [vmem:[%s3 + $0x30] sm:$0xff]
  %v223 = vld [vmem:[%s3 + $0x38] sm:$0xff]
  %v224 = vld [vmem:[%s3 + $0x40] sm:$0xff]
  %v225 = vld [vmem:[%s3 + $0x48] sm:$0xff]
  %v226 = vld [vmem:[%s3 + $0x50] sm:$0xff]
  %v227 = vld [vmem:[%s3 + $0x58] sm:$0xff]
  %v228 = vld [vmem:[%s3 + $0x60] sm:$0xf]
  %v229 = vld [vmem:[#allocation2] sm:$0x1]
  %v231 = vlaneseq
  %v232 = vshrl.u32 %v231, 7
  %v233 = vsub.s32 0, %v232
  %v234 = vrot.slane %v229, %v233
  %v237 = vsel %vm37, %v215, 0
  %v240 = vsel %vm41, %v228, 0
  %242 = vmatprep.subr.mxu0 0.0
  %243 = vmatpush1.msra.mxu0 %v216
  %244 = vmatprep.subr.mxu0 0.0
  %245 = vmatpush1.msra.mxu0 %v217
  %246 = vmatprep.subr.mxu0 0.0
  %247 = vmatpush1.msra.mxu0 %v218
  %248 = vmatprep.subr.mxu0 0.0
  %249 = vmatpush1.msra.mxu0 %v219
  %250 = vmatprep.subr.mxu0 0.0
  %251 = vmatpush1.msra.mxu0 %v220
  %252 = vmatprep.subr.mxu0 0.0
  %253 = vmatpush1.msra.mxu0 %v221
  %254 = vmatprep.subr.mxu0 0.0
  %255 = vmatpush1.msra.mxu0 %v222
  %256 = vmatprep.subr.mxu0 0.0
  %257 = vmatpush1.msra.mxu0 %v223
  %258 = vmatprep.subr.mxu0 0.0
  %259 = vmatpush1.msra.mxu0 %v224
  %260 = vmatprep.subr.mxu0 0.0
  %261 = vmatpush1.msra.mxu0 %v225
  %262 = vmatprep.subr.mxu0 0.0
  %263 = vmatpush1.msra.mxu0 %v226
  %264 = vmatprep.subr.mxu0 0.0
  %265 = vmatpush1.msra.mxu0 %v227
  %266 = vmatprep.subr.mxu0 0.0
  %267 = vmatpush1.msra.mxu0 %v240
  %268 = vmatprep.subr.mxu0 0.0
  %269 = vmatpush1.msra.mxu0 0.0
  %270 = vmatprep.subr.mxu0 0.0
  %271 = vmatpush1.msra.mxu0 0.0
  %272 = vmatprep.subr.mxu0 0.0
  %273 = vmatpush1.msra.mxu0 0.0
  %274 = vmatprep.subr.mxu0 0.0
  %275 = vmatpush1.msra.mxu0 0.0
  %276 = vmatprep.subr.mxu0 0.0
  %277 = vmatpush1.msra.mxu0 0.0
  %278 = vmatprep.subr.mxu0 0.0
  %279 = vmatpush1.msra.mxu0 0.0
  %280 = vmatprep.subr.mxu0 0.0
  %281 = vmatpush1.msra.mxu0 0.0
  %282 = vmatprep.subr.mxu0 0.0
  %283 = vmatpush1.msra.mxu0 0.0
  %284 = vmatprep.subr.mxu0 0.0
  %285 = vmatpush1.msra.mxu0 0.0
  %286 = vmatprep.subr.mxu0 0.0
  %287 = vmatpush1.msra.mxu0 0.0
  %288 = vmatprep.subr.mxu0 0.0
  %289 = vmatpush1.msra.mxu0 0.0
  %290 = vmatprep.subr.mxu0 0.0
  %291 = vmatpush1.msra.mxu0 0.0
  %292 = vmatprep.subr.mxu0 0.0
  %293 = vmatpush1.msra.mxu0 0.0
  %294 = vmatprep.subr.mxu0 0.0
  %295 = vmatpush1.msra.mxu0 0.0
  %296 = vmatprep.subr.mxu0 0.0
  %297 = vmatpush1.msra.mxu0 0.0
  %298 = vmatprep.subr.mxu0 0.0
  %299 = vmatpush1.msra.mxu0 0.0
  %300 = vmatprep.subr.mxu0 0.0
  %301 = vmatpush1.msra.mxu0 0.0
  %302 = vmatprep.subr.mxu0 0.0
  %303 = vmatpush1.msra.mxu0 0.0
  %304 = vmatprep.subr.mxu0 0.0
  %305 = vmatpush1.msra.mxu0 0.0
  %306 = vmatprep.mubr.f32.mxu0 0.0
  %307 = vmatmul.mubr.f32.gmra.mrb[0].mxu0 %v237
  %v308 = vpop.f32.mrb[0].mxu0
  %v309 = vadd.f32 %v234, %v308
  %v310 = vpop.f32.mrb[0].mxu0
  %311 = vdwg.mxu0
  %vm312 = vcmask 1024
  %313 = vst.msk [vmem:[%s5] sm:$0x3] %vm312, %v309
  // Predicated region
  $region22: #{convnet_forward.9} parent=0 // pred_check
    _
  $region23: #{convnet_forward.9} parent=0 // pred_check_branch
    %315 = sbr.rel (0) target = $region25
  $region24: #{convnet_forward.9} parent=0 // pred_region
    _
  $region25: #{convnet_forward.9} parent=0 // pred_fallthru
    _
  // Predicated region
  $region26: #{convnet_forward.9} parent=0 // pred_check
    _
  $region27: #{convnet_forward.9} parent=0 // pred_check_branch
    %317 = sbr.rel (0) target = $region29
  $region28: #{convnet_forward.9} parent=0 // pred_region
    _
  $region29: #{convnet_forward.9} parent=0 // pred_fallthru
    _

</llo_original>
